<compile_context>
chip_gen: v5e
topology: v5e:2x2
jax: 0.10.0
libtpu: 0.0.40
codegen_flags: <defaults>
</compile_context>

<pallas_src>
import jax
import jax.numpy as jnp
from jax.experimental import pallas as pl
from jax.experimental.pallas import tpu as pltpu

LAYER_DIMS = ((3072, 1024), (1024, 512), (512, 256), (256, 1))
OUT_PAD = 128  # pad final 1-wide output to a full lane group


def mlp_kernel(x_ref,
               w1_ref, b1_ref,
               w2_ref, b2_ref,
               w3_ref, b3_ref,
               w4_ref, b4_ref,
               o_ref):
    # x arrives bf16; all matmuls feed the MXU with bf16 operands and f32
    # accumulation (preferred_element_type). Bias add / ReLU / sigmoid in f32.
    h = x_ref[...]                                             # (tm, 3072) bf16
    h = jnp.dot(h, w1_ref[...], preferred_element_type=jnp.float32)
    h = jnp.maximum(h + b1_ref[...], 0.0)

    h = jnp.dot(h.astype(jnp.bfloat16), w2_ref[...],
                preferred_element_type=jnp.float32)
    h = jnp.maximum(h + b2_ref[...], 0.0)

    h = jnp.dot(h.astype(jnp.bfloat16), w3_ref[...],
                preferred_element_type=jnp.float32)
    h = jnp.maximum(h + b3_ref[...], 0.0)

    z = jnp.dot(h.astype(jnp.bfloat16), w4_ref[...],           # (tm, 128) padded
                preferred_element_type=jnp.float32)
    o_ref[...] = jax.nn.sigmoid(z + b4_ref[...])


def _round_up(v, m):
    return ((v + m - 1) // m) * m


def discriminator_simple(x, params, *, block_b=512):
    """x: (B, 3, 32, 32) or anything reshapeable to (-1, 3072). Returns (B, 1) f32."""
    x2d = x.reshape(-1, 3072).astype(jnp.bfloat16)   # stream x in bf16
    B = x2d.shape[0]

    # Batch tile: multiple of 16 (bf16 sublane packing), capped at block_b, and
    # sized ~ceil(B/2) so there are >=2 grid tiles whenever the batch allows it
    # (lets v7x's two TensorCores split the "parallel" grid axis).
    tm = max(16, min(block_b, _round_up(-(-B // 2), 16)))
    Bp = _round_up(B, tm)
    if Bp != B:
        x2d = jnp.pad(x2d, ((0, Bp - B), (0, 0)))

    (w1, b1), (w2, b2), (w3, b3), (w4, b4) = params

    # Lane-dense final layer: pad 256->1 weight/bias out to 128 columns so the
    # output tile stores full 128-lane vregs; column 0 is the real logit.
    w4p = jnp.pad(w4, ((0, 0), (0, OUT_PAD - w4.shape[1])))
    b4p = jnp.pad(b4, ((0, 0), (0, OUT_PAD - b4.shape[1])))

    def resident(arr):
        # Whole-array block, constant block index (DMA'd once, VMEM-resident),
        # single-buffered: no need for a second pipeline buffer on constants.
        return pl.BlockSpec(arr.shape, lambda i: (0, 0),
                            pipeline_mode=pl.Buffered(1))

    in_specs = [
        pl.BlockSpec((tm, 3072), lambda i: (i, 0)),   # batch-tiled bf16 input
        resident(w1), resident(b1),
        resident(w2), resident(b2),
        resident(w3), resident(b3),
        resident(w4p), resident(b4p),
    ]
    out_specs = pl.BlockSpec((tm, OUT_PAD), lambda i: (i, 0))

    flops = 2 * Bp * sum(k * n for k, n in LAYER_DIMS)
    weight_bytes = (sum(int(w.size) * w.dtype.itemsize + int(b.size) * b.dtype.itemsize
                        for w, b in params[:3])
                    + int(w4p.size) * w4p.dtype.itemsize
                    + int(b4p.size) * b4p.dtype.itemsize)
    bytes_accessed = weight_bytes + int(x2d.size) * 2 + Bp * OUT_PAD * 4

    out = pl.pallas_call(
        mlp_kernel,
        out_shape=jax.ShapeDtypeStruct((Bp, OUT_PAD), jnp.float32),
        grid=(Bp // tm,),
        in_specs=in_specs,
        out_specs=out_specs,
        compiler_params=pltpu.CompilerParams(
            dimension_semantics=("parallel",),   # v7x: batch tiles split over 2 TCs
            vmem_limit_bytes=40 << 20,           # ~20 MiB real footprint + headroom
        ),
        cost_estimate=pl.CostEstimate(
            flops=flops, transcendentals=Bp * OUT_PAD,
            bytes_accessed=bytes_accessed),
    )(x2d, w1, b1, w2, b2, w3, b3, w4p, b4p)

    return out[:B, :1]


def init_params(key):
    """PyTorch-Linear-style init (uniform +-1/sqrt(fan_in)).

    Weights stored as (in_features, out_features) in bf16 (halved HBM traffic);
    biases kept f32, shape (1, out) for clean lane layout / broadcast.
    """
    params = []
    for i, (fan_in, fan_out) in enumerate(LAYER_DIMS):
        kw, kb = jax.random.split(jax.random.fold_in(key, i))
        bound = 1.0 / jnp.sqrt(float(fan_in))
        w = jax.random.uniform(kw, (fan_in, fan_out), jnp.float32, -bound, bound)
        b = jax.random.uniform(kb, (1, fan_out), jnp.float32, -bound, bound)
        params.append((w.astype(jnp.bfloat16), b))
    return params


def reference_forward(x, params):
    """Pure-JAX reference with identical numerics policy (bf16 operands, f32 accum)."""
    h = x.reshape(-1, 3072).astype(jnp.bfloat16)
    n_layers = len(params)
    for i, (w, b) in enumerate(params):
        z = jnp.dot(h.astype(jnp.bfloat16), w,
                    preferred_element_type=jnp.float32) + b
        h = jnp.maximum(z, 0.0) if i < n_layers - 1 else jax.nn.sigmoid(z)
    return h


if __name__ == "__main__":
    key = jax.random.PRNGKey(0)
    k_x, k_p = jax.random.split(key)

    # NCHW input, 3*32*32 = 3072 features per sample, batch = 2
    x = jax.random.normal(k_x, (2, 3, 32, 32), jnp.float32)
    params = init_params(k_p)

    out = discriminator_simple(x, params)
    out = jax.block_until_ready(out)

    ref = reference_forward(x, params)
    assert out.shape == (2, 1), out.shape
    assert jnp.allclose(out, ref, atol=2e-3, rtol=2e-3), "mismatch vs reference"

    print("KERNEL_OK")
</pallas_src>

<mosaic_0001>
module attributes {stable_mosaic.version = 11 : i64} {
  func.func @mlp_kernel(%arg0: i32, %arg1: memref<16x3072xbf16, #tpu.memory_space<vmem>>, %arg2: memref<3072x1024xbf16, #tpu.memory_space<vmem>>, %arg3: memref<1x1024xf32, #tpu.memory_space<vmem>>, %arg4: memref<1024x512xbf16, #tpu.memory_space<vmem>>, %arg5: memref<1x512xf32, #tpu.memory_space<vmem>>, %arg6: memref<512x256xbf16, #tpu.memory_space<vmem>>, %arg7: memref<1x256xf32, #tpu.memory_space<vmem>>, %arg8: memref<256x128xbf16, #tpu.memory_space<vmem>>, %arg9: memref<1x128xf32, #tpu.memory_space<vmem>>, %arg10: memref<16x128xf32, #tpu.memory_space<vmem>>) attributes {dimension_semantics = [#tpu.dimension_semantics<parallel>], iteration_bounds = array<i64: 1>, scalar_prefetch = 0 : i64, scratch_operands = 0 : i64, tpu.core_type = #tpu.core_type<tc>, window_params = [{transform_indices = @transform_0, window_bounds = array<i64: 16, 3072>}, {pipeline_mode = #tpu.pipeline_mode<synchronous>, transform_indices = @transform_1, window_bounds = array<i64: 3072, 1024>}, {pipeline_mode = #tpu.pipeline_mode<synchronous>, transform_indices = @transform_2, window_bounds = array<i64: 1, 1024>}, {pipeline_mode = #tpu.pipeline_mode<synchronous>, transform_indices = @transform_3, window_bounds = array<i64: 1024, 512>}, {pipeline_mode = #tpu.pipeline_mode<synchronous>, transform_indices = @transform_4, window_bounds = array<i64: 1, 512>}, {pipeline_mode = #tpu.pipeline_mode<synchronous>, transform_indices = @transform_5, window_bounds = array<i64: 512, 256>}, {pipeline_mode = #tpu.pipeline_mode<synchronous>, transform_indices = @transform_6, window_bounds = array<i64: 1, 256>}, {pipeline_mode = #tpu.pipeline_mode<synchronous>, transform_indices = @transform_7, window_bounds = array<i64: 256, 128>}, {pipeline_mode = #tpu.pipeline_mode<synchronous>, transform_indices = @transform_8, window_bounds = array<i64: 1, 128>}, {transform_indices = @transform_9, window_bounds = array<i64: 16, 128>}]} {
    %c0 = arith.constant 0 : index
    %c0_0 = arith.constant 0 : index
    %0 = vector.load %arg1[%c0, %c0_0] : memref<16x3072xbf16, #tpu.memory_space<vmem>>, vector<16x3072xbf16>
    %c0_1 = arith.constant 0 : index
    %c0_2 = arith.constant 0 : index
    %1 = vector.load %arg2[%c0_1, %c0_2] : memref<3072x1024xbf16, #tpu.memory_space<vmem>>, vector<3072x1024xbf16>
    %cst = arith.constant dense<0.000000e+00> : vector<16x1024xf32>
    %2 = tpu.matmul %0, %1, %cst {dimension_numbers = #tpu.dot_dimension_numbers<[1], [0], [0], [1], [0, 0, 1, 1], [], []>} : vector<16x3072xbf16>, vector<3072x1024xbf16>, vector<16x1024xf32> -> vector<16x1024xf32>
    %c0_3 = arith.constant 0 : index
    %c0_4 = arith.constant 0 : index
    %3 = vector.load %arg3[%c0_3, %c0_4] : memref<1x1024xf32, #tpu.memory_space<vmem>>, vector<1x1024xf32>
    %4 = vector.broadcast %3 : vector<1x1024xf32> to vector<16x1024xf32>
    %5 = arith.addf %2, %4 : vector<16x1024xf32>
    %cst_5 = arith.constant 0.000000e+00 : f32
    %6 = vector.broadcast %cst_5 : f32 to vector<16x1024xf32>
    %7 = arith.maximumf %5, %6 : vector<16x1024xf32>
    %8 = arith.truncf %7 : vector<16x1024xf32> to vector<16x1024xbf16>
    %c0_6 = arith.constant 0 : index
    %c0_7 = arith.constant 0 : index
    %9 = vector.load %arg4[%c0_6, %c0_7] : memref<1024x512xbf16, #tpu.memory_space<vmem>>, vector<1024x512xbf16>
    %cst_8 = arith.constant dense<0.000000e+00> : vector<16x512xf32>
    %10 = tpu.matmul %8, %9, %cst_8 {dimension_numbers = #tpu.dot_dimension_numbers<[1], [0], [0], [1], [0, 0, 1, 1], [], []>} : vector<16x1024xbf16>, vector<1024x512xbf16>, vector<16x512xf32> -> vector<16x512xf32>
    %c0_9 = arith.constant 0 : index
    %c0_10 = arith.constant 0 : index
    %11 = vector.load %arg5[%c0_9, %c0_10] : memref<1x512xf32, #tpu.memory_space<vmem>>, vector<1x512xf32>
    %12 = vector.broadcast %11 : vector<1x512xf32> to vector<16x512xf32>
    %13 = arith.addf %10, %12 : vector<16x512xf32>
    %cst_11 = arith.constant 0.000000e+00 : f32
    %14 = vector.broadcast %cst_11 : f32 to vector<16x512xf32>
    %15 = arith.maximumf %13, %14 : vector<16x512xf32>
    %16 = arith.truncf %15 : vector<16x512xf32> to vector<16x512xbf16>
    %c0_12 = arith.constant 0 : index
    %c0_13 = arith.constant 0 : index
    %17 = vector.load %arg6[%c0_12, %c0_13] : memref<512x256xbf16, #tpu.memory_space<vmem>>, vector<512x256xbf16>
    %cst_14 = arith.constant dense<0.000000e+00> : vector<16x256xf32>
    %18 = tpu.matmul %16, %17, %cst_14 {dimension_numbers = #tpu.dot_dimension_numbers<[1], [0], [0], [1], [0, 0, 1, 1], [], []>} : vector<16x512xbf16>, vector<512x256xbf16>, vector<16x256xf32> -> vector<16x256xf32>
    %c0_15 = arith.constant 0 : index
    %c0_16 = arith.constant 0 : index
    %19 = vector.load %arg7[%c0_15, %c0_16] : memref<1x256xf32, #tpu.memory_space<vmem>>, vector<1x256xf32>
    %20 = vector.broadcast %19 : vector<1x256xf32> to vector<16x256xf32>
    %21 = arith.addf %18, %20 : vector<16x256xf32>
    %cst_17 = arith.constant 0.000000e+00 : f32
    %22 = vector.broadcast %cst_17 : f32 to vector<16x256xf32>
    %23 = arith.maximumf %21, %22 : vector<16x256xf32>
    %24 = arith.truncf %23 : vector<16x256xf32> to vector<16x256xbf16>
    %c0_18 = arith.constant 0 : index
    %c0_19 = arith.constant 0 : index
    %25 = vector.load %arg8[%c0_18, %c0_19] : memref<256x128xbf16, #tpu.memory_space<vmem>>, vector<256x128xbf16>
    %cst_20 = arith.constant dense<0.000000e+00> : vector<16x128xf32>
    %26 = tpu.matmul %24, %25, %cst_20 {dimension_numbers = #tpu.dot_dimension_numbers<[1], [0], [0], [1], [0, 0, 1, 1], [], []>} : vector<16x256xbf16>, vector<256x128xbf16>, vector<16x128xf32> -> vector<16x128xf32>
    %c0_21 = arith.constant 0 : index
    %c0_22 = arith.constant 0 : index
    %27 = vector.load %arg9[%c0_21, %c0_22] : memref<1x128xf32, #tpu.memory_space<vmem>>, vector<1x128xf32>
    %28 = vector.broadcast %27 : vector<1x128xf32> to vector<16x128xf32>
    %29 = arith.addf %26, %28 : vector<16x128xf32>
    %30 = arith.negf %29 : vector<16x128xf32>
    %31 = math.exp %30 : vector<16x128xf32>
    %cst_23 = arith.constant 1.000000e+00 : f32
    %32 = vector.broadcast %cst_23 : f32 to vector<16x128xf32>
    %33 = arith.addf %32, %31 : vector<16x128xf32>
    %34 = arith.divf %32, %33 : vector<16x128xf32>
    %c0_24 = arith.constant 0 : index
    %c0_25 = arith.constant 0 : index
    %35 = vector.load %arg10[%c0_24, %c0_25] : memref<16x128xf32, #tpu.memory_space<vmem>>, vector<16x128xf32>
    tpu.vector_store %arg10[%c0_24, %c0_25], %34 {strides = array<i32>} : memref<16x128xf32, #tpu.memory_space<vmem>>, vector<16x128xf32>,
    return
  }
  func.func @transform_0(%arg0: i32) -> (i32, i32) {
    %c0_i32 = arith.constant 0 : i32
    %c0_i32_0 = arith.constant 0 : i32
    return %arg0, %c0_i32 : i32, i32
  }
  func.func @transform_1(%arg0: i32) -> (i32, i32) {
    %c0_i32 = arith.constant 0 : i32
    %c0_i32_0 = arith.constant 0 : i32
    %c0_i32_1 = arith.constant 0 : i32
    return %c0_i32, %c0_i32_0 : i32, i32
  }
  func.func @transform_2(%arg0: i32) -> (i32, i32) {
    %c0_i32 = arith.constant 0 : i32
    %c0_i32_0 = arith.constant 0 : i32
    %c0_i32_1 = arith.constant 0 : i32
    return %c0_i32, %c0_i32_0 : i32, i32
  }
  func.func @transform_3(%arg0: i32) -> (i32, i32) {
    %c0_i32 = arith.constant 0 : i32
    %c0_i32_0 = arith.constant 0 : i32
    %c0_i32_1 = arith.constant 0 : i32
    return %c0_i32, %c0_i32_0 : i32, i32
  }
  func.func @transform_4(%arg0: i32) -> (i32, i32) {
    %c0_i32 = arith.constant 0 : i32
    %c0_i32_0 = arith.constant 0 : i32
    %c0_i32_1 = arith.constant 0 : i32
    return %c0_i32, %c0_i32_0 : i32, i32
  }
  func.func @transform_5(%arg0: i32) -> (i32, i32) {
    %c0_i32 = arith.constant 0 : i32
    %c0_i32_0 = arith.constant 0 : i32
    %c0_i32_1 = arith.constant 0 : i32
    return %c0_i32, %c0_i32_0 : i32, i32
  }
  func.func @transform_6(%arg0: i32) -> (i32, i32) {
    %c0_i32 = arith.constant 0 : i32
    %c0_i32_0 = arith.constant 0 : i32
    %c0_i32_1 = arith.constant 0 : i32
    return %c0_i32, %c0_i32_0 : i32, i32
  }
  func.func @transform_7(%arg0: i32) -> (i32, i32) {
    %c0_i32 = arith.constant 0 : i32
    %c0_i32_0 = arith.constant 0 : i32
    %c0_i32_1 = arith.constant 0 : i32
    return %c0_i32, %c0_i32_0 : i32, i32
  }
  func.func @transform_8(%arg0: i32) -> (i32, i32) {
    %c0_i32 = arith.constant 0 : i32
    %c0_i32_0 = arith.constant 0 : i32
    %c0_i32_1 = arith.constant 0 : i32
    return %c0_i32, %c0_i32_0 : i32, i32
  }
  func.func @transform_9(%arg0: i32) -> (i32, i32) {
    %c0_i32 = arith.constant 0 : i32
    %c0_i32_0 = arith.constant 0 : i32
    return %arg0, %c0_i32 : i32, i32
  }
}

</mosaic_0001>

<llo_original>
// kernel: tpu_custom_call.1
$region0: #{tpu_custom_call.1}
  #allocation0 [shape = 'u32[]', space=smem, size = 0x4, offset = 0x4, fixed_abs, tag = 'smem constant byte address 0x4 - core index']
  #allocation1 [shape = 'u32[72,128]{1,0:T(1,128)}', space=vmem, size = 0x9000, scoped, tag = 'internal scratch']
  %s0 = inlined_call_operand.hbm [shape: bf16[16,3072], index: 0, kind: input, shape index: {}]
  %s1 = inlined_call_operand.hbm [shape: bf16[3072,1024], index: 1, kind: input, shape index: {}]
  %s2 = inlined_call_operand.hbm [shape: f32[1,1024], index: 2, kind: input, shape index: {}]
  %s3 = inlined_call_operand.hbm [shape: bf16[1024,512], index: 3, kind: input, shape index: {}]
  %s4 = inlined_call_operand.hbm [shape: f32[1,512], index: 4, kind: input, shape index: {}]
  %s5 = inlined_call_operand.hbm [shape: bf16[512,256], index: 5, kind: input, shape index: {}]
  %s6 = inlined_call_operand.hbm [shape: f32[1,256], index: 6, kind: input, shape index: {}]
  %s7 = inlined_call_operand.hbm [shape: bf16[256,128], index: 7, kind: input, shape index: {}]
  %s8 = inlined_call_operand.hbm [shape: f32[1,128], index: 8, kind: input, shape index: {}]
  %s9 = inlined_call_operand.hbm [shape: f32[16,128], index: 9, kind: output, shape index: {}]
  %s10 = sld [smem:[#allocation0]]
  $region82: #{tpu_custom_call.1} parent=0
    _
  %s12 = ssub.s32 1, %s10
  %s13 = scalar_select 0, %s12, %s10
  $region1: #{tpu_custom_call.1} parent=0
    #allocation2 [shape = 'u8[98304]{0}', space=vmem, size = 0x18000, scoped, tag = 'input window, operand 0, single buffered']
    #allocation3 [shape = 's32[1]{0}', space=sflag, size = 0x4, scoped, tag = 'scoped memory for tpu_custom_call.1']
    #allocation4 [shape = 's32[1]{0}', space=sflag, size = 0x4, scoped, tag = 'scoped memory for tpu_custom_call.1']
    #allocation5 [shape = 'u8[6291456]{0}', space=vmem, size = 0x600000, scoped, tag = 'input window, operand 1, single buffered']
    #allocation6 [shape = 's32[1]{0}', space=sflag, size = 0x4, scoped, tag = 'scoped memory for tpu_custom_call.1']
    #allocation7 [shape = 'u8[4096]{0}', space=vmem, size = 0x1000, scoped, tag = 'input window, operand 2, single buffered']
    #allocation8 [shape = 'u8[1048576]{0}', space=vmem, size = 0x100000, scoped, tag = 'input window, operand 3, single buffered']
    #allocation9 [shape = 's32[1]{0}', space=sflag, size = 0x4, scoped, tag = 'scoped memory for tpu_custom_call.1']
    #allocation10 [shape = 'u8[2048]{0}', space=vmem, size = 0x800, scoped, tag = 'input window, operand 4, single buffered']
    #allocation11 [shape = 'u8[262144]{0}', space=vmem, size = 0x40000, scoped, tag = 'input window, operand 5, single buffered']
    #allocation12 [shape = 's32[1]{0}', space=sflag, size = 0x4, scoped, tag = 'scoped memory for tpu_custom_call.1']
    #allocation13 [shape = 'u8[1024]{0}', space=vmem, size = 0x400, scoped, tag = 'input window, operand 6, single buffered']
    #allocation14 [shape = 'u8[65536]{0}', space=vmem, size = 0x10000, scoped, tag = 'input window, operand 7, single buffered']
    #allocation15 [shape = 's32[1]{0}', space=sflag, size = 0x4, scoped, tag = 'scoped memory for tpu_custom_call.1']
    #allocation16 [shape = 'u8[512]{0}', space=vmem, size = 0x400, scoped, tag = 'input window, operand 8, single buffered']
    #allocation17 [shape = 'u8[8192]{0}', space=vmem, size = 0x2000, scoped, tag = 'output window, operand 0, single buffered']
    %14 = vsyncpa [#allocation3], 0
    %15 = vsyncpa [#allocation6], 0
    %16 = vsyncpa [#allocation9], 0
    %17 = vsyncpa [#allocation12], 0
    %18 = vsyncpa [#allocation15], 0
    %19 = vsyncpa [#allocation4], 0
    // Predicated region
    $region2: #{tpu_custom_call.1} parent=1 // pred_check
      _
    $region3: #{tpu_custom_call.1} parent=1 // pred_check_branch
      %21 = sbr.rel (0) target = $region5
    $region4: #{tpu_custom_call.1} parent=1 // pred_region
      %23 = vsyncadd [#allocation3], 0
      %s24 = sshll.u32 %s0, 4
      %s25 = int_to_ptr.hbm [resolvable:$true] %s24
      %s26 = sshll.u32 [#allocation2], 4
      %s27 = int_to_ptr.vmem [resolvable:$true] %s26
      %32 = dma.hbm_to_vmem [thread:$0]  %s25, 3072, %s27, [#allocation3], 1536, 1536, 96
    $region5: #{tpu_custom_call.1} parent=1 // pred_fallthru
      _
    // Predicated region
    $region6: #{tpu_custom_call.1} parent=1 // pred_check
      _
    $region7: #{tpu_custom_call.1} parent=1 // pred_check_branch
      %34 = sbr.rel (0) target = $region9
    $region8: #{tpu_custom_call.1} parent=1 // pred_region
      %36 = vsyncadd [#allocation6], 0
      %s37 = sshll.u32 %s1, 4
      %s38 = int_to_ptr.hbm [resolvable:$true] %s37
      %s39 = sshll.u32 [#allocation5], 4
      %s40 = int_to_ptr.vmem [resolvable:$true] %s39
      %45 = dma.hbm_to_vmem [thread:$0]  %s38, 196608, %s40, [#allocation6], 512, 512, 32
    $region9: #{tpu_custom_call.1} parent=1 // pred_fallthru
      _
    // Predicated region
    $region10: #{tpu_custom_call.1} parent=1 // pred_check
      _
    $region11: #{tpu_custom_call.1} parent=1 // pred_check_branch
      %47 = sbr.rel (0) target = $region13
    $region12: #{tpu_custom_call.1} parent=1 // pred_region
      %49 = vsyncadd [#allocation6], 0
      %s51 = sshll.u32 %s2, 4
      %s52 = int_to_ptr.hbm [resolvable:$true] %s51
      %s53 = sshll.u32 [#allocation7], 4
      %s54 = int_to_ptr.vmem [resolvable:$true] %s53
      %56 = dma.hbm_to_vmem [thread:$0]  %s52, 128, %s54, [#allocation6]
    $region13: #{tpu_custom_call.1} parent=1 // pred_fallthru
      _
    // Predicated region
    $region14: #{tpu_custom_call.1} parent=1 // pred_check
      _
    $region15: #{tpu_custom_call.1} parent=1 // pred_check_branch
      %58 = sbr.rel (0) target = $region17
    $region16: #{tpu_custom_call.1} parent=1 // pred_region
      %60 = vsyncadd [#allocation9], 0
      %s61 = sshll.u32 %s3, 4
      %s62 = int_to_ptr.hbm [resolvable:$true] %s61
      %s63 = sshll.u32 [#allocation8], 4
      %s64 = int_to_ptr.vmem [resolvable:$true] %s63
      %69 = dma.hbm_to_vmem [thread:$0]  %s62, 32768, %s64, [#allocation9], 256, 256, 16
    $region17: #{tpu_custom_call.1} parent=1 // pred_fallthru
      _
    // Predicated region
    $region18: #{tpu_custom_call.1} parent=1 // pred_check
      _
    $region19: #{tpu_custom_call.1} parent=1 // pred_check_branch
      %71 = sbr.rel (0) target = $region21
    $region20: #{tpu_custom_call.1} parent=1 // pred_region
      %73 = vsyncadd [#allocation9], 0
      %s75 = sshll.u32 %s4, 4
      %s76 = int_to_ptr.hbm [resolvable:$true] %s75
      %s77 = sshll.u32 [#allocation10], 4
      %s78 = int_to_ptr.vmem [resolvable:$true] %s77
      %80 = dma.hbm_to_vmem [thread:$0]  %s76, 64, %s78, [#allocation9]
    $region21: #{tpu_custom_call.1} parent=1 // pred_fallthru
      _
    // Predicated region
    $region22: #{tpu_custom_call.1} parent=1 // pred_check
      _
    $region23: #{tpu_custom_call.1} parent=1 // pred_check_branch
      %82 = sbr.rel (0) target = $region25
    $region24: #{tpu_custom_call.1} parent=1 // pred_region
      %84 = vsyncadd [#allocation12], 0
      %s85 = sshll.u32 %s5, 4
      %s86 = int_to_ptr.hbm [resolvable:$true] %s85
      %s87 = sshll.u32 [#allocation11], 4
      %s88 = int_to_ptr.vmem [resolvable:$true] %s87
      %93 = dma.hbm_to_vmem [thread:$0]  %s86, 8192, %s88, [#allocation12], 128, 128, 8
    $region25: #{tpu_custom_call.1} parent=1 // pred_fallthru
      _
    // Predicated region
    $region26: #{tpu_custom_call.1} parent=1 // pred_check
      _
    $region27: #{tpu_custom_call.1} parent=1 // pred_check_branch
      %95 = sbr.rel (0) target = $region29
    $region28: #{tpu_custom_call.1} parent=1 // pred_region
      %97 = vsyncadd [#allocation12], 0
      %s99 = sshll.u32 %s6, 4
      %s100 = int_to_ptr.hbm [resolvable:$true] %s99
      %s101 = sshll.u32 [#allocation13], 4
      %s102 = int_to_ptr.vmem [resolvable:$true] %s101
      %104 = dma.hbm_to_vmem [thread:$0]  %s100, 32, %s102, [#allocation12]
    $region29: #{tpu_custom_call.1} parent=1 // pred_fallthru
      _
    // Predicated region
    $region30: #{tpu_custom_call.1} parent=1 // pred_check
      _
    $region31: #{tpu_custom_call.1} parent=1 // pred_check_branch
      %106 = sbr.rel (0) target = $region33
    $region32: #{tpu_custom_call.1} parent=1 // pred_region
      %108 = vsyncadd [#allocation15], 0
      %s109 = sshll.u32 %s7, 4
      %s110 = int_to_ptr.hbm [resolvable:$true] %s109
      %s111 = sshll.u32 [#allocation14], 4
      %s112 = int_to_ptr.vmem [resolvable:$true] %s111
      %117 = dma.hbm_to_vmem [thread:$0]  %s110, 2048, %s112, [#allocation15], 64, 64, 4
    $region33: #{tpu_custom_call.1} parent=1 // pred_fallthru
      _
    // Predicated region
    $region34: #{tpu_custom_call.1} parent=1 // pred_check
      _
    $region35: #{tpu_custom_call.1} parent=1 // pred_check_branch
      %119 = sbr.rel (0) target = $region37
    $region36: #{tpu_custom_call.1} parent=1 // pred_region
      %121 = vsyncadd [#allocation15], 0
      %s123 = sshll.u32 %s8, 4
      %s124 = int_to_ptr.hbm [resolvable:$true] %s123
      %s125 = sshll.u32 [#allocation16], 4
      %s126 = int_to_ptr.vmem [resolvable:$true] %s125
      %128 = dma.hbm_to_vmem [thread:$0]  %s124, 16, %s126, [#allocation15]
    $region37: #{tpu_custom_call.1} parent=1 // pred_fallthru
      _
    // Predicated region
    $region38: #{tpu_custom_call.1} parent=1 // pred_check
      _
    $region39: #{tpu_custom_call.1} parent=1 // pred_check_branch
      %130 = sbr.rel (0) target = $region41
    $region40: #{tpu_custom_call.1} parent=1 // pred_region
      %132 = dma.done [#allocation3], 3072
    $region41: #{tpu_custom_call.1} parent=1 // pred_fallthru
      _
    // Predicated region
    $region42: #{tpu_custom_call.1} parent=1 // pred_check
      _
    $region43: #{tpu_custom_call.1} parent=1 // pred_check_branch
      %134 = sbr.rel (0) target = $region45
    $region44: #{tpu_custom_call.1} parent=1 // pred_region
      %136 = dma.done [#allocation6], 196608
    $region45: #{tpu_custom_call.1} parent=1 // pred_fallthru
      _
    // Predicated region
    $region46: #{tpu_custom_call.1} parent=1 // pred_check
      _
    $region47: #{tpu_custom_call.1} parent=1 // pred_check_branch
      %138 = sbr.rel (0) target = $region49
    $region48: #{tpu_custom_call.1} parent=1 // pred_region
      %140 = dma.done [#allocation6], 128
    $region49: #{tpu_custom_call.1} parent=1 // pred_fallthru
      _
    // Predicated region
    $region50: #{tpu_custom_call.1} parent=1 // pred_check
      _
    $region51: #{tpu_custom_call.1} parent=1 // pred_check_branch
      %142 = sbr.rel (0) target = $region53
    $region52: #{tpu_custom_call.1} parent=1 // pred_region
      %144 = dma.done [#allocation9], 32768
    $region53: #{tpu_custom_call.1} parent=1 // pred_fallthru
      _
    // Predicated region
    $region54: #{tpu_custom_call.1} parent=1 // pred_check
      _
    $region55: #{tpu_custom_call.1} parent=1 // pred_check_branch
      %146 = sbr.rel (0) target = $region57
    $region56: #{tpu_custom_call.1} parent=1 // pred_region
      %148 = dma.done [#allocation9], 64
    $region57: #{tpu_custom_call.1} parent=1 // pred_fallthru
      _
    // Predicated region
    $region58: #{tpu_custom_call.1} parent=1 // pred_check
      _
    $region59: #{tpu_custom_call.1} parent=1 // pred_check_branch
      %150 = sbr.rel (0) target = $region61
    $region60: #{tpu_custom_call.1} parent=1 // pred_region
      %152 = dma.done [#allocation12], 8192
    $region61: #{tpu_custom_call.1} parent=1 // pred_fallthru
      _
    // Predicated region
    $region62: #{tpu_custom_call.1} parent=1 // pred_check
      _
    $region63: #{tpu_custom_call.1} parent=1 // pred_check_branch
      %154 = sbr.rel (0) target = $region65
    $region64: #{tpu_custom_call.1} parent=1 // pred_region
      %156 = dma.done [#allocation12], 32
    $region65: #{tpu_custom_call.1} parent=1 // pred_fallthru
      _
    // Predicated region
    $region66: #{tpu_custom_call.1} parent=1 // pred_check
      _
    $region67: #{tpu_custom_call.1} parent=1 // pred_check_branch
      %158 = sbr.rel (0) target = $region69
    $region68: #{tpu_custom_call.1} parent=1 // pred_region
      %160 = dma.done [#allocation15], 2048
    $region69: #{tpu_custom_call.1} parent=1 // pred_fallthru
      _
    // Predicated region
    $region70: #{tpu_custom_call.1} parent=1 // pred_check
      _
    $region71: #{tpu_custom_call.1} parent=1 // pred_check_branch
      %162 = sbr.rel (0) target = $region73
    $region72: #{tpu_custom_call.1} parent=1 // pred_region
      %164 = dma.done [#allocation15], 16
    $region73: #{tpu_custom_call.1} parent=1 // pred_fallthru
      _
    %v165 = vld [vmem:[#allocation2] sm:$0xff]
    %v166 = vld [vmem:[#allocation2 + $0x8] sm:$0xff]
    %v167 = vld [vmem:[#allocation2 + $0x10] sm:$0xff]
    %v168 = vld [vmem:[#allocation2 + $0x18] sm:$0xff]
    %v169 = vld [vmem:[#allocation2 + $0x20] sm:$0xff]
    %v170 = vld [vmem:[#allocation2 + $0x28] sm:$0xff]
    %v171 = vld [vmem:[#allocation2 + $0x30] sm:$0xff]
    %v172 = vld [vmem:[#allocation2 + $0x38] sm:$0xff]
    %v173 = vld [vmem:[#allocation2 + $0x40] sm:$0xff]
    %v174 = vld [vmem:[#allocation2 + $0x48] sm:$0xff]
    %v175 = vld [vmem:[#allocation2 + $0x50] sm:$0xff]
    %v176 = vld [vmem:[#allocation2 + $0x58] sm:$0xff]
    %v177 = vld [vmem:[#allocation2 + $0x60] sm:$0xff]
    %v178 = vld [vmem:[#allocation2 + $0x68] sm:$0xff]
    %v179 = vld [vmem:[#allocation2 + $0x70] sm:$0xff]
    %v180 = vld [vmem:[#allocation2 + $0x78] sm:$0xff]
    %v181 = vld [vmem:[#allocation2 + $0x80] sm:$0xff]
    %v182 = vld [vmem:[#allocation2 + $0x88] sm:$0xff]
    %v183 = vld [vmem:[#allocation2 + $0x90] sm:$0xff]
    %v184 = vld [vmem:[#allocation2 + $0x98] sm:$0xff]
    %v185 = vld [vmem:[#allocation2 + $0xa0] sm:$0xff]
    %v186 = vld [vmem:[#allocation2 + $0xa8] sm:$0xff]
    %v187 = vld [vmem:[#allocation2 + $0xb0] sm:$0xff]
    %v188 = vld [vmem:[#allocation2 + $0xb8] sm:$0xff]
    %v189 = vld [vmem:[#allocation5] sm:$0xff]
    %v190 = vld [vmem:[#allocation5 + $0x8] sm:$0xff]
    %v191 = vld [vmem:[#allocation5 + $0x10] sm:$0xff]
    %v192 = vld [vmem:[#allocation5 + $0x18] sm:$0xff]
    %v193 = vld [vmem:[#allocation5 + $0x20] sm:$0xff]
    %v194 = vld [vmem:[#allocation5 + $0x28] sm:$0xff]
    %v195 = vld [vmem:[#allocation5 + $0x30] sm:$0xff]
    %v196 = vld [vmem:[#allocation5 + $0x38] sm:$0xff]
    %v197 = vld [vmem:[#allocation5 + $0x40] sm:$0xff]
    %v198 = vld [vmem:[#allocation5 + $0x48] sm:$0xff]
    %v199 = vld [vmem:[#allocation5 + $0x50] sm:$0xff]
    %v200 = vld [vmem:[#allocation5 + $0x58] sm:$0xff]
    %v201 = vld [vmem:[#allocation5 + $0x60] sm:$0xff]
    %v202 = vld [vmem:[#allocation5 + $0x68] sm:$0xff]
    %v203 = vld [vmem:[#allocation5 + $0x70] sm:$0xff]
    %v204 = vld [vmem:[#allocation5 + $0x78] sm:$0xff]
    %v205 = vld [vmem:[#allocation5 + $0x80] sm:$0xff]
    %v206 = vld [vmem:[#allocation5 + $0x88] sm:$0xff]
    %v207 = vld [vmem:[#allocation5 + $0x90] sm:$0xff]
    %v208 = vld [vmem:[#allocation5 + $0x98] sm:$0xff]
    %v209 = vld [vmem:[#allocation5 + $0xa0] sm:$0xff]
    %v210 = vld [vmem:[#allocation5 + $0xa8] sm:$0xff]
    %v211 = vld [vmem:[#allocation5 + $0xb0] sm:$0xff]
    %v212 = vld [vmem:[#allocation5 + $0xb8] sm:$0xff]
    %v213 = vld [vmem:[#allocation5 + $0xc0] sm:$0xff]
    %v214 = vld [vmem:[#allocation5 + $0xc8] sm:$0xff]
    %v215 = vld [vmem:[#allocation5 + $0xd0] sm:$0xff]
    %v216 = vld [vmem:[#allocation5 + $0xd8] sm:$0xff]
    %v217 = vld [vmem:[#allocation5 + $0xe0] sm:$0xff]
    %v218 = vld [vmem:[#allocation5 + $0xe8] sm:$0xff]
    %v219 = vld [vmem:[#allocation5 + $0xf0] sm:$0xff]
    %v220 = vld [vmem:[#allocation5 + $0xf8] sm:$0xff]
    %v221 = vld [vmem:[#allocation5 + $0x100] sm:$0xff]
    %v222 = vld [vmem:[#allocation5 + $0x108] sm:$0xff]
    %v223 = vld [vmem:[#allocation5 + $0x110] sm:$0xff]
    %v224 = vld [vmem:[#allocation5 + $0x118] sm:$0xff]
    %v225 = vld [vmem:[#allocation5 + $0x120] sm:$0xff]
    %v226 = vld [vmem:[#allocation5 + $0x128] sm:$0xff]
    %v227 = vld [vmem:[#allocation5 + $0x130] sm:$0xff]
    %v228 = vld [vmem:[#allocation5 + $0x138] sm:$0xff]
    %v229 = vld [vmem:[#allocation5 + $0x140] sm:$0xff]
    %v230 = vld [vmem:[#allocation5 + $0x148] sm:$0xff]
    %v231 = vld [vmem:[#allocation5 + $0x150] sm:$0xff]
    %v232 = vld [vmem:[#allocation5 + $0x158] sm:$0xff]
    %v233 = vld [vmem:[#allocation5 + $0x160] sm:$0xff]
    %v234 = vld [vmem:[#allocation5 + $0x168] sm:$0xff]
    %v235 = vld [vmem:[#allocation5 + $0x170] sm:$0xff]
    %v236 = vld [vmem:[#allocation5 + $0x178] sm:$0xff]
    %v237 = vld [vmem:[#allocation5 + $0x180] sm:$0xff]
    %v238 = vld [vmem:[#allocation5 + $0x188] sm:$0xff]
    %v239 = vld [vmem:[#allocation5 + $0x190] sm:$0xff]
    %v240 = vld [vmem:[#allocation5 + $0x198] sm:$0xff]
    %v241 = vld [vmem:[#allocation5 + $0x1a0] sm:$0xff]
    %v242 = vld [vmem:[#allocation5 + $0x1a8] sm:$0xff]
    %v243 = vld [vmem:[#allocation5 + $0x1b0] sm:$0xff]
    %v244 = vld [vmem:[#allocation5 + $0x1b8] sm:$0xff]
    %v245 = vld [vmem:[#allocation5 + $0x1c0] sm:$0xff]
    %v246 = vld [vmem:[#allocation5 + $0x1c8] sm:$0xff]
    %v247 = vld [vmem:[#allocation5 + $0x1d0] sm:$0xff]
    %v248 = vld [vmem:[#allocation5 + $0x1d8] sm:$0xff]
    %v249 = vld [vmem:[#allocation5 + $0x1e0] sm:$0xff]
    %v250 = vld [vmem:[#allocation5 + $0x1e8] sm:$0xff]
    %v251 = vld [vmem:[#allocation5 + $0x1f0] sm:$0xff]
    %v252 = vld [vmem:[#allocation5 + $0x1f8] sm:$0xff]
    %v253 = vld [vmem:[#allocation5 + $0x200] sm:$0xff]
    %v254 = vld [vmem:[#allocation5 + $0x208] sm:$0xff]
    %v255 = vld [vmem:[#allocation5 + $0x210] sm:$0xff]
    %v256 = vld [vmem:[#allocation5 + $0x218] sm:$0xff]
    %v257 = vld [vmem:[#allocation5 + $0x220] sm:$0xff]
    %v258 = vld [vmem:[#allocation5 + $0x228] sm:$0xff]
    %v259 = vld [vmem:[#allocation5 + $0x230] sm:$0xff]
    %v260 = vld [vmem:[#allocation5 + $0x238] sm:$0xff]
    %v261 = vld [vmem:[#allocation5 + $0x240] sm:$0xff]
    %v262 = vld [vmem:[#allocation5 + $0x248] sm:$0xff]
    %v263 = vld [vmem:[#allocation5 + $0x250] sm:$0xff]
    %v264 = vld [vmem:[#allocation5 + $0x258] sm:$0xff]
    %v265 = vld [vmem:[#allocation5 + $0x260] sm:$0xff]
    %v266 = vld [vmem:[#allocation5 + $0x268] sm:$0xff]
    %v267 = vld [vmem:[#allocation5 + $0x270] sm:$0xff]
    %v268 = vld [vmem:[#allocation5 + $0x278] sm:$0xff]
    %v269 = vld [vmem:[#allocation5 + $0x280] sm:$0xff]
    %v270 = vld [vmem:[#allocation5 + $0x288] sm:$0xff]
    %v271 = vld [vmem:[#allocation5 + $0x290] sm:$0xff]
    %v272 = vld [vmem:[#allocation5 + $0x298] sm:$0xff]
    %v273 = vld [vmem:[#allocation5 + $0x2a0] sm:$0xff]
    %v274 = vld [vmem:[#allocation5 + $0x2a8] sm:$0xff]
    %v275 = vld [vmem:[#allocation5 + $0x2b0] sm:$0xff]
    %v276 = vld [vmem:[#allocation5 + $0x2b8] sm:$0xff]
    %v277 = vld [vmem:[#allocation5 + $0x2c0] sm:$0xff]
    %v278 = vld [vmem:[#allocation5 + $0x2c8] sm:$0xff]
    %v279 = vld [vmem:[#allocation5 + $0x2d0] sm:$0xff]
    %v280 = vld [vmem:[#allocation5 + $0x2d8] sm:$0xff]
    %v281 = vld [vmem:[#allocation5 + $0x2e0] sm:$0xff]
    %v282 = vld [vmem:[#allocation5 + $0x2e8] sm:$0xff]
    %v283 = vld [vmem:[#allocation5 + $0x2f0] sm:$0xff]
    %v284 = vld [vmem:[#allocation5 + $0x2f8] sm:$0xff]
    %v285 = vld [vmem:[#allocation5 + $0x300] sm:$0xff]
    %v286 = vld [vmem:[#allocation5 + $0x308] sm:$0xff]
    %v287 = vld [vmem:[#allocation5 + $0x310] sm:$0xff]
    %v288 = vld [vmem:[#allocation5 + $0x318] sm:$0xff]
    %v289 = vld [vmem:[#allocation5 + $0x320] sm:$0xff]
    %v290 = vld [vmem:[#allocation5 + $0x328] sm:$0xff]
    %v291 = vld [vmem:[#allocation5 + $0x330] sm:$0xff]
    %v292 = vld [vmem:[#allocation5 + $0x338] sm:$0xff]
    %v293 = vld [vmem:[#allocation5 + $0x340] sm:$0xff]
    %v294 = vld [vmem:[#allocation5 + $0x348] sm:$0xff]
    %v295 = vld [vmem:[#allocation5 + $0x350] sm:$0xff]
    %v296 = vld [vmem:[#allocation5 + $0x358] sm:$0xff]
    %v297 = vld [vmem:[#allocation5 + $0x360] sm:$0xff]
    %v298 = vld [vmem:[#allocation5 + $0x368] sm:$0xff]
    %v299 = vld [vmem:[#allocation5 + $0x370] sm:$0xff]
    %v300 = vld [vmem:[#allocation5 + $0x378] sm:$0xff]
    %v301 = vld [vmem:[#allocation5 + $0x380] sm:$0xff]
    %v302 = vld [vmem:[#allocation5 + $0x388] sm:$0xff]
    %v303 = vld [vmem:[#allocation5 + $0x390] sm:$0xff]
    %v304 = vld [vmem:[#allocation5 + $0x398] sm:$0xff]
    %v305 = vld [vmem:[#allocation5 + $0x3a0] sm:$0xff]
    %v306 = vld [vmem:[#allocation5 + $0x3a8] sm:$0xff]
    %v307 = vld [vmem:[#allocation5 + $0x3b0] sm:$0xff]
    %v308 = vld [vmem:[#allocation5 + $0x3b8] sm:$0xff]
    %v309 = vld [vmem:[#allocation5 + $0x3c0] sm:$0xff]
    %v310 = vld [vmem:[#allocation5 + $0x3c8] sm:$0xff]
    %v311 = vld [vmem:[#allocation5 + $0x3d0] sm:$0xff]
    %v312 = vld [vmem:[#allocation5 + $0x3d8] sm:$0xff]
    %v313 = vld [vmem:[#allocation5 + $0x3e0] sm:$0xff]
    %v314 = vld [vmem:[#allocation5 + $0x3e8] sm:$0xff]
    %v315 = vld [vmem:[#allocation5 + $0x3f0] sm:$0xff]
    %v316 = vld [vmem:[#allocation5 + $0x3f8] sm:$0xff]
    %v317 = vld [vmem:[#allocation5 + $0x400] sm:$0xff]
    %v318 = vld [vmem:[#allocation5 + $0x408] sm:$0xff]
    %v319 = vld [vmem:[#allocation5 + $0x410] sm:$0xff]
    %v320 = vld [vmem:[#allocation5 + $0x418] sm:$0xff]
    %v321 = vld [vmem:[#allocation5 + $0x420] sm:$0xff]
    %v322 = vld [vmem:[#allocation5 + $0x428] sm:$0xff]
    %v323 = vld [vmem:[#allocation5 + $0x430] sm:$0xff]
    %v324 = vld [vmem:[#allocation5 + $0x438] sm:$0xff]
    %v325 = vld [vmem:[#allocation5 + $0x440] sm:$0xff]
    %v326 = vld [vmem:[#allocation5 + $0x448] sm:$0xff]
    %v327 = vld [vmem:[#allocation5 + $0x450] sm:$0xff]
    %v328 = vld [vmem:[#allocation5 + $0x458] sm:$0xff]
    %v329 = vld [vmem:[#allocation5 + $0x460] sm:$0xff]
    %v330 = vld [vmem:[#allocation5 + $0x468] sm:$0xff]
    %v331 = vld [vmem:[#allocation5 + $0x470] sm:$0xff]
    %v332 = vld [vmem:[#allocation5 + $0x478] sm:$0xff]
    %v333 = vld [vmem:[#allocation5 + $0x480] sm:$0xff]
    %v334 = vld [vmem:[#allocation5 + $0x488] sm:$0xff]
    %v335 = vld [vmem:[#allocation5 + $0x490] sm:$0xff]
    %v336 = vld [vmem:[#allocation5 + $0x498] sm:$0xff]
    %v337 = vld [vmem:[#allocation5 + $0x4a0] sm:$0xff]
    %v338 = vld [vmem:[#allocation5 + $0x4a8] sm:$0xff]
    %v339 = vld [vmem:[#allocation5 + $0x4b0] sm:$0xff]
    %v340 = vld [vmem:[#allocation5 + $0x4b8] sm:$0xff]
    %v341 = vld [vmem:[#allocation5 + $0x4c0] sm:$0xff]
    %v342 = vld [vmem:[#allocation5 + $0x4c8] sm:$0xff]
    %v343 = vld [vmem:[#allocation5 + $0x4d0] sm:$0xff]
    %v344 = vld [vmem:[#allocation5 + $0x4d8] sm:$0xff]
    %v345 = vld [vmem:[#allocation5 + $0x4e0] sm:$0xff]
    %v346 = vld [vmem:[#allocation5 + $0x4e8] sm:$0xff]
    %v347 = vld [vmem:[#allocation5 + $0x4f0] sm:$0xff]
    %v348 = vld [vmem:[#allocation5 + $0x4f8] sm:$0xff]
    %v349 = vld [vmem:[#allocation5 + $0x500] sm:$0xff]
    %v350 = vld [vmem:[#allocation5 + $0x508] sm:$0xff]
    %v351 = vld [vmem:[#allocation5 + $0x510] sm:$0xff]
    %v352 = vld [vmem:[#allocation5 + $0x518] sm:$0xff]
    %v353 = vld [vmem:[#allocation5 + $0x520] sm:$0xff]
    %v354 = vld [vmem:[#allocation5 + $0x528] sm:$0xff]
    %v355 = vld [vmem:[#allocation5 + $0x530] sm:$0xff]
    %v356 = vld [vmem:[#allocation5 + $0x538] sm:$0xff]
    %v357 = vld [vmem:[#allocation5 + $0x540] sm:$0xff]
    %v358 = vld [vmem:[#allocation5 + $0x548] sm:$0xff]
    %v359 = vld [vmem:[#allocation5 + $0x550] sm:$0xff]
    %v360 = vld [vmem:[#allocation5 + $0x558] sm:$0xff]
    %v361 = vld [vmem:[#allocation5 + $0x560] sm:$0xff]
    %v362 = vld [vmem:[#allocation5 + $0x568] sm:$0xff]
    %v363 = vld [vmem:[#allocation5 + $0x570] sm:$0xff]
    %v364 = vld [vmem:[#allocation5 + $0x578] sm:$0xff]
    %v365 = vld [vmem:[#allocation5 + $0x580] sm:$0xff]
    %v366 = vld [vmem:[#allocation5 + $0x588] sm:$0xff]
    %v367 = vld [vmem:[#allocation5 + $0x590] sm:$0xff]
    %v368 = vld [vmem:[#allocation5 + $0x598] sm:$0xff]
    %v369 = vld [vmem:[#allocation5 + $0x5a0] sm:$0xff]
    %v370 = vld [vmem:[#allocation5 + $0x5a8] sm:$0xff]
    %v371 = vld [vmem:[#allocation5 + $0x5b0] sm:$0xff]
    %v372 = vld [vmem:[#allocation5 + $0x5b8] sm:$0xff]
    %v373 = vld [vmem:[#allocation5 + $0x5c0] sm:$0xff]
    %v374 = vld [vmem:[#allocation5 + $0x5c8] sm:$0xff]
    %v375 = vld [vmem:[#allocation5 + $0x5d0] sm:$0xff]
    %v376 = vld [vmem:[#allocation5 + $0x5d8] sm:$0xff]
    %v377 = vld [vmem:[#allocation5 + $0x5e0] sm:$0xff]
    %v378 = vld [vmem:[#allocation5 + $0x5e8] sm:$0xff]
    %v379 = vld [vmem:[#allocation5 + $0x5f0] sm:$0xff]
    %v380 = vld [vmem:[#allocation5 + $0x5f8] sm:$0xff]
    %v381 = vld [vmem:[#allocation5 + $0x600] sm:$0xff]
    %v382 = vld [vmem:[#allocation5 + $0x608] sm:$0xff]
    %v383 = vld [vmem:[#allocation5 + $0x610] sm:$0xff]
    %v384 = vld [vmem:[#allocation5 + $0x618] sm:$0xff]
    %v385 = vld [vmem:[#allocation5 + $0x620] sm:$0xff]
    %v386 = vld [vmem:[#allocation5 + $0x628] sm:$0xff]
    %v387 = vld [vmem:[#allocation5 + $0x630] sm:$0xff]
    %v388 = vld [vmem:[#allocation5 + $0x638] sm:$0xff]
    %v389 = vld [vmem:[#allocation5 + $0x640] sm:$0xff]
    %v390 = vld [vmem:[#allocation5 + $0x648] sm:$0xff]
    %v391 = vld [vmem:[#allocation5 + $0x650] sm:$0xff]
    %v392 = vld [vmem:[#allocation5 + $0x658] sm:$0xff]
    %v393 = vld [vmem:[#allocation5 + $0x660] sm:$0xff]
    %v394 = vld [vmem:[#allocation5 + $0x668] sm:$0xff]
    %v395 = vld [vmem:[#allocation5 + $0x670] sm:$0xff]
    %v396 = vld [vmem:[#allocation5 + $0x678] sm:$0xff]
    %v397 = vld [vmem:[#allocation5 + $0x680] sm:$0xff]
    %v398 = vld [vmem:[#allocation5 + $0x688] sm:$0xff]
    %v399 = vld [vmem:[#allocation5 + $0x690] sm:$0xff]
    %v400 = vld [vmem:[#allocation5 + $0x698] sm:$0xff]
    %v401 = vld [vmem:[#allocation5 + $0x6a0] sm:$0xff]
    %v402 = vld [vmem:[#allocation5 + $0x6a8] sm:$0xff]
    %v403 = vld [vmem:[#allocation5 + $0x6b0] sm:$0xff]
    %v404 = vld [vmem:[#allocation5 + $0x6b8] sm:$0xff]
    %v405 = vld [vmem:[#allocation5 + $0x6c0] sm:$0xff]
    %v406 = vld [vmem:[#allocation5 + $0x6c8] sm:$0xff]
    %v407 = vld [vmem:[#allocation5 + $0x6d0] sm:$0xff]
    %v408 = vld [vmem:[#allocation5 + $0x6d8] sm:$0xff]
    %v409 = vld [vmem:[#allocation5 + $0x6e0] sm:$0xff]
    %v410 = vld [vmem:[#allocation5 + $0x6e8] sm:$0xff]
    %v411 = vld [vmem:[#allocation5 + $0x6f0] sm:$0xff]
    %v412 = vld [vmem:[#allocation5 + $0x6f8] sm:$0xff]
    %v413 = vld [vmem:[#allocation5 + $0x700] sm:$0xff]
    %v414 = vld [vmem:[#allocation5 + $0x708] sm:$0xff]
    %v415 = vld [vmem:[#allocation5 + $0x710] sm:$0xff]
    %v416 = vld [vmem:[#allocation5 + $0x718] sm:$0xff]
    %v417 = vld [vmem:[#allocation5 + $0x720] sm:$0xff]
    %v418 = vld [vmem:[#allocation5 + $0x728] sm:$0xff]
    %v419 = vld [vmem:[#allocation5 + $0x730] sm:$0xff]
    %v420 = vld [vmem:[#allocation5 + $0x738] sm:$0xff]
    %v421 = vld [vmem:[#allocation5 + $0x740] sm:$0xff]
    %v422 = vld [vmem:[#allocation5 + $0x748] sm:$0xff]
    %v423 = vld [vmem:[#allocation5 + $0x750] sm:$0xff]
    %v424 = vld [vmem:[#allocation5 + $0x758] sm:$0xff]
    %v425 = vld [vmem:[#allocation5 + $0x760] sm:$0xff]
    %v426 = vld [vmem:[#allocation5 + $0x768] sm:$0xff]
    %v427 = vld [vmem:[#allocation5 + $0x770] sm:$0xff]
    %v428 = vld [vmem:[#allocation5 + $0x778] sm:$0xff]
    %v429 = vld [vmem:[#allocation5 + $0x780] sm:$0xff]
    %v430 = vld [vmem:[#allocation5 + $0x788] sm:$0xff]
    %v431 = vld [vmem:[#allocation5 + $0x790] sm:$0xff]
    %v432 = vld [vmem:[#allocation5 + $0x798] sm:$0xff]
    %v433 = vld [vmem:[#allocation5 + $0x7a0] sm:$0xff]
    %v434 = vld [vmem:[#allocation5 + $0x7a8] sm:$0xff]
    %v435 = vld [vmem:[#allocation5 + $0x7b0] sm:$0xff]
    %v436 = vld [vmem:[#allocation5 + $0x7b8] sm:$0xff]
    %v437 = vld [vmem:[#allocation5 + $0x7c0] sm:$0xff]
    %v438 = vld [vmem:[#allocation5 + $0x7c8] sm:$0xff]
    %v439 = vld [vmem:[#allocation5 + $0x7d0] sm:$0xff]
    %v440 = vld [vmem:[#allocation5 + $0x7d8] sm:$0xff]
    %v441 = vld [vmem:[#allocation5 + $0x7e0] sm:$0xff]
    %v442 = vld [vmem:[#allocation5 + $0x7e8] sm:$0xff]
    %v443 = vld [vmem:[#allocation5 + $0x7f0] sm:$0xff]
    %v444 = vld [vmem:[#allocation5 + $0x7f8] sm:$0xff]
    %v445 = vld [vmem:[#allocation5 + $0x800] sm:$0xff]
    %v446 = vld [vmem:[#allocation5 + $0x808] sm:$0xff]
    %v447 = vld [vmem:[#allocation5 + $0x810] sm:$0xff]
    %v448 = vld [vmem:[#allocation5 + $0x818] sm:$0xff]
    %v449 = vld [vmem:[#allocation5 + $0x820] sm:$0xff]
    %v450 = vld [vmem:[#allocation5 + $0x828] sm:$0xff]
    %v451 = vld [vmem:[#allocation5 + $0x830] sm:$0xff]
    %v452 = vld [vmem:[#allocation5 + $0x838] sm:$0xff]
    %v453 = vld [vmem:[#allocation5 + $0x840] sm:$0xff]
    %v454 = vld [vmem:[#allocation5 + $0x848] sm:$0xff]
    %v455 = vld [vmem:[#allocation5 + $0x850] sm:$0xff]
    %v456 = vld [vmem:[#allocation5 + $0x858] sm:$0xff]
    %v457 = vld [vmem:[#allocation5 + $0x860] sm:$0xff]
    %v458 = vld [vmem:[#allocation5 + $0x868] sm:$0xff]
    %v459 = vld [vmem:[#allocation5 + $0x870] sm:$0xff]
    %v460 = vld [vmem:[#allocation5 + $0x878] sm:$0xff]
    %v461 = vld [vmem:[#allocation5 + $0x880] sm:$0xff]
    %v462 = vld [vmem:[#allocation5 + $0x888] sm:$0xff]
    %v463 = vld [vmem:[#allocation5 + $0x890] sm:$0xff]
    %v464 = vld [vmem:[#allocation5 + $0x898] sm:$0xff]
    %v465 = vld [vmem:[#allocation5 + $0x8a0] sm:$0xff]
    %v466 = vld [vmem:[#allocation5 + $0x8a8] sm:$0xff]
    %v467 = vld [vmem:[#allocation5 + $0x8b0] sm:$0xff]
    %v468 = vld [vmem:[#allocation5 + $0x8b8] sm:$0xff]
    %v469 = vld [vmem:[#allocation5 + $0x8c0] sm:$0xff]
    %v470 = vld [vmem:[#allocation5 + $0x8c8] sm:$0xff]
    %v471 = vld [vmem:[#allocation5 + $0x8d0] sm:$0xff]
    %v472 = vld [vmem:[#allocation5 + $0x8d8] sm:$0xff]
    %v473 = vld [vmem:[#allocation5 + $0x8e0] sm:$0xff]
    %v474 = vld [vmem:[#allocation5 + $0x8e8] sm:$0xff]
    %v475 = vld [vmem:[#allocation5 + $0x8f0] sm:$0xff]
    %v476 = vld [vmem:[#allocation5 + $0x8f8] sm:$0xff]
    %v477 = vld [vmem:[#allocation5 + $0x900] sm:$0xff]
    %v478 = vld [vmem:[#allocation5 + $0x908] sm:$0xff]
    %v479 = vld [vmem:[#allocation5 + $0x910] sm:$0xff]
    %v480 = vld [vmem:[#allocation5 + $0x918] sm:$0xff]
    %v481 = vld [vmem:[#allocation5 + $0x920] sm:$0xff]
    %v482 = vld [vmem:[#allocation5 + $0x928] sm:$0xff]
    %v483 = vld [vmem:[#allocation5 + $0x930] sm:$0xff]
    %v484 = vld [vmem:[#allocation5 + $0x938] sm:$0xff]
    %v485 = vld [vmem:[#allocation5 + $0x940] sm:$0xff]
    %v486 = vld [vmem:[#allocation5 + $0x948] sm:$0xff]
    %v487 = vld [vmem:[#allocation5 + $0x950] sm:$0xff]
    %v488 = vld [vmem:[#allocation5 + $0x958] sm:$0xff]
    %v489 = vld [vmem:[#allocation5 + $0x960] sm:$0xff]
    %v490 = vld [vmem:[#allocation5 + $0x968] sm:$0xff]
    %v491 = vld [vmem:[#allocation5 + $0x970] sm:$0xff]
    %v492 = vld [vmem:[#allocation5 + $0x978] sm:$0xff]
    %v493 = vld [vmem:[#allocation5 + $0x980] sm:$0xff]
    %v494 = vld [vmem:[#allocation5 + $0x988] sm:$0xff]
    %v495 = vld [vmem:[#allocation5 + $0x990] sm:$0xff]
    %v496 = vld [vmem:[#allocation5 + $0x998] sm:$0xff]
    %v497 = vld [vmem:[#allocation5 + $0x9a0] sm:$0xff]
    %v498 = vld [vmem:[#allocation5 + $0x9a8] sm:$0xff]
    %v499 = vld [vmem:[#allocation5 + $0x9b0] sm:$0xff]
    %v500 = vld [vmem:[#allocation5 + $0x9b8] sm:$0xff]
    %v501 = vld [vmem:[#allocation5 + $0x9c0] sm:$0xff]
    %v502 = vld [vmem:[#allocation5 + $0x9c8] sm:$0xff]
    %v503 = vld [vmem:[#allocation5 + $0x9d0] sm:$0xff]
    %v504 = vld [vmem:[#allocation5 + $0x9d8] sm:$0xff]
    %v505 = vld [vmem:[#allocation5 + $0x9e0] sm:$0xff]
    %v506 = vld [vmem:[#allocation5 + $0x9e8] sm:$0xff]
    %v507 = vld [vmem:[#allocation5 + $0x9f0] sm:$0xff]
    %v508 = vld [vmem:[#allocation5 + $0x9f8] sm:$0xff]
    %v509 = vld [vmem:[#allocation5 + $0xa00] sm:$0xff]
    %v510 = vld [vmem:[#allocation5 + $0xa08] sm:$0xff]
    %v511 = vld [vmem:[#allocation5 + $0xa10] sm:$0xff]
    %v512 = vld [vmem:[#allocation5 + $0xa18] sm:$0xff]
    %v513 = vld [vmem:[#allocation5 + $0xa20] sm:$0xff]
    %v514 = vld [vmem:[#allocation5 + $0xa28] sm:$0xff]
    %v515 = vld [vmem:[#allocation5 + $0xa30] sm:$0xff]
    %v516 = vld [vmem:[#allocation5 + $0xa38] sm:$0xff]
    %v517 = vld [vmem:[#allocation5 + $0xa40] sm:$0xff]
    %v518 = vld [vmem:[#allocation5 + $0xa48] sm:$0xff]
    %v519 = vld [vmem:[#allocation5 + $0xa50] sm:$0xff]
    %v520 = vld [vmem:[#allocation5 + $0xa58] sm:$0xff]
    %v521 = vld [vmem:[#allocation5 + $0xa60] sm:$0xff]
    %v522 = vld [vmem:[#allocation5 + $0xa68] sm:$0xff]
    %v523 = vld [vmem:[#allocation5 + $0xa70] sm:$0xff]
    %v524 = vld [vmem:[#allocation5 + $0xa78] sm:$0xff]
    %v525 = vld [vmem:[#allocation5 + $0xa80] sm:$0xff]
    %v526 = vld [vmem:[#allocation5 + $0xa88] sm:$0xff]
    %v527 = vld [vmem:[#allocation5 + $0xa90] sm:$0xff]
    %v528 = vld [vmem:[#allocation5 + $0xa98] sm:$0xff]
    %v529 = vld [vmem:[#allocation5 + $0xaa0] sm:$0xff]
    %v530 = vld [vmem:[#allocation5 + $0xaa8] sm:$0xff]
    %v531 = vld [vmem:[#allocation5 + $0xab0] sm:$0xff]
    %v532 = vld [vmem:[#allocation5 + $0xab8] sm:$0xff]
    %v533 = vld [vmem:[#allocation5 + $0xac0] sm:$0xff]
    %v534 = vld [vmem:[#allocation5 + $0xac8] sm:$0xff]
    %v535 = vld [vmem:[#allocation5 + $0xad0] sm:$0xff]
    %v536 = vld [vmem:[#allocation5 + $0xad8] sm:$0xff]
    %v537 = vld [vmem:[#allocation5 + $0xae0] sm:$0xff]
    %v538 = vld [vmem:[#allocation5 + $0xae8] sm:$0xff]
    %v539 = vld [vmem:[#allocation5 + $0xaf0] sm:$0xff]
    %v540 = vld [vmem:[#allocation5 + $0xaf8] sm:$0xff]
    %v541 = vld [vmem:[#allocation5 + $0xb00] sm:$0xff]
    %v542 = vld [vmem:[#allocation5 + $0xb08] sm:$0xff]
    %v543 = vld [vmem:[#allocation5 + $0xb10] sm:$0xff]
    %v544 = vld [vmem:[#allocation5 + $0xb18] sm:$0xff]
    %v545 = vld [vmem:[#allocation5 + $0xb20] sm:$0xff]
    %v546 = vld [vmem:[#allocation5 + $0xb28] sm:$0xff]
    %v547 = vld [vmem:[#allocation5 + $0xb30] sm:$0xff]
    %v548 = vld [vmem:[#allocation5 + $0xb38] sm:$0xff]
    %v549 = vld [vmem:[#allocation5 + $0xb40] sm:$0xff]
    %v550 = vld [vmem:[#allocation5 + $0xb48] sm:$0xff]
    %v551 = vld [vmem:[#allocation5 + $0xb50] sm:$0xff]
    %v552 = vld [vmem:[#allocation5 + $0xb58] sm:$0xff]
    %v553 = vld [vmem:[#allocation5 + $0xb60] sm:$0xff]
    %v554 = vld [vmem:[#allocation5 + $0xb68] sm:$0xff]
    %v555 = vld [vmem:[#allocation5 + $0xb70] sm:$0xff]
    %v556 = vld [vmem:[#allocation5 + $0xb78] sm:$0xff]
    %v557 = vld [vmem:[#allocation5 + $0xb80] sm:$0xff]
    %v558 = vld [vmem:[#allocation5 + $0xb88] sm:$0xff]
    %v559 = vld [vmem:[#allocation5 + $0xb90] sm:$0xff]
    %v560 = vld [vmem:[#allocation5 + $0xb98] sm:$0xff]
    %v561 = vld [vmem:[#allocation5 + $0xba0] sm:$0xff]
    %v562 = vld [vmem:[#allocation5 + $0xba8] sm:$0xff]
    %v563 = vld [vmem:[#allocation5 + $0xbb0] sm:$0xff]
    %v564 = vld [vmem:[#allocation5 + $0xbb8] sm:$0xff]
    %v565 = vld [vmem:[#allocation5 + $0xbc0] sm:$0xff]
    %v566 = vld [vmem:[#allocation5 + $0xbc8] sm:$0xff]
    %v567 = vld [vmem:[#allocation5 + $0xbd0] sm:$0xff]
    %v568 = vld [vmem:[#allocation5 + $0xbd8] sm:$0xff]
    %v569 = vld [vmem:[#allocation5 + $0xbe0] sm:$0xff]
    %v570 = vld [vmem:[#allocation5 + $0xbe8] sm:$0xff]
    %v571 = vld [vmem:[#allocation5 + $0xbf0] sm:$0xff]
    %v572 = vld [vmem:[#allocation5 + $0xbf8] sm:$0xff]
    %v573 = vld [vmem:[#allocation5 + $0xc00] sm:$0xff]
    %v574 = vld [vmem:[#allocation5 + $0xc08] sm:$0xff]
    %v575 = vld [vmem:[#allocation5 + $0xc10] sm:$0xff]
    %v576 = vld [vmem:[#allocation5 + $0xc18] sm:$0xff]
    %v577 = vld [vmem:[#allocation5 + $0xc20] sm:$0xff]
    %v578 = vld [vmem:[#allocation5 + $0xc28] sm:$0xff]
    %v579 = vld [vmem:[#allocation5 + $0xc30] sm:$0xff]
    %v580 = vld [vmem:[#allocation5 + $0xc38] sm:$0xff]
    %v581 = vld [vmem:[#allocation5 + $0xc40] sm:$0xff]
    %v582 = vld [vmem:[#allocation5 + $0xc48] sm:$0xff]
    %v583 = vld [vmem:[#allocation5 + $0xc50] sm:$0xff]
    %v584 = vld [vmem:[#allocation5 + $0xc58] sm:$0xff]
    %v585 = vld [vmem:[#allocation5 + $0xc60] sm:$0xff]
    %v586 = vld [vmem:[#allocation5 + $0xc68] sm:$0xff]
    %v587 = vld [vmem:[#allocation5 + $0xc70] sm:$0xff]
    %v588 = vld [vmem:[#allocation5 + $0xc78] sm:$0xff]
    %v589 = vld [vmem:[#allocation5 + $0xc80] sm:$0xff]
    %v590 = vld [vmem:[#allocation5 + $0xc88] sm:$0xff]
    %v591 = vld [vmem:[#allocation5 + $0xc90] sm:$0xff]
    %v592 = vld [vmem:[#allocation5 + $0xc98] sm:$0xff]
    %v593 = vld [vmem:[#allocation5 + $0xca0] sm:$0xff]
    %v594 = vld [vmem:[#allocation5 + $0xca8] sm:$0xff]
    %v595 = vld [vmem:[#allocation5 + $0xcb0] sm:$0xff]
    %v596 = vld [vmem:[#allocation5 + $0xcb8] sm:$0xff]
    %v597 = vld [vmem:[#allocation5 + $0xcc0] sm:$0xff]
    %v598 = vld [vmem:[#allocation5 + $0xcc8] sm:$0xff]
    %v599 = vld [vmem:[#allocation5 + $0xcd0] sm:$0xff]
    %v600 = vld [vmem:[#allocation5 + $0xcd8] sm:$0xff]
    %v601 = vld [vmem:[#allocation5 + $0xce0] sm:$0xff]
    %v602 = vld [vmem:[#allocation5 + $0xce8] sm:$0xff]
    %v603 = vld [vmem:[#allocation5 + $0xcf0] sm:$0xff]
    %v604 = vld [vmem:[#allocation5 + $0xcf8] sm:$0xff]
    %v605 = vld [vmem:[#allocation5 + $0xd00] sm:$0xff]
    %v606 = vld [vmem:[#allocation5 + $0xd08] sm:$0xff]
    %v607 = vld [vmem:[#allocation5 + $0xd10] sm:$0xff]
    %v608 = vld [vmem:[#allocation5 + $0xd18] sm:$0xff]
    %v609 = vld [vmem:[#allocation5 + $0xd20] sm:$0xff]
    %v610 = vld [vmem:[#allocation5 + $0xd28] sm:$0xff]
    %v611 = vld [vmem:[#allocation5 + $0xd30] sm:$0xff]
    %v612 = vld [vmem:[#allocation5 + $0xd38] sm:$0xff]
    %v613 = vld [vmem:[#allocation5 + $0xd40] sm:$0xff]
    %v614 = vld [vmem:[#allocation5 + $0xd48] sm:$0xff]
    %v615 = vld [vmem:[#allocation5 + $0xd50] sm:$0xff]
    %v616 = vld [vmem:[#allocation5 + $0xd58] sm:$0xff]
    %v617 = vld [vmem:[#allocation5 + $0xd60] sm:$0xff]
    %v618 = vld [vmem:[#allocation5 + $0xd68] sm:$0xff]
    %v619 = vld [vmem:[#allocation5 + $0xd70] sm:$0xff]
    %v620 = vld [vmem:[#allocation5 + $0xd78] sm:$0xff]
    %v621 = vld [vmem:[#allocation5 + $0xd80] sm:$0xff]
    %v622 = vld [vmem:[#allocation5 + $0xd88] sm:$0xff]
    %v623 = vld [vmem:[#allocation5 + $0xd90] sm:$0xff]
    %v624 = vld [vmem:[#allocation5 + $0xd98] sm:$0xff]
    %v625 = vld [vmem:[#allocation5 + $0xda0] sm:$0xff]
    %v626 = vld [vmem:[#allocation5 + $0xda8] sm:$0xff]
    %v627 = vld [vmem:[#allocation5 + $0xdb0] sm:$0xff]
    %v628 = vld [vmem:[#allocation5 + $0xdb8] sm:$0xff]
    %v629 = vld [vmem:[#allocation5 + $0xdc0] sm:$0xff]
    %v630 = vld [vmem:[#allocation5 + $0xdc8] sm:$0xff]
    %v631 = vld [vmem:[#allocation5 + $0xdd0] sm:$0xff]
    %v632 = vld [vmem:[#allocation5 + $0xdd8] sm:$0xff]
    %v633 = vld [vmem:[#allocation5 + $0xde0] sm:$0xff]
    %v634 = vld [vmem:[#allocation5 + $0xde8] sm:$0xff]
    %v635 = vld [vmem:[#allocation5 + $0xdf0] sm:$0xff]
    %v636 = vld [vmem:[#allocation5 + $0xdf8] sm:$0xff]
    %v637 = vld [vmem:[#allocation5 + $0xe00] sm:$0xff]
    %v638 = vld [vmem:[#allocation5 + $0xe08] sm:$0xff]
    %v639 = vld [vmem:[#allocation5 + $0xe10] sm:$0xff]
    %v640 = vld [vmem:[#allocation5 + $0xe18] sm:$0xff]
    %v641 = vld [vmem:[#allocation5 + $0xe20] sm:$0xff]
    %v642 = vld [vmem:[#allocation5 + $0xe28] sm:$0xff]
    %v643 = vld [vmem:[#allocation5 + $0xe30] sm:$0xff]
    %v644 = vld [vmem:[#allocation5 + $0xe38] sm:$0xff]
    %v645 = vld [vmem:[#allocation5 + $0xe40] sm:$0xff]
    %v646 = vld [vmem:[#allocation5 + $0xe48] sm:$0xff]
    %v647 = vld [vmem:[#allocation5 + $0xe50] sm:$0xff]
    %v648 = vld [vmem:[#allocation5 + $0xe58] sm:$0xff]
    %v649 = vld [vmem:[#allocation5 + $0xe60] sm:$0xff]
    %v650 = vld [vmem:[#allocation5 + $0xe68] sm:$0xff]
    %v651 = vld [vmem:[#allocation5 + $0xe70] sm:$0xff]
    %v652 = vld [vmem:[#allocation5 + $0xe78] sm:$0xff]
    %v653 = vld [vmem:[#allocation5 + $0xe80] sm:$0xff]
    %v654 = vld [vmem:[#allocation5 + $0xe88] sm:$0xff]
    %v655 = vld [vmem:[#allocation5 + $0xe90] sm:$0xff]
    %v656 = vld [vmem:[#allocation5 + $0xe98] sm:$0xff]
    %v657 = vld [vmem:[#allocation5 + $0xea0] sm:$0xff]
    %v658 = vld [vmem:[#allocation5 + $0xea8] sm:$0xff]
    %v659 = vld [vmem:[#allocation5 + $0xeb0] sm:$0xff]
    %v660 = vld [vmem:[#allocation5 + $0xeb8] sm:$0xff]
    %v661 = vld [vmem:[#allocation5 + $0xec0] sm:$0xff]
    %v662 = vld [vmem:[#allocation5 + $0xec8] sm:$0xff]
    %v663 = vld [vmem:[#allocation5 + $0xed0] sm:$0xff]
    %v664 = vld [vmem:[#allocation5 + $0xed8] sm:$0xff]
    %v665 = vld [vmem:[#allocation5 + $0xee0] sm:$0xff]
    %v666 = vld [vmem:[#allocation5 + $0xee8] sm:$0xff]
    %v667 = vld [vmem:[#allocation5 + $0xef0] sm:$0xff]
    %v668 = vld [vmem:[#allocation5 + $0xef8] sm:$0xff]
    %v669 = vld [vmem:[#allocation5 + $0xf00] sm:$0xff]
    %v670 = vld [vmem:[#allocation5 + $0xf08] sm:$0xff]
    %v671 = vld [vmem:[#allocation5 + $0xf10] sm:$0xff]
    %v672 = vld [vmem:[#allocation5 + $0xf18] sm:$0xff]
    %v673 = vld [vmem:[#allocation5 + $0xf20] sm:$0xff]
    %v674 = vld [vmem:[#allocation5 + $0xf28] sm:$0xff]
    %v675 = vld [vmem:[#allocation5 + $0xf30] sm:$0xff]
    %v676 = vld [vmem:[#allocation5 + $0xf38] sm:$0xff]
    %v677 = vld [vmem:[#allocation5 + $0xf40] sm:$0xff]
    %v678 = vld [vmem:[#allocation5 + $0xf48] sm:$0xff]
    %v679 = vld [vmem:[#allocation5 + $0xf50] sm:$0xff]
    %v680 = vld [vmem:[#allocation5 + $0xf58] sm:$0xff]
    %v681 = vld [vmem:[#allocation5 + $0xf60] sm:$0xff]
    %v682 = vld [vmem:[#allocation5 + $0xf68] sm:$0xff]
    %v683 = vld [vmem:[#allocation5 + $0xf70] sm:$0xff]
    %v684 = vld [vmem:[#allocation5 + $0xf78] sm:$0xff]
    %v685 = vld [vmem:[#allocation5 + $0xf80] sm:$0xff]
    %v686 = vld [vmem:[#allocation5 + $0xf88] sm:$0xff]
    %v687 = vld [vmem:[#allocation5 + $0xf90] sm:$0xff]
    %v688 = vld [vmem:[#allocation5 + $0xf98] sm:$0xff]
    %v689 = vld [vmem:[#allocation5 + $0xfa0] sm:$0xff]
    %v690 = vld [vmem:[#allocation5 + $0xfa8] sm:$0xff]
    %v691 = vld [vmem:[#allocation5 + $0xfb0] sm:$0xff]
    %v692 = vld [vmem:[#allocation5 + $0xfb8] sm:$0xff]
    %v693 = vld [vmem:[#allocation5 + $0xfc0] sm:$0xff]
    %v694 = vld [vmem:[#allocation5 + $0xfc8] sm:$0xff]
    %v695 = vld [vmem:[#allocation5 + $0xfd0] sm:$0xff]
    %v696 = vld [vmem:[#allocation5 + $0xfd8] sm:$0xff]
    %v697 = vld [vmem:[#allocation5 + $0xfe0] sm:$0xff]
    %v698 = vld [vmem:[#allocation5 + $0xfe8] sm:$0xff]
    %v699 = vld [vmem:[#allocation5 + $0xff0] sm:$0xff]
    %v700 = vld [vmem:[#allocation5 + $0xff8] sm:$0xff]
    %v701 = vld [vmem:[#allocation5 + $0x1000] sm:$0xff]
    %v702 = vld [vmem:[#allocation5 + $0x1008] sm:$0xff]
    %v703 = vld [vmem:[#allocation5 + $0x1010] sm:$0xff]
    %v704 = vld [vmem:[#allocation5 + $0x1018] sm:$0xff]
    %v705 = vld [vmem:[#allocation5 + $0x1020] sm:$0xff]
    %v706 = vld [vmem:[#allocation5 + $0x1028] sm:$0xff]
    %v707 = vld [vmem:[#allocation5 + $0x1030] sm:$0xff]
    %v708 = vld [vmem:[#allocation5 + $0x1038] sm:$0xff]
    %v709 = vld [vmem:[#allocation5 + $0x1040] sm:$0xff]
    %v710 = vld [vmem:[#allocation5 + $0x1048] sm:$0xff]
    %v711 = vld [vmem:[#allocation5 + $0x1050] sm:$0xff]
    %v712 = vld [vmem:[#allocation5 + $0x1058] sm:$0xff]
    %v713 = vld [vmem:[#allocation5 + $0x1060] sm:$0xff]
    %v714 = vld [vmem:[#allocation5 + $0x1068] sm:$0xff]
    %v715 = vld [vmem:[#allocation5 + $0x1070] sm:$0xff]
    %v716 = vld [vmem:[#allocation5 + $0x1078] sm:$0xff]
    %v717 = vld [vmem:[#allocation5 + $0x1080] sm:$0xff]
    %v718 = vld [vmem:[#allocation5 + $0x1088] sm:$0xff]
    %v719 = vld [vmem:[#allocation5 + $0x1090] sm:$0xff]
    %v720 = vld [vmem:[#allocation5 + $0x1098] sm:$0xff]
    %v721 = vld [vmem:[#allocation5 + $0x10a0] sm:$0xff]
    %v722 = vld [vmem:[#allocation5 + $0x10a8] sm:$0xff]
    %v723 = vld [vmem:[#allocation5 + $0x10b0] sm:$0xff]
    %v724 = vld [vmem:[#allocation5 + $0x10b8] sm:$0xff]
    %v725 = vld [vmem:[#allocation5 + $0x10c0] sm:$0xff]
    %v726 = vld [vmem:[#allocation5 + $0x10c8] sm:$0xff]
    %v727 = vld [vmem:[#allocation5 + $0x10d0] sm:$0xff]
    %v728 = vld [vmem:[#allocation5 + $0x10d8] sm:$0xff]
    %v729 = vld [vmem:[#allocation5 + $0x10e0] sm:$0xff]
    %v730 = vld [vmem:[#allocation5 + $0x10e8] sm:$0xff]
    %v731 = vld [vmem:[#allocation5 + $0x10f0] sm:$0xff]
    %v732 = vld [vmem:[#allocation5 + $0x10f8] sm:$0xff]
    %v733 = vld [vmem:[#allocation5 + $0x1100] sm:$0xff]
    %v734 = vld [vmem:[#allocation5 + $0x1108] sm:$0xff]
    %v735 = vld [vmem:[#allocation5 + $0x1110] sm:$0xff]
    %v736 = vld [vmem:[#allocation5 + $0x1118] sm:$0xff]
    %v737 = vld [vmem:[#allocation5 + $0x1120] sm:$0xff]
    %v738 = vld [vmem:[#allocation5 + $0x1128] sm:$0xff]
    %v739 = vld [vmem:[#allocation5 + $0x1130] sm:$0xff]
    %v740 = vld [vmem:[#allocation5 + $0x1138] sm:$0xff]
    %v741 = vld [vmem:[#allocation5 + $0x1140] sm:$0xff]
    %v742 = vld [vmem:[#allocation5 + $0x1148] sm:$0xff]
    %v743 = vld [vmem:[#allocation5 + $0x1150] sm:$0xff]
    %v744 = vld [vmem:[#allocation5 + $0x1158] sm:$0xff]
    %v745 = vld [vmem:[#allocation5 + $0x1160] sm:$0xff]
    %v746 = vld [vmem:[#allocation5 + $0x1168] sm:$0xff]
    %v747 = vld [vmem:[#allocation5 + $0x1170] sm:$0xff]
    %v748 = vld [vmem:[#allocation5 + $0x1178] sm:$0xff]
    %v749 = vld [vmem:[#allocation5 + $0x1180] sm:$0xff]
    %v750 = vld [vmem:[#allocation5 + $0x1188] sm:$0xff]
    %v751 = vld [vmem:[#allocation5 + $0x1190] sm:$0xff]
    %v752 = vld [vmem:[#allocation5 + $0x1198] sm:$0xff]
    %v753 = vld [vmem:[#allocation5 + $0x11a0] sm:$0xff]
    %v754 = vld [vmem:[#allocation5 + $0x11a8] sm:$0xff]
    %v755 = vld [vmem:[#allocation5 + $0x11b0] sm:$0xff]
    %v756 = vld [vmem:[#allocation5 + $0x11b8] sm:$0xff]
    %v757 = vld [vmem:[#allocation5 + $0x11c0] sm:$0xff]
    %v758 = vld [vmem:[#allocation5 + $0x11c8] sm:$0xff]
    %v759 = vld [vmem:[#allocation5 + $0x11d0] sm:$0xff]
    %v760 = vld [vmem:[#allocation5 + $0x11d8] sm:$0xff]
    %v761 = vld [vmem:[#allocation5 + $0x11e0] sm:$0xff]
    %v762 = vld [vmem:[#allocation5 + $0x11e8] sm:$0xff]
    %v763 = vld [vmem:[#allocation5 + $0x11f0] sm:$0xff]
    %v764 = vld [vmem:[#allocation5 + $0x11f8] sm:$0xff]
    %v765 = vld [vmem:[#allocation5 + $0x1200] sm:$0xff]
    %v766 = vld [vmem:[#allocation5 + $0x1208] sm:$0xff]
    %v767 = vld [vmem:[#allocation5 + $0x1210] sm:$0xff]
    %v768 = vld [vmem:[#allocation5 + $0x1218] sm:$0xff]
    %v769 = vld [vmem:[#allocation5 + $0x1220] sm:$0xff]
    %v770 = vld [vmem:[#allocation5 + $0x1228] sm:$0xff]
    %v771 = vld [vmem:[#allocation5 + $0x1230] sm:$0xff]
    %v772 = vld [vmem:[#allocation5 + $0x1238] sm:$0xff]
    %v773 = vld [vmem:[#allocation5 + $0x1240] sm:$0xff]
    %v774 = vld [vmem:[#allocation5 + $0x1248] sm:$0xff]
    %v775 = vld [vmem:[#allocation5 + $0x1250] sm:$0xff]
    %v776 = vld [vmem:[#allocation5 + $0x1258] sm:$0xff]
    %v777 = vld [vmem:[#allocation5 + $0x1260] sm:$0xff]
    %v778 = vld [vmem:[#allocation5 + $0x1268] sm:$0xff]
    %v779 = vld [vmem:[#allocation5 + $0x1270] sm:$0xff]
    %v780 = vld [vmem:[#allocation5 + $0x1278] sm:$0xff]
    %v781 = vld [vmem:[#allocation5 + $0x1280] sm:$0xff]
    %v782 = vld [vmem:[#allocation5 + $0x1288] sm:$0xff]
    %v783 = vld [vmem:[#allocation5 + $0x1290] sm:$0xff]
    %v784 = vld [vmem:[#allocation5 + $0x1298] sm:$0xff]
    %v785 = vld [vmem:[#allocation5 + $0x12a0] sm:$0xff]
    %v786 = vld [vmem:[#allocation5 + $0x12a8] sm:$0xff]
    %v787 = vld [vmem:[#allocation5 + $0x12b0] sm:$0xff]
    %v788 = vld [vmem:[#allocation5 + $0x12b8] sm:$0xff]
    %v789 = vld [vmem:[#allocation5 + $0x12c0] sm:$0xff]
    %v790 = vld [vmem:[#allocation5 + $0x12c8] sm:$0xff]
    %v791 = vld [vmem:[#allocation5 + $0x12d0] sm:$0xff]
    %v792 = vld [vmem:[#allocation5 + $0x12d8] sm:$0xff]
    %v793 = vld [vmem:[#allocation5 + $0x12e0] sm:$0xff]
    %v794 = vld [vmem:[#allocation5 + $0x12e8] sm:$0xff]
    %v795 = vld [vmem:[#allocation5 + $0x12f0] sm:$0xff]
    %v796 = vld [vmem:[#allocation5 + $0x12f8] sm:$0xff]
    %v797 = vld [vmem:[#allocation5 + $0x1300] sm:$0xff]
    %v798 = vld [vmem:[#allocation5 + $0x1308] sm:$0xff]
    %v799 = vld [vmem:[#allocation5 + $0x1310] sm:$0xff]
    %v800 = vld [vmem:[#allocation5 + $0x1318] sm:$0xff]
    %v801 = vld [vmem:[#allocation5 + $0x1320] sm:$0xff]
    %v802 = vld [vmem:[#allocation5 + $0x1328] sm:$0xff]
    %v803 = vld [vmem:[#allocation5 + $0x1330] sm:$0xff]
    %v804 = vld [vmem:[#allocation5 + $0x1338] sm:$0xff]
    %v805 = vld [vmem:[#allocation5 + $0x1340] sm:$0xff]
    %v806 = vld [vmem:[#allocation5 + $0x1348] sm:$0xff]
    %v807 = vld [vmem:[#allocation5 + $0x1350] sm:$0xff]
    %v808 = vld [vmem:[#allocation5 + $0x1358] sm:$0xff]
    %v809 = vld [vmem:[#allocation5 + $0x1360] sm:$0xff]
    %v810 = vld [vmem:[#allocation5 + $0x1368] sm:$0xff]
    %v811 = vld [vmem:[#allocation5 + $0x1370] sm:$0xff]
    %v812 = vld [vmem:[#allocation5 + $0x1378] sm:$0xff]
    %v813 = vld [vmem:[#allocation5 + $0x1380] sm:$0xff]
    %v814 = vld [vmem:[#allocation5 + $0x1388] sm:$0xff]
    %v815 = vld [vmem:[#allocation5 + $0x1390] sm:$0xff]
    %v816 = vld [vmem:[#allocation5 + $0x1398] sm:$0xff]
    %v817 = vld [vmem:[#allocation5 + $0x13a0] sm:$0xff]
    %v818 = vld [vmem:[#allocation5 + $0x13a8] sm:$0xff]
    %v819 = vld [vmem:[#allocation5 + $0x13b0] sm:$0xff]
    %v820 = vld [vmem:[#allocation5 + $0x13b8] sm:$0xff]
    %v821 = vld [vmem:[#allocation5 + $0x13c0] sm:$0xff]
    %v822 = vld [vmem:[#allocation5 + $0x13c8] sm:$0xff]
    %v823 = vld [vmem:[#allocation5 + $0x13d0] sm:$0xff]
    %v824 = vld [vmem:[#allocation5 + $0x13d8] sm:$0xff]
    %v825 = vld [vmem:[#allocation5 + $0x13e0] sm:$0xff]
    %v826 = vld [vmem:[#allocation5 + $0x13e8] sm:$0xff]
    %v827 = vld [vmem:[#allocation5 + $0x13f0] sm:$0xff]
    %v828 = vld [vmem:[#allocation5 + $0x13f8] sm:$0xff]
    %v829 = vld [vmem:[#allocation5 + $0x1400] sm:$0xff]
    %v830 = vld [vmem:[#allocation5 + $0x1408] sm:$0xff]
    %v831 = vld [vmem:[#allocation5 + $0x1410] sm:$0xff]
    %v832 = vld [vmem:[#allocation5 + $0x1418] sm:$0xff]
    %v833 = vld [vmem:[#allocation5 + $0x1420] sm:$0xff]
    %v834 = vld [vmem:[#allocation5 + $0x1428] sm:$0xff]
    %v835 = vld [vmem:[#allocation5 + $0x1430] sm:$0xff]
    %v836 = vld [vmem:[#allocation5 + $0x1438] sm:$0xff]
    %v837 = vld [vmem:[#allocation5 + $0x1440] sm:$0xff]
    %v838 = vld [vmem:[#allocation5 + $0x1448] sm:$0xff]
    %v839 = vld [vmem:[#allocation5 + $0x1450] sm:$0xff]
    %v840 = vld [vmem:[#allocation5 + $0x1458] sm:$0xff]
    %v841 = vld [vmem:[#allocation5 + $0x1460] sm:$0xff]
    %v842 = vld [vmem:[#allocation5 + $0x1468] sm:$0xff]
    %v843 = vld [vmem:[#allocation5 + $0x1470] sm:$0xff]
    %v844 = vld [vmem:[#allocation5 + $0x1478] sm:$0xff]
    %v845 = vld [vmem:[#allocation5 + $0x1480] sm:$0xff]
    %v846 = vld [vmem:[#allocation5 + $0x1488] sm:$0xff]
    %v847 = vld [vmem:[#allocation5 + $0x1490] sm:$0xff]
    %v848 = vld [vmem:[#allocation5 + $0x1498] sm:$0xff]
    %v849 = vld [vmem:[#allocation5 + $0x14a0] sm:$0xff]
    %v850 = vld [vmem:[#allocation5 + $0x14a8] sm:$0xff]
    %v851 = vld [vmem:[#allocation5 + $0x14b0] sm:$0xff]
    %v852 = vld [vmem:[#allocation5 + $0x14b8] sm:$0xff]
    %v853 = vld [vmem:[#allocation5 + $0x14c0] sm:$0xff]
    %v854 = vld [vmem:[#allocation5 + $0x14c8] sm:$0xff]
    %v855 = vld [vmem:[#allocation5 + $0x14d0] sm:$0xff]
    %v856 = vld [vmem:[#allocation5 + $0x14d8] sm:$0xff]
    %v857 = vld [vmem:[#allocation5 + $0x14e0] sm:$0xff]
    %v858 = vld [vmem:[#allocation5 + $0x14e8] sm:$0xff]
    %v859 = vld [vmem:[#allocation5 + $0x14f0] sm:$0xff]
    %v860 = vld [vmem:[#allocation5 + $0x14f8] sm:$0xff]
    %v861 = vld [vmem:[#allocation5 + $0x1500] sm:$0xff]
    %v862 = vld [vmem:[#allocation5 + $0x1508] sm:$0xff]
    %v863 = vld [vmem:[#allocation5 + $0x1510] sm:$0xff]
    %v864 = vld [vmem:[#allocation5 + $0x1518] sm:$0xff]
    %v865 = vld [vmem:[#allocation5 + $0x1520] sm:$0xff]
    %v866 = vld [vmem:[#allocation5 + $0x1528] sm:$0xff]
    %v867 = vld [vmem:[#allocation5 + $0x1530] sm:$0xff]
    %v868 = vld [vmem:[#allocation5 + $0x1538] sm:$0xff]
    %v869 = vld [vmem:[#allocation5 + $0x1540] sm:$0xff]
    %v870 = vld [vmem:[#allocation5 + $0x1548] sm:$0xff]
    %v871 = vld [vmem:[#allocation5 + $0x1550] sm:$0xff]
    %v872 = vld [vmem:[#allocation5 + $0x1558] sm:$0xff]
    %v873 = vld [vmem:[#allocation5 + $0x1560] sm:$0xff]
    %v874 = vld [vmem:[#allocation5 + $0x1568] sm:$0xff]
    %v875 = vld [vmem:[#allocation5 + $0x1570] sm:$0xff]
    %v876 = vld [vmem:[#allocation5 + $0x1578] sm:$0xff]
    %v877 = vld [vmem:[#allocation5 + $0x1580] sm:$0xff]
    %v878 = vld [vmem:[#allocation5 + $0x1588] sm:$0xff]
    %v879 = vld [vmem:[#allocation5 + $0x1590] sm:$0xff]
    %v880 = vld [vmem:[#allocation5 + $0x1598] sm:$0xff]
    %v881 = vld [vmem:[#allocation5 + $0x15a0] sm:$0xff]
    %v882 = vld [vmem:[#allocation5 + $0x15a8] sm:$0xff]
    %v883 = vld [vmem:[#allocation5 + $0x15b0] sm:$0xff]
    %v884 = vld [vmem:[#allocation5 + $0x15b8] sm:$0xff]
    %v885 = vld [vmem:[#allocation5 + $0x15c0] sm:$0xff]
    %v886 = vld [vmem:[#allocation5 + $0x15c8] sm:$0xff]
    %v887 = vld [vmem:[#allocation5 + $0x15d0] sm:$0xff]
    %v888 = vld [vmem:[#allocation5 + $0x15d8] sm:$0xff]
    %v889 = vld [vmem:[#allocation5 + $0x15e0] sm:$0xff]
    %v890 = vld [vmem:[#allocation5 + $0x15e8] sm:$0xff]
    %v891 = vld [vmem:[#allocation5 + $0x15f0] sm:$0xff]
    %v892 = vld [vmem:[#allocation5 + $0x15f8] sm:$0xff]
    %v893 = vld [vmem:[#allocation5 + $0x1600] sm:$0xff]
    %v894 = vld [vmem:[#allocation5 + $0x1608] sm:$0xff]
    %v895 = vld [vmem:[#allocation5 + $0x1610] sm:$0xff]
    %v896 = vld [vmem:[#allocation5 + $0x1618] sm:$0xff]
    %v897 = vld [vmem:[#allocation5 + $0x1620] sm:$0xff]
    %v898 = vld [vmem:[#allocation5 + $0x1628] sm:$0xff]
    %v899 = vld [vmem:[#allocation5 + $0x1630] sm:$0xff]
    %v900 = vld [vmem:[#allocation5 + $0x1638] sm:$0xff]
    %v901 = vld [vmem:[#allocation5 + $0x1640] sm:$0xff]
    %v902 = vld [vmem:[#allocation5 + $0x1648] sm:$0xff]
    %v903 = vld [vmem:[#allocation5 + $0x1650] sm:$0xff]
    %v904 = vld [vmem:[#allocation5 + $0x1658] sm:$0xff]
    %v905 = vld [vmem:[#allocation5 + $0x1660] sm:$0xff]
    %v906 = vld [vmem:[#allocation5 + $0x1668] sm:$0xff]
    %v907 = vld [vmem:[#allocation5 + $0x1670] sm:$0xff]
    %v908 = vld [vmem:[#allocation5 + $0x1678] sm:$0xff]
    %v909 = vld [vmem:[#allocation5 + $0x1680] sm:$0xff]
    %v910 = vld [vmem:[#allocation5 + $0x1688] sm:$0xff]
    %v911 = vld [vmem:[#allocation5 + $0x1690] sm:$0xff]
    %v912 = vld [vmem:[#allocation5 + $0x1698] sm:$0xff]
    %v913 = vld [vmem:[#allocation5 + $0x16a0] sm:$0xff]
    %v914 = vld [vmem:[#allocation5 + $0x16a8] sm:$0xff]
    %v915 = vld [vmem:[#allocation5 + $0x16b0] sm:$0xff]
    %v916 = vld [vmem:[#allocation5 + $0x16b8] sm:$0xff]
    %v917 = vld [vmem:[#allocation5 + $0x16c0] sm:$0xff]
    %v918 = vld [vmem:[#allocation5 + $0x16c8] sm:$0xff]
    %v919 = vld [vmem:[#allocation5 + $0x16d0] sm:$0xff]
    %v920 = vld [vmem:[#allocation5 + $0x16d8] sm:$0xff]
    %v921 = vld [vmem:[#allocation5 + $0x16e0] sm:$0xff]
    %v922 = vld [vmem:[#allocation5 + $0x16e8] sm:$0xff]
    %v923 = vld [vmem:[#allocation5 + $0x16f0] sm:$0xff]
    %v924 = vld [vmem:[#allocation5 + $0x16f8] sm:$0xff]
    %v925 = vld [vmem:[#allocation5 + $0x1700] sm:$0xff]
    %v926 = vld [vmem:[#allocation5 + $0x1708] sm:$0xff]
    %v927 = vld [vmem:[#allocation5 + $0x1710] sm:$0xff]
    %v928 = vld [vmem:[#allocation5 + $0x1718] sm:$0xff]
    %v929 = vld [vmem:[#allocation5 + $0x1720] sm:$0xff]
    %v930 = vld [vmem:[#allocation5 + $0x1728] sm:$0xff]
    %v931 = vld [vmem:[#allocation5 + $0x1730] sm:$0xff]
    %v932 = vld [vmem:[#allocation5 + $0x1738] sm:$0xff]
    %v933 = vld [vmem:[#allocation5 + $0x1740] sm:$0xff]
    %v934 = vld [vmem:[#allocation5 + $0x1748] sm:$0xff]
    %v935 = vld [vmem:[#allocation5 + $0x1750] sm:$0xff]
    %v936 = vld [vmem:[#allocation5 + $0x1758] sm:$0xff]
    %v937 = vld [vmem:[#allocation5 + $0x1760] sm:$0xff]
    %v938 = vld [vmem:[#allocation5 + $0x1768] sm:$0xff]
    %v939 = vld [vmem:[#allocation5 + $0x1770] sm:$0xff]
    %v940 = vld [vmem:[#allocation5 + $0x1778] sm:$0xff]
    %v941 = vld [vmem:[#allocation5 + $0x1780] sm:$0xff]
    %v942 = vld [vmem:[#allocation5 + $0x1788] sm:$0xff]
    %v943 = vld [vmem:[#allocation5 + $0x1790] sm:$0xff]
    %v944 = vld [vmem:[#allocation5 + $0x1798] sm:$0xff]
    %v945 = vld [vmem:[#allocation5 + $0x17a0] sm:$0xff]
    %v946 = vld [vmem:[#allocation5 + $0x17a8] sm:$0xff]
    %v947 = vld [vmem:[#allocation5 + $0x17b0] sm:$0xff]
    %v948 = vld [vmem:[#allocation5 + $0x17b8] sm:$0xff]
    %v949 = vld [vmem:[#allocation5 + $0x17c0] sm:$0xff]
    %v950 = vld [vmem:[#allocation5 + $0x17c8] sm:$0xff]
    %v951 = vld [vmem:[#allocation5 + $0x17d0] sm:$0xff]
    %v952 = vld [vmem:[#allocation5 + $0x17d8] sm:$0xff]
    %v953 = vld [vmem:[#allocation5 + $0x17e0] sm:$0xff]
    %v954 = vld [vmem:[#allocation5 + $0x17e8] sm:$0xff]
    %v955 = vld [vmem:[#allocation5 + $0x17f0] sm:$0xff]
    %v956 = vld [vmem:[#allocation5 + $0x17f8] sm:$0xff]
    %v957 = vld [vmem:[#allocation5 + $0x1800] sm:$0xff]
    %v958 = vld [vmem:[#allocation5 + $0x1808] sm:$0xff]
    %v959 = vld [vmem:[#allocation5 + $0x1810] sm:$0xff]
    %v960 = vld [vmem:[#allocation5 + $0x1818] sm:$0xff]
    %v961 = vld [vmem:[#allocation5 + $0x1820] sm:$0xff]
    %v962 = vld [vmem:[#allocation5 + $0x1828] sm:$0xff]
    %v963 = vld [vmem:[#allocation5 + $0x1830] sm:$0xff]
    %v964 = vld [vmem:[#allocation5 + $0x1838] sm:$0xff]
    %v965 = vld [vmem:[#allocation5 + $0x1840] sm:$0xff]
    %v966 = vld [vmem:[#allocation5 + $0x1848] sm:$0xff]
    %v967 = vld [vmem:[#allocation5 + $0x1850] sm:$0xff]
    %v968 = vld [vmem:[#allocation5 + $0x1858] sm:$0xff]
    %v969 = vld [vmem:[#allocation5 + $0x1860] sm:$0xff]
    %v970 = vld [vmem:[#allocation5 + $0x1868] sm:$0xff]
    %v971 = vld [vmem:[#allocation5 + $0x1870] sm:$0xff]
    %v972 = vld [vmem:[#allocation5 + $0x1878] sm:$0xff]
    %v973 = vld [vmem:[#allocation5 + $0x1880] sm:$0xff]
    %v974 = vld [vmem:[#allocation5 + $0x1888] sm:$0xff]
    %v975 = vld [vmem:[#allocation5 + $0x1890] sm:$0xff]
    %v976 = vld [vmem:[#allocation5 + $0x1898] sm:$0xff]
    %v977 = vld [vmem:[#allocation5 + $0x18a0] sm:$0xff]
    %v978 = vld [vmem:[#allocation5 + $0x18a8] sm:$0xff]
    %v979 = vld [vmem:[#allocation5 + $0x18b0] sm:$0xff]
    %v980 = vld [vmem:[#allocation5 + $0x18b8] sm:$0xff]
    %v981 = vld [vmem:[#allocation5 + $0x18c0] sm:$0xff]
    %v982 = vld [vmem:[#allocation5 + $0x18c8] sm:$0xff]
    %v983 = vld [vmem:[#allocation5 + $0x18d0] sm:$0xff]
    %v984 = vld [vmem:[#allocation5 + $0x18d8] sm:$0xff]
    %v985 = vld [vmem:[#allocation5 + $0x18e0] sm:$0xff]
    %v986 = vld [vmem:[#allocation5 + $0x18e8] sm:$0xff]
    %v987 = vld [vmem:[#allocation5 + $0x18f0] sm:$0xff]
    %v988 = vld [vmem:[#allocation5 + $0x18f8] sm:$0xff]
    %v989 = vld [vmem:[#allocation5 + $0x1900] sm:$0xff]
    %v990 = vld [vmem:[#allocation5 + $0x1908] sm:$0xff]
    %v991 = vld [vmem:[#allocation5 + $0x1910] sm:$0xff]
    %v992 = vld [vmem:[#allocation5 + $0x1918] sm:$0xff]
    %v993 = vld [vmem:[#allocation5 + $0x1920] sm:$0xff]
    %v994 = vld [vmem:[#allocation5 + $0x1928] sm:$0xff]
    %v995 = vld [vmem:[#allocation5 + $0x1930] sm:$0xff]
    %v996 = vld [vmem:[#allocation5 + $0x1938] sm:$0xff]
    %v997 = vld [vmem:[#allocation5 + $0x1940] sm:$0xff]
    %v998 = vld [vmem:[#allocation5 + $0x1948] sm:$0xff]
    %v999 = vld [vmem:[#allocation5 + $0x1950] sm:$0xff]
    %v1000 = vld [vmem:[#allocation5 + $0x1958] sm:$0xff]
    %v1001 = vld [vmem:[#allocation5 + $0x1960] sm:$0xff]
    %v1002 = vld [vmem:[#allocation5 + $0x1968] sm:$0xff]
    %v1003 = vld [vmem:[#allocation5 + $0x1970] sm:$0xff]
    %v1004 = vld [vmem:[#allocation5 + $0x1978] sm:$0xff]
    %v1005 = vld [vmem:[#allocation5 + $0x1980] sm:$0xff]
    %v1006 = vld [vmem:[#allocation5 + $0x1988] sm:$0xff]
    %v1007 = vld [vmem:[#allocation5 + $0x1990] sm:$0xff]
    %v1008 = vld [vmem:[#allocation5 + $0x1998] sm:$0xff]
    %v1009 = vld [vmem:[#allocation5 + $0x19a0] sm:$0xff]
    %v1010 = vld [vmem:[#allocation5 + $0x19a8] sm:$0xff]
    %v1011 = vld [vmem:[#allocation5 + $0x19b0] sm:$0xff]
    %v1012 = vld [vmem:[#allocation5 + $0x19b8] sm:$0xff]
    %v1013 = vld [vmem:[#allocation5 + $0x19c0] sm:$0xff]
    %v1014 = vld [vmem:[#allocation5 + $0x19c8] sm:$0xff]
    %v1015 = vld [vmem:[#allocation5 + $0x19d0] sm:$0xff]
    %v1016 = vld [vmem:[#allocation5 + $0x19d8] sm:$0xff]
    %v1017 = vld [vmem:[#allocation5 + $0x19e0] sm:$0xff]
    %v1018 = vld [vmem:[#allocation5 + $0x19e8] sm:$0xff]
    %v1019 = vld [vmem:[#allocation5 + $0x19f0] sm:$0xff]
    %v1020 = vld [vmem:[#allocation5 + $0x19f8] sm:$0xff]
    %v1021 = vld [vmem:[#allocation5 + $0x1a00] sm:$0xff]
    %v1022 = vld [vmem:[#allocation5 + $0x1a08] sm:$0xff]
    %v1023 = vld [vmem:[#allocation5 + $0x1a10] sm:$0xff]
    %v1024 = vld [vmem:[#allocation5 + $0x1a18] sm:$0xff]
    %v1025 = vld [vmem:[#allocation5 + $0x1a20] sm:$0xff]
    %v1026 = vld [vmem:[#allocation5 + $0x1a28] sm:$0xff]
    %v1027 = vld [vmem:[#allocation5 + $0x1a30] sm:$0xff]
    %v1028 = vld [vmem:[#allocation5 + $0x1a38] sm:$0xff]
    %v1029 = vld [vmem:[#allocation5 + $0x1a40] sm:$0xff]
    %v1030 = vld [vmem:[#allocation5 + $0x1a48] sm:$0xff]
    %v1031 = vld [vmem:[#allocation5 + $0x1a50] sm:$0xff]
    %v1032 = vld [vmem:[#allocation5 + $0x1a58] sm:$0xff]
    %v1033 = vld [vmem:[#allocation5 + $0x1a60] sm:$0xff]
    %v1034 = vld [vmem:[#allocation5 + $0x1a68] sm:$0xff]
    %v1035 = vld [vmem:[#allocation5 + $0x1a70] sm:$0xff]
    %v1036 = vld [vmem:[#allocation5 + $0x1a78] sm:$0xff]
    %v1037 = vld [vmem:[#allocation5 + $0x1a80] sm:$0xff]
    %v1038 = vld [vmem:[#allocation5 + $0x1a88] sm:$0xff]
    %v1039 = vld [vmem:[#allocation5 + $0x1a90] sm:$0xff]
    %v1040 = vld [vmem:[#allocation5 + $0x1a98] sm:$0xff]
    %v1041 = vld [vmem:[#allocation5 + $0x1aa0] sm:$0xff]
    %v1042 = vld [vmem:[#allocation5 + $0x1aa8] sm:$0xff]
    %v1043 = vld [vmem:[#allocation5 + $0x1ab0] sm:$0xff]
    %v1044 = vld [vmem:[#allocation5 + $0x1ab8] sm:$0xff]
    %v1045 = vld [vmem:[#allocation5 + $0x1ac0] sm:$0xff]
    %v1046 = vld [vmem:[#allocation5 + $0x1ac8] sm:$0xff]
    %v1047 = vld [vmem:[#allocation5 + $0x1ad0] sm:$0xff]
    %v1048 = vld [vmem:[#allocation5 + $0x1ad8] sm:$0xff]
    %v1049 = vld [vmem:[#allocation5 + $0x1ae0] sm:$0xff]
    %v1050 = vld [vmem:[#allocation5 + $0x1ae8] sm:$0xff]
    %v1051 = vld [vmem:[#allocation5 + $0x1af0] sm:$0xff]
    %v1052 = vld [vmem:[#allocation5 + $0x1af8] sm:$0xff]
    %v1053 = vld [vmem:[#allocation5 + $0x1b00] sm:$0xff]
    %v1054 = vld [vmem:[#allocation5 + $0x1b08] sm:$0xff]
    %v1055 = vld [vmem:[#allocation5 + $0x1b10] sm:$0xff]
    %v1056 = vld [vmem:[#allocation5 + $0x1b18] sm:$0xff]
    %v1057 = vld [vmem:[#allocation5 + $0x1b20] sm:$0xff]
    %v1058 = vld [vmem:[#allocation5 + $0x1b28] sm:$0xff]
    %v1059 = vld [vmem:[#allocation5 + $0x1b30] sm:$0xff]
    %v1060 = vld [vmem:[#allocation5 + $0x1b38] sm:$0xff]
    %v1061 = vld [vmem:[#allocation5 + $0x1b40] sm:$0xff]
    %v1062 = vld [vmem:[#allocation5 + $0x1b48] sm:$0xff]
    %v1063 = vld [vmem:[#allocation5 + $0x1b50] sm:$0xff]
    %v1064 = vld [vmem:[#allocation5 + $0x1b58] sm:$0xff]
    %v1065 = vld [vmem:[#allocation5 + $0x1b60] sm:$0xff]
    %v1066 = vld [vmem:[#allocation5 + $0x1b68] sm:$0xff]
    %v1067 = vld [vmem:[#allocation5 + $0x1b70] sm:$0xff]
    %v1068 = vld [vmem:[#allocation5 + $0x1b78] sm:$0xff]
    %v1069 = vld [vmem:[#allocation5 + $0x1b80] sm:$0xff]
    %v1070 = vld [vmem:[#allocation5 + $0x1b88] sm:$0xff]
    %v1071 = vld [vmem:[#allocation5 + $0x1b90] sm:$0xff]
    %v1072 = vld [vmem:[#allocation5 + $0x1b98] sm:$0xff]
    %v1073 = vld [vmem:[#allocation5 + $0x1ba0] sm:$0xff]
    %v1074 = vld [vmem:[#allocation5 + $0x1ba8] sm:$0xff]
    %v1075 = vld [vmem:[#allocation5 + $0x1bb0] sm:$0xff]
    %v1076 = vld [vmem:[#allocation5 + $0x1bb8] sm:$0xff]
    %v1077 = vld [vmem:[#allocation5 + $0x1bc0] sm:$0xff]
    %v1078 = vld [vmem:[#allocation5 + $0x1bc8] sm:$0xff]
    %v1079 = vld [vmem:[#allocation5 + $0x1bd0] sm:$0xff]
    %v1080 = vld [vmem:[#allocation5 + $0x1bd8] sm:$0xff]
    %v1081 = vld [vmem:[#allocation5 + $0x1be0] sm:$0xff]
    %v1082 = vld [vmem:[#allocation5 + $0x1be8] sm:$0xff]
    %v1083 = vld [vmem:[#allocation5 + $0x1bf0] sm:$0xff]
    %v1084 = vld [vmem:[#allocation5 + $0x1bf8] sm:$0xff]
    %v1085 = vld [vmem:[#allocation5 + $0x1c00] sm:$0xff]
    %v1086 = vld [vmem:[#allocation5 + $0x1c08] sm:$0xff]
    %v1087 = vld [vmem:[#allocation5 + $0x1c10] sm:$0xff]
    %v1088 = vld [vmem:[#allocation5 + $0x1c18] sm:$0xff]
    %v1089 = vld [vmem:[#allocation5 + $0x1c20] sm:$0xff]
    %v1090 = vld [vmem:[#allocation5 + $0x1c28] sm:$0xff]
    %v1091 = vld [vmem:[#allocation5 + $0x1c30] sm:$0xff]
    %v1092 = vld [vmem:[#allocation5 + $0x1c38] sm:$0xff]
    %v1093 = vld [vmem:[#allocation5 + $0x1c40] sm:$0xff]
    %v1094 = vld [vmem:[#allocation5 + $0x1c48] sm:$0xff]
    %v1095 = vld [vmem:[#allocation5 + $0x1c50] sm:$0xff]
    %v1096 = vld [vmem:[#allocation5 + $0x1c58] sm:$0xff]
    %v1097 = vld [vmem:[#allocation5 + $0x1c60] sm:$0xff]
    %v1098 = vld [vmem:[#allocation5 + $0x1c68] sm:$0xff]
    %v1099 = vld [vmem:[#allocation5 + $0x1c70] sm:$0xff]
    %v1100 = vld [vmem:[#allocation5 + $0x1c78] sm:$0xff]
    %v1101 = vld [vmem:[#allocation5 + $0x1c80] sm:$0xff]
    %v1102 = vld [vmem:[#allocation5 + $0x1c88] sm:$0xff]
    %v1103 = vld [vmem:[#allocation5 + $0x1c90] sm:$0xff]
    %v1104 = vld [vmem:[#allocation5 + $0x1c98] sm:$0xff]
    %v1105 = vld [vmem:[#allocation5 + $0x1ca0] sm:$0xff]
    %v1106 = vld [vmem:[#allocation5 + $0x1ca8] sm:$0xff]
    %v1107 = vld [vmem:[#allocation5 + $0x1cb0] sm:$0xff]
    %v1108 = vld [vmem:[#allocation5 + $0x1cb8] sm:$0xff]
    %v1109 = vld [vmem:[#allocation5 + $0x1cc0] sm:$0xff]
    %v1110 = vld [vmem:[#allocation5 + $0x1cc8] sm:$0xff]
    %v1111 = vld [vmem:[#allocation5 + $0x1cd0] sm:$0xff]
    %v1112 = vld [vmem:[#allocation5 + $0x1cd8] sm:$0xff]
    %v1113 = vld [vmem:[#allocation5 + $0x1ce0] sm:$0xff]
    %v1114 = vld [vmem:[#allocation5 + $0x1ce8] sm:$0xff]
    %v1115 = vld [vmem:[#allocation5 + $0x1cf0] sm:$0xff]
    %v1116 = vld [vmem:[#allocation5 + $0x1cf8] sm:$0xff]
    %v1117 = vld [vmem:[#allocation5 + $0x1d00] sm:$0xff]
    %v1118 = vld [vmem:[#allocation5 + $0x1d08] sm:$0xff]
    %v1119 = vld [vmem:[#allocation5 + $0x1d10] sm:$0xff]
    %v1120 = vld [vmem:[#allocation5 + $0x1d18] sm:$0xff]
    %v1121 = vld [vmem:[#allocation5 + $0x1d20] sm:$0xff]
    %v1122 = vld [vmem:[#allocation5 + $0x1d28] sm:$0xff]
    %v1123 = vld [vmem:[#allocation5 + $0x1d30] sm:$0xff]
    %v1124 = vld [vmem:[#allocation5 + $0x1d38] sm:$0xff]
    %v1125 = vld [vmem:[#allocation5 + $0x1d40] sm:$0xff]
    %v1126 = vld [vmem:[#allocation5 + $0x1d48] sm:$0xff]
    %v1127 = vld [vmem:[#allocation5 + $0x1d50] sm:$0xff]
    %v1128 = vld [vmem:[#allocation5 + $0x1d58] sm:$0xff]
    %v1129 = vld [vmem:[#allocation5 + $0x1d60] sm:$0xff]
    %v1130 = vld [vmem:[#allocation5 + $0x1d68] sm:$0xff]
    %v1131 = vld [vmem:[#allocation5 + $0x1d70] sm:$0xff]
    %v1132 = vld [vmem:[#allocation5 + $0x1d78] sm:$0xff]
    %v1133 = vld [vmem:[#allocation5 + $0x1d80] sm:$0xff]
    %v1134 = vld [vmem:[#allocation5 + $0x1d88] sm:$0xff]
    %v1135 = vld [vmem:[#allocation5 + $0x1d90] sm:$0xff]
    %v1136 = vld [vmem:[#allocation5 + $0x1d98] sm:$0xff]
    %v1137 = vld [vmem:[#allocation5 + $0x1da0] sm:$0xff]
    %v1138 = vld [vmem:[#allocation5 + $0x1da8] sm:$0xff]
    %v1139 = vld [vmem:[#allocation5 + $0x1db0] sm:$0xff]
    %v1140 = vld [vmem:[#allocation5 + $0x1db8] sm:$0xff]
    %v1141 = vld [vmem:[#allocation5 + $0x1dc0] sm:$0xff]
    %v1142 = vld [vmem:[#allocation5 + $0x1dc8] sm:$0xff]
    %v1143 = vld [vmem:[#allocation5 + $0x1dd0] sm:$0xff]
    %v1144 = vld [vmem:[#allocation5 + $0x1dd8] sm:$0xff]
    %v1145 = vld [vmem:[#allocation5 + $0x1de0] sm:$0xff]
    %v1146 = vld [vmem:[#allocation5 + $0x1de8] sm:$0xff]
    %v1147 = vld [vmem:[#allocation5 + $0x1df0] sm:$0xff]
    %v1148 = vld [vmem:[#allocation5 + $0x1df8] sm:$0xff]
    %v1149 = vld [vmem:[#allocation5 + $0x1e00] sm:$0xff]
    %v1150 = vld [vmem:[#allocation5 + $0x1e08] sm:$0xff]
    %v1151 = vld [vmem:[#allocation5 + $0x1e10] sm:$0xff]
    %v1152 = vld [vmem:[#allocation5 + $0x1e18] sm:$0xff]
    %v1153 = vld [vmem:[#allocation5 + $0x1e20] sm:$0xff]
    %v1154 = vld [vmem:[#allocation5 + $0x1e28] sm:$0xff]
    %v1155 = vld [vmem:[#allocation5 + $0x1e30] sm:$0xff]
    %v1156 = vld [vmem:[#allocation5 + $0x1e38] sm:$0xff]
    %v1157 = vld [vmem:[#allocation5 + $0x1e40] sm:$0xff]
    %v1158 = vld [vmem:[#allocation5 + $0x1e48] sm:$0xff]
    %v1159 = vld [vmem:[#allocation5 + $0x1e50] sm:$0xff]
    %v1160 = vld [vmem:[#allocation5 + $0x1e58] sm:$0xff]
    %v1161 = vld [vmem:[#allocation5 + $0x1e60] sm:$0xff]
    %v1162 = vld [vmem:[#allocation5 + $0x1e68] sm:$0xff]
    %v1163 = vld [vmem:[#allocation5 + $0x1e70] sm:$0xff]
    %v1164 = vld [vmem:[#allocation5 + $0x1e78] sm:$0xff]
    %v1165 = vld [vmem:[#allocation5 + $0x1e80] sm:$0xff]
    %v1166 = vld [vmem:[#allocation5 + $0x1e88] sm:$0xff]
    %v1167 = vld [vmem:[#allocation5 + $0x1e90] sm:$0xff]
    %v1168 = vld [vmem:[#allocation5 + $0x1e98] sm:$0xff]
    %v1169 = vld [vmem:[#allocation5 + $0x1ea0] sm:$0xff]
    %v1170 = vld [vmem:[#allocation5 + $0x1ea8] sm:$0xff]
    %v1171 = vld [vmem:[#allocation5 + $0x1eb0] sm:$0xff]
    %v1172 = vld [vmem:[#allocation5 + $0x1eb8] sm:$0xff]
    %v1173 = vld [vmem:[#allocation5 + $0x1ec0] sm:$0xff]
    %v1174 = vld [vmem:[#allocation5 + $0x1ec8] sm:$0xff]
    %v1175 = vld [vmem:[#allocation5 + $0x1ed0] sm:$0xff]
    %v1176 = vld [vmem:[#allocation5 + $0x1ed8] sm:$0xff]
    %v1177 = vld [vmem:[#allocation5 + $0x1ee0] sm:$0xff]
    %v1178 = vld [vmem:[#allocation5 + $0x1ee8] sm:$0xff]
    %v1179 = vld [vmem:[#allocation5 + $0x1ef0] sm:$0xff]
    %v1180 = vld [vmem:[#allocation5 + $0x1ef8] sm:$0xff]
    %v1181 = vld [vmem:[#allocation5 + $0x1f00] sm:$0xff]
    %v1182 = vld [vmem:[#allocation5 + $0x1f08] sm:$0xff]
    %v1183 = vld [vmem:[#allocation5 + $0x1f10] sm:$0xff]
    %v1184 = vld [vmem:[#allocation5 + $0x1f18] sm:$0xff]
    %v1185 = vld [vmem:[#allocation5 + $0x1f20] sm:$0xff]
    %v1186 = vld [vmem:[#allocation5 + $0x1f28] sm:$0xff]
    %v1187 = vld [vmem:[#allocation5 + $0x1f30] sm:$0xff]
    %v1188 = vld [vmem:[#allocation5 + $0x1f38] sm:$0xff]
    %v1189 = vld [vmem:[#allocation5 + $0x1f40] sm:$0xff]
    %v1190 = vld [vmem:[#allocation5 + $0x1f48] sm:$0xff]
    %v1191 = vld [vmem:[#allocation5 + $0x1f50] sm:$0xff]
    %v1192 = vld [vmem:[#allocation5 + $0x1f58] sm:$0xff]
    %v1193 = vld [vmem:[#allocation5 + $0x1f60] sm:$0xff]
    %v1194 = vld [vmem:[#allocation5 + $0x1f68] sm:$0xff]
    %v1195 = vld [vmem:[#allocation5 + $0x1f70] sm:$0xff]
    %v1196 = vld [vmem:[#allocation5 + $0x1f78] sm:$0xff]
    %v1197 = vld [vmem:[#allocation5 + $0x1f80] sm:$0xff]
    %v1198 = vld [vmem:[#allocation5 + $0x1f88] sm:$0xff]
    %v1199 = vld [vmem:[#allocation5 + $0x1f90] sm:$0xff]
    %v1200 = vld [vmem:[#allocation5 + $0x1f98] sm:$0xff]
    %v1201 = vld [vmem:[#allocation5 + $0x1fa0] sm:$0xff]
    %v1202 = vld [vmem:[#allocation5 + $0x1fa8] sm:$0xff]
    %v1203 = vld [vmem:[#allocation5 + $0x1fb0] sm:$0xff]
    %v1204 = vld [vmem:[#allocation5 + $0x1fb8] sm:$0xff]
    %v1205 = vld [vmem:[#allocation5 + $0x1fc0] sm:$0xff]
    %v1206 = vld [vmem:[#allocation5 + $0x1fc8] sm:$0xff]
    %v1207 = vld [vmem:[#allocation5 + $0x1fd0] sm:$0xff]
    %v1208 = vld [vmem:[#allocation5 + $0x1fd8] sm:$0xff]
    %v1209 = vld [vmem:[#allocation5 + $0x1fe0] sm:$0xff]
    %v1210 = vld [vmem:[#allocation5 + $0x1fe8] sm:$0xff]
    %v1211 = vld [vmem:[#allocation5 + $0x1ff0] sm:$0xff]
    %v1212 = vld [vmem:[#allocation5 + $0x1ff8] sm:$0xff]
    %v1213 = vld [vmem:[#allocation5 + $0x2000] sm:$0xff]
    %v1214 = vld [vmem:[#allocation5 + $0x2008] sm:$0xff]
    %v1215 = vld [vmem:[#allocation5 + $0x2010] sm:$0xff]
    %v1216 = vld [vmem:[#allocation5 + $0x2018] sm:$0xff]
    %v1217 = vld [vmem:[#allocation5 + $0x2020] sm:$0xff]
    %v1218 = vld [vmem:[#allocation5 + $0x2028] sm:$0xff]
    %v1219 = vld [vmem:[#allocation5 + $0x2030] sm:$0xff]
    %v1220 = vld [vmem:[#allocation5 + $0x2038] sm:$0xff]
    %v1221 = vld [vmem:[#allocation5 + $0x2040] sm:$0xff]
    %v1222 = vld [vmem:[#allocation5 + $0x2048] sm:$0xff]
    %v1223 = vld [vmem:[#allocation5 + $0x2050] sm:$0xff]
    %v1224 = vld [vmem:[#allocation5 + $0x2058] sm:$0xff]
    %v1225 = vld [vmem:[#allocation5 + $0x2060] sm:$0xff]
    %v1226 = vld [vmem:[#allocation5 + $0x2068] sm:$0xff]
    %v1227 = vld [vmem:[#allocation5 + $0x2070] sm:$0xff]
    %v1228 = vld [vmem:[#allocation5 + $0x2078] sm:$0xff]
    %v1229 = vld [vmem:[#allocation5 + $0x2080] sm:$0xff]
    %v1230 = vld [vmem:[#allocation5 + $0x2088] sm:$0xff]
    %v1231 = vld [vmem:[#allocation5 + $0x2090] sm:$0xff]
    %v1232 = vld [vmem:[#allocation5 + $0x2098] sm:$0xff]
    %v1233 = vld [vmem:[#allocation5 + $0x20a0] sm:$0xff]
    %v1234 = vld [vmem:[#allocation5 + $0x20a8] sm:$0xff]
    %v1235 = vld [vmem:[#allocation5 + $0x20b0] sm:$0xff]
    %v1236 = vld [vmem:[#allocation5 + $0x20b8] sm:$0xff]
    %v1237 = vld [vmem:[#allocation5 + $0x20c0] sm:$0xff]
    %v1238 = vld [vmem:[#allocation5 + $0x20c8] sm:$0xff]
    %v1239 = vld [vmem:[#allocation5 + $0x20d0] sm:$0xff]
    %v1240 = vld [vmem:[#allocation5 + $0x20d8] sm:$0xff]
    %v1241 = vld [vmem:[#allocation5 + $0x20e0] sm:$0xff]
    %v1242 = vld [vmem:[#allocation5 + $0x20e8] sm:$0xff]
    %v1243 = vld [vmem:[#allocation5 + $0x20f0] sm:$0xff]
    %v1244 = vld [vmem:[#allocation5 + $0x20f8] sm:$0xff]
    %v1245 = vld [vmem:[#allocation5 + $0x2100] sm:$0xff]
    %v1246 = vld [vmem:[#allocation5 + $0x2108] sm:$0xff]
    %v1247 = vld [vmem:[#allocation5 + $0x2110] sm:$0xff]
    %v1248 = vld [vmem:[#allocation5 + $0x2118] sm:$0xff]
    %v1249 = vld [vmem:[#allocation5 + $0x2120] sm:$0xff]
    %v1250 = vld [vmem:[#allocation5 + $0x2128] sm:$0xff]
    %v1251 = vld [vmem:[#allocation5 + $0x2130] sm:$0xff]
    %v1252 = vld [vmem:[#allocation5 + $0x2138] sm:$0xff]
    %v1253 = vld [vmem:[#allocation5 + $0x2140] sm:$0xff]
    %v1254 = vld [vmem:[#allocation5 + $0x2148] sm:$0xff]
    %v1255 = vld [vmem:[#allocation5 + $0x2150] sm:$0xff]
    %v1256 = vld [vmem:[#allocation5 + $0x2158] sm:$0xff]
    %v1257 = vld [vmem:[#allocation5 + $0x2160] sm:$0xff]
    %v1258 = vld [vmem:[#allocation5 + $0x2168] sm:$0xff]
    %v1259 = vld [vmem:[#allocation5 + $0x2170] sm:$0xff]
    %v1260 = vld [vmem:[#allocation5 + $0x2178] sm:$0xff]
    %v1261 = vld [vmem:[#allocation5 + $0x2180] sm:$0xff]
    %v1262 = vld [vmem:[#allocation5 + $0x2188] sm:$0xff]
    %v1263 = vld [vmem:[#allocation5 + $0x2190] sm:$0xff]
    %v1264 = vld [vmem:[#allocation5 + $0x2198] sm:$0xff]
    %v1265 = vld [vmem:[#allocation5 + $0x21a0] sm:$0xff]
    %v1266 = vld [vmem:[#allocation5 + $0x21a8] sm:$0xff]
    %v1267 = vld [vmem:[#allocation5 + $0x21b0] sm:$0xff]
    %v1268 = vld [vmem:[#allocation5 + $0x21b8] sm:$0xff]
    %v1269 = vld [vmem:[#allocation5 + $0x21c0] sm:$0xff]
    %v1270 = vld [vmem:[#allocation5 + $0x21c8] sm:$0xff]
    %v1271 = vld [vmem:[#allocation5 + $0x21d0] sm:$0xff]
    %v1272 = vld [vmem:[#allocation5 + $0x21d8] sm:$0xff]
    %v1273 = vld [vmem:[#allocation5 + $0x21e0] sm:$0xff]
    %v1274 = vld [vmem:[#allocation5 + $0x21e8] sm:$0xff]
    %v1275 = vld [vmem:[#allocation5 + $0x21f0] sm:$0xff]
    %v1276 = vld [vmem:[#allocation5 + $0x21f8] sm:$0xff]
    %v1277 = vld [vmem:[#allocation5 + $0x2200] sm:$0xff]
    %v1278 = vld [vmem:[#allocation5 + $0x2208] sm:$0xff]
    %v1279 = vld [vmem:[#allocation5 + $0x2210] sm:$0xff]
    %v1280 = vld [vmem:[#allocation5 + $0x2218] sm:$0xff]
    %v1281 = vld [vmem:[#allocation5 + $0x2220] sm:$0xff]
    %v1282 = vld [vmem:[#allocation5 + $0x2228] sm:$0xff]
    %v1283 = vld [vmem:[#allocation5 + $0x2230] sm:$0xff]
    %v1284 = vld [vmem:[#allocation5 + $0x2238] sm:$0xff]
    %v1285 = vld [vmem:[#allocation5 + $0x2240] sm:$0xff]
    %v1286 = vld [vmem:[#allocation5 + $0x2248] sm:$0xff]
    %v1287 = vld [vmem:[#allocation5 + $0x2250] sm:$0xff]
    %v1288 = vld [vmem:[#allocation5 + $0x2258] sm:$0xff]
    %v1289 = vld [vmem:[#allocation5 + $0x2260] sm:$0xff]
    %v1290 = vld [vmem:[#allocation5 + $0x2268] sm:$0xff]
    %v1291 = vld [vmem:[#allocation5 + $0x2270] sm:$0xff]
    %v1292 = vld [vmem:[#allocation5 + $0x2278] sm:$0xff]
    %v1293 = vld [vmem:[#allocation5 + $0x2280] sm:$0xff]
    %v1294 = vld [vmem:[#allocation5 + $0x2288] sm:$0xff]
    %v1295 = vld [vmem:[#allocation5 + $0x2290] sm:$0xff]
    %v1296 = vld [vmem:[#allocation5 + $0x2298] sm:$0xff]
    %v1297 = vld [vmem:[#allocation5 + $0x22a0] sm:$0xff]
    %v1298 = vld [vmem:[#allocation5 + $0x22a8] sm:$0xff]
    %v1299 = vld [vmem:[#allocation5 + $0x22b0] sm:$0xff]
    %v1300 = vld [vmem:[#allocation5 + $0x22b8] sm:$0xff]
    %v1301 = vld [vmem:[#allocation5 + $0x22c0] sm:$0xff]
    %v1302 = vld [vmem:[#allocation5 + $0x22c8] sm:$0xff]
    %v1303 = vld [vmem:[#allocation5 + $0x22d0] sm:$0xff]
    %v1304 = vld [vmem:[#allocation5 + $0x22d8] sm:$0xff]
    %v1305 = vld [vmem:[#allocation5 + $0x22e0] sm:$0xff]
    %v1306 = vld [vmem:[#allocation5 + $0x22e8] sm:$0xff]
    %v1307 = vld [vmem:[#allocation5 + $0x22f0] sm:$0xff]
    %v1308 = vld [vmem:[#allocation5 + $0x22f8] sm:$0xff]
    %v1309 = vld [vmem:[#allocation5 + $0x2300] sm:$0xff]
    %v1310 = vld [vmem:[#allocation5 + $0x2308] sm:$0xff]
    %v1311 = vld [vmem:[#allocation5 + $0x2310] sm:$0xff]
    %v1312 = vld [vmem:[#allocation5 + $0x2318] sm:$0xff]
    %v1313 = vld [vmem:[#allocation5 + $0x2320] sm:$0xff]
    %v1314 = vld [vmem:[#allocation5 + $0x2328] sm:$0xff]
    %v1315 = vld [vmem:[#allocation5 + $0x2330] sm:$0xff]
    %v1316 = vld [vmem:[#allocation5 + $0x2338] sm:$0xff]
    %v1317 = vld [vmem:[#allocation5 + $0x2340] sm:$0xff]
    %v1318 = vld [vmem:[#allocation5 + $0x2348] sm:$0xff]
    %v1319 = vld [vmem:[#allocation5 + $0x2350] sm:$0xff]
    %v1320 = vld [vmem:[#allocation5 + $0x2358] sm:$0xff]
    %v1321 = vld [vmem:[#allocation5 + $0x2360] sm:$0xff]
    %v1322 = vld [vmem:[#allocation5 + $0x2368] sm:$0xff]
    %v1323 = vld [vmem:[#allocation5 + $0x2370] sm:$0xff]
    %v1324 = vld [vmem:[#allocation5 + $0x2378] sm:$0xff]
    %v1325 = vld [vmem:[#allocation5 + $0x2380] sm:$0xff]
    %v1326 = vld [vmem:[#allocation5 + $0x2388] sm:$0xff]
    %v1327 = vld [vmem:[#allocation5 + $0x2390] sm:$0xff]
    %v1328 = vld [vmem:[#allocation5 + $0x2398] sm:$0xff]
    %v1329 = vld [vmem:[#allocation5 + $0x23a0] sm:$0xff]
    %v1330 = vld [vmem:[#allocation5 + $0x23a8] sm:$0xff]
    %v1331 = vld [vmem:[#allocation5 + $0x23b0] sm:$0xff]
    %v1332 = vld [vmem:[#allocation5 + $0x23b8] sm:$0xff]
    %v1333 = vld [vmem:[#allocation5 + $0x23c0] sm:$0xff]
    %v1334 = vld [vmem:[#allocation5 + $0x23c8] sm:$0xff]
    %v1335 = vld [vmem:[#allocation5 + $0x23d0] sm:$0xff]
    %v1336 = vld [vmem:[#allocation5 + $0x23d8] sm:$0xff]
    %v1337 = vld [vmem:[#allocation5 + $0x23e0] sm:$0xff]
    %v1338 = vld [vmem:[#allocation5 + $0x23e8] sm:$0xff]
    %v1339 = vld [vmem:[#allocation5 + $0x23f0] sm:$0xff]
    %v1340 = vld [vmem:[#allocation5 + $0x23f8] sm:$0xff]
    %v1341 = vld [vmem:[#allocation5 + $0x2400] sm:$0xff]
    %v1342 = vld [vmem:[#allocation5 + $0x2408] sm:$0xff]
    %v1343 = vld [vmem:[#allocation5 + $0x2410] sm:$0xff]
    %v1344 = vld [vmem:[#allocation5 + $0x2418] sm:$0xff]
    %v1345 = vld [vmem:[#allocation5 + $0x2420] sm:$0xff]
    %v1346 = vld [vmem:[#allocation5 + $0x2428] sm:$0xff]
    %v1347 = vld [vmem:[#allocation5 + $0x2430] sm:$0xff]
    %v1348 = vld [vmem:[#allocation5 + $0x2438] sm:$0xff]
    %v1349 = vld [vmem:[#allocation5 + $0x2440] sm:$0xff]
    %v1350 = vld [vmem:[#allocation5 + $0x2448] sm:$0xff]
    %v1351 = vld [vmem:[#allocation5 + $0x2450] sm:$0xff]
    %v1352 = vld [vmem:[#allocation5 + $0x2458] sm:$0xff]
    %v1353 = vld [vmem:[#allocation5 + $0x2460] sm:$0xff]
    %v1354 = vld [vmem:[#allocation5 + $0x2468] sm:$0xff]
    %v1355 = vld [vmem:[#allocation5 + $0x2470] sm:$0xff]
    %v1356 = vld [vmem:[#allocation5 + $0x2478] sm:$0xff]
    %v1357 = vld [vmem:[#allocation5 + $0x2480] sm:$0xff]
    %v1358 = vld [vmem:[#allocation5 + $0x2488] sm:$0xff]
    %v1359 = vld [vmem:[#allocation5 + $0x2490] sm:$0xff]
    %v1360 = vld [vmem:[#allocation5 + $0x2498] sm:$0xff]
    %v1361 = vld [vmem:[#allocation5 + $0x24a0] sm:$0xff]
    %v1362 = vld [vmem:[#allocation5 + $0x24a8] sm:$0xff]
    %v1363 = vld [vmem:[#allocation5 + $0x24b0] sm:$0xff]
    %v1364 = vld [vmem:[#allocation5 + $0x24b8] sm:$0xff]
    %v1365 = vld [vmem:[#allocation5 + $0x24c0] sm:$0xff]
    %v1366 = vld [vmem:[#allocation5 + $0x24c8] sm:$0xff]
    %v1367 = vld [vmem:[#allocation5 + $0x24d0] sm:$0xff]
    %v1368 = vld [vmem:[#allocation5 + $0x24d8] sm:$0xff]
    %v1369 = vld [vmem:[#allocation5 + $0x24e0] sm:$0xff]
    %v1370 = vld [vmem:[#allocation5 + $0x24e8] sm:$0xff]
    %v1371 = vld [vmem:[#allocation5 + $0x24f0] sm:$0xff]
    %v1372 = vld [vmem:[#allocation5 + $0x24f8] sm:$0xff]
    %v1373 = vld [vmem:[#allocation5 + $0x2500] sm:$0xff]
    %v1374 = vld [vmem:[#allocation5 + $0x2508] sm:$0xff]
    %v1375 = vld [vmem:[#allocation5 + $0x2510] sm:$0xff]
    %v1376 = vld [vmem:[#allocation5 + $0x2518] sm:$0xff]
    %v1377 = vld [vmem:[#allocation5 + $0x2520] sm:$0xff]
    %v1378 = vld [vmem:[#allocation5 + $0x2528] sm:$0xff]
    %v1379 = vld [vmem:[#allocation5 + $0x2530] sm:$0xff]
    %v1380 = vld [vmem:[#allocation5 + $0x2538] sm:$0xff]
    %v1381 = vld [vmem:[#allocation5 + $0x2540] sm:$0xff]
    %v1382 = vld [vmem:[#allocation5 + $0x2548] sm:$0xff]
    %v1383 = vld [vmem:[#allocation5 + $0x2550] sm:$0xff]
    %v1384 = vld [vmem:[#allocation5 + $0x2558] sm:$0xff]
    %v1385 = vld [vmem:[#allocation5 + $0x2560] sm:$0xff]
    %v1386 = vld [vmem:[#allocation5 + $0x2568] sm:$0xff]
    %v1387 = vld [vmem:[#allocation5 + $0x2570] sm:$0xff]
    %v1388 = vld [vmem:[#allocation5 + $0x2578] sm:$0xff]
    %v1389 = vld [vmem:[#allocation5 + $0x2580] sm:$0xff]
    %v1390 = vld [vmem:[#allocation5 + $0x2588] sm:$0xff]
    %v1391 = vld [vmem:[#allocation5 + $0x2590] sm:$0xff]
    %v1392 = vld [vmem:[#allocation5 + $0x2598] sm:$0xff]
    %v1393 = vld [vmem:[#allocation5 + $0x25a0] sm:$0xff]
    %v1394 = vld [vmem:[#allocation5 + $0x25a8] sm:$0xff]
    %v1395 = vld [vmem:[#allocation5 + $0x25b0] sm:$0xff]
    %v1396 = vld [vmem:[#allocation5 + $0x25b8] sm:$0xff]
    %v1397 = vld [vmem:[#allocation5 + $0x25c0] sm:$0xff]
    %v1398 = vld [vmem:[#allocation5 + $0x25c8] sm:$0xff]
    %v1399 = vld [vmem:[#allocation5 + $0x25d0] sm:$0xff]
    %v1400 = vld [vmem:[#allocation5 + $0x25d8] sm:$0xff]
    %v1401 = vld [vmem:[#allocation5 + $0x25e0] sm:$0xff]
    %v1402 = vld [vmem:[#allocation5 + $0x25e8] sm:$0xff]
    %v1403 = vld [vmem:[#allocation5 + $0x25f0] sm:$0xff]
    %v1404 = vld [vmem:[#allocation5 + $0x25f8] sm:$0xff]
    %v1405 = vld [vmem:[#allocation5 + $0x2600] sm:$0xff]
    %v1406 = vld [vmem:[#allocation5 + $0x2608] sm:$0xff]
    %v1407 = vld [vmem:[#allocation5 + $0x2610] sm:$0xff]
    %v1408 = vld [vmem:[#allocation5 + $0x2618] sm:$0xff]
    %v1409 = vld [vmem:[#allocation5 + $0x2620] sm:$0xff]
    %v1410 = vld [vmem:[#allocation5 + $0x2628] sm:$0xff]
    %v1411 = vld [vmem:[#allocation5 + $0x2630] sm:$0xff]
    %v1412 = vld [vmem:[#allocation5 + $0x2638] sm:$0xff]
    %v1413 = vld [vmem:[#allocation5 + $0x2640] sm:$0xff]
    %v1414 = vld [vmem:[#allocation5 + $0x2648] sm:$0xff]
    %v1415 = vld [vmem:[#allocation5 + $0x2650] sm:$0xff]
    %v1416 = vld [vmem:[#allocation5 + $0x2658] sm:$0xff]
    %v1417 = vld [vmem:[#allocation5 + $0x2660] sm:$0xff]
    %v1418 = vld [vmem:[#allocation5 + $0x2668] sm:$0xff]
    %v1419 = vld [vmem:[#allocation5 + $0x2670] sm:$0xff]
    %v1420 = vld [vmem:[#allocation5 + $0x2678] sm:$0xff]
    %v1421 = vld [vmem:[#allocation5 + $0x2680] sm:$0xff]
    %v1422 = vld [vmem:[#allocation5 + $0x2688] sm:$0xff]
    %v1423 = vld [vmem:[#allocation5 + $0x2690] sm:$0xff]
    %v1424 = vld [vmem:[#allocation5 + $0x2698] sm:$0xff]
    %v1425 = vld [vmem:[#allocation5 + $0x26a0] sm:$0xff]
    %v1426 = vld [vmem:[#allocation5 + $0x26a8] sm:$0xff]
    %v1427 = vld [vmem:[#allocation5 + $0x26b0] sm:$0xff]
    %v1428 = vld [vmem:[#allocation5 + $0x26b8] sm:$0xff]
    %v1429 = vld [vmem:[#allocation5 + $0x26c0] sm:$0xff]
    %v1430 = vld [vmem:[#allocation5 + $0x26c8] sm:$0xff]
    %v1431 = vld [vmem:[#allocation5 + $0x26d0] sm:$0xff]
    %v1432 = vld [vmem:[#allocation5 + $0x26d8] sm:$0xff]
    %v1433 = vld [vmem:[#allocation5 + $0x26e0] sm:$0xff]
    %v1434 = vld [vmem:[#allocation5 + $0x26e8] sm:$0xff]
    %v1435 = vld [vmem:[#allocation5 + $0x26f0] sm:$0xff]
    %v1436 = vld [vmem:[#allocation5 + $0x26f8] sm:$0xff]
    %v1437 = vld [vmem:[#allocation5 + $0x2700] sm:$0xff]
    %v1438 = vld [vmem:[#allocation5 + $0x2708] sm:$0xff]
    %v1439 = vld [vmem:[#allocation5 + $0x2710] sm:$0xff]
    %v1440 = vld [vmem:[#allocation5 + $0x2718] sm:$0xff]
    %v1441 = vld [vmem:[#allocation5 + $0x2720] sm:$0xff]
    %v1442 = vld [vmem:[#allocation5 + $0x2728] sm:$0xff]
    %v1443 = vld [vmem:[#allocation5 + $0x2730] sm:$0xff]
    %v1444 = vld [vmem:[#allocation5 + $0x2738] sm:$0xff]
    %v1445 = vld [vmem:[#allocation5 + $0x2740] sm:$0xff]
    %v1446 = vld [vmem:[#allocation5 + $0x2748] sm:$0xff]
    %v1447 = vld [vmem:[#allocation5 + $0x2750] sm:$0xff]
    %v1448 = vld [vmem:[#allocation5 + $0x2758] sm:$0xff]
    %v1449 = vld [vmem:[#allocation5 + $0x2760] sm:$0xff]
    %v1450 = vld [vmem:[#allocation5 + $0x2768] sm:$0xff]
    %v1451 = vld [vmem:[#allocation5 + $0x2770] sm:$0xff]
    %v1452 = vld [vmem:[#allocation5 + $0x2778] sm:$0xff]
    %v1453 = vld [vmem:[#allocation5 + $0x2780] sm:$0xff]
    %v1454 = vld [vmem:[#allocation5 + $0x2788] sm:$0xff]
    %v1455 = vld [vmem:[#allocation5 + $0x2790] sm:$0xff]
    %v1456 = vld [vmem:[#allocation5 + $0x2798] sm:$0xff]
    %v1457 = vld [vmem:[#allocation5 + $0x27a0] sm:$0xff]
    %v1458 = vld [vmem:[#allocation5 + $0x27a8] sm:$0xff]
    %v1459 = vld [vmem:[#allocation5 + $0x27b0] sm:$0xff]
    %v1460 = vld [vmem:[#allocation5 + $0x27b8] sm:$0xff]
    %v1461 = vld [vmem:[#allocation5 + $0x27c0] sm:$0xff]
    %v1462 = vld [vmem:[#allocation5 + $0x27c8] sm:$0xff]
    %v1463 = vld [vmem:[#allocation5 + $0x27d0] sm:$0xff]
    %v1464 = vld [vmem:[#allocation5 + $0x27d8] sm:$0xff]
    %v1465 = vld [vmem:[#allocation5 + $0x27e0] sm:$0xff]
    %v1466 = vld [vmem:[#allocation5 + $0x27e8] sm:$0xff]
    %v1467 = vld [vmem:[#allocation5 + $0x27f0] sm:$0xff]
    %v1468 = vld [vmem:[#allocation5 + $0x27f8] sm:$0xff]
    %v1469 = vld [vmem:[#allocation5 + $0x2800] sm:$0xff]
    %v1470 = vld [vmem:[#allocation5 + $0x2808] sm:$0xff]
    %v1471 = vld [vmem:[#allocation5 + $0x2810] sm:$0xff]
    %v1472 = vld [vmem:[#allocation5 + $0x2818] sm:$0xff]
    %v1473 = vld [vmem:[#allocation5 + $0x2820] sm:$0xff]
    %v1474 = vld [vmem:[#allocation5 + $0x2828] sm:$0xff]
    %v1475 = vld [vmem:[#allocation5 + $0x2830] sm:$0xff]
    %v1476 = vld [vmem:[#allocation5 + $0x2838] sm:$0xff]
    %v1477 = vld [vmem:[#allocation5 + $0x2840] sm:$0xff]
    %v1478 = vld [vmem:[#allocation5 + $0x2848] sm:$0xff]
    %v1479 = vld [vmem:[#allocation5 + $0x2850] sm:$0xff]
    %v1480 = vld [vmem:[#allocation5 + $0x2858] sm:$0xff]
    %v1481 = vld [vmem:[#allocation5 + $0x2860] sm:$0xff]
    %v1482 = vld [vmem:[#allocation5 + $0x2868] sm:$0xff]
    %v1483 = vld [vmem:[#allocation5 + $0x2870] sm:$0xff]
    %v1484 = vld [vmem:[#allocation5 + $0x2878] sm:$0xff]
    %v1485 = vld [vmem:[#allocation5 + $0x2880] sm:$0xff]
    %v1486 = vld [vmem:[#allocation5 + $0x2888] sm:$0xff]
    %v1487 = vld [vmem:[#allocation5 + $0x2890] sm:$0xff]
    %v1488 = vld [vmem:[#allocation5 + $0x2898] sm:$0xff]
    %v1489 = vld [vmem:[#allocation5 + $0x28a0] sm:$0xff]
    %v1490 = vld [vmem:[#allocation5 + $0x28a8] sm:$0xff]
    %v1491 = vld [vmem:[#allocation5 + $0x28b0] sm:$0xff]
    %v1492 = vld [vmem:[#allocation5 + $0x28b8] sm:$0xff]
    %v1493 = vld [vmem:[#allocation5 + $0x28c0] sm:$0xff]
    %v1494 = vld [vmem:[#allocation5 + $0x28c8] sm:$0xff]
    %v1495 = vld [vmem:[#allocation5 + $0x28d0] sm:$0xff]
    %v1496 = vld [vmem:[#allocation5 + $0x28d8] sm:$0xff]
    %v1497 = vld [vmem:[#allocation5 + $0x28e0] sm:$0xff]
    %v1498 = vld [vmem:[#allocation5 + $0x28e8] sm:$0xff]
    %v1499 = vld [vmem:[#allocation5 + $0x28f0] sm:$0xff]
    %v1500 = vld [vmem:[#allocation5 + $0x28f8] sm:$0xff]
    %v1501 = vld [vmem:[#allocation5 + $0x2900] sm:$0xff]
    %v1502 = vld [vmem:[#allocation5 + $0x2908] sm:$0xff]
    %v1503 = vld [vmem:[#allocation5 + $0x2910] sm:$0xff]
    %v1504 = vld [vmem:[#allocation5 + $0x2918] sm:$0xff]
    %v1505 = vld [vmem:[#allocation5 + $0x2920] sm:$0xff]
    %v1506 = vld [vmem:[#allocation5 + $0x2928] sm:$0xff]
    %v1507 = vld [vmem:[#allocation5 + $0x2930] sm:$0xff]
    %v1508 = vld [vmem:[#allocation5 + $0x2938] sm:$0xff]
    %v1509 = vld [vmem:[#allocation5 + $0x2940] sm:$0xff]
    %v1510 = vld [vmem:[#allocation5 + $0x2948] sm:$0xff]
    %v1511 = vld [vmem:[#allocation5 + $0x2950] sm:$0xff]
    %v1512 = vld [vmem:[#allocation5 + $0x2958] sm:$0xff]
    %v1513 = vld [vmem:[#allocation5 + $0x2960] sm:$0xff]
    %v1514 = vld [vmem:[#allocation5 + $0x2968] sm:$0xff]
    %v1515 = vld [vmem:[#allocation5 + $0x2970] sm:$0xff]
    %v1516 = vld [vmem:[#allocation5 + $0x2978] sm:$0xff]
    %v1517 = vld [vmem:[#allocation5 + $0x2980] sm:$0xff]
    %v1518 = vld [vmem:[#allocation5 + $0x2988] sm:$0xff]
    %v1519 = vld [vmem:[#allocation5 + $0x2990] sm:$0xff]
    %v1520 = vld [vmem:[#allocation5 + $0x2998] sm:$0xff]
    %v1521 = vld [vmem:[#allocation5 + $0x29a0] sm:$0xff]
    %v1522 = vld [vmem:[#allocation5 + $0x29a8] sm:$0xff]
    %v1523 = vld [vmem:[#allocation5 + $0x29b0] sm:$0xff]
    %v1524 = vld [vmem:[#allocation5 + $0x29b8] sm:$0xff]
    %v1525 = vld [vmem:[#allocation5 + $0x29c0] sm:$0xff]
    %v1526 = vld [vmem:[#allocation5 + $0x29c8] sm:$0xff]
    %v1527 = vld [vmem:[#allocation5 + $0x29d0] sm:$0xff]
    %v1528 = vld [vmem:[#allocation5 + $0x29d8] sm:$0xff]
    %v1529 = vld [vmem:[#allocation5 + $0x29e0] sm:$0xff]
    %v1530 = vld [vmem:[#allocation5 + $0x29e8] sm:$0xff]
    %v1531 = vld [vmem:[#allocation5 + $0x29f0] sm:$0xff]
    %v1532 = vld [vmem:[#allocation5 + $0x29f8] sm:$0xff]
    %v1533 = vld [vmem:[#allocation5 + $0x2a00] sm:$0xff]
    %v1534 = vld [vmem:[#allocation5 + $0x2a08] sm:$0xff]
    %v1535 = vld [vmem:[#allocation5 + $0x2a10] sm:$0xff]
    %v1536 = vld [vmem:[#allocation5 + $0x2a18] sm:$0xff]
    %v1537 = vld [vmem:[#allocation5 + $0x2a20] sm:$0xff]
    %v1538 = vld [vmem:[#allocation5 + $0x2a28] sm:$0xff]
    %v1539 = vld [vmem:[#allocation5 + $0x2a30] sm:$0xff]
    %v1540 = vld [vmem:[#allocation5 + $0x2a38] sm:$0xff]
    %v1541 = vld [vmem:[#allocation5 + $0x2a40] sm:$0xff]
    %v1542 = vld [vmem:[#allocation5 + $0x2a48] sm:$0xff]
    %v1543 = vld [vmem:[#allocation5 + $0x2a50] sm:$0xff]
    %v1544 = vld [vmem:[#allocation5 + $0x2a58] sm:$0xff]
    %v1545 = vld [vmem:[#allocation5 + $0x2a60] sm:$0xff]
    %v1546 = vld [vmem:[#allocation5 + $0x2a68] sm:$0xff]
    %v1547 = vld [vmem:[#allocation5 + $0x2a70] sm:$0xff]
    %v1548 = vld [vmem:[#allocation5 + $0x2a78] sm:$0xff]
    %v1549 = vld [vmem:[#allocation5 + $0x2a80] sm:$0xff]
    %v1550 = vld [vmem:[#allocation5 + $0x2a88] sm:$0xff]
    %v1551 = vld [vmem:[#allocation5 + $0x2a90] sm:$0xff]
    %v1552 = vld [vmem:[#allocation5 + $0x2a98] sm:$0xff]
    %v1553 = vld [vmem:[#allocation5 + $0x2aa0] sm:$0xff]
    %v1554 = vld [vmem:[#allocation5 + $0x2aa8] sm:$0xff]
    %v1555 = vld [vmem:[#allocation5 + $0x2ab0] sm:$0xff]
    %v1556 = vld [vmem:[#allocation5 + $0x2ab8] sm:$0xff]
    %v1557 = vld [vmem:[#allocation5 + $0x2ac0] sm:$0xff]
    %v1558 = vld [vmem:[#allocation5 + $0x2ac8] sm:$0xff]
    %v1559 = vld [vmem:[#allocation5 + $0x2ad0] sm:$0xff]
    %v1560 = vld [vmem:[#allocation5 + $0x2ad8] sm:$0xff]
    %v1561 = vld [vmem:[#allocation5 + $0x2ae0] sm:$0xff]
    %v1562 = vld [vmem:[#allocation5 + $0x2ae8] sm:$0xff]
    %v1563 = vld [vmem:[#allocation5 + $0x2af0] sm:$0xff]
    %v1564 = vld [vmem:[#allocation5 + $0x2af8] sm:$0xff]
    %v1565 = vld [vmem:[#allocation5 + $0x2b00] sm:$0xff]
    %v1566 = vld [vmem:[#allocation5 + $0x2b08] sm:$0xff]
    %v1567 = vld [vmem:[#allocation5 + $0x2b10] sm:$0xff]
    %v1568 = vld [vmem:[#allocation5 + $0x2b18] sm:$0xff]
    %v1569 = vld [vmem:[#allocation5 + $0x2b20] sm:$0xff]
    %v1570 = vld [vmem:[#allocation5 + $0x2b28] sm:$0xff]
    %v1571 = vld [vmem:[#allocation5 + $0x2b30] sm:$0xff]
    %v1572 = vld [vmem:[#allocation5 + $0x2b38] sm:$0xff]
    %v1573 = vld [vmem:[#allocation5 + $0x2b40] sm:$0xff]
    %v1574 = vld [vmem:[#allocation5 + $0x2b48] sm:$0xff]
    %v1575 = vld [vmem:[#allocation5 + $0x2b50] sm:$0xff]
    %v1576 = vld [vmem:[#allocation5 + $0x2b58] sm:$0xff]
    %v1577 = vld [vmem:[#allocation5 + $0x2b60] sm:$0xff]
    %v1578 = vld [vmem:[#allocation5 + $0x2b68] sm:$0xff]
    %v1579 = vld [vmem:[#allocation5 + $0x2b70] sm:$0xff]
    %v1580 = vld [vmem:[#allocation5 + $0x2b78] sm:$0xff]
    %v1581 = vld [vmem:[#allocation5 + $0x2b80] sm:$0xff]
    %v1582 = vld [vmem:[#allocation5 + $0x2b88] sm:$0xff]
    %v1583 = vld [vmem:[#allocation5 + $0x2b90] sm:$0xff]
    %v1584 = vld [vmem:[#allocation5 + $0x2b98] sm:$0xff]
    %v1585 = vld [vmem:[#allocation5 + $0x2ba0] sm:$0xff]
    %v1586 = vld [vmem:[#allocation5 + $0x2ba8] sm:$0xff]
    %v1587 = vld [vmem:[#allocation5 + $0x2bb0] sm:$0xff]
    %v1588 = vld [vmem:[#allocation5 + $0x2bb8] sm:$0xff]
    %v1589 = vld [vmem:[#allocation5 + $0x2bc0] sm:$0xff]
    %v1590 = vld [vmem:[#allocation5 + $0x2bc8] sm:$0xff]
    %v1591 = vld [vmem:[#allocation5 + $0x2bd0] sm:$0xff]
    %v1592 = vld [vmem:[#allocation5 + $0x2bd8] sm:$0xff]
    %v1593 = vld [vmem:[#allocation5 + $0x2be0] sm:$0xff]
    %v1594 = vld [vmem:[#allocation5 + $0x2be8] sm:$0xff]
    %v1595 = vld [vmem:[#allocation5 + $0x2bf0] sm:$0xff]
    %v1596 = vld [vmem:[#allocation5 + $0x2bf8] sm:$0xff]
    %v1597 = vld [vmem:[#allocation5 + $0x2c00] sm:$0xff]
    %v1598 = vld [vmem:[#allocation5 + $0x2c08] sm:$0xff]
    %v1599 = vld [vmem:[#allocation5 + $0x2c10] sm:$0xff]
    %v1600 = vld [vmem:[#allocation5 + $0x2c18] sm:$0xff]
    %v1601 = vld [vmem:[#allocation5 + $0x2c20] sm:$0xff]
    %v1602 = vld [vmem:[#allocation5 + $0x2c28] sm:$0xff]
    %v1603 = vld [vmem:[#allocation5 + $0x2c30] sm:$0xff]
    %v1604 = vld [vmem:[#allocation5 + $0x2c38] sm:$0xff]
    %v1605 = vld [vmem:[#allocation5 + $0x2c40] sm:$0xff]
    %v1606 = vld [vmem:[#allocation5 + $0x2c48] sm:$0xff]
    %v1607 = vld [vmem:[#allocation5 + $0x2c50] sm:$0xff]
    %v1608 = vld [vmem:[#allocation5 + $0x2c58] sm:$0xff]
    %v1609 = vld [vmem:[#allocation5 + $0x2c60] sm:$0xff]
    %v1610 = vld [vmem:[#allocation5 + $0x2c68] sm:$0xff]
    %v1611 = vld [vmem:[#allocation5 + $0x2c70] sm:$0xff]
    %v1612 = vld [vmem:[#allocation5 + $0x2c78] sm:$0xff]
    %v1613 = vld [vmem:[#allocation5 + $0x2c80] sm:$0xff]
    %v1614 = vld [vmem:[#allocation5 + $0x2c88] sm:$0xff]
    %v1615 = vld [vmem:[#allocation5 + $0x2c90] sm:$0xff]
    %v1616 = vld [vmem:[#allocation5 + $0x2c98] sm:$0xff]
    %v1617 = vld [vmem:[#allocation5 + $0x2ca0] sm:$0xff]
    %v1618 = vld [vmem:[#allocation5 + $0x2ca8] sm:$0xff]
    %v1619 = vld [vmem:[#allocation5 + $0x2cb0] sm:$0xff]
    %v1620 = vld [vmem:[#allocation5 + $0x2cb8] sm:$0xff]
    %v1621 = vld [vmem:[#allocation5 + $0x2cc0] sm:$0xff]
    %v1622 = vld [vmem:[#allocation5 + $0x2cc8] sm:$0xff]
    %v1623 = vld [vmem:[#allocation5 + $0x2cd0] sm:$0xff]
    %v1624 = vld [vmem:[#allocation5 + $0x2cd8] sm:$0xff]
    %v1625 = vld [vmem:[#allocation5 + $0x2ce0] sm:$0xff]
    %v1626 = vld [vmem:[#allocation5 + $0x2ce8] sm:$0xff]
    %v1627 = vld [vmem:[#allocation5 + $0x2cf0] sm:$0xff]
    %v1628 = vld [vmem:[#allocation5 + $0x2cf8] sm:$0xff]
    %v1629 = vld [vmem:[#allocation5 + $0x2d00] sm:$0xff]
    %v1630 = vld [vmem:[#allocation5 + $0x2d08] sm:$0xff]
    %v1631 = vld [vmem:[#allocation5 + $0x2d10] sm:$0xff]
    %v1632 = vld [vmem:[#allocation5 + $0x2d18] sm:$0xff]
    %v1633 = vld [vmem:[#allocation5 + $0x2d20] sm:$0xff]
    %v1634 = vld [vmem:[#allocation5 + $0x2d28] sm:$0xff]
    %v1635 = vld [vmem:[#allocation5 + $0x2d30] sm:$0xff]
    %v1636 = vld [vmem:[#allocation5 + $0x2d38] sm:$0xff]
    %v1637 = vld [vmem:[#allocation5 + $0x2d40] sm:$0xff]
    %v1638 = vld [vmem:[#allocation5 + $0x2d48] sm:$0xff]
    %v1639 = vld [vmem:[#allocation5 + $0x2d50] sm:$0xff]
    %v1640 = vld [vmem:[#allocation5 + $0x2d58] sm:$0xff]
    %v1641 = vld [vmem:[#allocation5 + $0x2d60] sm:$0xff]
    %v1642 = vld [vmem:[#allocation5 + $0x2d68] sm:$0xff]
    %v1643 = vld [vmem:[#allocation5 + $0x2d70] sm:$0xff]
    %v1644 = vld [vmem:[#allocation5 + $0x2d78] sm:$0xff]
    %v1645 = vld [vmem:[#allocation5 + $0x2d80] sm:$0xff]
    %v1646 = vld [vmem:[#allocation5 + $0x2d88] sm:$0xff]
    %v1647 = vld [vmem:[#allocation5 + $0x2d90] sm:$0xff]
    %v1648 = vld [vmem:[#allocation5 + $0x2d98] sm:$0xff]
    %v1649 = vld [vmem:[#allocation5 + $0x2da0] sm:$0xff]
    %v1650 = vld [vmem:[#allocation5 + $0x2da8] sm:$0xff]
    %v1651 = vld [vmem:[#allocation5 + $0x2db0] sm:$0xff]
    %v1652 = vld [vmem:[#allocation5 + $0x2db8] sm:$0xff]
    %v1653 = vld [vmem:[#allocation5 + $0x2dc0] sm:$0xff]
    %v1654 = vld [vmem:[#allocation5 + $0x2dc8] sm:$0xff]
    %v1655 = vld [vmem:[#allocation5 + $0x2dd0] sm:$0xff]
    %v1656 = vld [vmem:[#allocation5 + $0x2dd8] sm:$0xff]
    %v1657 = vld [vmem:[#allocation5 + $0x2de0] sm:$0xff]
    %v1658 = vld [vmem:[#allocation5 + $0x2de8] sm:$0xff]
    %v1659 = vld [vmem:[#allocation5 + $0x2df0] sm:$0xff]
    %v1660 = vld [vmem:[#allocation5 + $0x2df8] sm:$0xff]
    %v1661 = vld [vmem:[#allocation5 + $0x2e00] sm:$0xff]
    %v1662 = vld [vmem:[#allocation5 + $0x2e08] sm:$0xff]
    %v1663 = vld [vmem:[#allocation5 + $0x2e10] sm:$0xff]
    %v1664 = vld [vmem:[#allocation5 + $0x2e18] sm:$0xff]
    %v1665 = vld [vmem:[#allocation5 + $0x2e20] sm:$0xff]
    %v1666 = vld [vmem:[#allocation5 + $0x2e28] sm:$0xff]
    %v1667 = vld [vmem:[#allocation5 + $0x2e30] sm:$0xff]
    %v1668 = vld [vmem:[#allocation5 + $0x2e38] sm:$0xff]
    %v1669 = vld [vmem:[#allocation5 + $0x2e40] sm:$0xff]
    %v1670 = vld [vmem:[#allocation5 + $0x2e48] sm:$0xff]
    %v1671 = vld [vmem:[#allocation5 + $0x2e50] sm:$0xff]
    %v1672 = vld [vmem:[#allocation5 + $0x2e58] sm:$0xff]
    %v1673 = vld [vmem:[#allocation5 + $0x2e60] sm:$0xff]
    %v1674 = vld [vmem:[#allocation5 + $0x2e68] sm:$0xff]
    %v1675 = vld [vmem:[#allocation5 + $0x2e70] sm:$0xff]
    %v1676 = vld [vmem:[#allocation5 + $0x2e78] sm:$0xff]
    %v1677 = vld [vmem:[#allocation5 + $0x2e80] sm:$0xff]
    %v1678 = vld [vmem:[#allocation5 + $0x2e88] sm:$0xff]
    %v1679 = vld [vmem:[#allocation5 + $0x2e90] sm:$0xff]
    %v1680 = vld [vmem:[#allocation5 + $0x2e98] sm:$0xff]
    %v1681 = vld [vmem:[#allocation5 + $0x2ea0] sm:$0xff]
    %v1682 = vld [vmem:[#allocation5 + $0x2ea8] sm:$0xff]
    %v1683 = vld [vmem:[#allocation5 + $0x2eb0] sm:$0xff]
    %v1684 = vld [vmem:[#allocation5 + $0x2eb8] sm:$0xff]
    %v1685 = vld [vmem:[#allocation5 + $0x2ec0] sm:$0xff]
    %v1686 = vld [vmem:[#allocation5 + $0x2ec8] sm:$0xff]
    %v1687 = vld [vmem:[#allocation5 + $0x2ed0] sm:$0xff]
    %v1688 = vld [vmem:[#allocation5 + $0x2ed8] sm:$0xff]
    %v1689 = vld [vmem:[#allocation5 + $0x2ee0] sm:$0xff]
    %v1690 = vld [vmem:[#allocation5 + $0x2ee8] sm:$0xff]
    %v1691 = vld [vmem:[#allocation5 + $0x2ef0] sm:$0xff]
    %v1692 = vld [vmem:[#allocation5 + $0x2ef8] sm:$0xff]
    %v1693 = vld [vmem:[#allocation5 + $0x2f00] sm:$0xff]
    %v1694 = vld [vmem:[#allocation5 + $0x2f08] sm:$0xff]
    %v1695 = vld [vmem:[#allocation5 + $0x2f10] sm:$0xff]
    %v1696 = vld [vmem:[#allocation5 + $0x2f18] sm:$0xff]
    %v1697 = vld [vmem:[#allocation5 + $0x2f20] sm:$0xff]
    %v1698 = vld [vmem:[#allocation5 + $0x2f28] sm:$0xff]
    %v1699 = vld [vmem:[#allocation5 + $0x2f30] sm:$0xff]
    %v1700 = vld [vmem:[#allocation5 + $0x2f38] sm:$0xff]
    %v1701 = vld [vmem:[#allocation5 + $0x2f40] sm:$0xff]
    %v1702 = vld [vmem:[#allocation5 + $0x2f48] sm:$0xff]
    %v1703 = vld [vmem:[#allocation5 + $0x2f50] sm:$0xff]
    %v1704 = vld [vmem:[#allocation5 + $0x2f58] sm:$0xff]
    %v1705 = vld [vmem:[#allocation5 + $0x2f60] sm:$0xff]
    %v1706 = vld [vmem:[#allocation5 + $0x2f68] sm:$0xff]
    %v1707 = vld [vmem:[#allocation5 + $0x2f70] sm:$0xff]
    %v1708 = vld [vmem:[#allocation5 + $0x2f78] sm:$0xff]
    %v1709 = vld [vmem:[#allocation5 + $0x2f80] sm:$0xff]
    %v1710 = vld [vmem:[#allocation5 + $0x2f88] sm:$0xff]
    %v1711 = vld [vmem:[#allocation5 + $0x2f90] sm:$0xff]
    %v1712 = vld [vmem:[#allocation5 + $0x2f98] sm:$0xff]
    %v1713 = vld [vmem:[#allocation5 + $0x2fa0] sm:$0xff]
    %v1714 = vld [vmem:[#allocation5 + $0x2fa8] sm:$0xff]
    %v1715 = vld [vmem:[#allocation5 + $0x2fb0] sm:$0xff]
    %v1716 = vld [vmem:[#allocation5 + $0x2fb8] sm:$0xff]
    %v1717 = vld [vmem:[#allocation5 + $0x2fc0] sm:$0xff]
    %v1718 = vld [vmem:[#allocation5 + $0x2fc8] sm:$0xff]
    %v1719 = vld [vmem:[#allocation5 + $0x2fd0] sm:$0xff]
    %v1720 = vld [vmem:[#allocation5 + $0x2fd8] sm:$0xff]
    %v1721 = vld [vmem:[#allocation5 + $0x2fe0] sm:$0xff]
    %v1722 = vld [vmem:[#allocation5 + $0x2fe8] sm:$0xff]
    %v1723 = vld [vmem:[#allocation5 + $0x2ff0] sm:$0xff]
    %v1724 = vld [vmem:[#allocation5 + $0x2ff8] sm:$0xff]
    %v1725 = vld [vmem:[#allocation7] sm:$0xff]
    %v1727 = vperm.slane %v1725, 0
    %v1728 = vperm.slane %v1725, 1
    %v1729 = vperm.slane %v1725, 2
    %v1730 = vperm.slane %v1725, 3
    %v1731 = vperm.slane %v1725, 4
    %v1732 = vperm.slane %v1725, 5
    %v1733 = vperm.slane %v1725, 6
    %v1734 = vperm.slane %v1725, 7
    %v1767 = vunpack.c.l.b16 %v165
    %v1768 = vunpack.c.h.b16 %v165
    %v1769 = vunpack.c.l.b16 %v166
    %v1770 = vunpack.c.h.b16 %v166
    %v1771 = vunpack.c.l.b16 %v167
    %v1772 = vunpack.c.h.b16 %v167
    %v1773 = vunpack.c.l.b16 %v168
    %v1774 = vunpack.c.h.b16 %v168
    %v1775 = vunpack.c.l.b16 %v169
    %v1776 = vunpack.c.h.b16 %v169
    %v1777 = vunpack.c.l.b16 %v170
    %v1778 = vunpack.c.h.b16 %v170
    %v1779 = vunpack.c.l.b16 %v171
    %v1780 = vunpack.c.h.b16 %v171
    %v1781 = vunpack.c.l.b16 %v172
    %v1782 = vunpack.c.h.b16 %v172
    %v1783 = vunpack.c.l.b16 %v173
    %v1784 = vunpack.c.h.b16 %v173
    %v1785 = vunpack.c.l.b16 %v174
    %v1786 = vunpack.c.h.b16 %v174
    %v1787 = vunpack.c.l.b16 %v175
    %v1788 = vunpack.c.h.b16 %v175
    %v1789 = vunpack.c.l.b16 %v176
    %v1790 = vunpack.c.h.b16 %v176
    %v1791 = vunpack.c.l.b16 %v177
    %v1792 = vunpack.c.h.b16 %v177
    %v1793 = vunpack.c.l.b16 %v178
    %v1794 = vunpack.c.h.b16 %v178
    %v1795 = vunpack.c.l.b16 %v179
    %v1796 = vunpack.c.h.b16 %v179
    %v1797 = vunpack.c.l.b16 %v180
    %v1798 = vunpack.c.h.b16 %v180
    %v1799 = vunpack.c.l.b16 %v181
    %v1800 = vunpack.c.h.b16 %v181
    %v1801 = vunpack.c.l.b16 %v182
    %v1802 = vunpack.c.h.b16 %v182
    %v1803 = vunpack.c.l.b16 %v183
    %v1804 = vunpack.c.h.b16 %v183
    %v1805 = vunpack.c.l.b16 %v184
    %v1806 = vunpack.c.h.b16 %v184
    %v1807 = vunpack.c.l.b16 %v185
    %v1808 = vunpack.c.h.b16 %v185
    %v1809 = vunpack.c.l.b16 %v186
    %v1810 = vunpack.c.h.b16 %v186
    %v1811 = vunpack.c.l.b16 %v187
    %v1812 = vunpack.c.h.b16 %v187
    %v1813 = vunpack.c.l.b16 %v188
    %v1814 = vunpack.c.h.b16 %v188
    %v1815 = vpack.c.b16 %v1791, %v1767
    %v1816 = vpack.c.b16 %v1792, %v1768
    %v1817 = vpack.c.b16 %v1793, %v1769
    %v1818 = vpack.c.b16 %v1794, %v1770
    %v1819 = vpack.c.b16 %v1795, %v1771
    %v1820 = vpack.c.b16 %v1796, %v1772
    %v1821 = vpack.c.b16 %v1797, %v1773
    %v1822 = vpack.c.b16 %v1798, %v1774
    %v1823 = vpack.c.b16 %v1799, %v1775
    %v1824 = vpack.c.b16 %v1800, %v1776
    %v1825 = vpack.c.b16 %v1801, %v1777
    %v1826 = vpack.c.b16 %v1802, %v1778
    %v1827 = vpack.c.b16 %v1803, %v1779
    %v1828 = vpack.c.b16 %v1804, %v1780
    %v1829 = vpack.c.b16 %v1805, %v1781
    %v1830 = vpack.c.b16 %v1806, %v1782
    %v1831 = vpack.c.b16 %v1807, %v1783
    %v1832 = vpack.c.b16 %v1808, %v1784
    %v1833 = vpack.c.b16 %v1809, %v1785
    %v1834 = vpack.c.b16 %v1810, %v1786
    %v1835 = vpack.c.b16 %v1811, %v1787
    %v1836 = vpack.c.b16 %v1812, %v1788
    %v1837 = vpack.c.b16 %v1813, %v1789
    %v1838 = vpack.c.b16 %v1814, %v1790
    %v3399 = vunpack.c.l.b16 %v189
    %v3400 = vunpack.c.h.b16 %v189
    %v3401 = vunpack.c.l.b16 %v190
    %v3402 = vunpack.c.h.b16 %v190
    %v3403 = vunpack.c.l.b16 %v191
    %v3404 = vunpack.c.h.b16 %v191
    %v3405 = vunpack.c.l.b16 %v192
    %v3406 = vunpack.c.h.b16 %v192
    %v3407 = vunpack.c.l.b16 %v193
    %v3408 = vunpack.c.h.b16 %v193
    %v3409 = vunpack.c.l.b16 %v194
    %v3410 = vunpack.c.h.b16 %v194
    %v3411 = vunpack.c.l.b16 %v195
    %v3412 = vunpack.c.h.b16 %v195
    %v3413 = vunpack.c.l.b16 %v196
    %v3414 = vunpack.c.h.b16 %v196
    %v3415 = vunpack.c.l.b16 %v197
    %v3416 = vunpack.c.h.b16 %v197
    %v3417 = vunpack.c.l.b16 %v198
    %v3418 = vunpack.c.h.b16 %v198
    %v3419 = vunpack.c.l.b16 %v199
    %v3420 = vunpack.c.h.b16 %v199
    %v3421 = vunpack.c.l.b16 %v200
    %v3422 = vunpack.c.h.b16 %v200
    %v3423 = vunpack.c.l.b16 %v201
    %v3424 = vunpack.c.h.b16 %v201
    %v3425 = vunpack.c.l.b16 %v202
    %v3426 = vunpack.c.h.b16 %v202
    %v3427 = vunpack.c.l.b16 %v203
    %v3428 = vunpack.c.h.b16 %v203
    %v3429 = vunpack.c.l.b16 %v204
    %v3430 = vunpack.c.h.b16 %v204
    %v3431 = vunpack.c.l.b16 %v205
    %v3432 = vunpack.c.h.b16 %v205
    %v3433 = vunpack.c.l.b16 %v206
    %v3434 = vunpack.c.h.b16 %v206
    %v3435 = vunpack.c.l.b16 %v207
    %v3436 = vunpack.c.h.b16 %v207
    %v3437 = vunpack.c.l.b16 %v208
    %v3438 = vunpack.c.h.b16 %v208
    %v3439 = vunpack.c.l.b16 %v209
    %v3440 = vunpack.c.h.b16 %v209
    %v3441 = vunpack.c.l.b16 %v210
    %v3442 = vunpack.c.h.b16 %v210
    %v3443 = vunpack.c.l.b16 %v211
    %v3444 = vunpack.c.h.b16 %v211
    %v3445 = vunpack.c.l.b16 %v212
    %v3446 = vunpack.c.h.b16 %v212
    %v3447 = vunpack.c.l.b16 %v213
    %v3448 = vunpack.c.h.b16 %v213
    %v3449 = vunpack.c.l.b16 %v214
    %v3450 = vunpack.c.h.b16 %v214
    %v3451 = vunpack.c.l.b16 %v215
    %v3452 = vunpack.c.h.b16 %v215
    %v3453 = vunpack.c.l.b16 %v216
    %v3454 = vunpack.c.h.b16 %v216
    %v3455 = vunpack.c.l.b16 %v217
    %v3456 = vunpack.c.h.b16 %v217
    %v3457 = vunpack.c.l.b16 %v218
    %v3458 = vunpack.c.h.b16 %v218
    %v3459 = vunpack.c.l.b16 %v219
    %v3460 = vunpack.c.h.b16 %v219
    %v3461 = vunpack.c.l.b16 %v220
    %v3462 = vunpack.c.h.b16 %v220
    %v3463 = vunpack.c.l.b16 %v221
    %v3464 = vunpack.c.h.b16 %v221
    %v3465 = vunpack.c.l.b16 %v222
    %v3466 = vunpack.c.h.b16 %v222
    %v3467 = vunpack.c.l.b16 %v223
    %v3468 = vunpack.c.h.b16 %v223
    %v3469 = vunpack.c.l.b16 %v224
    %v3470 = vunpack.c.h.b16 %v224
    %v3471 = vunpack.c.l.b16 %v225
    %v3472 = vunpack.c.h.b16 %v225
    %v3473 = vunpack.c.l.b16 %v226
    %v3474 = vunpack.c.h.b16 %v226
    %v3475 = vunpack.c.l.b16 %v227
    %v3476 = vunpack.c.h.b16 %v227
    %v3477 = vunpack.c.l.b16 %v228
    %v3478 = vunpack.c.h.b16 %v228
    %v3479 = vunpack.c.l.b16 %v229
    %v3480 = vunpack.c.h.b16 %v229
    %v3481 = vunpack.c.l.b16 %v230
    %v3482 = vunpack.c.h.b16 %v230
    %v3483 = vunpack.c.l.b16 %v231
    %v3484 = vunpack.c.h.b16 %v231
    %v3485 = vunpack.c.l.b16 %v232
    %v3486 = vunpack.c.h.b16 %v232
    %v3487 = vunpack.c.l.b16 %v233
    %v3488 = vunpack.c.h.b16 %v233
    %v3489 = vunpack.c.l.b16 %v234
    %v3490 = vunpack.c.h.b16 %v234
    %v3491 = vunpack.c.l.b16 %v235
    %v3492 = vunpack.c.h.b16 %v235
    %v3493 = vunpack.c.l.b16 %v236
    %v3494 = vunpack.c.h.b16 %v236
    %v3495 = vunpack.c.l.b16 %v237
    %v3496 = vunpack.c.h.b16 %v237
    %v3497 = vunpack.c.l.b16 %v238
    %v3498 = vunpack.c.h.b16 %v238
    %v3499 = vunpack.c.l.b16 %v239
    %v3500 = vunpack.c.h.b16 %v239
    %v3501 = vunpack.c.l.b16 %v240
    %v3502 = vunpack.c.h.b16 %v240
    %v3503 = vunpack.c.l.b16 %v241
    %v3504 = vunpack.c.h.b16 %v241
    %v3505 = vunpack.c.l.b16 %v242
    %v3506 = vunpack.c.h.b16 %v242
    %v3507 = vunpack.c.l.b16 %v243
    %v3508 = vunpack.c.h.b16 %v243
    %v3509 = vunpack.c.l.b16 %v244
    %v3510 = vunpack.c.h.b16 %v244
    %v3511 = vunpack.c.l.b16 %v245
    %v3512 = vunpack.c.h.b16 %v245
    %v3513 = vunpack.c.l.b16 %v246
    %v3514 = vunpack.c.h.b16 %v246
    %v3515 = vunpack.c.l.b16 %v247
    %v3516 = vunpack.c.h.b16 %v247
    %v3517 = vunpack.c.l.b16 %v248
    %v3518 = vunpack.c.h.b16 %v248
    %v3519 = vunpack.c.l.b16 %v249
    %v3520 = vunpack.c.h.b16 %v249
    %v3521 = vunpack.c.l.b16 %v250
    %v3522 = vunpack.c.h.b16 %v250
    %v3523 = vunpack.c.l.b16 %v251
    %v3524 = vunpack.c.h.b16 %v251
    %v3525 = vunpack.c.l.b16 %v252
    %v3526 = vunpack.c.h.b16 %v252
    %v3527 = vunpack.c.l.b16 %v253
    %v3528 = vunpack.c.h.b16 %v253
    %v3529 = vunpack.c.l.b16 %v254
    %v3530 = vunpack.c.h.b16 %v254
    %v3531 = vunpack.c.l.b16 %v255
    %v3532 = vunpack.c.h.b16 %v255
    %v3533 = vunpack.c.l.b16 %v256
    %v3534 = vunpack.c.h.b16 %v256
    %v3535 = vunpack.c.l.b16 %v257
    %v3536 = vunpack.c.h.b16 %v257
    %v3537 = vunpack.c.l.b16 %v258
    %v3538 = vunpack.c.h.b16 %v258
    %v3539 = vunpack.c.l.b16 %v259
    %v3540 = vunpack.c.h.b16 %v259
    %v3541 = vunpack.c.l.b16 %v260
    %v3542 = vunpack.c.h.b16 %v260
    %v3543 = vunpack.c.l.b16 %v261
    %v3544 = vunpack.c.h.b16 %v261
    %v3545 = vunpack.c.l.b16 %v262
    %v3546 = vunpack.c.h.b16 %v262
    %v3547 = vunpack.c.l.b16 %v263
    %v3548 = vunpack.c.h.b16 %v263
    %v3549 = vunpack.c.l.b16 %v264
    %v3550 = vunpack.c.h.b16 %v264
    %v3551 = vunpack.c.l.b16 %v265
    %v3552 = vunpack.c.h.b16 %v265
    %v3553 = vunpack.c.l.b16 %v266
    %v3554 = vunpack.c.h.b16 %v266
    %v3555 = vunpack.c.l.b16 %v267
    %v3556 = vunpack.c.h.b16 %v267
    %v3557 = vunpack.c.l.b16 %v268
    %v3558 = vunpack.c.h.b16 %v268
    %v3559 = vunpack.c.l.b16 %v269
    %v3560 = vunpack.c.h.b16 %v269
    %v3561 = vunpack.c.l.b16 %v270
    %v3562 = vunpack.c.h.b16 %v270
    %v3563 = vunpack.c.l.b16 %v271
    %v3564 = vunpack.c.h.b16 %v271
    %v3565 = vunpack.c.l.b16 %v272
    %v3566 = vunpack.c.h.b16 %v272
    %v3567 = vunpack.c.l.b16 %v273
    %v3568 = vunpack.c.h.b16 %v273
    %v3569 = vunpack.c.l.b16 %v274
    %v3570 = vunpack.c.h.b16 %v274
    %v3571 = vunpack.c.l.b16 %v275
    %v3572 = vunpack.c.h.b16 %v275
    %v3573 = vunpack.c.l.b16 %v276
    %v3574 = vunpack.c.h.b16 %v276
    %v3575 = vunpack.c.l.b16 %v277
    %v3576 = vunpack.c.h.b16 %v277
    %v3577 = vunpack.c.l.b16 %v278
    %v3578 = vunpack.c.h.b16 %v278
    %v3579 = vunpack.c.l.b16 %v279
    %v3580 = vunpack.c.h.b16 %v279
    %v3581 = vunpack.c.l.b16 %v280
    %v3582 = vunpack.c.h.b16 %v280
    %v3583 = vunpack.c.l.b16 %v281
    %v3584 = vunpack.c.h.b16 %v281
    %v3585 = vunpack.c.l.b16 %v282
    %v3586 = vunpack.c.h.b16 %v282
    %v3587 = vunpack.c.l.b16 %v283
    %v3588 = vunpack.c.h.b16 %v283
    %v3589 = vunpack.c.l.b16 %v284
    %v3590 = vunpack.c.h.b16 %v284
    %v3591 = vunpack.c.l.b16 %v285
    %v3592 = vunpack.c.h.b16 %v285
    %v3593 = vunpack.c.l.b16 %v286
    %v3594 = vunpack.c.h.b16 %v286
    %v3595 = vunpack.c.l.b16 %v287
    %v3596 = vunpack.c.h.b16 %v287
    %v3597 = vunpack.c.l.b16 %v288
    %v3598 = vunpack.c.h.b16 %v288
    %v3599 = vunpack.c.l.b16 %v289
    %v3600 = vunpack.c.h.b16 %v289
    %v3601 = vunpack.c.l.b16 %v290
    %v3602 = vunpack.c.h.b16 %v290
    %v3603 = vunpack.c.l.b16 %v291
    %v3604 = vunpack.c.h.b16 %v291
    %v3605 = vunpack.c.l.b16 %v292
    %v3606 = vunpack.c.h.b16 %v292
    %v3607 = vunpack.c.l.b16 %v293
    %v3608 = vunpack.c.h.b16 %v293
    %v3609 = vunpack.c.l.b16 %v294
    %v3610 = vunpack.c.h.b16 %v294
    %v3611 = vunpack.c.l.b16 %v295
    %v3612 = vunpack.c.h.b16 %v295
    %v3613 = vunpack.c.l.b16 %v296
    %v3614 = vunpack.c.h.b16 %v296
    %v3615 = vunpack.c.l.b16 %v297
    %v3616 = vunpack.c.h.b16 %v297
    %v3617 = vunpack.c.l.b16 %v298
    %v3618 = vunpack.c.h.b16 %v298
    %v3619 = vunpack.c.l.b16 %v299
    %v3620 = vunpack.c.h.b16 %v299
    %v3621 = vunpack.c.l.b16 %v300
    %v3622 = vunpack.c.h.b16 %v300
    %v3623 = vunpack.c.l.b16 %v301
    %v3624 = vunpack.c.h.b16 %v301
    %v3625 = vunpack.c.l.b16 %v302
    %v3626 = vunpack.c.h.b16 %v302
    %v3627 = vunpack.c.l.b16 %v303
    %v3628 = vunpack.c.h.b16 %v303
    %v3629 = vunpack.c.l.b16 %v304
    %v3630 = vunpack.c.h.b16 %v304
    %v3631 = vunpack.c.l.b16 %v305
    %v3632 = vunpack.c.h.b16 %v305
    %v3633 = vunpack.c.l.b16 %v306
    %v3634 = vunpack.c.h.b16 %v306
    %v3635 = vunpack.c.l.b16 %v307
    %v3636 = vunpack.c.h.b16 %v307
    %v3637 = vunpack.c.l.b16 %v308
    %v3638 = vunpack.c.h.b16 %v308
    %v3639 = vunpack.c.l.b16 %v309
    %v3640 = vunpack.c.h.b16 %v309
    %v3641 = vunpack.c.l.b16 %v310
    %v3642 = vunpack.c.h.b16 %v310
    %v3643 = vunpack.c.l.b16 %v311
    %v3644 = vunpack.c.h.b16 %v311
    %v3645 = vunpack.c.l.b16 %v312
    %v3646 = vunpack.c.h.b16 %v312
    %v3647 = vunpack.c.l.b16 %v313
    %v3648 = vunpack.c.h.b16 %v313
    %v3649 = vunpack.c.l.b16 %v314
    %v3650 = vunpack.c.h.b16 %v314
    %v3651 = vunpack.c.l.b16 %v315
    %v3652 = vunpack.c.h.b16 %v315
    %v3653 = vunpack.c.l.b16 %v316
    %v3654 = vunpack.c.h.b16 %v316
    %v3655 = vunpack.c.l.b16 %v317
    %v3656 = vunpack.c.h.b16 %v317
    %v3657 = vunpack.c.l.b16 %v318
    %v3658 = vunpack.c.h.b16 %v318
    %v3659 = vunpack.c.l.b16 %v319
    %v3660 = vunpack.c.h.b16 %v319
    %v3661 = vunpack.c.l.b16 %v320
    %v3662 = vunpack.c.h.b16 %v320
    %v3663 = vunpack.c.l.b16 %v321
    %v3664 = vunpack.c.h.b16 %v321
    %v3665 = vunpack.c.l.b16 %v322
    %v3666 = vunpack.c.h.b16 %v322
    %v3667 = vunpack.c.l.b16 %v323
    %v3668 = vunpack.c.h.b16 %v323
    %v3669 = vunpack.c.l.b16 %v324
    %v3670 = vunpack.c.h.b16 %v324
    %v3671 = vunpack.c.l.b16 %v325
    %v3672 = vunpack.c.h.b16 %v325
    %v3673 = vunpack.c.l.b16 %v326
    %v3674 = vunpack.c.h.b16 %v326
    %v3675 = vunpack.c.l.b16 %v327
    %v3676 = vunpack.c.h.b16 %v327
    %v3677 = vunpack.c.l.b16 %v328
    %v3678 = vunpack.c.h.b16 %v328
    %v3679 = vunpack.c.l.b16 %v329
    %v3680 = vunpack.c.h.b16 %v329
    %v3681 = vunpack.c.l.b16 %v330
    %v3682 = vunpack.c.h.b16 %v330
    %v3683 = vunpack.c.l.b16 %v331
    %v3684 = vunpack.c.h.b16 %v331
    %v3685 = vunpack.c.l.b16 %v332
    %v3686 = vunpack.c.h.b16 %v332
    %v3687 = vunpack.c.l.b16 %v333
    %v3688 = vunpack.c.h.b16 %v333
    %v3689 = vunpack.c.l.b16 %v334
    %v3690 = vunpack.c.h.b16 %v334
    %v3691 = vunpack.c.l.b16 %v335
    %v3692 = vunpack.c.h.b16 %v335
    %v3693 = vunpack.c.l.b16 %v336
    %v3694 = vunpack.c.h.b16 %v336
    %v3695 = vunpack.c.l.b16 %v337
    %v3696 = vunpack.c.h.b16 %v337
    %v3697 = vunpack.c.l.b16 %v338
    %v3698 = vunpack.c.h.b16 %v338
    %v3699 = vunpack.c.l.b16 %v339
    %v3700 = vunpack.c.h.b16 %v339
    %v3701 = vunpack.c.l.b16 %v340
    %v3702 = vunpack.c.h.b16 %v340
    %v3703 = vunpack.c.l.b16 %v341
    %v3704 = vunpack.c.h.b16 %v341
    %v3705 = vunpack.c.l.b16 %v342
    %v3706 = vunpack.c.h.b16 %v342
    %v3707 = vunpack.c.l.b16 %v343
    %v3708 = vunpack.c.h.b16 %v343
    %v3709 = vunpack.c.l.b16 %v344
    %v3710 = vunpack.c.h.b16 %v344
    %v3711 = vunpack.c.l.b16 %v345
    %v3712 = vunpack.c.h.b16 %v345
    %v3713 = vunpack.c.l.b16 %v346
    %v3714 = vunpack.c.h.b16 %v346
    %v3715 = vunpack.c.l.b16 %v347
    %v3716 = vunpack.c.h.b16 %v347
    %v3717 = vunpack.c.l.b16 %v348
    %v3718 = vunpack.c.h.b16 %v348
    %v3719 = vunpack.c.l.b16 %v349
    %v3720 = vunpack.c.h.b16 %v349
    %v3721 = vunpack.c.l.b16 %v350
    %v3722 = vunpack.c.h.b16 %v350
    %v3723 = vunpack.c.l.b16 %v351
    %v3724 = vunpack.c.h.b16 %v351
    %v3725 = vunpack.c.l.b16 %v352
    %v3726 = vunpack.c.h.b16 %v352
    %v3727 = vunpack.c.l.b16 %v353
    %v3728 = vunpack.c.h.b16 %v353
    %v3729 = vunpack.c.l.b16 %v354
    %v3730 = vunpack.c.h.b16 %v354
    %v3731 = vunpack.c.l.b16 %v355
    %v3732 = vunpack.c.h.b16 %v355
    %v3733 = vunpack.c.l.b16 %v356
    %v3734 = vunpack.c.h.b16 %v356
    %v3735 = vunpack.c.l.b16 %v357
    %v3736 = vunpack.c.h.b16 %v357
    %v3737 = vunpack.c.l.b16 %v358
    %v3738 = vunpack.c.h.b16 %v358
    %v3739 = vunpack.c.l.b16 %v359
    %v3740 = vunpack.c.h.b16 %v359
    %v3741 = vunpack.c.l.b16 %v360
    %v3742 = vunpack.c.h.b16 %v360
    %v3743 = vunpack.c.l.b16 %v361
    %v3744 = vunpack.c.h.b16 %v361
    %v3745 = vunpack.c.l.b16 %v362
    %v3746 = vunpack.c.h.b16 %v362
    %v3747 = vunpack.c.l.b16 %v363
    %v3748 = vunpack.c.h.b16 %v363
    %v3749 = vunpack.c.l.b16 %v364
    %v3750 = vunpack.c.h.b16 %v364
    %v3751 = vunpack.c.l.b16 %v365
    %v3752 = vunpack.c.h.b16 %v365
    %v3753 = vunpack.c.l.b16 %v366
    %v3754 = vunpack.c.h.b16 %v366
    %v3755 = vunpack.c.l.b16 %v367
    %v3756 = vunpack.c.h.b16 %v367
    %v3757 = vunpack.c.l.b16 %v368
    %v3758 = vunpack.c.h.b16 %v368
    %v3759 = vunpack.c.l.b16 %v369
    %v3760 = vunpack.c.h.b16 %v369
    %v3761 = vunpack.c.l.b16 %v370
    %v3762 = vunpack.c.h.b16 %v370
    %v3763 = vunpack.c.l.b16 %v371
    %v3764 = vunpack.c.h.b16 %v371
    %v3765 = vunpack.c.l.b16 %v372
    %v3766 = vunpack.c.h.b16 %v372
    %v3767 = vunpack.c.l.b16 %v373
    %v3768 = vunpack.c.h.b16 %v373
    %v3769 = vunpack.c.l.b16 %v374
    %v3770 = vunpack.c.h.b16 %v374
    %v3771 = vunpack.c.l.b16 %v375
    %v3772 = vunpack.c.h.b16 %v375
    %v3773 = vunpack.c.l.b16 %v376
    %v3774 = vunpack.c.h.b16 %v376
    %v3775 = vunpack.c.l.b16 %v377
    %v3776 = vunpack.c.h.b16 %v377
    %v3777 = vunpack.c.l.b16 %v378
    %v3778 = vunpack.c.h.b16 %v378
    %v3779 = vunpack.c.l.b16 %v379
    %v3780 = vunpack.c.h.b16 %v379
    %v3781 = vunpack.c.l.b16 %v380
    %v3782 = vunpack.c.h.b16 %v380
    %v3783 = vunpack.c.l.b16 %v381
    %v3784 = vunpack.c.h.b16 %v381
    %v3785 = vunpack.c.l.b16 %v382
    %v3786 = vunpack.c.h.b16 %v382
    %v3787 = vunpack.c.l.b16 %v383
    %v3788 = vunpack.c.h.b16 %v383
    %v3789 = vunpack.c.l.b16 %v384
    %v3790 = vunpack.c.h.b16 %v384
    %v3791 = vunpack.c.l.b16 %v385
    %v3792 = vunpack.c.h.b16 %v385
    %v3793 = vunpack.c.l.b16 %v386
    %v3794 = vunpack.c.h.b16 %v386
    %v3795 = vunpack.c.l.b16 %v387
    %v3796 = vunpack.c.h.b16 %v387
    %v3797 = vunpack.c.l.b16 %v388
    %v3798 = vunpack.c.h.b16 %v388
    %v3799 = vunpack.c.l.b16 %v389
    %v3800 = vunpack.c.h.b16 %v389
    %v3801 = vunpack.c.l.b16 %v390
    %v3802 = vunpack.c.h.b16 %v390
    %v3803 = vunpack.c.l.b16 %v391
    %v3804 = vunpack.c.h.b16 %v391
    %v3805 = vunpack.c.l.b16 %v392
    %v3806 = vunpack.c.h.b16 %v392
    %v3807 = vunpack.c.l.b16 %v393
    %v3808 = vunpack.c.h.b16 %v393
    %v3809 = vunpack.c.l.b16 %v394
    %v3810 = vunpack.c.h.b16 %v394
    %v3811 = vunpack.c.l.b16 %v395
    %v3812 = vunpack.c.h.b16 %v395
    %v3813 = vunpack.c.l.b16 %v396
    %v3814 = vunpack.c.h.b16 %v396
    %v3815 = vunpack.c.l.b16 %v397
    %v3816 = vunpack.c.h.b16 %v397
    %v3817 = vunpack.c.l.b16 %v398
    %v3818 = vunpack.c.h.b16 %v398
    %v3819 = vunpack.c.l.b16 %v399
    %v3820 = vunpack.c.h.b16 %v399
    %v3821 = vunpack.c.l.b16 %v400
    %v3822 = vunpack.c.h.b16 %v400
    %v3823 = vunpack.c.l.b16 %v401
    %v3824 = vunpack.c.h.b16 %v401
    %v3825 = vunpack.c.l.b16 %v402
    %v3826 = vunpack.c.h.b16 %v402
    %v3827 = vunpack.c.l.b16 %v403
    %v3828 = vunpack.c.h.b16 %v403
    %v3829 = vunpack.c.l.b16 %v404
    %v3830 = vunpack.c.h.b16 %v404
    %v3831 = vunpack.c.l.b16 %v405
    %v3832 = vunpack.c.h.b16 %v405
    %v3833 = vunpack.c.l.b16 %v406
    %v3834 = vunpack.c.h.b16 %v406
    %v3835 = vunpack.c.l.b16 %v407
    %v3836 = vunpack.c.h.b16 %v407
    %v3837 = vunpack.c.l.b16 %v408
    %v3838 = vunpack.c.h.b16 %v408
    %v3839 = vunpack.c.l.b16 %v409
    %v3840 = vunpack.c.h.b16 %v409
    %v3841 = vunpack.c.l.b16 %v410
    %v3842 = vunpack.c.h.b16 %v410
    %v3843 = vunpack.c.l.b16 %v411
    %v3844 = vunpack.c.h.b16 %v411
    %v3845 = vunpack.c.l.b16 %v412
    %v3846 = vunpack.c.h.b16 %v412
    %v3847 = vunpack.c.l.b16 %v413
    %v3848 = vunpack.c.h.b16 %v413
    %v3849 = vunpack.c.l.b16 %v414
    %v3850 = vunpack.c.h.b16 %v414
    %v3851 = vunpack.c.l.b16 %v415
    %v3852 = vunpack.c.h.b16 %v415
    %v3853 = vunpack.c.l.b16 %v416
    %v3854 = vunpack.c.h.b16 %v416
    %v3855 = vunpack.c.l.b16 %v417
    %v3856 = vunpack.c.h.b16 %v417
    %v3857 = vunpack.c.l.b16 %v418
    %v3858 = vunpack.c.h.b16 %v418
    %v3859 = vunpack.c.l.b16 %v419
    %v3860 = vunpack.c.h.b16 %v419
    %v3861 = vunpack.c.l.b16 %v420
    %v3862 = vunpack.c.h.b16 %v420
    %v3863 = vunpack.c.l.b16 %v421
    %v3864 = vunpack.c.h.b16 %v421
    %v3865 = vunpack.c.l.b16 %v422
    %v3866 = vunpack.c.h.b16 %v422
    %v3867 = vunpack.c.l.b16 %v423
    %v3868 = vunpack.c.h.b16 %v423
    %v3869 = vunpack.c.l.b16 %v424
    %v3870 = vunpack.c.h.b16 %v424
    %v3871 = vunpack.c.l.b16 %v425
    %v3872 = vunpack.c.h.b16 %v425
    %v3873 = vunpack.c.l.b16 %v426
    %v3874 = vunpack.c.h.b16 %v426
    %v3875 = vunpack.c.l.b16 %v427
    %v3876 = vunpack.c.h.b16 %v427
    %v3877 = vunpack.c.l.b16 %v428
    %v3878 = vunpack.c.h.b16 %v428
    %v3879 = vunpack.c.l.b16 %v429
    %v3880 = vunpack.c.h.b16 %v429
    %v3881 = vunpack.c.l.b16 %v430
    %v3882 = vunpack.c.h.b16 %v430
    %v3883 = vunpack.c.l.b16 %v431
    %v3884 = vunpack.c.h.b16 %v431
    %v3885 = vunpack.c.l.b16 %v432
    %v3886 = vunpack.c.h.b16 %v432
    %v3887 = vunpack.c.l.b16 %v433
    %v3888 = vunpack.c.h.b16 %v433
    %v3889 = vunpack.c.l.b16 %v434
    %v3890 = vunpack.c.h.b16 %v434
    %v3891 = vunpack.c.l.b16 %v435
    %v3892 = vunpack.c.h.b16 %v435
    %v3893 = vunpack.c.l.b16 %v436
    %v3894 = vunpack.c.h.b16 %v436
    %v3895 = vunpack.c.l.b16 %v437
    %v3896 = vunpack.c.h.b16 %v437
    %v3897 = vunpack.c.l.b16 %v438
    %v3898 = vunpack.c.h.b16 %v438
    %v3899 = vunpack.c.l.b16 %v439
    %v3900 = vunpack.c.h.b16 %v439
    %v3901 = vunpack.c.l.b16 %v440
    %v3902 = vunpack.c.h.b16 %v440
    %v3903 = vunpack.c.l.b16 %v441
    %v3904 = vunpack.c.h.b16 %v441
    %v3905 = vunpack.c.l.b16 %v442
    %v3906 = vunpack.c.h.b16 %v442
    %v3907 = vunpack.c.l.b16 %v443
    %v3908 = vunpack.c.h.b16 %v443
    %v3909 = vunpack.c.l.b16 %v444
    %v3910 = vunpack.c.h.b16 %v444
    %v3911 = vunpack.c.l.b16 %v445
    %v3912 = vunpack.c.h.b16 %v445
    %v3913 = vunpack.c.l.b16 %v446
    %v3914 = vunpack.c.h.b16 %v446
    %v3915 = vunpack.c.l.b16 %v447
    %v3916 = vunpack.c.h.b16 %v447
    %v3917 = vunpack.c.l.b16 %v448
    %v3918 = vunpack.c.h.b16 %v448
    %v3919 = vunpack.c.l.b16 %v449
    %v3920 = vunpack.c.h.b16 %v449
    %v3921 = vunpack.c.l.b16 %v450
    %v3922 = vunpack.c.h.b16 %v450
    %v3923 = vunpack.c.l.b16 %v451
    %v3924 = vunpack.c.h.b16 %v451
    %v3925 = vunpack.c.l.b16 %v452
    %v3926 = vunpack.c.h.b16 %v452
    %v3927 = vunpack.c.l.b16 %v453
    %v3928 = vunpack.c.h.b16 %v453
    %v3929 = vunpack.c.l.b16 %v454
    %v3930 = vunpack.c.h.b16 %v454
    %v3931 = vunpack.c.l.b16 %v455
    %v3932 = vunpack.c.h.b16 %v455
    %v3933 = vunpack.c.l.b16 %v456
    %v3934 = vunpack.c.h.b16 %v456
    %v3935 = vunpack.c.l.b16 %v457
    %v3936 = vunpack.c.h.b16 %v457
    %v3937 = vunpack.c.l.b16 %v458
    %v3938 = vunpack.c.h.b16 %v458
    %v3939 = vunpack.c.l.b16 %v459
    %v3940 = vunpack.c.h.b16 %v459
    %v3941 = vunpack.c.l.b16 %v460
    %v3942 = vunpack.c.h.b16 %v460
    %v3943 = vunpack.c.l.b16 %v461
    %v3944 = vunpack.c.h.b16 %v461
    %v3945 = vunpack.c.l.b16 %v462
    %v3946 = vunpack.c.h.b16 %v462
    %v3947 = vunpack.c.l.b16 %v463
    %v3948 = vunpack.c.h.b16 %v463
    %v3949 = vunpack.c.l.b16 %v464
    %v3950 = vunpack.c.h.b16 %v464
    %v3951 = vunpack.c.l.b16 %v465
    %v3952 = vunpack.c.h.b16 %v465
    %v3953 = vunpack.c.l.b16 %v466
    %v3954 = vunpack.c.h.b16 %v466
    %v3955 = vunpack.c.l.b16 %v467
    %v3956 = vunpack.c.h.b16 %v467
    %v3957 = vunpack.c.l.b16 %v468
    %v3958 = vunpack.c.h.b16 %v468
    %v3959 = vunpack.c.l.b16 %v469
    %v3960 = vunpack.c.h.b16 %v469
    %v3961 = vunpack.c.l.b16 %v470
    %v3962 = vunpack.c.h.b16 %v470
    %v3963 = vunpack.c.l.b16 %v471
    %v3964 = vunpack.c.h.b16 %v471
    %v3965 = vunpack.c.l.b16 %v472
    %v3966 = vunpack.c.h.b16 %v472
    %v3967 = vunpack.c.l.b16 %v473
    %v3968 = vunpack.c.h.b16 %v473
    %v3969 = vunpack.c.l.b16 %v474
    %v3970 = vunpack.c.h.b16 %v474
    %v3971 = vunpack.c.l.b16 %v475
    %v3972 = vunpack.c.h.b16 %v475
    %v3973 = vunpack.c.l.b16 %v476
    %v3974 = vunpack.c.h.b16 %v476
    %v3975 = vunpack.c.l.b16 %v477
    %v3976 = vunpack.c.h.b16 %v477
    %v3977 = vunpack.c.l.b16 %v478
    %v3978 = vunpack.c.h.b16 %v478
    %v3979 = vunpack.c.l.b16 %v479
    %v3980 = vunpack.c.h.b16 %v479
    %v3981 = vunpack.c.l.b16 %v480
    %v3982 = vunpack.c.h.b16 %v480
    %v3983 = vunpack.c.l.b16 %v481
    %v3984 = vunpack.c.h.b16 %v481
    %v3985 = vunpack.c.l.b16 %v482
    %v3986 = vunpack.c.h.b16 %v482
    %v3987 = vunpack.c.l.b16 %v483
    %v3988 = vunpack.c.h.b16 %v483
    %v3989 = vunpack.c.l.b16 %v484
    %v3990 = vunpack.c.h.b16 %v484
    %v3991 = vunpack.c.l.b16 %v485
    %v3992 = vunpack.c.h.b16 %v485
    %v3993 = vunpack.c.l.b16 %v486
    %v3994 = vunpack.c.h.b16 %v486
    %v3995 = vunpack.c.l.b16 %v487
    %v3996 = vunpack.c.h.b16 %v487
    %v3997 = vunpack.c.l.b16 %v488
    %v3998 = vunpack.c.h.b16 %v488
    %v3999 = vunpack.c.l.b16 %v489
    %v4000 = vunpack.c.h.b16 %v489
    %v4001 = vunpack.c.l.b16 %v490
    %v4002 = vunpack.c.h.b16 %v490
    %v4003 = vunpack.c.l.b16 %v491
    %v4004 = vunpack.c.h.b16 %v491
    %v4005 = vunpack.c.l.b16 %v492
    %v4006 = vunpack.c.h.b16 %v492
    %v4007 = vunpack.c.l.b16 %v493
    %v4008 = vunpack.c.h.b16 %v493
    %v4009 = vunpack.c.l.b16 %v494
    %v4010 = vunpack.c.h.b16 %v494
    %v4011 = vunpack.c.l.b16 %v495
    %v4012 = vunpack.c.h.b16 %v495
    %v4013 = vunpack.c.l.b16 %v496
    %v4014 = vunpack.c.h.b16 %v496
    %v4015 = vunpack.c.l.b16 %v497
    %v4016 = vunpack.c.h.b16 %v497
    %v4017 = vunpack.c.l.b16 %v498
    %v4018 = vunpack.c.h.b16 %v498
    %v4019 = vunpack.c.l.b16 %v499
    %v4020 = vunpack.c.h.b16 %v499
    %v4021 = vunpack.c.l.b16 %v500
    %v4022 = vunpack.c.h.b16 %v500
    %v4023 = vunpack.c.l.b16 %v501
    %v4024 = vunpack.c.h.b16 %v501
    %v4025 = vunpack.c.l.b16 %v502
    %v4026 = vunpack.c.h.b16 %v502
    %v4027 = vunpack.c.l.b16 %v503
    %v4028 = vunpack.c.h.b16 %v503
    %v4029 = vunpack.c.l.b16 %v504
    %v4030 = vunpack.c.h.b16 %v504
    %v4031 = vunpack.c.l.b16 %v505
    %v4032 = vunpack.c.h.b16 %v505
    %v4033 = vunpack.c.l.b16 %v506
    %v4034 = vunpack.c.h.b16 %v506
    %v4035 = vunpack.c.l.b16 %v507
    %v4036 = vunpack.c.h.b16 %v507
    %v4037 = vunpack.c.l.b16 %v508
    %v4038 = vunpack.c.h.b16 %v508
    %v4039 = vunpack.c.l.b16 %v509
    %v4040 = vunpack.c.h.b16 %v509
    %v4041 = vunpack.c.l.b16 %v510
    %v4042 = vunpack.c.h.b16 %v510
    %v4043 = vunpack.c.l.b16 %v511
    %v4044 = vunpack.c.h.b16 %v511
    %v4045 = vunpack.c.l.b16 %v512
    %v4046 = vunpack.c.h.b16 %v512
    %v4047 = vunpack.c.l.b16 %v513
    %v4048 = vunpack.c.h.b16 %v513
    %v4049 = vunpack.c.l.b16 %v514
    %v4050 = vunpack.c.h.b16 %v514
    %v4051 = vunpack.c.l.b16 %v515
    %v4052 = vunpack.c.h.b16 %v515
    %v4053 = vunpack.c.l.b16 %v516
    %v4054 = vunpack.c.h.b16 %v516
    %v4055 = vunpack.c.l.b16 %v517
    %v4056 = vunpack.c.h.b16 %v517
    %v4057 = vunpack.c.l.b16 %v518
    %v4058 = vunpack.c.h.b16 %v518
    %v4059 = vunpack.c.l.b16 %v519
    %v4060 = vunpack.c.h.b16 %v519
    %v4061 = vunpack.c.l.b16 %v520
    %v4062 = vunpack.c.h.b16 %v520
    %v4063 = vunpack.c.l.b16 %v521
    %v4064 = vunpack.c.h.b16 %v521
    %v4065 = vunpack.c.l.b16 %v522
    %v4066 = vunpack.c.h.b16 %v522
    %v4067 = vunpack.c.l.b16 %v523
    %v4068 = vunpack.c.h.b16 %v523
    %v4069 = vunpack.c.l.b16 %v524
    %v4070 = vunpack.c.h.b16 %v524
    %v4071 = vunpack.c.l.b16 %v525
    %v4072 = vunpack.c.h.b16 %v525
    %v4073 = vunpack.c.l.b16 %v526
    %v4074 = vunpack.c.h.b16 %v526
    %v4075 = vunpack.c.l.b16 %v527
    %v4076 = vunpack.c.h.b16 %v527
    %v4077 = vunpack.c.l.b16 %v528
    %v4078 = vunpack.c.h.b16 %v528
    %v4079 = vunpack.c.l.b16 %v529
    %v4080 = vunpack.c.h.b16 %v529
    %v4081 = vunpack.c.l.b16 %v530
    %v4082 = vunpack.c.h.b16 %v530
    %v4083 = vunpack.c.l.b16 %v531
    %v4084 = vunpack.c.h.b16 %v531
    %v4085 = vunpack.c.l.b16 %v532
    %v4086 = vunpack.c.h.b16 %v532
    %v4087 = vunpack.c.l.b16 %v533
    %v4088 = vunpack.c.h.b16 %v533
    %v4089 = vunpack.c.l.b16 %v534
    %v4090 = vunpack.c.h.b16 %v534
    %v4091 = vunpack.c.l.b16 %v535
    %v4092 = vunpack.c.h.b16 %v535
    %v4093 = vunpack.c.l.b16 %v536
    %v4094 = vunpack.c.h.b16 %v536
    %v4095 = vunpack.c.l.b16 %v537
    %v4096 = vunpack.c.h.b16 %v537
    %v4097 = vunpack.c.l.b16 %v538
    %v4098 = vunpack.c.h.b16 %v538
    %v4099 = vunpack.c.l.b16 %v539
    %v4100 = vunpack.c.h.b16 %v539
    %v4101 = vunpack.c.l.b16 %v540
    %v4102 = vunpack.c.h.b16 %v540
    %v4103 = vunpack.c.l.b16 %v541
    %v4104 = vunpack.c.h.b16 %v541
    %v4105 = vunpack.c.l.b16 %v542
    %v4106 = vunpack.c.h.b16 %v542
    %v4107 = vunpack.c.l.b16 %v543
    %v4108 = vunpack.c.h.b16 %v543
    %v4109 = vunpack.c.l.b16 %v544
    %v4110 = vunpack.c.h.b16 %v544
    %v4111 = vunpack.c.l.b16 %v545
    %v4112 = vunpack.c.h.b16 %v545
    %v4113 = vunpack.c.l.b16 %v546
    %v4114 = vunpack.c.h.b16 %v546
    %v4115 = vunpack.c.l.b16 %v547
    %v4116 = vunpack.c.h.b16 %v547
    %v4117 = vunpack.c.l.b16 %v548
    %v4118 = vunpack.c.h.b16 %v548
    %v4119 = vunpack.c.l.b16 %v549
    %v4120 = vunpack.c.h.b16 %v549
    %v4121 = vunpack.c.l.b16 %v550
    %v4122 = vunpack.c.h.b16 %v550
    %v4123 = vunpack.c.l.b16 %v551
    %v4124 = vunpack.c.h.b16 %v551
    %v4125 = vunpack.c.l.b16 %v552
    %v4126 = vunpack.c.h.b16 %v552
    %v4127 = vunpack.c.l.b16 %v553
    %v4128 = vunpack.c.h.b16 %v553
    %v4129 = vunpack.c.l.b16 %v554
    %v4130 = vunpack.c.h.b16 %v554
    %v4131 = vunpack.c.l.b16 %v555
    %v4132 = vunpack.c.h.b16 %v555
    %v4133 = vunpack.c.l.b16 %v556
    %v4134 = vunpack.c.h.b16 %v556
    %v4135 = vunpack.c.l.b16 %v557
    %v4136 = vunpack.c.h.b16 %v557
    %v4137 = vunpack.c.l.b16 %v558
    %v4138 = vunpack.c.h.b16 %v558
    %v4139 = vunpack.c.l.b16 %v559
    %v4140 = vunpack.c.h.b16 %v559
    %v4141 = vunpack.c.l.b16 %v560
    %v4142 = vunpack.c.h.b16 %v560
    %v4143 = vunpack.c.l.b16 %v561
    %v4144 = vunpack.c.h.b16 %v561
    %v4145 = vunpack.c.l.b16 %v562
    %v4146 = vunpack.c.h.b16 %v562
    %v4147 = vunpack.c.l.b16 %v563
    %v4148 = vunpack.c.h.b16 %v563
    %v4149 = vunpack.c.l.b16 %v564
    %v4150 = vunpack.c.h.b16 %v564
    %v4151 = vunpack.c.l.b16 %v565
    %v4152 = vunpack.c.h.b16 %v565
    %v4153 = vunpack.c.l.b16 %v566
    %v4154 = vunpack.c.h.b16 %v566
    %v4155 = vunpack.c.l.b16 %v567
    %v4156 = vunpack.c.h.b16 %v567
    %v4157 = vunpack.c.l.b16 %v568
    %v4158 = vunpack.c.h.b16 %v568
    %v4159 = vunpack.c.l.b16 %v569
    %v4160 = vunpack.c.h.b16 %v569
    %v4161 = vunpack.c.l.b16 %v570
    %v4162 = vunpack.c.h.b16 %v570
    %v4163 = vunpack.c.l.b16 %v571
    %v4164 = vunpack.c.h.b16 %v571
    %v4165 = vunpack.c.l.b16 %v572
    %v4166 = vunpack.c.h.b16 %v572
    %v4167 = vunpack.c.l.b16 %v573
    %v4168 = vunpack.c.h.b16 %v573
    %v4169 = vunpack.c.l.b16 %v574
    %v4170 = vunpack.c.h.b16 %v574
    %v4171 = vunpack.c.l.b16 %v575
    %v4172 = vunpack.c.h.b16 %v575
    %v4173 = vunpack.c.l.b16 %v576
    %v4174 = vunpack.c.h.b16 %v576
    %v4175 = vunpack.c.l.b16 %v577
    %v4176 = vunpack.c.h.b16 %v577
    %v4177 = vunpack.c.l.b16 %v578
    %v4178 = vunpack.c.h.b16 %v578
    %v4179 = vunpack.c.l.b16 %v579
    %v4180 = vunpack.c.h.b16 %v579
    %v4181 = vunpack.c.l.b16 %v580
    %v4182 = vunpack.c.h.b16 %v580
    %v4183 = vunpack.c.l.b16 %v581
    %v4184 = vunpack.c.h.b16 %v581
    %v4185 = vunpack.c.l.b16 %v582
    %v4186 = vunpack.c.h.b16 %v582
    %v4187 = vunpack.c.l.b16 %v583
    %v4188 = vunpack.c.h.b16 %v583
    %v4189 = vunpack.c.l.b16 %v584
    %v4190 = vunpack.c.h.b16 %v584
    %v4191 = vunpack.c.l.b16 %v585
    %v4192 = vunpack.c.h.b16 %v585
    %v4193 = vunpack.c.l.b16 %v586
    %v4194 = vunpack.c.h.b16 %v586
    %v4195 = vunpack.c.l.b16 %v587
    %v4196 = vunpack.c.h.b16 %v587
    %v4197 = vunpack.c.l.b16 %v588
    %v4198 = vunpack.c.h.b16 %v588
    %v4199 = vunpack.c.l.b16 %v589
    %v4200 = vunpack.c.h.b16 %v589
    %v4201 = vunpack.c.l.b16 %v590
    %v4202 = vunpack.c.h.b16 %v590
    %v4203 = vunpack.c.l.b16 %v591
    %v4204 = vunpack.c.h.b16 %v591
    %v4205 = vunpack.c.l.b16 %v592
    %v4206 = vunpack.c.h.b16 %v592
    %v4207 = vunpack.c.l.b16 %v593
    %v4208 = vunpack.c.h.b16 %v593
    %v4209 = vunpack.c.l.b16 %v594
    %v4210 = vunpack.c.h.b16 %v594
    %v4211 = vunpack.c.l.b16 %v595
    %v4212 = vunpack.c.h.b16 %v595
    %v4213 = vunpack.c.l.b16 %v596
    %v4214 = vunpack.c.h.b16 %v596
    %v4215 = vunpack.c.l.b16 %v597
    %v4216 = vunpack.c.h.b16 %v597
    %v4217 = vunpack.c.l.b16 %v598
    %v4218 = vunpack.c.h.b16 %v598
    %v4219 = vunpack.c.l.b16 %v599
    %v4220 = vunpack.c.h.b16 %v599
    %v4221 = vunpack.c.l.b16 %v600
    %v4222 = vunpack.c.h.b16 %v600
    %v4223 = vunpack.c.l.b16 %v601
    %v4224 = vunpack.c.h.b16 %v601
    %v4225 = vunpack.c.l.b16 %v602
    %v4226 = vunpack.c.h.b16 %v602
    %v4227 = vunpack.c.l.b16 %v603
    %v4228 = vunpack.c.h.b16 %v603
    %v4229 = vunpack.c.l.b16 %v604
    %v4230 = vunpack.c.h.b16 %v604
    %v4231 = vunpack.c.l.b16 %v605
    %v4232 = vunpack.c.h.b16 %v605
    %v4233 = vunpack.c.l.b16 %v606
    %v4234 = vunpack.c.h.b16 %v606
    %v4235 = vunpack.c.l.b16 %v607
    %v4236 = vunpack.c.h.b16 %v607
    %v4237 = vunpack.c.l.b16 %v608
    %v4238 = vunpack.c.h.b16 %v608
    %v4239 = vunpack.c.l.b16 %v609
    %v4240 = vunpack.c.h.b16 %v609
    %v4241 = vunpack.c.l.b16 %v610
    %v4242 = vunpack.c.h.b16 %v610
    %v4243 = vunpack.c.l.b16 %v611
    %v4244 = vunpack.c.h.b16 %v611
    %v4245 = vunpack.c.l.b16 %v612
    %v4246 = vunpack.c.h.b16 %v612
    %v4247 = vunpack.c.l.b16 %v613
    %v4248 = vunpack.c.h.b16 %v613
    %v4249 = vunpack.c.l.b16 %v614
    %v4250 = vunpack.c.h.b16 %v614
    %v4251 = vunpack.c.l.b16 %v615
    %v4252 = vunpack.c.h.b16 %v615
    %v4253 = vunpack.c.l.b16 %v616
    %v4254 = vunpack.c.h.b16 %v616
    %v4255 = vunpack.c.l.b16 %v617
    %v4256 = vunpack.c.h.b16 %v617
    %v4257 = vunpack.c.l.b16 %v618
    %v4258 = vunpack.c.h.b16 %v618
    %v4259 = vunpack.c.l.b16 %v619
    %v4260 = vunpack.c.h.b16 %v619
    %v4261 = vunpack.c.l.b16 %v620
    %v4262 = vunpack.c.h.b16 %v620
    %v4263 = vunpack.c.l.b16 %v621
    %v4264 = vunpack.c.h.b16 %v621
    %v4265 = vunpack.c.l.b16 %v622
    %v4266 = vunpack.c.h.b16 %v622
    %v4267 = vunpack.c.l.b16 %v623
    %v4268 = vunpack.c.h.b16 %v623
    %v4269 = vunpack.c.l.b16 %v624
    %v4270 = vunpack.c.h.b16 %v624
    %v4271 = vunpack.c.l.b16 %v625
    %v4272 = vunpack.c.h.b16 %v625
    %v4273 = vunpack.c.l.b16 %v626
    %v4274 = vunpack.c.h.b16 %v626
    %v4275 = vunpack.c.l.b16 %v627
    %v4276 = vunpack.c.h.b16 %v627
    %v4277 = vunpack.c.l.b16 %v628
    %v4278 = vunpack.c.h.b16 %v628
    %v4279 = vunpack.c.l.b16 %v629
    %v4280 = vunpack.c.h.b16 %v629
    %v4281 = vunpack.c.l.b16 %v630
    %v4282 = vunpack.c.h.b16 %v630
    %v4283 = vunpack.c.l.b16 %v631
    %v4284 = vunpack.c.h.b16 %v631
    %v4285 = vunpack.c.l.b16 %v632
    %v4286 = vunpack.c.h.b16 %v632
    %v4287 = vunpack.c.l.b16 %v633
    %v4288 = vunpack.c.h.b16 %v633
    %v4289 = vunpack.c.l.b16 %v634
    %v4290 = vunpack.c.h.b16 %v634
    %v4291 = vunpack.c.l.b16 %v635
    %v4292 = vunpack.c.h.b16 %v635
    %v4293 = vunpack.c.l.b16 %v636
    %v4294 = vunpack.c.h.b16 %v636
    %v4295 = vunpack.c.l.b16 %v637
    %v4296 = vunpack.c.h.b16 %v637
    %v4297 = vunpack.c.l.b16 %v638
    %v4298 = vunpack.c.h.b16 %v638
    %v4299 = vunpack.c.l.b16 %v639
    %v4300 = vunpack.c.h.b16 %v639
    %v4301 = vunpack.c.l.b16 %v640
    %v4302 = vunpack.c.h.b16 %v640
    %v4303 = vunpack.c.l.b16 %v641
    %v4304 = vunpack.c.h.b16 %v641
    %v4305 = vunpack.c.l.b16 %v642
    %v4306 = vunpack.c.h.b16 %v642
    %v4307 = vunpack.c.l.b16 %v643
    %v4308 = vunpack.c.h.b16 %v643
    %v4309 = vunpack.c.l.b16 %v644
    %v4310 = vunpack.c.h.b16 %v644
    %v4311 = vunpack.c.l.b16 %v645
    %v4312 = vunpack.c.h.b16 %v645
    %v4313 = vunpack.c.l.b16 %v646
    %v4314 = vunpack.c.h.b16 %v646
    %v4315 = vunpack.c.l.b16 %v647
    %v4316 = vunpack.c.h.b16 %v647
    %v4317 = vunpack.c.l.b16 %v648
    %v4318 = vunpack.c.h.b16 %v648
    %v4319 = vunpack.c.l.b16 %v649
    %v4320 = vunpack.c.h.b16 %v649
    %v4321 = vunpack.c.l.b16 %v650
    %v4322 = vunpack.c.h.b16 %v650
    %v4323 = vunpack.c.l.b16 %v651
    %v4324 = vunpack.c.h.b16 %v651
    %v4325 = vunpack.c.l.b16 %v652
    %v4326 = vunpack.c.h.b16 %v652
    %v4327 = vunpack.c.l.b16 %v653
    %v4328 = vunpack.c.h.b16 %v653
    %v4329 = vunpack.c.l.b16 %v654
    %v4330 = vunpack.c.h.b16 %v654
    %v4331 = vunpack.c.l.b16 %v655
    %v4332 = vunpack.c.h.b16 %v655
    %v4333 = vunpack.c.l.b16 %v656
    %v4334 = vunpack.c.h.b16 %v656
    %v4335 = vunpack.c.l.b16 %v657
    %v4336 = vunpack.c.h.b16 %v657
    %v4337 = vunpack.c.l.b16 %v658
    %v4338 = vunpack.c.h.b16 %v658
    %v4339 = vunpack.c.l.b16 %v659
    %v4340 = vunpack.c.h.b16 %v659
    %v4341 = vunpack.c.l.b16 %v660
    %v4342 = vunpack.c.h.b16 %v660
    %v4343 = vunpack.c.l.b16 %v661
    %v4344 = vunpack.c.h.b16 %v661
    %v4345 = vunpack.c.l.b16 %v662
    %v4346 = vunpack.c.h.b16 %v662
    %v4347 = vunpack.c.l.b16 %v663
    %v4348 = vunpack.c.h.b16 %v663
    %v4349 = vunpack.c.l.b16 %v664
    %v4350 = vunpack.c.h.b16 %v664
    %v4351 = vunpack.c.l.b16 %v665
    %v4352 = vunpack.c.h.b16 %v665
    %v4353 = vunpack.c.l.b16 %v666
    %v4354 = vunpack.c.h.b16 %v666
    %v4355 = vunpack.c.l.b16 %v667
    %v4356 = vunpack.c.h.b16 %v667
    %v4357 = vunpack.c.l.b16 %v668
    %v4358 = vunpack.c.h.b16 %v668
    %v4359 = vunpack.c.l.b16 %v669
    %v4360 = vunpack.c.h.b16 %v669
    %v4361 = vunpack.c.l.b16 %v670
    %v4362 = vunpack.c.h.b16 %v670
    %v4363 = vunpack.c.l.b16 %v671
    %v4364 = vunpack.c.h.b16 %v671
    %v4365 = vunpack.c.l.b16 %v672
    %v4366 = vunpack.c.h.b16 %v672
    %v4367 = vunpack.c.l.b16 %v673
    %v4368 = vunpack.c.h.b16 %v673
    %v4369 = vunpack.c.l.b16 %v674
    %v4370 = vunpack.c.h.b16 %v674
    %v4371 = vunpack.c.l.b16 %v675
    %v4372 = vunpack.c.h.b16 %v675
    %v4373 = vunpack.c.l.b16 %v676
    %v4374 = vunpack.c.h.b16 %v676
    %v4375 = vunpack.c.l.b16 %v677
    %v4376 = vunpack.c.h.b16 %v677
    %v4377 = vunpack.c.l.b16 %v678
    %v4378 = vunpack.c.h.b16 %v678
    %v4379 = vunpack.c.l.b16 %v679
    %v4380 = vunpack.c.h.b16 %v679
    %v4381 = vunpack.c.l.b16 %v680
    %v4382 = vunpack.c.h.b16 %v680
    %v4383 = vunpack.c.l.b16 %v681
    %v4384 = vunpack.c.h.b16 %v681
    %v4385 = vunpack.c.l.b16 %v682
    %v4386 = vunpack.c.h.b16 %v682
    %v4387 = vunpack.c.l.b16 %v683
    %v4388 = vunpack.c.h.b16 %v683
    %v4389 = vunpack.c.l.b16 %v684
    %v4390 = vunpack.c.h.b16 %v684
    %v4391 = vunpack.c.l.b16 %v685
    %v4392 = vunpack.c.h.b16 %v685
    %v4393 = vunpack.c.l.b16 %v686
    %v4394 = vunpack.c.h.b16 %v686
    %v4395 = vunpack.c.l.b16 %v687
    %v4396 = vunpack.c.h.b16 %v687
    %v4397 = vunpack.c.l.b16 %v688
    %v4398 = vunpack.c.h.b16 %v688
    %v4399 = vunpack.c.l.b16 %v689
    %v4400 = vunpack.c.h.b16 %v689
    %v4401 = vunpack.c.l.b16 %v690
    %v4402 = vunpack.c.h.b16 %v690
    %v4403 = vunpack.c.l.b16 %v691
    %v4404 = vunpack.c.h.b16 %v691
    %v4405 = vunpack.c.l.b16 %v692
    %v4406 = vunpack.c.h.b16 %v692
    %v4407 = vunpack.c.l.b16 %v693
    %v4408 = vunpack.c.h.b16 %v693
    %v4409 = vunpack.c.l.b16 %v694
    %v4410 = vunpack.c.h.b16 %v694
    %v4411 = vunpack.c.l.b16 %v695
    %v4412 = vunpack.c.h.b16 %v695
    %v4413 = vunpack.c.l.b16 %v696
    %v4414 = vunpack.c.h.b16 %v696
    %v4415 = vunpack.c.l.b16 %v697
    %v4416 = vunpack.c.h.b16 %v697
    %v4417 = vunpack.c.l.b16 %v698
    %v4418 = vunpack.c.h.b16 %v698
    %v4419 = vunpack.c.l.b16 %v699
    %v4420 = vunpack.c.h.b16 %v699
    %v4421 = vunpack.c.l.b16 %v700
    %v4422 = vunpack.c.h.b16 %v700
    %v4423 = vunpack.c.l.b16 %v701
    %v4424 = vunpack.c.h.b16 %v701
    %v4425 = vunpack.c.l.b16 %v702
    %v4426 = vunpack.c.h.b16 %v702
    %v4427 = vunpack.c.l.b16 %v703
    %v4428 = vunpack.c.h.b16 %v703
    %v4429 = vunpack.c.l.b16 %v704
    %v4430 = vunpack.c.h.b16 %v704
    %v4431 = vunpack.c.l.b16 %v705
    %v4432 = vunpack.c.h.b16 %v705
    %v4433 = vunpack.c.l.b16 %v706
    %v4434 = vunpack.c.h.b16 %v706
    %v4435 = vunpack.c.l.b16 %v707
    %v4436 = vunpack.c.h.b16 %v707
    %v4437 = vunpack.c.l.b16 %v708
    %v4438 = vunpack.c.h.b16 %v708
    %v4439 = vunpack.c.l.b16 %v709
    %v4440 = vunpack.c.h.b16 %v709
    %v4441 = vunpack.c.l.b16 %v710
    %v4442 = vunpack.c.h.b16 %v710
    %v4443 = vunpack.c.l.b16 %v711
    %v4444 = vunpack.c.h.b16 %v711
    %v4445 = vunpack.c.l.b16 %v712
    %v4446 = vunpack.c.h.b16 %v712
    %v4447 = vunpack.c.l.b16 %v713
    %v4448 = vunpack.c.h.b16 %v713
    %v4449 = vunpack.c.l.b16 %v714
    %v4450 = vunpack.c.h.b16 %v714
    %v4451 = vunpack.c.l.b16 %v715
    %v4452 = vunpack.c.h.b16 %v715
    %v4453 = vunpack.c.l.b16 %v716
    %v4454 = vunpack.c.h.b16 %v716
    %v4455 = vunpack.c.l.b16 %v717
    %v4456 = vunpack.c.h.b16 %v717
    %v4457 = vunpack.c.l.b16 %v718
    %v4458 = vunpack.c.h.b16 %v718
    %v4459 = vunpack.c.l.b16 %v719
    %v4460 = vunpack.c.h.b16 %v719
    %v4461 = vunpack.c.l.b16 %v720
    %v4462 = vunpack.c.h.b16 %v720
    %v4463 = vunpack.c.l.b16 %v721
    %v4464 = vunpack.c.h.b16 %v721
    %v4465 = vunpack.c.l.b16 %v722
    %v4466 = vunpack.c.h.b16 %v722
    %v4467 = vunpack.c.l.b16 %v723
    %v4468 = vunpack.c.h.b16 %v723
    %v4469 = vunpack.c.l.b16 %v724
    %v4470 = vunpack.c.h.b16 %v724
    %v4471 = vunpack.c.l.b16 %v725
    %v4472 = vunpack.c.h.b16 %v725
    %v4473 = vunpack.c.l.b16 %v726
    %v4474 = vunpack.c.h.b16 %v726
    %v4475 = vunpack.c.l.b16 %v727
    %v4476 = vunpack.c.h.b16 %v727
    %v4477 = vunpack.c.l.b16 %v728
    %v4478 = vunpack.c.h.b16 %v728
    %v4479 = vunpack.c.l.b16 %v729
    %v4480 = vunpack.c.h.b16 %v729
    %v4481 = vunpack.c.l.b16 %v730
    %v4482 = vunpack.c.h.b16 %v730
    %v4483 = vunpack.c.l.b16 %v731
    %v4484 = vunpack.c.h.b16 %v731
    %v4485 = vunpack.c.l.b16 %v732
    %v4486 = vunpack.c.h.b16 %v732
    %v4487 = vunpack.c.l.b16 %v733
    %v4488 = vunpack.c.h.b16 %v733
    %v4489 = vunpack.c.l.b16 %v734
    %v4490 = vunpack.c.h.b16 %v734
    %v4491 = vunpack.c.l.b16 %v735
    %v4492 = vunpack.c.h.b16 %v735
    %v4493 = vunpack.c.l.b16 %v736
    %v4494 = vunpack.c.h.b16 %v736
    %v4495 = vunpack.c.l.b16 %v737
    %v4496 = vunpack.c.h.b16 %v737
    %v4497 = vunpack.c.l.b16 %v738
    %v4498 = vunpack.c.h.b16 %v738
    %v4499 = vunpack.c.l.b16 %v739
    %v4500 = vunpack.c.h.b16 %v739
    %v4501 = vunpack.c.l.b16 %v740
    %v4502 = vunpack.c.h.b16 %v740
    %v4503 = vunpack.c.l.b16 %v741
    %v4504 = vunpack.c.h.b16 %v741
    %v4505 = vunpack.c.l.b16 %v742
    %v4506 = vunpack.c.h.b16 %v742
    %v4507 = vunpack.c.l.b16 %v743
    %v4508 = vunpack.c.h.b16 %v743
    %v4509 = vunpack.c.l.b16 %v744
    %v4510 = vunpack.c.h.b16 %v744
    %v4511 = vunpack.c.l.b16 %v745
    %v4512 = vunpack.c.h.b16 %v745
    %v4513 = vunpack.c.l.b16 %v746
    %v4514 = vunpack.c.h.b16 %v746
    %v4515 = vunpack.c.l.b16 %v747
    %v4516 = vunpack.c.h.b16 %v747
    %v4517 = vunpack.c.l.b16 %v748
    %v4518 = vunpack.c.h.b16 %v748
    %v4519 = vunpack.c.l.b16 %v749
    %v4520 = vunpack.c.h.b16 %v749
    %v4521 = vunpack.c.l.b16 %v750
    %v4522 = vunpack.c.h.b16 %v750
    %v4523 = vunpack.c.l.b16 %v751
    %v4524 = vunpack.c.h.b16 %v751
    %v4525 = vunpack.c.l.b16 %v752
    %v4526 = vunpack.c.h.b16 %v752
    %v4527 = vunpack.c.l.b16 %v753
    %v4528 = vunpack.c.h.b16 %v753
    %v4529 = vunpack.c.l.b16 %v754
    %v4530 = vunpack.c.h.b16 %v754
    %v4531 = vunpack.c.l.b16 %v755
    %v4532 = vunpack.c.h.b16 %v755
    %v4533 = vunpack.c.l.b16 %v756
    %v4534 = vunpack.c.h.b16 %v756
    %v4535 = vunpack.c.l.b16 %v757
    %v4536 = vunpack.c.h.b16 %v757
    %v4537 = vunpack.c.l.b16 %v758
    %v4538 = vunpack.c.h.b16 %v758
    %v4539 = vunpack.c.l.b16 %v759
    %v4540 = vunpack.c.h.b16 %v759
    %v4541 = vunpack.c.l.b16 %v760
    %v4542 = vunpack.c.h.b16 %v760
    %v4543 = vunpack.c.l.b16 %v761
    %v4544 = vunpack.c.h.b16 %v761
    %v4545 = vunpack.c.l.b16 %v762
    %v4546 = vunpack.c.h.b16 %v762
    %v4547 = vunpack.c.l.b16 %v763
    %v4548 = vunpack.c.h.b16 %v763
    %v4549 = vunpack.c.l.b16 %v764
    %v4550 = vunpack.c.h.b16 %v764
    %v4551 = vunpack.c.l.b16 %v765
    %v4552 = vunpack.c.h.b16 %v765
    %v4553 = vunpack.c.l.b16 %v766
    %v4554 = vunpack.c.h.b16 %v766
    %v4555 = vunpack.c.l.b16 %v767
    %v4556 = vunpack.c.h.b16 %v767
    %v4557 = vunpack.c.l.b16 %v768
    %v4558 = vunpack.c.h.b16 %v768
    %v4559 = vunpack.c.l.b16 %v769
    %v4560 = vunpack.c.h.b16 %v769
    %v4561 = vunpack.c.l.b16 %v770
    %v4562 = vunpack.c.h.b16 %v770
    %v4563 = vunpack.c.l.b16 %v771
    %v4564 = vunpack.c.h.b16 %v771
    %v4565 = vunpack.c.l.b16 %v772
    %v4566 = vunpack.c.h.b16 %v772
    %v4567 = vunpack.c.l.b16 %v773
    %v4568 = vunpack.c.h.b16 %v773
    %v4569 = vunpack.c.l.b16 %v774
    %v4570 = vunpack.c.h.b16 %v774
    %v4571 = vunpack.c.l.b16 %v775
    %v4572 = vunpack.c.h.b16 %v775
    %v4573 = vunpack.c.l.b16 %v776
    %v4574 = vunpack.c.h.b16 %v776
    %v4575 = vunpack.c.l.b16 %v777
    %v4576 = vunpack.c.h.b16 %v777
    %v4577 = vunpack.c.l.b16 %v778
    %v4578 = vunpack.c.h.b16 %v778
    %v4579 = vunpack.c.l.b16 %v779
    %v4580 = vunpack.c.h.b16 %v779
    %v4581 = vunpack.c.l.b16 %v780
    %v4582 = vunpack.c.h.b16 %v780
    %v4583 = vunpack.c.l.b16 %v781
    %v4584 = vunpack.c.h.b16 %v781
    %v4585 = vunpack.c.l.b16 %v782
    %v4586 = vunpack.c.h.b16 %v782
    %v4587 = vunpack.c.l.b16 %v783
    %v4588 = vunpack.c.h.b16 %v783
    %v4589 = vunpack.c.l.b16 %v784
    %v4590 = vunpack.c.h.b16 %v784
    %v4591 = vunpack.c.l.b16 %v785
    %v4592 = vunpack.c.h.b16 %v785
    %v4593 = vunpack.c.l.b16 %v786
    %v4594 = vunpack.c.h.b16 %v786
    %v4595 = vunpack.c.l.b16 %v787
    %v4596 = vunpack.c.h.b16 %v787
    %v4597 = vunpack.c.l.b16 %v788
    %v4598 = vunpack.c.h.b16 %v788
    %v4599 = vunpack.c.l.b16 %v789
    %v4600 = vunpack.c.h.b16 %v789
    %v4601 = vunpack.c.l.b16 %v790
    %v4602 = vunpack.c.h.b16 %v790
    %v4603 = vunpack.c.l.b16 %v791
    %v4604 = vunpack.c.h.b16 %v791
    %v4605 = vunpack.c.l.b16 %v792
    %v4606 = vunpack.c.h.b16 %v792
    %v4607 = vunpack.c.l.b16 %v793
    %v4608 = vunpack.c.h.b16 %v793
    %v4609 = vunpack.c.l.b16 %v794
    %v4610 = vunpack.c.h.b16 %v794
    %v4611 = vunpack.c.l.b16 %v795
    %v4612 = vunpack.c.h.b16 %v795
    %v4613 = vunpack.c.l.b16 %v796
    %v4614 = vunpack.c.h.b16 %v796
    %v4615 = vunpack.c.l.b16 %v797
    %v4616 = vunpack.c.h.b16 %v797
    %v4617 = vunpack.c.l.b16 %v798
    %v4618 = vunpack.c.h.b16 %v798
    %v4619 = vunpack.c.l.b16 %v799
    %v4620 = vunpack.c.h.b16 %v799
    %v4621 = vunpack.c.l.b16 %v800
    %v4622 = vunpack.c.h.b16 %v800
    %v4623 = vunpack.c.l.b16 %v801
    %v4624 = vunpack.c.h.b16 %v801
    %v4625 = vunpack.c.l.b16 %v802
    %v4626 = vunpack.c.h.b16 %v802
    %v4627 = vunpack.c.l.b16 %v803
    %v4628 = vunpack.c.h.b16 %v803
    %v4629 = vunpack.c.l.b16 %v804
    %v4630 = vunpack.c.h.b16 %v804
    %v4631 = vunpack.c.l.b16 %v805
    %v4632 = vunpack.c.h.b16 %v805
    %v4633 = vunpack.c.l.b16 %v806
    %v4634 = vunpack.c.h.b16 %v806
    %v4635 = vunpack.c.l.b16 %v807
    %v4636 = vunpack.c.h.b16 %v807
    %v4637 = vunpack.c.l.b16 %v808
    %v4638 = vunpack.c.h.b16 %v808
    %v4639 = vunpack.c.l.b16 %v809
    %v4640 = vunpack.c.h.b16 %v809
    %v4641 = vunpack.c.l.b16 %v810
    %v4642 = vunpack.c.h.b16 %v810
    %v4643 = vunpack.c.l.b16 %v811
    %v4644 = vunpack.c.h.b16 %v811
    %v4645 = vunpack.c.l.b16 %v812
    %v4646 = vunpack.c.h.b16 %v812
    %v4647 = vunpack.c.l.b16 %v813
    %v4648 = vunpack.c.h.b16 %v813
    %v4649 = vunpack.c.l.b16 %v814
    %v4650 = vunpack.c.h.b16 %v814
    %v4651 = vunpack.c.l.b16 %v815
    %v4652 = vunpack.c.h.b16 %v815
    %v4653 = vunpack.c.l.b16 %v816
    %v4654 = vunpack.c.h.b16 %v816
    %v4655 = vunpack.c.l.b16 %v817
    %v4656 = vunpack.c.h.b16 %v817
    %v4657 = vunpack.c.l.b16 %v818
    %v4658 = vunpack.c.h.b16 %v818
    %v4659 = vunpack.c.l.b16 %v819
    %v4660 = vunpack.c.h.b16 %v819
    %v4661 = vunpack.c.l.b16 %v820
    %v4662 = vunpack.c.h.b16 %v820
    %v4663 = vunpack.c.l.b16 %v821
    %v4664 = vunpack.c.h.b16 %v821
    %v4665 = vunpack.c.l.b16 %v822
    %v4666 = vunpack.c.h.b16 %v822
    %v4667 = vunpack.c.l.b16 %v823
    %v4668 = vunpack.c.h.b16 %v823
    %v4669 = vunpack.c.l.b16 %v824
    %v4670 = vunpack.c.h.b16 %v824
    %v4671 = vunpack.c.l.b16 %v825
    %v4672 = vunpack.c.h.b16 %v825
    %v4673 = vunpack.c.l.b16 %v826
    %v4674 = vunpack.c.h.b16 %v826
    %v4675 = vunpack.c.l.b16 %v827
    %v4676 = vunpack.c.h.b16 %v827
    %v4677 = vunpack.c.l.b16 %v828
    %v4678 = vunpack.c.h.b16 %v828
    %v4679 = vunpack.c.l.b16 %v829
    %v4680 = vunpack.c.h.b16 %v829
    %v4681 = vunpack.c.l.b16 %v830
    %v4682 = vunpack.c.h.b16 %v830
    %v4683 = vunpack.c.l.b16 %v831
    %v4684 = vunpack.c.h.b16 %v831
    %v4685 = vunpack.c.l.b16 %v832
    %v4686 = vunpack.c.h.b16 %v832
    %v4687 = vunpack.c.l.b16 %v833
    %v4688 = vunpack.c.h.b16 %v833
    %v4689 = vunpack.c.l.b16 %v834
    %v4690 = vunpack.c.h.b16 %v834
    %v4691 = vunpack.c.l.b16 %v835
    %v4692 = vunpack.c.h.b16 %v835
    %v4693 = vunpack.c.l.b16 %v836
    %v4694 = vunpack.c.h.b16 %v836
    %v4695 = vunpack.c.l.b16 %v837
    %v4696 = vunpack.c.h.b16 %v837
    %v4697 = vunpack.c.l.b16 %v838
    %v4698 = vunpack.c.h.b16 %v838
    %v4699 = vunpack.c.l.b16 %v839
    %v4700 = vunpack.c.h.b16 %v839
    %v4701 = vunpack.c.l.b16 %v840
    %v4702 = vunpack.c.h.b16 %v840
    %v4703 = vunpack.c.l.b16 %v841
    %v4704 = vunpack.c.h.b16 %v841
    %v4705 = vunpack.c.l.b16 %v842
    %v4706 = vunpack.c.h.b16 %v842
    %v4707 = vunpack.c.l.b16 %v843
    %v4708 = vunpack.c.h.b16 %v843
    %v4709 = vunpack.c.l.b16 %v844
    %v4710 = vunpack.c.h.b16 %v844
    %v4711 = vunpack.c.l.b16 %v845
    %v4712 = vunpack.c.h.b16 %v845
    %v4713 = vunpack.c.l.b16 %v846
    %v4714 = vunpack.c.h.b16 %v846
    %v4715 = vunpack.c.l.b16 %v847
    %v4716 = vunpack.c.h.b16 %v847
    %v4717 = vunpack.c.l.b16 %v848
    %v4718 = vunpack.c.h.b16 %v848
    %v4719 = vunpack.c.l.b16 %v849
    %v4720 = vunpack.c.h.b16 %v849
    %v4721 = vunpack.c.l.b16 %v850
    %v4722 = vunpack.c.h.b16 %v850
    %v4723 = vunpack.c.l.b16 %v851
    %v4724 = vunpack.c.h.b16 %v851
    %v4725 = vunpack.c.l.b16 %v852
    %v4726 = vunpack.c.h.b16 %v852
    %v4727 = vunpack.c.l.b16 %v853
    %v4728 = vunpack.c.h.b16 %v853
    %v4729 = vunpack.c.l.b16 %v854
    %v4730 = vunpack.c.h.b16 %v854
    %v4731 = vunpack.c.l.b16 %v855
    %v4732 = vunpack.c.h.b16 %v855
    %v4733 = vunpack.c.l.b16 %v856
    %v4734 = vunpack.c.h.b16 %v856
    %v4735 = vunpack.c.l.b16 %v857
    %v4736 = vunpack.c.h.b16 %v857
    %v4737 = vunpack.c.l.b16 %v858
    %v4738 = vunpack.c.h.b16 %v858
    %v4739 = vunpack.c.l.b16 %v859
    %v4740 = vunpack.c.h.b16 %v859
    %v4741 = vunpack.c.l.b16 %v860
    %v4742 = vunpack.c.h.b16 %v860
    %v4743 = vunpack.c.l.b16 %v861
    %v4744 = vunpack.c.h.b16 %v861
    %v4745 = vunpack.c.l.b16 %v862
    %v4746 = vunpack.c.h.b16 %v862
    %v4747 = vunpack.c.l.b16 %v863
    %v4748 = vunpack.c.h.b16 %v863
    %v4749 = vunpack.c.l.b16 %v864
    %v4750 = vunpack.c.h.b16 %v864
    %v4751 = vunpack.c.l.b16 %v865
    %v4752 = vunpack.c.h.b16 %v865
    %v4753 = vunpack.c.l.b16 %v866
    %v4754 = vunpack.c.h.b16 %v866
    %v4755 = vunpack.c.l.b16 %v867
    %v4756 = vunpack.c.h.b16 %v867
    %v4757 = vunpack.c.l.b16 %v868
    %v4758 = vunpack.c.h.b16 %v868
    %v4759 = vunpack.c.l.b16 %v869
    %v4760 = vunpack.c.h.b16 %v869
    %v4761 = vunpack.c.l.b16 %v870
    %v4762 = vunpack.c.h.b16 %v870
    %v4763 = vunpack.c.l.b16 %v871
    %v4764 = vunpack.c.h.b16 %v871
    %v4765 = vunpack.c.l.b16 %v872
    %v4766 = vunpack.c.h.b16 %v872
    %v4767 = vunpack.c.l.b16 %v873
    %v4768 = vunpack.c.h.b16 %v873
    %v4769 = vunpack.c.l.b16 %v874
    %v4770 = vunpack.c.h.b16 %v874
    %v4771 = vunpack.c.l.b16 %v875
    %v4772 = vunpack.c.h.b16 %v875
    %v4773 = vunpack.c.l.b16 %v876
    %v4774 = vunpack.c.h.b16 %v876
    %v4775 = vunpack.c.l.b16 %v877
    %v4776 = vunpack.c.h.b16 %v877
    %v4777 = vunpack.c.l.b16 %v878
    %v4778 = vunpack.c.h.b16 %v878
    %v4779 = vunpack.c.l.b16 %v879
    %v4780 = vunpack.c.h.b16 %v879
    %v4781 = vunpack.c.l.b16 %v880
    %v4782 = vunpack.c.h.b16 %v880
    %v4783 = vunpack.c.l.b16 %v881
    %v4784 = vunpack.c.h.b16 %v881
    %v4785 = vunpack.c.l.b16 %v882
    %v4786 = vunpack.c.h.b16 %v882
    %v4787 = vunpack.c.l.b16 %v883
    %v4788 = vunpack.c.h.b16 %v883
    %v4789 = vunpack.c.l.b16 %v884
    %v4790 = vunpack.c.h.b16 %v884
    %v4791 = vunpack.c.l.b16 %v885
    %v4792 = vunpack.c.h.b16 %v885
    %v4793 = vunpack.c.l.b16 %v886
    %v4794 = vunpack.c.h.b16 %v886
    %v4795 = vunpack.c.l.b16 %v887
    %v4796 = vunpack.c.h.b16 %v887
    %v4797 = vunpack.c.l.b16 %v888
    %v4798 = vunpack.c.h.b16 %v888
    %v4799 = vunpack.c.l.b16 %v889
    %v4800 = vunpack.c.h.b16 %v889
    %v4801 = vunpack.c.l.b16 %v890
    %v4802 = vunpack.c.h.b16 %v890
    %v4803 = vunpack.c.l.b16 %v891
    %v4804 = vunpack.c.h.b16 %v891
    %v4805 = vunpack.c.l.b16 %v892
    %v4806 = vunpack.c.h.b16 %v892
    %v4807 = vunpack.c.l.b16 %v893
    %v4808 = vunpack.c.h.b16 %v893
    %v4809 = vunpack.c.l.b16 %v894
    %v4810 = vunpack.c.h.b16 %v894
    %v4811 = vunpack.c.l.b16 %v895
    %v4812 = vunpack.c.h.b16 %v895
    %v4813 = vunpack.c.l.b16 %v896
    %v4814 = vunpack.c.h.b16 %v896
    %v4815 = vunpack.c.l.b16 %v897
    %v4816 = vunpack.c.h.b16 %v897
    %v4817 = vunpack.c.l.b16 %v898
    %v4818 = vunpack.c.h.b16 %v898
    %v4819 = vunpack.c.l.b16 %v899
    %v4820 = vunpack.c.h.b16 %v899
    %v4821 = vunpack.c.l.b16 %v900
    %v4822 = vunpack.c.h.b16 %v900
    %v4823 = vunpack.c.l.b16 %v901
    %v4824 = vunpack.c.h.b16 %v901
    %v4825 = vunpack.c.l.b16 %v902
    %v4826 = vunpack.c.h.b16 %v902
    %v4827 = vunpack.c.l.b16 %v903
    %v4828 = vunpack.c.h.b16 %v903
    %v4829 = vunpack.c.l.b16 %v904
    %v4830 = vunpack.c.h.b16 %v904
    %v4831 = vunpack.c.l.b16 %v905
    %v4832 = vunpack.c.h.b16 %v905
    %v4833 = vunpack.c.l.b16 %v906
    %v4834 = vunpack.c.h.b16 %v906
    %v4835 = vunpack.c.l.b16 %v907
    %v4836 = vunpack.c.h.b16 %v907
    %v4837 = vunpack.c.l.b16 %v908
    %v4838 = vunpack.c.h.b16 %v908
    %v4839 = vunpack.c.l.b16 %v909
    %v4840 = vunpack.c.h.b16 %v909
    %v4841 = vunpack.c.l.b16 %v910
    %v4842 = vunpack.c.h.b16 %v910
    %v4843 = vunpack.c.l.b16 %v911
    %v4844 = vunpack.c.h.b16 %v911
    %v4845 = vunpack.c.l.b16 %v912
    %v4846 = vunpack.c.h.b16 %v912
    %v4847 = vunpack.c.l.b16 %v913
    %v4848 = vunpack.c.h.b16 %v913
    %v4849 = vunpack.c.l.b16 %v914
    %v4850 = vunpack.c.h.b16 %v914
    %v4851 = vunpack.c.l.b16 %v915
    %v4852 = vunpack.c.h.b16 %v915
    %v4853 = vunpack.c.l.b16 %v916
    %v4854 = vunpack.c.h.b16 %v916
    %v4855 = vunpack.c.l.b16 %v917
    %v4856 = vunpack.c.h.b16 %v917
    %v4857 = vunpack.c.l.b16 %v918
    %v4858 = vunpack.c.h.b16 %v918
    %v4859 = vunpack.c.l.b16 %v919
    %v4860 = vunpack.c.h.b16 %v919
    %v4861 = vunpack.c.l.b16 %v920
    %v4862 = vunpack.c.h.b16 %v920
    %v4863 = vunpack.c.l.b16 %v921
    %v4864 = vunpack.c.h.b16 %v921
    %v4865 = vunpack.c.l.b16 %v922
    %v4866 = vunpack.c.h.b16 %v922
    %v4867 = vunpack.c.l.b16 %v923
    %v4868 = vunpack.c.h.b16 %v923
    %v4869 = vunpack.c.l.b16 %v924
    %v4870 = vunpack.c.h.b16 %v924
    %v4871 = vunpack.c.l.b16 %v925
    %v4872 = vunpack.c.h.b16 %v925
    %v4873 = vunpack.c.l.b16 %v926
    %v4874 = vunpack.c.h.b16 %v926
    %v4875 = vunpack.c.l.b16 %v927
    %v4876 = vunpack.c.h.b16 %v927
    %v4877 = vunpack.c.l.b16 %v928
    %v4878 = vunpack.c.h.b16 %v928
    %v4879 = vunpack.c.l.b16 %v929
    %v4880 = vunpack.c.h.b16 %v929
    %v4881 = vunpack.c.l.b16 %v930
    %v4882 = vunpack.c.h.b16 %v930
    %v4883 = vunpack.c.l.b16 %v931
    %v4884 = vunpack.c.h.b16 %v931
    %v4885 = vunpack.c.l.b16 %v932
    %v4886 = vunpack.c.h.b16 %v932
    %v4887 = vunpack.c.l.b16 %v933
    %v4888 = vunpack.c.h.b16 %v933
    %v4889 = vunpack.c.l.b16 %v934
    %v4890 = vunpack.c.h.b16 %v934
    %v4891 = vunpack.c.l.b16 %v935
    %v4892 = vunpack.c.h.b16 %v935
    %v4893 = vunpack.c.l.b16 %v936
    %v4894 = vunpack.c.h.b16 %v936
    %v4895 = vunpack.c.l.b16 %v937
    %v4896 = vunpack.c.h.b16 %v937
    %v4897 = vunpack.c.l.b16 %v938
    %v4898 = vunpack.c.h.b16 %v938
    %v4899 = vunpack.c.l.b16 %v939
    %v4900 = vunpack.c.h.b16 %v939
    %v4901 = vunpack.c.l.b16 %v940
    %v4902 = vunpack.c.h.b16 %v940
    %v4903 = vunpack.c.l.b16 %v941
    %v4904 = vunpack.c.h.b16 %v941
    %v4905 = vunpack.c.l.b16 %v942
    %v4906 = vunpack.c.h.b16 %v942
    %v4907 = vunpack.c.l.b16 %v943
    %v4908 = vunpack.c.h.b16 %v943
    %v4909 = vunpack.c.l.b16 %v944
    %v4910 = vunpack.c.h.b16 %v944
    %v4911 = vunpack.c.l.b16 %v945
    %v4912 = vunpack.c.h.b16 %v945
    %v4913 = vunpack.c.l.b16 %v946
    %v4914 = vunpack.c.h.b16 %v946
    %v4915 = vunpack.c.l.b16 %v947
    %v4916 = vunpack.c.h.b16 %v947
    %v4917 = vunpack.c.l.b16 %v948
    %v4918 = vunpack.c.h.b16 %v948
    %v4919 = vunpack.c.l.b16 %v949
    %v4920 = vunpack.c.h.b16 %v949
    %v4921 = vunpack.c.l.b16 %v950
    %v4922 = vunpack.c.h.b16 %v950
    %v4923 = vunpack.c.l.b16 %v951
    %v4924 = vunpack.c.h.b16 %v951
    %v4925 = vunpack.c.l.b16 %v952
    %v4926 = vunpack.c.h.b16 %v952
    %v4927 = vunpack.c.l.b16 %v953
    %v4928 = vunpack.c.h.b16 %v953
    %v4929 = vunpack.c.l.b16 %v954
    %v4930 = vunpack.c.h.b16 %v954
    %v4931 = vunpack.c.l.b16 %v955
    %v4932 = vunpack.c.h.b16 %v955
    %v4933 = vunpack.c.l.b16 %v956
    %v4934 = vunpack.c.h.b16 %v956
    %v4935 = vunpack.c.l.b16 %v957
    %v4936 = vunpack.c.h.b16 %v957
    %v4937 = vunpack.c.l.b16 %v958
    %v4938 = vunpack.c.h.b16 %v958
    %v4939 = vunpack.c.l.b16 %v959
    %v4940 = vunpack.c.h.b16 %v959
    %v4941 = vunpack.c.l.b16 %v960
    %v4942 = vunpack.c.h.b16 %v960
    %v4943 = vunpack.c.l.b16 %v961
    %v4944 = vunpack.c.h.b16 %v961
    %v4945 = vunpack.c.l.b16 %v962
    %v4946 = vunpack.c.h.b16 %v962
    %v4947 = vunpack.c.l.b16 %v963
    %v4948 = vunpack.c.h.b16 %v963
    %v4949 = vunpack.c.l.b16 %v964
    %v4950 = vunpack.c.h.b16 %v964
    %v4951 = vunpack.c.l.b16 %v965
    %v4952 = vunpack.c.h.b16 %v965
    %v4953 = vunpack.c.l.b16 %v966
    %v4954 = vunpack.c.h.b16 %v966
    %v4955 = vunpack.c.l.b16 %v967
    %v4956 = vunpack.c.h.b16 %v967
    %v4957 = vunpack.c.l.b16 %v968
    %v4958 = vunpack.c.h.b16 %v968
    %v4959 = vunpack.c.l.b16 %v969
    %v4960 = vunpack.c.h.b16 %v969
    %v4961 = vunpack.c.l.b16 %v970
    %v4962 = vunpack.c.h.b16 %v970
    %v4963 = vunpack.c.l.b16 %v971
    %v4964 = vunpack.c.h.b16 %v971
    %v4965 = vunpack.c.l.b16 %v972
    %v4966 = vunpack.c.h.b16 %v972
    %v4967 = vunpack.c.l.b16 %v973
    %v4968 = vunpack.c.h.b16 %v973
    %v4969 = vunpack.c.l.b16 %v974
    %v4970 = vunpack.c.h.b16 %v974
    %v4971 = vunpack.c.l.b16 %v975
    %v4972 = vunpack.c.h.b16 %v975
    %v4973 = vunpack.c.l.b16 %v976
    %v4974 = vunpack.c.h.b16 %v976
    %v4975 = vunpack.c.l.b16 %v977
    %v4976 = vunpack.c.h.b16 %v977
    %v4977 = vunpack.c.l.b16 %v978
    %v4978 = vunpack.c.h.b16 %v978
    %v4979 = vunpack.c.l.b16 %v979
    %v4980 = vunpack.c.h.b16 %v979
    %v4981 = vunpack.c.l.b16 %v980
    %v4982 = vunpack.c.h.b16 %v980
    %v4983 = vunpack.c.l.b16 %v981
    %v4984 = vunpack.c.h.b16 %v981
    %v4985 = vunpack.c.l.b16 %v982
    %v4986 = vunpack.c.h.b16 %v982
    %v4987 = vunpack.c.l.b16 %v983
    %v4988 = vunpack.c.h.b16 %v983
    %v4989 = vunpack.c.l.b16 %v984
    %v4990 = vunpack.c.h.b16 %v984
    %v4991 = vunpack.c.l.b16 %v985
    %v4992 = vunpack.c.h.b16 %v985
    %v4993 = vunpack.c.l.b16 %v986
    %v4994 = vunpack.c.h.b16 %v986
    %v4995 = vunpack.c.l.b16 %v987
    %v4996 = vunpack.c.h.b16 %v987
    %v4997 = vunpack.c.l.b16 %v988
    %v4998 = vunpack.c.h.b16 %v988
    %v4999 = vunpack.c.l.b16 %v989
    %v5000 = vunpack.c.h.b16 %v989
    %v5001 = vunpack.c.l.b16 %v990
    %v5002 = vunpack.c.h.b16 %v990
    %v5003 = vunpack.c.l.b16 %v991
    %v5004 = vunpack.c.h.b16 %v991
    %v5005 = vunpack.c.l.b16 %v992
    %v5006 = vunpack.c.h.b16 %v992
    %v5007 = vunpack.c.l.b16 %v993
    %v5008 = vunpack.c.h.b16 %v993
    %v5009 = vunpack.c.l.b16 %v994
    %v5010 = vunpack.c.h.b16 %v994
    %v5011 = vunpack.c.l.b16 %v995
    %v5012 = vunpack.c.h.b16 %v995
    %v5013 = vunpack.c.l.b16 %v996
    %v5014 = vunpack.c.h.b16 %v996
    %v5015 = vunpack.c.l.b16 %v997
    %v5016 = vunpack.c.h.b16 %v997
    %v5017 = vunpack.c.l.b16 %v998
    %v5018 = vunpack.c.h.b16 %v998
    %v5019 = vunpack.c.l.b16 %v999
    %v5020 = vunpack.c.h.b16 %v999
    %v5021 = vunpack.c.l.b16 %v1000
    %v5022 = vunpack.c.h.b16 %v1000
    %v5023 = vunpack.c.l.b16 %v1001
    %v5024 = vunpack.c.h.b16 %v1001
    %v5025 = vunpack.c.l.b16 %v1002
    %v5026 = vunpack.c.h.b16 %v1002
    %v5027 = vunpack.c.l.b16 %v1003
    %v5028 = vunpack.c.h.b16 %v1003
    %v5029 = vunpack.c.l.b16 %v1004
    %v5030 = vunpack.c.h.b16 %v1004
    %v5031 = vunpack.c.l.b16 %v1005
    %v5032 = vunpack.c.h.b16 %v1005
    %v5033 = vunpack.c.l.b16 %v1006
    %v5034 = vunpack.c.h.b16 %v1006
    %v5035 = vunpack.c.l.b16 %v1007
    %v5036 = vunpack.c.h.b16 %v1007
    %v5037 = vunpack.c.l.b16 %v1008
    %v5038 = vunpack.c.h.b16 %v1008
    %v5039 = vunpack.c.l.b16 %v1009
    %v5040 = vunpack.c.h.b16 %v1009
    %v5041 = vunpack.c.l.b16 %v1010
    %v5042 = vunpack.c.h.b16 %v1010
    %v5043 = vunpack.c.l.b16 %v1011
    %v5044 = vunpack.c.h.b16 %v1011
    %v5045 = vunpack.c.l.b16 %v1012
    %v5046 = vunpack.c.h.b16 %v1012
    %v5047 = vunpack.c.l.b16 %v1013
    %v5048 = vunpack.c.h.b16 %v1013
    %v5049 = vunpack.c.l.b16 %v1014
    %v5050 = vunpack.c.h.b16 %v1014
    %v5051 = vunpack.c.l.b16 %v1015
    %v5052 = vunpack.c.h.b16 %v1015
    %v5053 = vunpack.c.l.b16 %v1016
    %v5054 = vunpack.c.h.b16 %v1016
    %v5055 = vunpack.c.l.b16 %v1017
    %v5056 = vunpack.c.h.b16 %v1017
    %v5057 = vunpack.c.l.b16 %v1018
    %v5058 = vunpack.c.h.b16 %v1018
    %v5059 = vunpack.c.l.b16 %v1019
    %v5060 = vunpack.c.h.b16 %v1019
    %v5061 = vunpack.c.l.b16 %v1020
    %v5062 = vunpack.c.h.b16 %v1020
    %v5063 = vunpack.c.l.b16 %v1021
    %v5064 = vunpack.c.h.b16 %v1021
    %v5065 = vunpack.c.l.b16 %v1022
    %v5066 = vunpack.c.h.b16 %v1022
    %v5067 = vunpack.c.l.b16 %v1023
    %v5068 = vunpack.c.h.b16 %v1023
    %v5069 = vunpack.c.l.b16 %v1024
    %v5070 = vunpack.c.h.b16 %v1024
    %v5071 = vunpack.c.l.b16 %v1025
    %v5072 = vunpack.c.h.b16 %v1025
    %v5073 = vunpack.c.l.b16 %v1026
    %v5074 = vunpack.c.h.b16 %v1026
    %v5075 = vunpack.c.l.b16 %v1027
    %v5076 = vunpack.c.h.b16 %v1027
    %v5077 = vunpack.c.l.b16 %v1028
    %v5078 = vunpack.c.h.b16 %v1028
    %v5079 = vunpack.c.l.b16 %v1029
    %v5080 = vunpack.c.h.b16 %v1029
    %v5081 = vunpack.c.l.b16 %v1030
    %v5082 = vunpack.c.h.b16 %v1030
    %v5083 = vunpack.c.l.b16 %v1031
    %v5084 = vunpack.c.h.b16 %v1031
    %v5085 = vunpack.c.l.b16 %v1032
    %v5086 = vunpack.c.h.b16 %v1032
    %v5087 = vunpack.c.l.b16 %v1033
    %v5088 = vunpack.c.h.b16 %v1033
    %v5089 = vunpack.c.l.b16 %v1034
    %v5090 = vunpack.c.h.b16 %v1034
    %v5091 = vunpack.c.l.b16 %v1035
    %v5092 = vunpack.c.h.b16 %v1035
    %v5093 = vunpack.c.l.b16 %v1036
    %v5094 = vunpack.c.h.b16 %v1036
    %v5095 = vunpack.c.l.b16 %v1037
    %v5096 = vunpack.c.h.b16 %v1037
    %v5097 = vunpack.c.l.b16 %v1038
    %v5098 = vunpack.c.h.b16 %v1038
    %v5099 = vunpack.c.l.b16 %v1039
    %v5100 = vunpack.c.h.b16 %v1039
    %v5101 = vunpack.c.l.b16 %v1040
    %v5102 = vunpack.c.h.b16 %v1040
    %v5103 = vunpack.c.l.b16 %v1041
    %v5104 = vunpack.c.h.b16 %v1041
    %v5105 = vunpack.c.l.b16 %v1042
    %v5106 = vunpack.c.h.b16 %v1042
    %v5107 = vunpack.c.l.b16 %v1043
    %v5108 = vunpack.c.h.b16 %v1043
    %v5109 = vunpack.c.l.b16 %v1044
    %v5110 = vunpack.c.h.b16 %v1044
    %v5111 = vunpack.c.l.b16 %v1045
    %v5112 = vunpack.c.h.b16 %v1045
    %v5113 = vunpack.c.l.b16 %v1046
    %v5114 = vunpack.c.h.b16 %v1046
    %v5115 = vunpack.c.l.b16 %v1047
    %v5116 = vunpack.c.h.b16 %v1047
    %v5117 = vunpack.c.l.b16 %v1048
    %v5118 = vunpack.c.h.b16 %v1048
    %v5119 = vunpack.c.l.b16 %v1049
    %v5120 = vunpack.c.h.b16 %v1049
    %v5121 = vunpack.c.l.b16 %v1050
    %v5122 = vunpack.c.h.b16 %v1050
    %v5123 = vunpack.c.l.b16 %v1051
    %v5124 = vunpack.c.h.b16 %v1051
    %v5125 = vunpack.c.l.b16 %v1052
    %v5126 = vunpack.c.h.b16 %v1052
    %v5127 = vunpack.c.l.b16 %v1053
    %v5128 = vunpack.c.h.b16 %v1053
    %v5129 = vunpack.c.l.b16 %v1054
    %v5130 = vunpack.c.h.b16 %v1054
    %v5131 = vunpack.c.l.b16 %v1055
    %v5132 = vunpack.c.h.b16 %v1055
    %v5133 = vunpack.c.l.b16 %v1056
    %v5134 = vunpack.c.h.b16 %v1056
    %v5135 = vunpack.c.l.b16 %v1057
    %v5136 = vunpack.c.h.b16 %v1057
    %v5137 = vunpack.c.l.b16 %v1058
    %v5138 = vunpack.c.h.b16 %v1058
    %v5139 = vunpack.c.l.b16 %v1059
    %v5140 = vunpack.c.h.b16 %v1059
    %v5141 = vunpack.c.l.b16 %v1060
    %v5142 = vunpack.c.h.b16 %v1060
    %v5143 = vunpack.c.l.b16 %v1061
    %v5144 = vunpack.c.h.b16 %v1061
    %v5145 = vunpack.c.l.b16 %v1062
    %v5146 = vunpack.c.h.b16 %v1062
    %v5147 = vunpack.c.l.b16 %v1063
    %v5148 = vunpack.c.h.b16 %v1063
    %v5149 = vunpack.c.l.b16 %v1064
    %v5150 = vunpack.c.h.b16 %v1064
    %v5151 = vunpack.c.l.b16 %v1065
    %v5152 = vunpack.c.h.b16 %v1065
    %v5153 = vunpack.c.l.b16 %v1066
    %v5154 = vunpack.c.h.b16 %v1066
    %v5155 = vunpack.c.l.b16 %v1067
    %v5156 = vunpack.c.h.b16 %v1067
    %v5157 = vunpack.c.l.b16 %v1068
    %v5158 = vunpack.c.h.b16 %v1068
    %v5159 = vunpack.c.l.b16 %v1069
    %v5160 = vunpack.c.h.b16 %v1069
    %v5161 = vunpack.c.l.b16 %v1070
    %v5162 = vunpack.c.h.b16 %v1070
    %v5163 = vunpack.c.l.b16 %v1071
    %v5164 = vunpack.c.h.b16 %v1071
    %v5165 = vunpack.c.l.b16 %v1072
    %v5166 = vunpack.c.h.b16 %v1072
    %v5167 = vunpack.c.l.b16 %v1073
    %v5168 = vunpack.c.h.b16 %v1073
    %v5169 = vunpack.c.l.b16 %v1074
    %v5170 = vunpack.c.h.b16 %v1074
    %v5171 = vunpack.c.l.b16 %v1075
    %v5172 = vunpack.c.h.b16 %v1075
    %v5173 = vunpack.c.l.b16 %v1076
    %v5174 = vunpack.c.h.b16 %v1076
    %v5175 = vunpack.c.l.b16 %v1077
    %v5176 = vunpack.c.h.b16 %v1077
    %v5177 = vunpack.c.l.b16 %v1078
    %v5178 = vunpack.c.h.b16 %v1078
    %v5179 = vunpack.c.l.b16 %v1079
    %v5180 = vunpack.c.h.b16 %v1079
    %v5181 = vunpack.c.l.b16 %v1080
    %v5182 = vunpack.c.h.b16 %v1080
    %v5183 = vunpack.c.l.b16 %v1081
    %v5184 = vunpack.c.h.b16 %v1081
    %v5185 = vunpack.c.l.b16 %v1082
    %v5186 = vunpack.c.h.b16 %v1082
    %v5187 = vunpack.c.l.b16 %v1083
    %v5188 = vunpack.c.h.b16 %v1083
    %v5189 = vunpack.c.l.b16 %v1084
    %v5190 = vunpack.c.h.b16 %v1084
    %v5191 = vunpack.c.l.b16 %v1085
    %v5192 = vunpack.c.h.b16 %v1085
    %v5193 = vunpack.c.l.b16 %v1086
    %v5194 = vunpack.c.h.b16 %v1086
    %v5195 = vunpack.c.l.b16 %v1087
    %v5196 = vunpack.c.h.b16 %v1087
    %v5197 = vunpack.c.l.b16 %v1088
    %v5198 = vunpack.c.h.b16 %v1088
    %v5199 = vunpack.c.l.b16 %v1089
    %v5200 = vunpack.c.h.b16 %v1089
    %v5201 = vunpack.c.l.b16 %v1090
    %v5202 = vunpack.c.h.b16 %v1090
    %v5203 = vunpack.c.l.b16 %v1091
    %v5204 = vunpack.c.h.b16 %v1091
    %v5205 = vunpack.c.l.b16 %v1092
    %v5206 = vunpack.c.h.b16 %v1092
    %v5207 = vunpack.c.l.b16 %v1093
    %v5208 = vunpack.c.h.b16 %v1093
    %v5209 = vunpack.c.l.b16 %v1094
    %v5210 = vunpack.c.h.b16 %v1094
    %v5211 = vunpack.c.l.b16 %v1095
    %v5212 = vunpack.c.h.b16 %v1095
    %v5213 = vunpack.c.l.b16 %v1096
    %v5214 = vunpack.c.h.b16 %v1096
    %v5215 = vunpack.c.l.b16 %v1097
    %v5216 = vunpack.c.h.b16 %v1097
    %v5217 = vunpack.c.l.b16 %v1098
    %v5218 = vunpack.c.h.b16 %v1098
    %v5219 = vunpack.c.l.b16 %v1099
    %v5220 = vunpack.c.h.b16 %v1099
    %v5221 = vunpack.c.l.b16 %v1100
    %v5222 = vunpack.c.h.b16 %v1100
    %v5223 = vunpack.c.l.b16 %v1101
    %v5224 = vunpack.c.h.b16 %v1101
    %v5225 = vunpack.c.l.b16 %v1102
    %v5226 = vunpack.c.h.b16 %v1102
    %v5227 = vunpack.c.l.b16 %v1103
    %v5228 = vunpack.c.h.b16 %v1103
    %v5229 = vunpack.c.l.b16 %v1104
    %v5230 = vunpack.c.h.b16 %v1104
    %v5231 = vunpack.c.l.b16 %v1105
    %v5232 = vunpack.c.h.b16 %v1105
    %v5233 = vunpack.c.l.b16 %v1106
    %v5234 = vunpack.c.h.b16 %v1106
    %v5235 = vunpack.c.l.b16 %v1107
    %v5236 = vunpack.c.h.b16 %v1107
    %v5237 = vunpack.c.l.b16 %v1108
    %v5238 = vunpack.c.h.b16 %v1108
    %v5239 = vunpack.c.l.b16 %v1109
    %v5240 = vunpack.c.h.b16 %v1109
    %v5241 = vunpack.c.l.b16 %v1110
    %v5242 = vunpack.c.h.b16 %v1110
    %v5243 = vunpack.c.l.b16 %v1111
    %v5244 = vunpack.c.h.b16 %v1111
    %v5245 = vunpack.c.l.b16 %v1112
    %v5246 = vunpack.c.h.b16 %v1112
    %v5247 = vunpack.c.l.b16 %v1113
    %v5248 = vunpack.c.h.b16 %v1113
    %v5249 = vunpack.c.l.b16 %v1114
    %v5250 = vunpack.c.h.b16 %v1114
    %v5251 = vunpack.c.l.b16 %v1115
    %v5252 = vunpack.c.h.b16 %v1115
    %v5253 = vunpack.c.l.b16 %v1116
    %v5254 = vunpack.c.h.b16 %v1116
    %v5255 = vunpack.c.l.b16 %v1117
    %v5256 = vunpack.c.h.b16 %v1117
    %v5257 = vunpack.c.l.b16 %v1118
    %v5258 = vunpack.c.h.b16 %v1118
    %v5259 = vunpack.c.l.b16 %v1119
    %v5260 = vunpack.c.h.b16 %v1119
    %v5261 = vunpack.c.l.b16 %v1120
    %v5262 = vunpack.c.h.b16 %v1120
    %v5263 = vunpack.c.l.b16 %v1121
    %v5264 = vunpack.c.h.b16 %v1121
    %v5265 = vunpack.c.l.b16 %v1122
    %v5266 = vunpack.c.h.b16 %v1122
    %v5267 = vunpack.c.l.b16 %v1123
    %v5268 = vunpack.c.h.b16 %v1123
    %v5269 = vunpack.c.l.b16 %v1124
    %v5270 = vunpack.c.h.b16 %v1124
    %v5271 = vunpack.c.l.b16 %v1125
    %v5272 = vunpack.c.h.b16 %v1125
    %v5273 = vunpack.c.l.b16 %v1126
    %v5274 = vunpack.c.h.b16 %v1126
    %v5275 = vunpack.c.l.b16 %v1127
    %v5276 = vunpack.c.h.b16 %v1127
    %v5277 = vunpack.c.l.b16 %v1128
    %v5278 = vunpack.c.h.b16 %v1128
    %v5279 = vunpack.c.l.b16 %v1129
    %v5280 = vunpack.c.h.b16 %v1129
    %v5281 = vunpack.c.l.b16 %v1130
    %v5282 = vunpack.c.h.b16 %v1130
    %v5283 = vunpack.c.l.b16 %v1131
    %v5284 = vunpack.c.h.b16 %v1131
    %v5285 = vunpack.c.l.b16 %v1132
    %v5286 = vunpack.c.h.b16 %v1132
    %v5287 = vunpack.c.l.b16 %v1133
    %v5288 = vunpack.c.h.b16 %v1133
    %v5289 = vunpack.c.l.b16 %v1134
    %v5290 = vunpack.c.h.b16 %v1134
    %v5291 = vunpack.c.l.b16 %v1135
    %v5292 = vunpack.c.h.b16 %v1135
    %v5293 = vunpack.c.l.b16 %v1136
    %v5294 = vunpack.c.h.b16 %v1136
    %v5295 = vunpack.c.l.b16 %v1137
    %v5296 = vunpack.c.h.b16 %v1137
    %v5297 = vunpack.c.l.b16 %v1138
    %v5298 = vunpack.c.h.b16 %v1138
    %v5299 = vunpack.c.l.b16 %v1139
    %v5300 = vunpack.c.h.b16 %v1139
    %v5301 = vunpack.c.l.b16 %v1140
    %v5302 = vunpack.c.h.b16 %v1140
    %v5303 = vunpack.c.l.b16 %v1141
    %v5304 = vunpack.c.h.b16 %v1141
    %v5305 = vunpack.c.l.b16 %v1142
    %v5306 = vunpack.c.h.b16 %v1142
    %v5307 = vunpack.c.l.b16 %v1143
    %v5308 = vunpack.c.h.b16 %v1143
    %v5309 = vunpack.c.l.b16 %v1144
    %v5310 = vunpack.c.h.b16 %v1144
    %v5311 = vunpack.c.l.b16 %v1145
    %v5312 = vunpack.c.h.b16 %v1145
    %v5313 = vunpack.c.l.b16 %v1146
    %v5314 = vunpack.c.h.b16 %v1146
    %v5315 = vunpack.c.l.b16 %v1147
    %v5316 = vunpack.c.h.b16 %v1147
    %v5317 = vunpack.c.l.b16 %v1148
    %v5318 = vunpack.c.h.b16 %v1148
    %v5319 = vunpack.c.l.b16 %v1149
    %v5320 = vunpack.c.h.b16 %v1149
    %v5321 = vunpack.c.l.b16 %v1150
    %v5322 = vunpack.c.h.b16 %v1150
    %v5323 = vunpack.c.l.b16 %v1151
    %v5324 = vunpack.c.h.b16 %v1151
    %v5325 = vunpack.c.l.b16 %v1152
    %v5326 = vunpack.c.h.b16 %v1152
    %v5327 = vunpack.c.l.b16 %v1153
    %v5328 = vunpack.c.h.b16 %v1153
    %v5329 = vunpack.c.l.b16 %v1154
    %v5330 = vunpack.c.h.b16 %v1154
    %v5331 = vunpack.c.l.b16 %v1155
    %v5332 = vunpack.c.h.b16 %v1155
    %v5333 = vunpack.c.l.b16 %v1156
    %v5334 = vunpack.c.h.b16 %v1156
    %v5335 = vunpack.c.l.b16 %v1157
    %v5336 = vunpack.c.h.b16 %v1157
    %v5337 = vunpack.c.l.b16 %v1158
    %v5338 = vunpack.c.h.b16 %v1158
    %v5339 = vunpack.c.l.b16 %v1159
    %v5340 = vunpack.c.h.b16 %v1159
    %v5341 = vunpack.c.l.b16 %v1160
    %v5342 = vunpack.c.h.b16 %v1160
    %v5343 = vunpack.c.l.b16 %v1161
    %v5344 = vunpack.c.h.b16 %v1161
    %v5345 = vunpack.c.l.b16 %v1162
    %v5346 = vunpack.c.h.b16 %v1162
    %v5347 = vunpack.c.l.b16 %v1163
    %v5348 = vunpack.c.h.b16 %v1163
    %v5349 = vunpack.c.l.b16 %v1164
    %v5350 = vunpack.c.h.b16 %v1164
    %v5351 = vunpack.c.l.b16 %v1165
    %v5352 = vunpack.c.h.b16 %v1165
    %v5353 = vunpack.c.l.b16 %v1166
    %v5354 = vunpack.c.h.b16 %v1166
    %v5355 = vunpack.c.l.b16 %v1167
    %v5356 = vunpack.c.h.b16 %v1167
    %v5357 = vunpack.c.l.b16 %v1168
    %v5358 = vunpack.c.h.b16 %v1168
    %v5359 = vunpack.c.l.b16 %v1169
    %v5360 = vunpack.c.h.b16 %v1169
    %v5361 = vunpack.c.l.b16 %v1170
    %v5362 = vunpack.c.h.b16 %v1170
    %v5363 = vunpack.c.l.b16 %v1171
    %v5364 = vunpack.c.h.b16 %v1171
    %v5365 = vunpack.c.l.b16 %v1172
    %v5366 = vunpack.c.h.b16 %v1172
    %v5367 = vunpack.c.l.b16 %v1173
    %v5368 = vunpack.c.h.b16 %v1173
    %v5369 = vunpack.c.l.b16 %v1174
    %v5370 = vunpack.c.h.b16 %v1174
    %v5371 = vunpack.c.l.b16 %v1175
    %v5372 = vunpack.c.h.b16 %v1175
    %v5373 = vunpack.c.l.b16 %v1176
    %v5374 = vunpack.c.h.b16 %v1176
    %v5375 = vunpack.c.l.b16 %v1177
    %v5376 = vunpack.c.h.b16 %v1177
    %v5377 = vunpack.c.l.b16 %v1178
    %v5378 = vunpack.c.h.b16 %v1178
    %v5379 = vunpack.c.l.b16 %v1179
    %v5380 = vunpack.c.h.b16 %v1179
    %v5381 = vunpack.c.l.b16 %v1180
    %v5382 = vunpack.c.h.b16 %v1180
    %v5383 = vunpack.c.l.b16 %v1181
    %v5384 = vunpack.c.h.b16 %v1181
    %v5385 = vunpack.c.l.b16 %v1182
    %v5386 = vunpack.c.h.b16 %v1182
    %v5387 = vunpack.c.l.b16 %v1183
    %v5388 = vunpack.c.h.b16 %v1183
    %v5389 = vunpack.c.l.b16 %v1184
    %v5390 = vunpack.c.h.b16 %v1184
    %v5391 = vunpack.c.l.b16 %v1185
    %v5392 = vunpack.c.h.b16 %v1185
    %v5393 = vunpack.c.l.b16 %v1186
    %v5394 = vunpack.c.h.b16 %v1186
    %v5395 = vunpack.c.l.b16 %v1187
    %v5396 = vunpack.c.h.b16 %v1187
    %v5397 = vunpack.c.l.b16 %v1188
    %v5398 = vunpack.c.h.b16 %v1188
    %v5399 = vunpack.c.l.b16 %v1189
    %v5400 = vunpack.c.h.b16 %v1189
    %v5401 = vunpack.c.l.b16 %v1190
    %v5402 = vunpack.c.h.b16 %v1190
    %v5403 = vunpack.c.l.b16 %v1191
    %v5404 = vunpack.c.h.b16 %v1191
    %v5405 = vunpack.c.l.b16 %v1192
    %v5406 = vunpack.c.h.b16 %v1192
    %v5407 = vunpack.c.l.b16 %v1193
    %v5408 = vunpack.c.h.b16 %v1193
    %v5409 = vunpack.c.l.b16 %v1194
    %v5410 = vunpack.c.h.b16 %v1194
    %v5411 = vunpack.c.l.b16 %v1195
    %v5412 = vunpack.c.h.b16 %v1195
    %v5413 = vunpack.c.l.b16 %v1196
    %v5414 = vunpack.c.h.b16 %v1196
    %v5415 = vunpack.c.l.b16 %v1197
    %v5416 = vunpack.c.h.b16 %v1197
    %v5417 = vunpack.c.l.b16 %v1198
    %v5418 = vunpack.c.h.b16 %v1198
    %v5419 = vunpack.c.l.b16 %v1199
    %v5420 = vunpack.c.h.b16 %v1199
    %v5421 = vunpack.c.l.b16 %v1200
    %v5422 = vunpack.c.h.b16 %v1200
    %v5423 = vunpack.c.l.b16 %v1201
    %v5424 = vunpack.c.h.b16 %v1201
    %v5425 = vunpack.c.l.b16 %v1202
    %v5426 = vunpack.c.h.b16 %v1202
    %v5427 = vunpack.c.l.b16 %v1203
    %v5428 = vunpack.c.h.b16 %v1203
    %v5429 = vunpack.c.l.b16 %v1204
    %v5430 = vunpack.c.h.b16 %v1204
    %v5431 = vunpack.c.l.b16 %v1205
    %v5432 = vunpack.c.h.b16 %v1205
    %v5433 = vunpack.c.l.b16 %v1206
    %v5434 = vunpack.c.h.b16 %v1206
    %v5435 = vunpack.c.l.b16 %v1207
    %v5436 = vunpack.c.h.b16 %v1207
    %v5437 = vunpack.c.l.b16 %v1208
    %v5438 = vunpack.c.h.b16 %v1208
    %v5439 = vunpack.c.l.b16 %v1209
    %v5440 = vunpack.c.h.b16 %v1209
    %v5441 = vunpack.c.l.b16 %v1210
    %v5442 = vunpack.c.h.b16 %v1210
    %v5443 = vunpack.c.l.b16 %v1211
    %v5444 = vunpack.c.h.b16 %v1211
    %v5445 = vunpack.c.l.b16 %v1212
    %v5446 = vunpack.c.h.b16 %v1212
    %v5447 = vunpack.c.l.b16 %v1213
    %v5448 = vunpack.c.h.b16 %v1213
    %v5449 = vunpack.c.l.b16 %v1214
    %v5450 = vunpack.c.h.b16 %v1214
    %v5451 = vunpack.c.l.b16 %v1215
    %v5452 = vunpack.c.h.b16 %v1215
    %v5453 = vunpack.c.l.b16 %v1216
    %v5454 = vunpack.c.h.b16 %v1216
    %v5455 = vunpack.c.l.b16 %v1217
    %v5456 = vunpack.c.h.b16 %v1217
    %v5457 = vunpack.c.l.b16 %v1218
    %v5458 = vunpack.c.h.b16 %v1218
    %v5459 = vunpack.c.l.b16 %v1219
    %v5460 = vunpack.c.h.b16 %v1219
    %v5461 = vunpack.c.l.b16 %v1220
    %v5462 = vunpack.c.h.b16 %v1220
    %v5463 = vunpack.c.l.b16 %v1221
    %v5464 = vunpack.c.h.b16 %v1221
    %v5465 = vunpack.c.l.b16 %v1222
    %v5466 = vunpack.c.h.b16 %v1222
    %v5467 = vunpack.c.l.b16 %v1223
    %v5468 = vunpack.c.h.b16 %v1223
    %v5469 = vunpack.c.l.b16 %v1224
    %v5470 = vunpack.c.h.b16 %v1224
    %v5471 = vunpack.c.l.b16 %v1225
    %v5472 = vunpack.c.h.b16 %v1225
    %v5473 = vunpack.c.l.b16 %v1226
    %v5474 = vunpack.c.h.b16 %v1226
    %v5475 = vunpack.c.l.b16 %v1227
    %v5476 = vunpack.c.h.b16 %v1227
    %v5477 = vunpack.c.l.b16 %v1228
    %v5478 = vunpack.c.h.b16 %v1228
    %v5479 = vunpack.c.l.b16 %v1229
    %v5480 = vunpack.c.h.b16 %v1229
    %v5481 = vunpack.c.l.b16 %v1230
    %v5482 = vunpack.c.h.b16 %v1230
    %v5483 = vunpack.c.l.b16 %v1231
    %v5484 = vunpack.c.h.b16 %v1231
    %v5485 = vunpack.c.l.b16 %v1232
    %v5486 = vunpack.c.h.b16 %v1232
    %v5487 = vunpack.c.l.b16 %v1233
    %v5488 = vunpack.c.h.b16 %v1233
    %v5489 = vunpack.c.l.b16 %v1234
    %v5490 = vunpack.c.h.b16 %v1234
    %v5491 = vunpack.c.l.b16 %v1235
    %v5492 = vunpack.c.h.b16 %v1235
    %v5493 = vunpack.c.l.b16 %v1236
    %v5494 = vunpack.c.h.b16 %v1236
    %v5495 = vunpack.c.l.b16 %v1237
    %v5496 = vunpack.c.h.b16 %v1237
    %v5497 = vunpack.c.l.b16 %v1238
    %v5498 = vunpack.c.h.b16 %v1238
    %v5499 = vunpack.c.l.b16 %v1239
    %v5500 = vunpack.c.h.b16 %v1239
    %v5501 = vunpack.c.l.b16 %v1240
    %v5502 = vunpack.c.h.b16 %v1240
    %v5503 = vunpack.c.l.b16 %v1241
    %v5504 = vunpack.c.h.b16 %v1241
    %v5505 = vunpack.c.l.b16 %v1242
    %v5506 = vunpack.c.h.b16 %v1242
    %v5507 = vunpack.c.l.b16 %v1243
    %v5508 = vunpack.c.h.b16 %v1243
    %v5509 = vunpack.c.l.b16 %v1244
    %v5510 = vunpack.c.h.b16 %v1244
    %v5511 = vunpack.c.l.b16 %v1245
    %v5512 = vunpack.c.h.b16 %v1245
    %v5513 = vunpack.c.l.b16 %v1246
    %v5514 = vunpack.c.h.b16 %v1246
    %v5515 = vunpack.c.l.b16 %v1247
    %v5516 = vunpack.c.h.b16 %v1247
    %v5517 = vunpack.c.l.b16 %v1248
    %v5518 = vunpack.c.h.b16 %v1248
    %v5519 = vunpack.c.l.b16 %v1249
    %v5520 = vunpack.c.h.b16 %v1249
    %v5521 = vunpack.c.l.b16 %v1250
    %v5522 = vunpack.c.h.b16 %v1250
    %v5523 = vunpack.c.l.b16 %v1251
    %v5524 = vunpack.c.h.b16 %v1251
    %v5525 = vunpack.c.l.b16 %v1252
    %v5526 = vunpack.c.h.b16 %v1252
    %v5527 = vunpack.c.l.b16 %v1253
    %v5528 = vunpack.c.h.b16 %v1253
    %v5529 = vunpack.c.l.b16 %v1254
    %v5530 = vunpack.c.h.b16 %v1254
    %v5531 = vunpack.c.l.b16 %v1255
    %v5532 = vunpack.c.h.b16 %v1255
    %v5533 = vunpack.c.l.b16 %v1256
    %v5534 = vunpack.c.h.b16 %v1256
    %v5535 = vunpack.c.l.b16 %v1257
    %v5536 = vunpack.c.h.b16 %v1257
    %v5537 = vunpack.c.l.b16 %v1258
    %v5538 = vunpack.c.h.b16 %v1258
    %v5539 = vunpack.c.l.b16 %v1259
    %v5540 = vunpack.c.h.b16 %v1259
    %v5541 = vunpack.c.l.b16 %v1260
    %v5542 = vunpack.c.h.b16 %v1260
    %v5543 = vunpack.c.l.b16 %v1261
    %v5544 = vunpack.c.h.b16 %v1261
    %v5545 = vunpack.c.l.b16 %v1262
    %v5546 = vunpack.c.h.b16 %v1262
    %v5547 = vunpack.c.l.b16 %v1263
    %v5548 = vunpack.c.h.b16 %v1263
    %v5549 = vunpack.c.l.b16 %v1264
    %v5550 = vunpack.c.h.b16 %v1264
    %v5551 = vunpack.c.l.b16 %v1265
    %v5552 = vunpack.c.h.b16 %v1265
    %v5553 = vunpack.c.l.b16 %v1266
    %v5554 = vunpack.c.h.b16 %v1266
    %v5555 = vunpack.c.l.b16 %v1267
    %v5556 = vunpack.c.h.b16 %v1267
    %v5557 = vunpack.c.l.b16 %v1268
    %v5558 = vunpack.c.h.b16 %v1268
    %v5559 = vunpack.c.l.b16 %v1269
    %v5560 = vunpack.c.h.b16 %v1269
    %v5561 = vunpack.c.l.b16 %v1270
    %v5562 = vunpack.c.h.b16 %v1270
    %v5563 = vunpack.c.l.b16 %v1271
    %v5564 = vunpack.c.h.b16 %v1271
    %v5565 = vunpack.c.l.b16 %v1272
    %v5566 = vunpack.c.h.b16 %v1272
    %v5567 = vunpack.c.l.b16 %v1273
    %v5568 = vunpack.c.h.b16 %v1273
    %v5569 = vunpack.c.l.b16 %v1274
    %v5570 = vunpack.c.h.b16 %v1274
    %v5571 = vunpack.c.l.b16 %v1275
    %v5572 = vunpack.c.h.b16 %v1275
    %v5573 = vunpack.c.l.b16 %v1276
    %v5574 = vunpack.c.h.b16 %v1276
    %v5575 = vunpack.c.l.b16 %v1277
    %v5576 = vunpack.c.h.b16 %v1277
    %v5577 = vunpack.c.l.b16 %v1278
    %v5578 = vunpack.c.h.b16 %v1278
    %v5579 = vunpack.c.l.b16 %v1279
    %v5580 = vunpack.c.h.b16 %v1279
    %v5581 = vunpack.c.l.b16 %v1280
    %v5582 = vunpack.c.h.b16 %v1280
    %v5583 = vunpack.c.l.b16 %v1281
    %v5584 = vunpack.c.h.b16 %v1281
    %v5585 = vunpack.c.l.b16 %v1282
    %v5586 = vunpack.c.h.b16 %v1282
    %v5587 = vunpack.c.l.b16 %v1283
    %v5588 = vunpack.c.h.b16 %v1283
    %v5589 = vunpack.c.l.b16 %v1284
    %v5590 = vunpack.c.h.b16 %v1284
    %v5591 = vunpack.c.l.b16 %v1285
    %v5592 = vunpack.c.h.b16 %v1285
    %v5593 = vunpack.c.l.b16 %v1286
    %v5594 = vunpack.c.h.b16 %v1286
    %v5595 = vunpack.c.l.b16 %v1287
    %v5596 = vunpack.c.h.b16 %v1287
    %v5597 = vunpack.c.l.b16 %v1288
    %v5598 = vunpack.c.h.b16 %v1288
    %v5599 = vunpack.c.l.b16 %v1289
    %v5600 = vunpack.c.h.b16 %v1289
    %v5601 = vunpack.c.l.b16 %v1290
    %v5602 = vunpack.c.h.b16 %v1290
    %v5603 = vunpack.c.l.b16 %v1291
    %v5604 = vunpack.c.h.b16 %v1291
    %v5605 = vunpack.c.l.b16 %v1292
    %v5606 = vunpack.c.h.b16 %v1292
    %v5607 = vunpack.c.l.b16 %v1293
    %v5608 = vunpack.c.h.b16 %v1293
    %v5609 = vunpack.c.l.b16 %v1294
    %v5610 = vunpack.c.h.b16 %v1294
    %v5611 = vunpack.c.l.b16 %v1295
    %v5612 = vunpack.c.h.b16 %v1295
    %v5613 = vunpack.c.l.b16 %v1296
    %v5614 = vunpack.c.h.b16 %v1296
    %v5615 = vunpack.c.l.b16 %v1297
    %v5616 = vunpack.c.h.b16 %v1297
    %v5617 = vunpack.c.l.b16 %v1298
    %v5618 = vunpack.c.h.b16 %v1298
    %v5619 = vunpack.c.l.b16 %v1299
    %v5620 = vunpack.c.h.b16 %v1299
    %v5621 = vunpack.c.l.b16 %v1300
    %v5622 = vunpack.c.h.b16 %v1300
    %v5623 = vunpack.c.l.b16 %v1301
    %v5624 = vunpack.c.h.b16 %v1301
    %v5625 = vunpack.c.l.b16 %v1302
    %v5626 = vunpack.c.h.b16 %v1302
    %v5627 = vunpack.c.l.b16 %v1303
    %v5628 = vunpack.c.h.b16 %v1303
    %v5629 = vunpack.c.l.b16 %v1304
    %v5630 = vunpack.c.h.b16 %v1304
    %v5631 = vunpack.c.l.b16 %v1305
    %v5632 = vunpack.c.h.b16 %v1305
    %v5633 = vunpack.c.l.b16 %v1306
    %v5634 = vunpack.c.h.b16 %v1306
    %v5635 = vunpack.c.l.b16 %v1307
    %v5636 = vunpack.c.h.b16 %v1307
    %v5637 = vunpack.c.l.b16 %v1308
    %v5638 = vunpack.c.h.b16 %v1308
    %v5639 = vunpack.c.l.b16 %v1309
    %v5640 = vunpack.c.h.b16 %v1309
    %v5641 = vunpack.c.l.b16 %v1310
    %v5642 = vunpack.c.h.b16 %v1310
    %v5643 = vunpack.c.l.b16 %v1311
    %v5644 = vunpack.c.h.b16 %v1311
    %v5645 = vunpack.c.l.b16 %v1312
    %v5646 = vunpack.c.h.b16 %v1312
    %v5647 = vunpack.c.l.b16 %v1313
    %v5648 = vunpack.c.h.b16 %v1313
    %v5649 = vunpack.c.l.b16 %v1314
    %v5650 = vunpack.c.h.b16 %v1314
    %v5651 = vunpack.c.l.b16 %v1315
    %v5652 = vunpack.c.h.b16 %v1315
    %v5653 = vunpack.c.l.b16 %v1316
    %v5654 = vunpack.c.h.b16 %v1316
    %v5655 = vunpack.c.l.b16 %v1317
    %v5656 = vunpack.c.h.b16 %v1317
    %v5657 = vunpack.c.l.b16 %v1318
    %v5658 = vunpack.c.h.b16 %v1318
    %v5659 = vunpack.c.l.b16 %v1319
    %v5660 = vunpack.c.h.b16 %v1319
    %v5661 = vunpack.c.l.b16 %v1320
    %v5662 = vunpack.c.h.b16 %v1320
    %v5663 = vunpack.c.l.b16 %v1321
    %v5664 = vunpack.c.h.b16 %v1321
    %v5665 = vunpack.c.l.b16 %v1322
    %v5666 = vunpack.c.h.b16 %v1322
    %v5667 = vunpack.c.l.b16 %v1323
    %v5668 = vunpack.c.h.b16 %v1323
    %v5669 = vunpack.c.l.b16 %v1324
    %v5670 = vunpack.c.h.b16 %v1324
    %v5671 = vunpack.c.l.b16 %v1325
    %v5672 = vunpack.c.h.b16 %v1325
    %v5673 = vunpack.c.l.b16 %v1326
    %v5674 = vunpack.c.h.b16 %v1326
    %v5675 = vunpack.c.l.b16 %v1327
    %v5676 = vunpack.c.h.b16 %v1327
    %v5677 = vunpack.c.l.b16 %v1328
    %v5678 = vunpack.c.h.b16 %v1328
    %v5679 = vunpack.c.l.b16 %v1329
    %v5680 = vunpack.c.h.b16 %v1329
    %v5681 = vunpack.c.l.b16 %v1330
    %v5682 = vunpack.c.h.b16 %v1330
    %v5683 = vunpack.c.l.b16 %v1331
    %v5684 = vunpack.c.h.b16 %v1331
    %v5685 = vunpack.c.l.b16 %v1332
    %v5686 = vunpack.c.h.b16 %v1332
    %v5687 = vunpack.c.l.b16 %v1333
    %v5688 = vunpack.c.h.b16 %v1333
    %v5689 = vunpack.c.l.b16 %v1334
    %v5690 = vunpack.c.h.b16 %v1334
    %v5691 = vunpack.c.l.b16 %v1335
    %v5692 = vunpack.c.h.b16 %v1335
    %v5693 = vunpack.c.l.b16 %v1336
    %v5694 = vunpack.c.h.b16 %v1336
    %v5695 = vunpack.c.l.b16 %v1337
    %v5696 = vunpack.c.h.b16 %v1337
    %v5697 = vunpack.c.l.b16 %v1338
    %v5698 = vunpack.c.h.b16 %v1338
    %v5699 = vunpack.c.l.b16 %v1339
    %v5700 = vunpack.c.h.b16 %v1339
    %v5701 = vunpack.c.l.b16 %v1340
    %v5702 = vunpack.c.h.b16 %v1340
    %v5703 = vunpack.c.l.b16 %v1341
    %v5704 = vunpack.c.h.b16 %v1341
    %v5705 = vunpack.c.l.b16 %v1342
    %v5706 = vunpack.c.h.b16 %v1342
    %v5707 = vunpack.c.l.b16 %v1343
    %v5708 = vunpack.c.h.b16 %v1343
    %v5709 = vunpack.c.l.b16 %v1344
    %v5710 = vunpack.c.h.b16 %v1344
    %v5711 = vunpack.c.l.b16 %v1345
    %v5712 = vunpack.c.h.b16 %v1345
    %v5713 = vunpack.c.l.b16 %v1346
    %v5714 = vunpack.c.h.b16 %v1346
    %v5715 = vunpack.c.l.b16 %v1347
    %v5716 = vunpack.c.h.b16 %v1347
    %v5717 = vunpack.c.l.b16 %v1348
    %v5718 = vunpack.c.h.b16 %v1348
    %v5719 = vunpack.c.l.b16 %v1349
    %v5720 = vunpack.c.h.b16 %v1349
    %v5721 = vunpack.c.l.b16 %v1350
    %v5722 = vunpack.c.h.b16 %v1350
    %v5723 = vunpack.c.l.b16 %v1351
    %v5724 = vunpack.c.h.b16 %v1351
    %v5725 = vunpack.c.l.b16 %v1352
    %v5726 = vunpack.c.h.b16 %v1352
    %v5727 = vunpack.c.l.b16 %v1353
    %v5728 = vunpack.c.h.b16 %v1353
    %v5729 = vunpack.c.l.b16 %v1354
    %v5730 = vunpack.c.h.b16 %v1354
    %v5731 = vunpack.c.l.b16 %v1355
    %v5732 = vunpack.c.h.b16 %v1355
    %v5733 = vunpack.c.l.b16 %v1356
    %v5734 = vunpack.c.h.b16 %v1356
    %v5735 = vunpack.c.l.b16 %v1357
    %v5736 = vunpack.c.h.b16 %v1357
    %v5737 = vunpack.c.l.b16 %v1358
    %v5738 = vunpack.c.h.b16 %v1358
    %v5739 = vunpack.c.l.b16 %v1359
    %v5740 = vunpack.c.h.b16 %v1359
    %v5741 = vunpack.c.l.b16 %v1360
    %v5742 = vunpack.c.h.b16 %v1360
    %v5743 = vunpack.c.l.b16 %v1361
    %v5744 = vunpack.c.h.b16 %v1361
    %v5745 = vunpack.c.l.b16 %v1362
    %v5746 = vunpack.c.h.b16 %v1362
    %v5747 = vunpack.c.l.b16 %v1363
    %v5748 = vunpack.c.h.b16 %v1363
    %v5749 = vunpack.c.l.b16 %v1364
    %v5750 = vunpack.c.h.b16 %v1364
    %v5751 = vunpack.c.l.b16 %v1365
    %v5752 = vunpack.c.h.b16 %v1365
    %v5753 = vunpack.c.l.b16 %v1366
    %v5754 = vunpack.c.h.b16 %v1366
    %v5755 = vunpack.c.l.b16 %v1367
    %v5756 = vunpack.c.h.b16 %v1367
    %v5757 = vunpack.c.l.b16 %v1368
    %v5758 = vunpack.c.h.b16 %v1368
    %v5759 = vunpack.c.l.b16 %v1369
    %v5760 = vunpack.c.h.b16 %v1369
    %v5761 = vunpack.c.l.b16 %v1370
    %v5762 = vunpack.c.h.b16 %v1370
    %v5763 = vunpack.c.l.b16 %v1371
    %v5764 = vunpack.c.h.b16 %v1371
    %v5765 = vunpack.c.l.b16 %v1372
    %v5766 = vunpack.c.h.b16 %v1372
    %v5767 = vunpack.c.l.b16 %v1373
    %v5768 = vunpack.c.h.b16 %v1373
    %v5769 = vunpack.c.l.b16 %v1374
    %v5770 = vunpack.c.h.b16 %v1374
    %v5771 = vunpack.c.l.b16 %v1375
    %v5772 = vunpack.c.h.b16 %v1375
    %v5773 = vunpack.c.l.b16 %v1376
    %v5774 = vunpack.c.h.b16 %v1376
    %v5775 = vunpack.c.l.b16 %v1377
    %v5776 = vunpack.c.h.b16 %v1377
    %v5777 = vunpack.c.l.b16 %v1378
    %v5778 = vunpack.c.h.b16 %v1378
    %v5779 = vunpack.c.l.b16 %v1379
    %v5780 = vunpack.c.h.b16 %v1379
    %v5781 = vunpack.c.l.b16 %v1380
    %v5782 = vunpack.c.h.b16 %v1380
    %v5783 = vunpack.c.l.b16 %v1381
    %v5784 = vunpack.c.h.b16 %v1381
    %v5785 = vunpack.c.l.b16 %v1382
    %v5786 = vunpack.c.h.b16 %v1382
    %v5787 = vunpack.c.l.b16 %v1383
    %v5788 = vunpack.c.h.b16 %v1383
    %v5789 = vunpack.c.l.b16 %v1384
    %v5790 = vunpack.c.h.b16 %v1384
    %v5791 = vunpack.c.l.b16 %v1385
    %v5792 = vunpack.c.h.b16 %v1385
    %v5793 = vunpack.c.l.b16 %v1386
    %v5794 = vunpack.c.h.b16 %v1386
    %v5795 = vunpack.c.l.b16 %v1387
    %v5796 = vunpack.c.h.b16 %v1387
    %v5797 = vunpack.c.l.b16 %v1388
    %v5798 = vunpack.c.h.b16 %v1388
    %v5799 = vunpack.c.l.b16 %v1389
    %v5800 = vunpack.c.h.b16 %v1389
    %v5801 = vunpack.c.l.b16 %v1390
    %v5802 = vunpack.c.h.b16 %v1390
    %v5803 = vunpack.c.l.b16 %v1391
    %v5804 = vunpack.c.h.b16 %v1391
    %v5805 = vunpack.c.l.b16 %v1392
    %v5806 = vunpack.c.h.b16 %v1392
    %v5807 = vunpack.c.l.b16 %v1393
    %v5808 = vunpack.c.h.b16 %v1393
    %v5809 = vunpack.c.l.b16 %v1394
    %v5810 = vunpack.c.h.b16 %v1394
    %v5811 = vunpack.c.l.b16 %v1395
    %v5812 = vunpack.c.h.b16 %v1395
    %v5813 = vunpack.c.l.b16 %v1396
    %v5814 = vunpack.c.h.b16 %v1396
    %v5815 = vunpack.c.l.b16 %v1397
    %v5816 = vunpack.c.h.b16 %v1397
    %v5817 = vunpack.c.l.b16 %v1398
    %v5818 = vunpack.c.h.b16 %v1398
    %v5819 = vunpack.c.l.b16 %v1399
    %v5820 = vunpack.c.h.b16 %v1399
    %v5821 = vunpack.c.l.b16 %v1400
    %v5822 = vunpack.c.h.b16 %v1400
    %v5823 = vunpack.c.l.b16 %v1401
    %v5824 = vunpack.c.h.b16 %v1401
    %v5825 = vunpack.c.l.b16 %v1402
    %v5826 = vunpack.c.h.b16 %v1402
    %v5827 = vunpack.c.l.b16 %v1403
    %v5828 = vunpack.c.h.b16 %v1403
    %v5829 = vunpack.c.l.b16 %v1404
    %v5830 = vunpack.c.h.b16 %v1404
    %v5831 = vunpack.c.l.b16 %v1405
    %v5832 = vunpack.c.h.b16 %v1405
    %v5833 = vunpack.c.l.b16 %v1406
    %v5834 = vunpack.c.h.b16 %v1406
    %v5835 = vunpack.c.l.b16 %v1407
    %v5836 = vunpack.c.h.b16 %v1407
    %v5837 = vunpack.c.l.b16 %v1408
    %v5838 = vunpack.c.h.b16 %v1408
    %v5839 = vunpack.c.l.b16 %v1409
    %v5840 = vunpack.c.h.b16 %v1409
    %v5841 = vunpack.c.l.b16 %v1410
    %v5842 = vunpack.c.h.b16 %v1410
    %v5843 = vunpack.c.l.b16 %v1411
    %v5844 = vunpack.c.h.b16 %v1411
    %v5845 = vunpack.c.l.b16 %v1412
    %v5846 = vunpack.c.h.b16 %v1412
    %v5847 = vunpack.c.l.b16 %v1413
    %v5848 = vunpack.c.h.b16 %v1413
    %v5849 = vunpack.c.l.b16 %v1414
    %v5850 = vunpack.c.h.b16 %v1414
    %v5851 = vunpack.c.l.b16 %v1415
    %v5852 = vunpack.c.h.b16 %v1415
    %v5853 = vunpack.c.l.b16 %v1416
    %v5854 = vunpack.c.h.b16 %v1416
    %v5855 = vunpack.c.l.b16 %v1417
    %v5856 = vunpack.c.h.b16 %v1417
    %v5857 = vunpack.c.l.b16 %v1418
    %v5858 = vunpack.c.h.b16 %v1418
    %v5859 = vunpack.c.l.b16 %v1419
    %v5860 = vunpack.c.h.b16 %v1419
    %v5861 = vunpack.c.l.b16 %v1420
    %v5862 = vunpack.c.h.b16 %v1420
    %v5863 = vunpack.c.l.b16 %v1421
    %v5864 = vunpack.c.h.b16 %v1421
    %v5865 = vunpack.c.l.b16 %v1422
    %v5866 = vunpack.c.h.b16 %v1422
    %v5867 = vunpack.c.l.b16 %v1423
    %v5868 = vunpack.c.h.b16 %v1423
    %v5869 = vunpack.c.l.b16 %v1424
    %v5870 = vunpack.c.h.b16 %v1424
    %v5871 = vunpack.c.l.b16 %v1425
    %v5872 = vunpack.c.h.b16 %v1425
    %v5873 = vunpack.c.l.b16 %v1426
    %v5874 = vunpack.c.h.b16 %v1426
    %v5875 = vunpack.c.l.b16 %v1427
    %v5876 = vunpack.c.h.b16 %v1427
    %v5877 = vunpack.c.l.b16 %v1428
    %v5878 = vunpack.c.h.b16 %v1428
    %v5879 = vunpack.c.l.b16 %v1429
    %v5880 = vunpack.c.h.b16 %v1429
    %v5881 = vunpack.c.l.b16 %v1430
    %v5882 = vunpack.c.h.b16 %v1430
    %v5883 = vunpack.c.l.b16 %v1431
    %v5884 = vunpack.c.h.b16 %v1431
    %v5885 = vunpack.c.l.b16 %v1432
    %v5886 = vunpack.c.h.b16 %v1432
    %v5887 = vunpack.c.l.b16 %v1433
    %v5888 = vunpack.c.h.b16 %v1433
    %v5889 = vunpack.c.l.b16 %v1434
    %v5890 = vunpack.c.h.b16 %v1434
    %v5891 = vunpack.c.l.b16 %v1435
    %v5892 = vunpack.c.h.b16 %v1435
    %v5893 = vunpack.c.l.b16 %v1436
    %v5894 = vunpack.c.h.b16 %v1436
    %v5895 = vunpack.c.l.b16 %v1437
    %v5896 = vunpack.c.h.b16 %v1437
    %v5897 = vunpack.c.l.b16 %v1438
    %v5898 = vunpack.c.h.b16 %v1438
    %v5899 = vunpack.c.l.b16 %v1439
    %v5900 = vunpack.c.h.b16 %v1439
    %v5901 = vunpack.c.l.b16 %v1440
    %v5902 = vunpack.c.h.b16 %v1440
    %v5903 = vunpack.c.l.b16 %v1441
    %v5904 = vunpack.c.h.b16 %v1441
    %v5905 = vunpack.c.l.b16 %v1442
    %v5906 = vunpack.c.h.b16 %v1442
    %v5907 = vunpack.c.l.b16 %v1443
    %v5908 = vunpack.c.h.b16 %v1443
    %v5909 = vunpack.c.l.b16 %v1444
    %v5910 = vunpack.c.h.b16 %v1444
    %v5911 = vunpack.c.l.b16 %v1445
    %v5912 = vunpack.c.h.b16 %v1445
    %v5913 = vunpack.c.l.b16 %v1446
    %v5914 = vunpack.c.h.b16 %v1446
    %v5915 = vunpack.c.l.b16 %v1447
    %v5916 = vunpack.c.h.b16 %v1447
    %v5917 = vunpack.c.l.b16 %v1448
    %v5918 = vunpack.c.h.b16 %v1448
    %v5919 = vunpack.c.l.b16 %v1449
    %v5920 = vunpack.c.h.b16 %v1449
    %v5921 = vunpack.c.l.b16 %v1450
    %v5922 = vunpack.c.h.b16 %v1450
    %v5923 = vunpack.c.l.b16 %v1451
    %v5924 = vunpack.c.h.b16 %v1451
    %v5925 = vunpack.c.l.b16 %v1452
    %v5926 = vunpack.c.h.b16 %v1452
    %v5927 = vunpack.c.l.b16 %v1453
    %v5928 = vunpack.c.h.b16 %v1453
    %v5929 = vunpack.c.l.b16 %v1454
    %v5930 = vunpack.c.h.b16 %v1454
    %v5931 = vunpack.c.l.b16 %v1455
    %v5932 = vunpack.c.h.b16 %v1455
    %v5933 = vunpack.c.l.b16 %v1456
    %v5934 = vunpack.c.h.b16 %v1456
    %v5935 = vunpack.c.l.b16 %v1457
    %v5936 = vunpack.c.h.b16 %v1457
    %v5937 = vunpack.c.l.b16 %v1458
    %v5938 = vunpack.c.h.b16 %v1458
    %v5939 = vunpack.c.l.b16 %v1459
    %v5940 = vunpack.c.h.b16 %v1459
    %v5941 = vunpack.c.l.b16 %v1460
    %v5942 = vunpack.c.h.b16 %v1460
    %v5943 = vunpack.c.l.b16 %v1461
    %v5944 = vunpack.c.h.b16 %v1461
    %v5945 = vunpack.c.l.b16 %v1462
    %v5946 = vunpack.c.h.b16 %v1462
    %v5947 = vunpack.c.l.b16 %v1463
    %v5948 = vunpack.c.h.b16 %v1463
    %v5949 = vunpack.c.l.b16 %v1464
    %v5950 = vunpack.c.h.b16 %v1464
    %v5951 = vunpack.c.l.b16 %v1465
    %v5952 = vunpack.c.h.b16 %v1465
    %v5953 = vunpack.c.l.b16 %v1466
    %v5954 = vunpack.c.h.b16 %v1466
    %v5955 = vunpack.c.l.b16 %v1467
    %v5956 = vunpack.c.h.b16 %v1467
    %v5957 = vunpack.c.l.b16 %v1468
    %v5958 = vunpack.c.h.b16 %v1468
    %v5959 = vunpack.c.l.b16 %v1469
    %v5960 = vunpack.c.h.b16 %v1469
    %v5961 = vunpack.c.l.b16 %v1470
    %v5962 = vunpack.c.h.b16 %v1470
    %v5963 = vunpack.c.l.b16 %v1471
    %v5964 = vunpack.c.h.b16 %v1471
    %v5965 = vunpack.c.l.b16 %v1472
    %v5966 = vunpack.c.h.b16 %v1472
    %v5967 = vunpack.c.l.b16 %v1473
    %v5968 = vunpack.c.h.b16 %v1473
    %v5969 = vunpack.c.l.b16 %v1474
    %v5970 = vunpack.c.h.b16 %v1474
    %v5971 = vunpack.c.l.b16 %v1475
    %v5972 = vunpack.c.h.b16 %v1475
    %v5973 = vunpack.c.l.b16 %v1476
    %v5974 = vunpack.c.h.b16 %v1476
    %v5975 = vunpack.c.l.b16 %v1477
    %v5976 = vunpack.c.h.b16 %v1477
    %v5977 = vunpack.c.l.b16 %v1478
    %v5978 = vunpack.c.h.b16 %v1478
    %v5979 = vunpack.c.l.b16 %v1479
    %v5980 = vunpack.c.h.b16 %v1479
    %v5981 = vunpack.c.l.b16 %v1480
    %v5982 = vunpack.c.h.b16 %v1480
    %v5983 = vunpack.c.l.b16 %v1481
    %v5984 = vunpack.c.h.b16 %v1481
    %v5985 = vunpack.c.l.b16 %v1482
    %v5986 = vunpack.c.h.b16 %v1482
    %v5987 = vunpack.c.l.b16 %v1483
    %v5988 = vunpack.c.h.b16 %v1483
    %v5989 = vunpack.c.l.b16 %v1484
    %v5990 = vunpack.c.h.b16 %v1484
    %v5991 = vunpack.c.l.b16 %v1485
    %v5992 = vunpack.c.h.b16 %v1485
    %v5993 = vunpack.c.l.b16 %v1486
    %v5994 = vunpack.c.h.b16 %v1486
    %v5995 = vunpack.c.l.b16 %v1487
    %v5996 = vunpack.c.h.b16 %v1487
    %v5997 = vunpack.c.l.b16 %v1488
    %v5998 = vunpack.c.h.b16 %v1488
    %v5999 = vunpack.c.l.b16 %v1489
    %v6000 = vunpack.c.h.b16 %v1489
    %v6001 = vunpack.c.l.b16 %v1490
    %v6002 = vunpack.c.h.b16 %v1490
    %v6003 = vunpack.c.l.b16 %v1491
    %v6004 = vunpack.c.h.b16 %v1491
    %v6005 = vunpack.c.l.b16 %v1492
    %v6006 = vunpack.c.h.b16 %v1492
    %v6007 = vunpack.c.l.b16 %v1493
    %v6008 = vunpack.c.h.b16 %v1493
    %v6009 = vunpack.c.l.b16 %v1494
    %v6010 = vunpack.c.h.b16 %v1494
    %v6011 = vunpack.c.l.b16 %v1495
    %v6012 = vunpack.c.h.b16 %v1495
    %v6013 = vunpack.c.l.b16 %v1496
    %v6014 = vunpack.c.h.b16 %v1496
    %v6015 = vunpack.c.l.b16 %v1497
    %v6016 = vunpack.c.h.b16 %v1497
    %v6017 = vunpack.c.l.b16 %v1498
    %v6018 = vunpack.c.h.b16 %v1498
    %v6019 = vunpack.c.l.b16 %v1499
    %v6020 = vunpack.c.h.b16 %v1499
    %v6021 = vunpack.c.l.b16 %v1500
    %v6022 = vunpack.c.h.b16 %v1500
    %v6023 = vunpack.c.l.b16 %v1501
    %v6024 = vunpack.c.h.b16 %v1501
    %v6025 = vunpack.c.l.b16 %v1502
    %v6026 = vunpack.c.h.b16 %v1502
    %v6027 = vunpack.c.l.b16 %v1503
    %v6028 = vunpack.c.h.b16 %v1503
    %v6029 = vunpack.c.l.b16 %v1504
    %v6030 = vunpack.c.h.b16 %v1504
    %v6031 = vunpack.c.l.b16 %v1505
    %v6032 = vunpack.c.h.b16 %v1505
    %v6033 = vunpack.c.l.b16 %v1506
    %v6034 = vunpack.c.h.b16 %v1506
    %v6035 = vunpack.c.l.b16 %v1507
    %v6036 = vunpack.c.h.b16 %v1507
    %v6037 = vunpack.c.l.b16 %v1508
    %v6038 = vunpack.c.h.b16 %v1508
    %v6039 = vunpack.c.l.b16 %v1509
    %v6040 = vunpack.c.h.b16 %v1509
    %v6041 = vunpack.c.l.b16 %v1510
    %v6042 = vunpack.c.h.b16 %v1510
    %v6043 = vunpack.c.l.b16 %v1511
    %v6044 = vunpack.c.h.b16 %v1511
    %v6045 = vunpack.c.l.b16 %v1512
    %v6046 = vunpack.c.h.b16 %v1512
    %v6047 = vunpack.c.l.b16 %v1513
    %v6048 = vunpack.c.h.b16 %v1513
    %v6049 = vunpack.c.l.b16 %v1514
    %v6050 = vunpack.c.h.b16 %v1514
    %v6051 = vunpack.c.l.b16 %v1515
    %v6052 = vunpack.c.h.b16 %v1515
    %v6053 = vunpack.c.l.b16 %v1516
    %v6054 = vunpack.c.h.b16 %v1516
    %v6055 = vunpack.c.l.b16 %v1517
    %v6056 = vunpack.c.h.b16 %v1517
    %v6057 = vunpack.c.l.b16 %v1518
    %v6058 = vunpack.c.h.b16 %v1518
    %v6059 = vunpack.c.l.b16 %v1519
    %v6060 = vunpack.c.h.b16 %v1519
    %v6061 = vunpack.c.l.b16 %v1520
    %v6062 = vunpack.c.h.b16 %v1520
    %v6063 = vunpack.c.l.b16 %v1521
    %v6064 = vunpack.c.h.b16 %v1521
    %v6065 = vunpack.c.l.b16 %v1522
    %v6066 = vunpack.c.h.b16 %v1522
    %v6067 = vunpack.c.l.b16 %v1523
    %v6068 = vunpack.c.h.b16 %v1523
    %v6069 = vunpack.c.l.b16 %v1524
    %v6070 = vunpack.c.h.b16 %v1524
    %v6071 = vunpack.c.l.b16 %v1525
    %v6072 = vunpack.c.h.b16 %v1525
    %v6073 = vunpack.c.l.b16 %v1526
    %v6074 = vunpack.c.h.b16 %v1526
    %v6075 = vunpack.c.l.b16 %v1527
    %v6076 = vunpack.c.h.b16 %v1527
    %v6077 = vunpack.c.l.b16 %v1528
    %v6078 = vunpack.c.h.b16 %v1528
    %v6079 = vunpack.c.l.b16 %v1529
    %v6080 = vunpack.c.h.b16 %v1529
    %v6081 = vunpack.c.l.b16 %v1530
    %v6082 = vunpack.c.h.b16 %v1530
    %v6083 = vunpack.c.l.b16 %v1531
    %v6084 = vunpack.c.h.b16 %v1531
    %v6085 = vunpack.c.l.b16 %v1532
    %v6086 = vunpack.c.h.b16 %v1532
    %v6087 = vunpack.c.l.b16 %v1533
    %v6088 = vunpack.c.h.b16 %v1533
    %v6089 = vunpack.c.l.b16 %v1534
    %v6090 = vunpack.c.h.b16 %v1534
    %v6091 = vunpack.c.l.b16 %v1535
    %v6092 = vunpack.c.h.b16 %v1535
    %v6093 = vunpack.c.l.b16 %v1536
    %v6094 = vunpack.c.h.b16 %v1536
    %v6095 = vunpack.c.l.b16 %v1537
    %v6096 = vunpack.c.h.b16 %v1537
    %v6097 = vunpack.c.l.b16 %v1538
    %v6098 = vunpack.c.h.b16 %v1538
    %v6099 = vunpack.c.l.b16 %v1539
    %v6100 = vunpack.c.h.b16 %v1539
    %v6101 = vunpack.c.l.b16 %v1540
    %v6102 = vunpack.c.h.b16 %v1540
    %v6103 = vunpack.c.l.b16 %v1541
    %v6104 = vunpack.c.h.b16 %v1541
    %v6105 = vunpack.c.l.b16 %v1542
    %v6106 = vunpack.c.h.b16 %v1542
    %v6107 = vunpack.c.l.b16 %v1543
    %v6108 = vunpack.c.h.b16 %v1543
    %v6109 = vunpack.c.l.b16 %v1544
    %v6110 = vunpack.c.h.b16 %v1544
    %v6111 = vunpack.c.l.b16 %v1545
    %v6112 = vunpack.c.h.b16 %v1545
    %v6113 = vunpack.c.l.b16 %v1546
    %v6114 = vunpack.c.h.b16 %v1546
    %v6115 = vunpack.c.l.b16 %v1547
    %v6116 = vunpack.c.h.b16 %v1547
    %v6117 = vunpack.c.l.b16 %v1548
    %v6118 = vunpack.c.h.b16 %v1548
    %v6119 = vunpack.c.l.b16 %v1549
    %v6120 = vunpack.c.h.b16 %v1549
    %v6121 = vunpack.c.l.b16 %v1550
    %v6122 = vunpack.c.h.b16 %v1550
    %v6123 = vunpack.c.l.b16 %v1551
    %v6124 = vunpack.c.h.b16 %v1551
    %v6125 = vunpack.c.l.b16 %v1552
    %v6126 = vunpack.c.h.b16 %v1552
    %v6127 = vunpack.c.l.b16 %v1553
    %v6128 = vunpack.c.h.b16 %v1553
    %v6129 = vunpack.c.l.b16 %v1554
    %v6130 = vunpack.c.h.b16 %v1554
    %v6131 = vunpack.c.l.b16 %v1555
    %v6132 = vunpack.c.h.b16 %v1555
    %v6133 = vunpack.c.l.b16 %v1556
    %v6134 = vunpack.c.h.b16 %v1556
    %v6135 = vunpack.c.l.b16 %v1557
    %v6136 = vunpack.c.h.b16 %v1557
    %v6137 = vunpack.c.l.b16 %v1558
    %v6138 = vunpack.c.h.b16 %v1558
    %v6139 = vunpack.c.l.b16 %v1559
    %v6140 = vunpack.c.h.b16 %v1559
    %v6141 = vunpack.c.l.b16 %v1560
    %v6142 = vunpack.c.h.b16 %v1560
    %v6143 = vunpack.c.l.b16 %v1561
    %v6144 = vunpack.c.h.b16 %v1561
    %v6145 = vunpack.c.l.b16 %v1562
    %v6146 = vunpack.c.h.b16 %v1562
    %v6147 = vunpack.c.l.b16 %v1563
    %v6148 = vunpack.c.h.b16 %v1563
    %v6149 = vunpack.c.l.b16 %v1564
    %v6150 = vunpack.c.h.b16 %v1564
    %v6151 = vunpack.c.l.b16 %v1565
    %v6152 = vunpack.c.h.b16 %v1565
    %v6153 = vunpack.c.l.b16 %v1566
    %v6154 = vunpack.c.h.b16 %v1566
    %v6155 = vunpack.c.l.b16 %v1567
    %v6156 = vunpack.c.h.b16 %v1567
    %v6157 = vunpack.c.l.b16 %v1568
    %v6158 = vunpack.c.h.b16 %v1568
    %v6159 = vunpack.c.l.b16 %v1569
    %v6160 = vunpack.c.h.b16 %v1569
    %v6161 = vunpack.c.l.b16 %v1570
    %v6162 = vunpack.c.h.b16 %v1570
    %v6163 = vunpack.c.l.b16 %v1571
    %v6164 = vunpack.c.h.b16 %v1571
    %v6165 = vunpack.c.l.b16 %v1572
    %v6166 = vunpack.c.h.b16 %v1572
    %v6167 = vunpack.c.l.b16 %v1573
    %v6168 = vunpack.c.h.b16 %v1573
    %v6169 = vunpack.c.l.b16 %v1574
    %v6170 = vunpack.c.h.b16 %v1574
    %v6171 = vunpack.c.l.b16 %v1575
    %v6172 = vunpack.c.h.b16 %v1575
    %v6173 = vunpack.c.l.b16 %v1576
    %v6174 = vunpack.c.h.b16 %v1576
    %v6175 = vunpack.c.l.b16 %v1577
    %v6176 = vunpack.c.h.b16 %v1577
    %v6177 = vunpack.c.l.b16 %v1578
    %v6178 = vunpack.c.h.b16 %v1578
    %v6179 = vunpack.c.l.b16 %v1579
    %v6180 = vunpack.c.h.b16 %v1579
    %v6181 = vunpack.c.l.b16 %v1580
    %v6182 = vunpack.c.h.b16 %v1580
    %v6183 = vunpack.c.l.b16 %v1581
    %v6184 = vunpack.c.h.b16 %v1581
    %v6185 = vunpack.c.l.b16 %v1582
    %v6186 = vunpack.c.h.b16 %v1582
    %v6187 = vunpack.c.l.b16 %v1583
    %v6188 = vunpack.c.h.b16 %v1583
    %v6189 = vunpack.c.l.b16 %v1584
    %v6190 = vunpack.c.h.b16 %v1584
    %v6191 = vunpack.c.l.b16 %v1585
    %v6192 = vunpack.c.h.b16 %v1585
    %v6193 = vunpack.c.l.b16 %v1586
    %v6194 = vunpack.c.h.b16 %v1586
    %v6195 = vunpack.c.l.b16 %v1587
    %v6196 = vunpack.c.h.b16 %v1587
    %v6197 = vunpack.c.l.b16 %v1588
    %v6198 = vunpack.c.h.b16 %v1588
    %v6199 = vunpack.c.l.b16 %v1589
    %v6200 = vunpack.c.h.b16 %v1589
    %v6201 = vunpack.c.l.b16 %v1590
    %v6202 = vunpack.c.h.b16 %v1590
    %v6203 = vunpack.c.l.b16 %v1591
    %v6204 = vunpack.c.h.b16 %v1591
    %v6205 = vunpack.c.l.b16 %v1592
    %v6206 = vunpack.c.h.b16 %v1592
    %v6207 = vunpack.c.l.b16 %v1593
    %v6208 = vunpack.c.h.b16 %v1593
    %v6209 = vunpack.c.l.b16 %v1594
    %v6210 = vunpack.c.h.b16 %v1594
    %v6211 = vunpack.c.l.b16 %v1595
    %v6212 = vunpack.c.h.b16 %v1595
    %v6213 = vunpack.c.l.b16 %v1596
    %v6214 = vunpack.c.h.b16 %v1596
    %v6215 = vunpack.c.l.b16 %v1597
    %v6216 = vunpack.c.h.b16 %v1597
    %v6217 = vunpack.c.l.b16 %v1598
    %v6218 = vunpack.c.h.b16 %v1598
    %v6219 = vunpack.c.l.b16 %v1599
    %v6220 = vunpack.c.h.b16 %v1599
    %v6221 = vunpack.c.l.b16 %v1600
    %v6222 = vunpack.c.h.b16 %v1600
    %v6223 = vunpack.c.l.b16 %v1601
    %v6224 = vunpack.c.h.b16 %v1601
    %v6225 = vunpack.c.l.b16 %v1602
    %v6226 = vunpack.c.h.b16 %v1602
    %v6227 = vunpack.c.l.b16 %v1603
    %v6228 = vunpack.c.h.b16 %v1603
    %v6229 = vunpack.c.l.b16 %v1604
    %v6230 = vunpack.c.h.b16 %v1604
    %v6231 = vunpack.c.l.b16 %v1605
    %v6232 = vunpack.c.h.b16 %v1605
    %v6233 = vunpack.c.l.b16 %v1606
    %v6234 = vunpack.c.h.b16 %v1606
    %v6235 = vunpack.c.l.b16 %v1607
    %v6236 = vunpack.c.h.b16 %v1607
    %v6237 = vunpack.c.l.b16 %v1608
    %v6238 = vunpack.c.h.b16 %v1608
    %v6239 = vunpack.c.l.b16 %v1609
    %v6240 = vunpack.c.h.b16 %v1609
    %v6241 = vunpack.c.l.b16 %v1610
    %v6242 = vunpack.c.h.b16 %v1610
    %v6243 = vunpack.c.l.b16 %v1611
    %v6244 = vunpack.c.h.b16 %v1611
    %v6245 = vunpack.c.l.b16 %v1612
    %v6246 = vunpack.c.h.b16 %v1612
    %v6247 = vunpack.c.l.b16 %v1613
    %v6248 = vunpack.c.h.b16 %v1613
    %v6249 = vunpack.c.l.b16 %v1614
    %v6250 = vunpack.c.h.b16 %v1614
    %v6251 = vunpack.c.l.b16 %v1615
    %v6252 = vunpack.c.h.b16 %v1615
    %v6253 = vunpack.c.l.b16 %v1616
    %v6254 = vunpack.c.h.b16 %v1616
    %v6255 = vunpack.c.l.b16 %v1617
    %v6256 = vunpack.c.h.b16 %v1617
    %v6257 = vunpack.c.l.b16 %v1618
    %v6258 = vunpack.c.h.b16 %v1618
    %v6259 = vunpack.c.l.b16 %v1619
    %v6260 = vunpack.c.h.b16 %v1619
    %v6261 = vunpack.c.l.b16 %v1620
    %v6262 = vunpack.c.h.b16 %v1620
    %v6263 = vunpack.c.l.b16 %v1621
    %v6264 = vunpack.c.h.b16 %v1621
    %v6265 = vunpack.c.l.b16 %v1622
    %v6266 = vunpack.c.h.b16 %v1622
    %v6267 = vunpack.c.l.b16 %v1623
    %v6268 = vunpack.c.h.b16 %v1623
    %v6269 = vunpack.c.l.b16 %v1624
    %v6270 = vunpack.c.h.b16 %v1624
    %v6271 = vunpack.c.l.b16 %v1625
    %v6272 = vunpack.c.h.b16 %v1625
    %v6273 = vunpack.c.l.b16 %v1626
    %v6274 = vunpack.c.h.b16 %v1626
    %v6275 = vunpack.c.l.b16 %v1627
    %v6276 = vunpack.c.h.b16 %v1627
    %v6277 = vunpack.c.l.b16 %v1628
    %v6278 = vunpack.c.h.b16 %v1628
    %v6279 = vunpack.c.l.b16 %v1629
    %v6280 = vunpack.c.h.b16 %v1629
    %v6281 = vunpack.c.l.b16 %v1630
    %v6282 = vunpack.c.h.b16 %v1630
    %v6283 = vunpack.c.l.b16 %v1631
    %v6284 = vunpack.c.h.b16 %v1631
    %v6285 = vunpack.c.l.b16 %v1632
    %v6286 = vunpack.c.h.b16 %v1632
    %v6287 = vunpack.c.l.b16 %v1633
    %v6288 = vunpack.c.h.b16 %v1633
    %v6289 = vunpack.c.l.b16 %v1634
    %v6290 = vunpack.c.h.b16 %v1634
    %v6291 = vunpack.c.l.b16 %v1635
    %v6292 = vunpack.c.h.b16 %v1635
    %v6293 = vunpack.c.l.b16 %v1636
    %v6294 = vunpack.c.h.b16 %v1636
    %v6295 = vunpack.c.l.b16 %v1637
    %v6296 = vunpack.c.h.b16 %v1637
    %v6297 = vunpack.c.l.b16 %v1638
    %v6298 = vunpack.c.h.b16 %v1638
    %v6299 = vunpack.c.l.b16 %v1639
    %v6300 = vunpack.c.h.b16 %v1639
    %v6301 = vunpack.c.l.b16 %v1640
    %v6302 = vunpack.c.h.b16 %v1640
    %v6303 = vunpack.c.l.b16 %v1641
    %v6304 = vunpack.c.h.b16 %v1641
    %v6305 = vunpack.c.l.b16 %v1642
    %v6306 = vunpack.c.h.b16 %v1642
    %v6307 = vunpack.c.l.b16 %v1643
    %v6308 = vunpack.c.h.b16 %v1643
    %v6309 = vunpack.c.l.b16 %v1644
    %v6310 = vunpack.c.h.b16 %v1644
    %v6311 = vunpack.c.l.b16 %v1645
    %v6312 = vunpack.c.h.b16 %v1645
    %v6313 = vunpack.c.l.b16 %v1646
    %v6314 = vunpack.c.h.b16 %v1646
    %v6315 = vunpack.c.l.b16 %v1647
    %v6316 = vunpack.c.h.b16 %v1647
    %v6317 = vunpack.c.l.b16 %v1648
    %v6318 = vunpack.c.h.b16 %v1648
    %v6319 = vunpack.c.l.b16 %v1649
    %v6320 = vunpack.c.h.b16 %v1649
    %v6321 = vunpack.c.l.b16 %v1650
    %v6322 = vunpack.c.h.b16 %v1650
    %v6323 = vunpack.c.l.b16 %v1651
    %v6324 = vunpack.c.h.b16 %v1651
    %v6325 = vunpack.c.l.b16 %v1652
    %v6326 = vunpack.c.h.b16 %v1652
    %v6327 = vunpack.c.l.b16 %v1653
    %v6328 = vunpack.c.h.b16 %v1653
    %v6329 = vunpack.c.l.b16 %v1654
    %v6330 = vunpack.c.h.b16 %v1654
    %v6331 = vunpack.c.l.b16 %v1655
    %v6332 = vunpack.c.h.b16 %v1655
    %v6333 = vunpack.c.l.b16 %v1656
    %v6334 = vunpack.c.h.b16 %v1656
    %v6335 = vunpack.c.l.b16 %v1657
    %v6336 = vunpack.c.h.b16 %v1657
    %v6337 = vunpack.c.l.b16 %v1658
    %v6338 = vunpack.c.h.b16 %v1658
    %v6339 = vunpack.c.l.b16 %v1659
    %v6340 = vunpack.c.h.b16 %v1659
    %v6341 = vunpack.c.l.b16 %v1660
    %v6342 = vunpack.c.h.b16 %v1660
    %v6343 = vunpack.c.l.b16 %v1661
    %v6344 = vunpack.c.h.b16 %v1661
    %v6345 = vunpack.c.l.b16 %v1662
    %v6346 = vunpack.c.h.b16 %v1662
    %v6347 = vunpack.c.l.b16 %v1663
    %v6348 = vunpack.c.h.b16 %v1663
    %v6349 = vunpack.c.l.b16 %v1664
    %v6350 = vunpack.c.h.b16 %v1664
    %v6351 = vunpack.c.l.b16 %v1665
    %v6352 = vunpack.c.h.b16 %v1665
    %v6353 = vunpack.c.l.b16 %v1666
    %v6354 = vunpack.c.h.b16 %v1666
    %v6355 = vunpack.c.l.b16 %v1667
    %v6356 = vunpack.c.h.b16 %v1667
    %v6357 = vunpack.c.l.b16 %v1668
    %v6358 = vunpack.c.h.b16 %v1668
    %v6359 = vunpack.c.l.b16 %v1669
    %v6360 = vunpack.c.h.b16 %v1669
    %v6361 = vunpack.c.l.b16 %v1670
    %v6362 = vunpack.c.h.b16 %v1670
    %v6363 = vunpack.c.l.b16 %v1671
    %v6364 = vunpack.c.h.b16 %v1671
    %v6365 = vunpack.c.l.b16 %v1672
    %v6366 = vunpack.c.h.b16 %v1672
    %v6367 = vunpack.c.l.b16 %v1673
    %v6368 = vunpack.c.h.b16 %v1673
    %v6369 = vunpack.c.l.b16 %v1674
    %v6370 = vunpack.c.h.b16 %v1674
    %v6371 = vunpack.c.l.b16 %v1675
    %v6372 = vunpack.c.h.b16 %v1675
    %v6373 = vunpack.c.l.b16 %v1676
    %v6374 = vunpack.c.h.b16 %v1676
    %v6375 = vunpack.c.l.b16 %v1677
    %v6376 = vunpack.c.h.b16 %v1677
    %v6377 = vunpack.c.l.b16 %v1678
    %v6378 = vunpack.c.h.b16 %v1678
    %v6379 = vunpack.c.l.b16 %v1679
    %v6380 = vunpack.c.h.b16 %v1679
    %v6381 = vunpack.c.l.b16 %v1680
    %v6382 = vunpack.c.h.b16 %v1680
    %v6383 = vunpack.c.l.b16 %v1681
    %v6384 = vunpack.c.h.b16 %v1681
    %v6385 = vunpack.c.l.b16 %v1682
    %v6386 = vunpack.c.h.b16 %v1682
    %v6387 = vunpack.c.l.b16 %v1683
    %v6388 = vunpack.c.h.b16 %v1683
    %v6389 = vunpack.c.l.b16 %v1684
    %v6390 = vunpack.c.h.b16 %v1684
    %v6391 = vunpack.c.l.b16 %v1685
    %v6392 = vunpack.c.h.b16 %v1685
    %v6393 = vunpack.c.l.b16 %v1686
    %v6394 = vunpack.c.h.b16 %v1686
    %v6395 = vunpack.c.l.b16 %v1687
    %v6396 = vunpack.c.h.b16 %v1687
    %v6397 = vunpack.c.l.b16 %v1688
    %v6398 = vunpack.c.h.b16 %v1688
    %v6399 = vunpack.c.l.b16 %v1689
    %v6400 = vunpack.c.h.b16 %v1689
    %v6401 = vunpack.c.l.b16 %v1690
    %v6402 = vunpack.c.h.b16 %v1690
    %v6403 = vunpack.c.l.b16 %v1691
    %v6404 = vunpack.c.h.b16 %v1691
    %v6405 = vunpack.c.l.b16 %v1692
    %v6406 = vunpack.c.h.b16 %v1692
    %v6407 = vunpack.c.l.b16 %v1693
    %v6408 = vunpack.c.h.b16 %v1693
    %v6409 = vunpack.c.l.b16 %v1694
    %v6410 = vunpack.c.h.b16 %v1694
    %v6411 = vunpack.c.l.b16 %v1695
    %v6412 = vunpack.c.h.b16 %v1695
    %v6413 = vunpack.c.l.b16 %v1696
    %v6414 = vunpack.c.h.b16 %v1696
    %v6415 = vunpack.c.l.b16 %v1697
    %v6416 = vunpack.c.h.b16 %v1697
    %v6417 = vunpack.c.l.b16 %v1698
    %v6418 = vunpack.c.h.b16 %v1698
    %v6419 = vunpack.c.l.b16 %v1699
    %v6420 = vunpack.c.h.b16 %v1699
    %v6421 = vunpack.c.l.b16 %v1700
    %v6422 = vunpack.c.h.b16 %v1700
    %v6423 = vunpack.c.l.b16 %v1701
    %v6424 = vunpack.c.h.b16 %v1701
    %v6425 = vunpack.c.l.b16 %v1702
    %v6426 = vunpack.c.h.b16 %v1702
    %v6427 = vunpack.c.l.b16 %v1703
    %v6428 = vunpack.c.h.b16 %v1703
    %v6429 = vunpack.c.l.b16 %v1704
    %v6430 = vunpack.c.h.b16 %v1704
    %v6431 = vunpack.c.l.b16 %v1705
    %v6432 = vunpack.c.h.b16 %v1705
    %v6433 = vunpack.c.l.b16 %v1706
    %v6434 = vunpack.c.h.b16 %v1706
    %v6435 = vunpack.c.l.b16 %v1707
    %v6436 = vunpack.c.h.b16 %v1707
    %v6437 = vunpack.c.l.b16 %v1708
    %v6438 = vunpack.c.h.b16 %v1708
    %v6439 = vunpack.c.l.b16 %v1709
    %v6440 = vunpack.c.h.b16 %v1709
    %v6441 = vunpack.c.l.b16 %v1710
    %v6442 = vunpack.c.h.b16 %v1710
    %v6443 = vunpack.c.l.b16 %v1711
    %v6444 = vunpack.c.h.b16 %v1711
    %v6445 = vunpack.c.l.b16 %v1712
    %v6446 = vunpack.c.h.b16 %v1712
    %v6447 = vunpack.c.l.b16 %v1713
    %v6448 = vunpack.c.h.b16 %v1713
    %v6449 = vunpack.c.l.b16 %v1714
    %v6450 = vunpack.c.h.b16 %v1714
    %v6451 = vunpack.c.l.b16 %v1715
    %v6452 = vunpack.c.h.b16 %v1715
    %v6453 = vunpack.c.l.b16 %v1716
    %v6454 = vunpack.c.h.b16 %v1716
    %v6455 = vunpack.c.l.b16 %v1717
    %v6456 = vunpack.c.h.b16 %v1717
    %v6457 = vunpack.c.l.b16 %v1718
    %v6458 = vunpack.c.h.b16 %v1718
    %v6459 = vunpack.c.l.b16 %v1719
    %v6460 = vunpack.c.h.b16 %v1719
    %v6461 = vunpack.c.l.b16 %v1720
    %v6462 = vunpack.c.h.b16 %v1720
    %v6463 = vunpack.c.l.b16 %v1721
    %v6464 = vunpack.c.h.b16 %v1721
    %v6465 = vunpack.c.l.b16 %v1722
    %v6466 = vunpack.c.h.b16 %v1722
    %v6467 = vunpack.c.l.b16 %v1723
    %v6468 = vunpack.c.h.b16 %v1723
    %v6469 = vunpack.c.l.b16 %v1724
    %v6470 = vunpack.c.h.b16 %v1724
    %v6471 = vpack.c.b16 %v3407, %v3399
    %v6472 = vpack.c.b16 %v3408, %v3400
    %v6473 = vpack.c.b16 %v3409, %v3401
    %v6474 = vpack.c.b16 %v3410, %v3402
    %v6475 = vpack.c.b16 %v3411, %v3403
    %v6476 = vpack.c.b16 %v3412, %v3404
    %v6477 = vpack.c.b16 %v3413, %v3405
    %v6478 = vpack.c.b16 %v3414, %v3406
    %v6479 = vpack.c.b16 %v3423, %v3415
    %v6480 = vpack.c.b16 %v3424, %v3416
    %v6481 = vpack.c.b16 %v3425, %v3417
    %v6482 = vpack.c.b16 %v3426, %v3418
    %v6483 = vpack.c.b16 %v3427, %v3419
    %v6484 = vpack.c.b16 %v3428, %v3420
    %v6485 = vpack.c.b16 %v3429, %v3421
    %v6486 = vpack.c.b16 %v3430, %v3422
    %v6487 = vpack.c.b16 %v3439, %v3431
    %v6488 = vpack.c.b16 %v3440, %v3432
    %v6489 = vpack.c.b16 %v3441, %v3433
    %v6490 = vpack.c.b16 %v3442, %v3434
    %v6491 = vpack.c.b16 %v3443, %v3435
    %v6492 = vpack.c.b16 %v3444, %v3436
    %v6493 = vpack.c.b16 %v3445, %v3437
    %v6494 = vpack.c.b16 %v3446, %v3438
    %v6495 = vpack.c.b16 %v3455, %v3447
    %v6496 = vpack.c.b16 %v3456, %v3448
    %v6497 = vpack.c.b16 %v3457, %v3449
    %v6498 = vpack.c.b16 %v3458, %v3450
    %v6499 = vpack.c.b16 %v3459, %v3451
    %v6500 = vpack.c.b16 %v3460, %v3452
    %v6501 = vpack.c.b16 %v3461, %v3453
    %v6502 = vpack.c.b16 %v3462, %v3454
    %v6503 = vpack.c.b16 %v3471, %v3463
    %v6504 = vpack.c.b16 %v3472, %v3464
    %v6505 = vpack.c.b16 %v3473, %v3465
    %v6506 = vpack.c.b16 %v3474, %v3466
    %v6507 = vpack.c.b16 %v3475, %v3467
    %v6508 = vpack.c.b16 %v3476, %v3468
    %v6509 = vpack.c.b16 %v3477, %v3469
    %v6510 = vpack.c.b16 %v3478, %v3470
    %v6511 = vpack.c.b16 %v3487, %v3479
    %v6512 = vpack.c.b16 %v3488, %v3480
    %v6513 = vpack.c.b16 %v3489, %v3481
    %v6514 = vpack.c.b16 %v3490, %v3482
    %v6515 = vpack.c.b16 %v3491, %v3483
    %v6516 = vpack.c.b16 %v3492, %v3484
    %v6517 = vpack.c.b16 %v3493, %v3485
    %v6518 = vpack.c.b16 %v3494, %v3486
    %v6519 = vpack.c.b16 %v3503, %v3495
    %v6520 = vpack.c.b16 %v3504, %v3496
    %v6521 = vpack.c.b16 %v3505, %v3497
    %v6522 = vpack.c.b16 %v3506, %v3498
    %v6523 = vpack.c.b16 %v3507, %v3499
    %v6524 = vpack.c.b16 %v3508, %v3500
    %v6525 = vpack.c.b16 %v3509, %v3501
    %v6526 = vpack.c.b16 %v3510, %v3502
    %v6527 = vpack.c.b16 %v3519, %v3511
    %v6528 = vpack.c.b16 %v3520, %v3512
    %v6529 = vpack.c.b16 %v3521, %v3513
    %v6530 = vpack.c.b16 %v3522, %v3514
    %v6531 = vpack.c.b16 %v3523, %v3515
    %v6532 = vpack.c.b16 %v3524, %v3516
    %v6533 = vpack.c.b16 %v3525, %v3517
    %v6534 = vpack.c.b16 %v3526, %v3518
    %v6535 = vpack.c.b16 %v3535, %v3527
    %v6536 = vpack.c.b16 %v3536, %v3528
    %v6537 = vpack.c.b16 %v3537, %v3529
    %v6538 = vpack.c.b16 %v3538, %v3530
    %v6539 = vpack.c.b16 %v3539, %v3531
    %v6540 = vpack.c.b16 %v3540, %v3532
    %v6541 = vpack.c.b16 %v3541, %v3533
    %v6542 = vpack.c.b16 %v3542, %v3534
    %v6543 = vpack.c.b16 %v3551, %v3543
    %v6544 = vpack.c.b16 %v3552, %v3544
    %v6545 = vpack.c.b16 %v3553, %v3545
    %v6546 = vpack.c.b16 %v3554, %v3546
    %v6547 = vpack.c.b16 %v3555, %v3547
    %v6548 = vpack.c.b16 %v3556, %v3548
    %v6549 = vpack.c.b16 %v3557, %v3549
    %v6550 = vpack.c.b16 %v3558, %v3550
    %v6551 = vpack.c.b16 %v3567, %v3559
    %v6552 = vpack.c.b16 %v3568, %v3560
    %v6553 = vpack.c.b16 %v3569, %v3561
    %v6554 = vpack.c.b16 %v3570, %v3562
    %v6555 = vpack.c.b16 %v3571, %v3563
    %v6556 = vpack.c.b16 %v3572, %v3564
    %v6557 = vpack.c.b16 %v3573, %v3565
    %v6558 = vpack.c.b16 %v3574, %v3566
    %v6559 = vpack.c.b16 %v3583, %v3575
    %v6560 = vpack.c.b16 %v3584, %v3576
    %v6561 = vpack.c.b16 %v3585, %v3577
    %v6562 = vpack.c.b16 %v3586, %v3578
    %v6563 = vpack.c.b16 %v3587, %v3579
    %v6564 = vpack.c.b16 %v3588, %v3580
    %v6565 = vpack.c.b16 %v3589, %v3581
    %v6566 = vpack.c.b16 %v3590, %v3582
    %v6567 = vpack.c.b16 %v3599, %v3591
    %v6568 = vpack.c.b16 %v3600, %v3592
    %v6569 = vpack.c.b16 %v3601, %v3593
    %v6570 = vpack.c.b16 %v3602, %v3594
    %v6571 = vpack.c.b16 %v3603, %v3595
    %v6572 = vpack.c.b16 %v3604, %v3596
    %v6573 = vpack.c.b16 %v3605, %v3597
    %v6574 = vpack.c.b16 %v3606, %v3598
    %v6575 = vpack.c.b16 %v3615, %v3607
    %v6576 = vpack.c.b16 %v3616, %v3608
    %v6577 = vpack.c.b16 %v3617, %v3609
    %v6578 = vpack.c.b16 %v3618, %v3610
    %v6579 = vpack.c.b16 %v3619, %v3611
    %v6580 = vpack.c.b16 %v3620, %v3612
    %v6581 = vpack.c.b16 %v3621, %v3613
    %v6582 = vpack.c.b16 %v3622, %v3614
    %v6583 = vpack.c.b16 %v3631, %v3623
    %v6584 = vpack.c.b16 %v3632, %v3624
    %v6585 = vpack.c.b16 %v3633, %v3625
    %v6586 = vpack.c.b16 %v3634, %v3626
    %v6587 = vpack.c.b16 %v3635, %v3627
    %v6588 = vpack.c.b16 %v3636, %v3628
    %v6589 = vpack.c.b16 %v3637, %v3629
    %v6590 = vpack.c.b16 %v3638, %v3630
    %v6591 = vpack.c.b16 %v3647, %v3639
    %v6592 = vpack.c.b16 %v3648, %v3640
    %v6593 = vpack.c.b16 %v3649, %v3641
    %v6594 = vpack.c.b16 %v3650, %v3642
    %v6595 = vpack.c.b16 %v3651, %v3643
    %v6596 = vpack.c.b16 %v3652, %v3644
    %v6597 = vpack.c.b16 %v3653, %v3645
    %v6598 = vpack.c.b16 %v3654, %v3646
    %v6599 = vpack.c.b16 %v3663, %v3655
    %v6600 = vpack.c.b16 %v3664, %v3656
    %v6601 = vpack.c.b16 %v3665, %v3657
    %v6602 = vpack.c.b16 %v3666, %v3658
    %v6603 = vpack.c.b16 %v3667, %v3659
    %v6604 = vpack.c.b16 %v3668, %v3660
    %v6605 = vpack.c.b16 %v3669, %v3661
    %v6606 = vpack.c.b16 %v3670, %v3662
    %v6607 = vpack.c.b16 %v3679, %v3671
    %v6608 = vpack.c.b16 %v3680, %v3672
    %v6609 = vpack.c.b16 %v3681, %v3673
    %v6610 = vpack.c.b16 %v3682, %v3674
    %v6611 = vpack.c.b16 %v3683, %v3675
    %v6612 = vpack.c.b16 %v3684, %v3676
    %v6613 = vpack.c.b16 %v3685, %v3677
    %v6614 = vpack.c.b16 %v3686, %v3678
    %v6615 = vpack.c.b16 %v3695, %v3687
    %v6616 = vpack.c.b16 %v3696, %v3688
    %v6617 = vpack.c.b16 %v3697, %v3689
    %v6618 = vpack.c.b16 %v3698, %v3690
    %v6619 = vpack.c.b16 %v3699, %v3691
    %v6620 = vpack.c.b16 %v3700, %v3692
    %v6621 = vpack.c.b16 %v3701, %v3693
    %v6622 = vpack.c.b16 %v3702, %v3694
    %v6623 = vpack.c.b16 %v3711, %v3703
    %v6624 = vpack.c.b16 %v3712, %v3704
    %v6625 = vpack.c.b16 %v3713, %v3705
    %v6626 = vpack.c.b16 %v3714, %v3706
    %v6627 = vpack.c.b16 %v3715, %v3707
    %v6628 = vpack.c.b16 %v3716, %v3708
    %v6629 = vpack.c.b16 %v3717, %v3709
    %v6630 = vpack.c.b16 %v3718, %v3710
    %v6631 = vpack.c.b16 %v3727, %v3719
    %v6632 = vpack.c.b16 %v3728, %v3720
    %v6633 = vpack.c.b16 %v3729, %v3721
    %v6634 = vpack.c.b16 %v3730, %v3722
    %v6635 = vpack.c.b16 %v3731, %v3723
    %v6636 = vpack.c.b16 %v3732, %v3724
    %v6637 = vpack.c.b16 %v3733, %v3725
    %v6638 = vpack.c.b16 %v3734, %v3726
    %v6639 = vpack.c.b16 %v3743, %v3735
    %v6640 = vpack.c.b16 %v3744, %v3736
    %v6641 = vpack.c.b16 %v3745, %v3737
    %v6642 = vpack.c.b16 %v3746, %v3738
    %v6643 = vpack.c.b16 %v3747, %v3739
    %v6644 = vpack.c.b16 %v3748, %v3740
    %v6645 = vpack.c.b16 %v3749, %v3741
    %v6646 = vpack.c.b16 %v3750, %v3742
    %v6647 = vpack.c.b16 %v3759, %v3751
    %v6648 = vpack.c.b16 %v3760, %v3752
    %v6649 = vpack.c.b16 %v3761, %v3753
    %v6650 = vpack.c.b16 %v3762, %v3754
    %v6651 = vpack.c.b16 %v3763, %v3755
    %v6652 = vpack.c.b16 %v3764, %v3756
    %v6653 = vpack.c.b16 %v3765, %v3757
    %v6654 = vpack.c.b16 %v3766, %v3758
    %v6655 = vpack.c.b16 %v3775, %v3767
    %v6656 = vpack.c.b16 %v3776, %v3768
    %v6657 = vpack.c.b16 %v3777, %v3769
    %v6658 = vpack.c.b16 %v3778, %v3770
    %v6659 = vpack.c.b16 %v3779, %v3771
    %v6660 = vpack.c.b16 %v3780, %v3772
    %v6661 = vpack.c.b16 %v3781, %v3773
    %v6662 = vpack.c.b16 %v3782, %v3774
    %v6663 = vpack.c.b16 %v3791, %v3783
    %v6664 = vpack.c.b16 %v3792, %v3784
    %v6665 = vpack.c.b16 %v3793, %v3785
    %v6666 = vpack.c.b16 %v3794, %v3786
    %v6667 = vpack.c.b16 %v3795, %v3787
    %v6668 = vpack.c.b16 %v3796, %v3788
    %v6669 = vpack.c.b16 %v3797, %v3789
    %v6670 = vpack.c.b16 %v3798, %v3790
    %v6671 = vpack.c.b16 %v3807, %v3799
    %v6672 = vpack.c.b16 %v3808, %v3800
    %v6673 = vpack.c.b16 %v3809, %v3801
    %v6674 = vpack.c.b16 %v3810, %v3802
    %v6675 = vpack.c.b16 %v3811, %v3803
    %v6676 = vpack.c.b16 %v3812, %v3804
    %v6677 = vpack.c.b16 %v3813, %v3805
    %v6678 = vpack.c.b16 %v3814, %v3806
    %v6679 = vpack.c.b16 %v3823, %v3815
    %v6680 = vpack.c.b16 %v3824, %v3816
    %v6681 = vpack.c.b16 %v3825, %v3817
    %v6682 = vpack.c.b16 %v3826, %v3818
    %v6683 = vpack.c.b16 %v3827, %v3819
    %v6684 = vpack.c.b16 %v3828, %v3820
    %v6685 = vpack.c.b16 %v3829, %v3821
    %v6686 = vpack.c.b16 %v3830, %v3822
    %v6687 = vpack.c.b16 %v3839, %v3831
    %v6688 = vpack.c.b16 %v3840, %v3832
    %v6689 = vpack.c.b16 %v3841, %v3833
    %v6690 = vpack.c.b16 %v3842, %v3834
    %v6691 = vpack.c.b16 %v3843, %v3835
    %v6692 = vpack.c.b16 %v3844, %v3836
    %v6693 = vpack.c.b16 %v3845, %v3837
    %v6694 = vpack.c.b16 %v3846, %v3838
    %v6695 = vpack.c.b16 %v3855, %v3847
    %v6696 = vpack.c.b16 %v3856, %v3848
    %v6697 = vpack.c.b16 %v3857, %v3849
    %v6698 = vpack.c.b16 %v3858, %v3850
    %v6699 = vpack.c.b16 %v3859, %v3851
    %v6700 = vpack.c.b16 %v3860, %v3852
    %v6701 = vpack.c.b16 %v3861, %v3853
    %v6702 = vpack.c.b16 %v3862, %v3854
    %v6703 = vpack.c.b16 %v3871, %v3863
    %v6704 = vpack.c.b16 %v3872, %v3864
    %v6705 = vpack.c.b16 %v3873, %v3865
    %v6706 = vpack.c.b16 %v3874, %v3866
    %v6707 = vpack.c.b16 %v3875, %v3867
    %v6708 = vpack.c.b16 %v3876, %v3868
    %v6709 = vpack.c.b16 %v3877, %v3869
    %v6710 = vpack.c.b16 %v3878, %v3870
    %v6711 = vpack.c.b16 %v3887, %v3879
    %v6712 = vpack.c.b16 %v3888, %v3880
    %v6713 = vpack.c.b16 %v3889, %v3881
    %v6714 = vpack.c.b16 %v3890, %v3882
    %v6715 = vpack.c.b16 %v3891, %v3883
    %v6716 = vpack.c.b16 %v3892, %v3884
    %v6717 = vpack.c.b16 %v3893, %v3885
    %v6718 = vpack.c.b16 %v3894, %v3886
    %v6719 = vpack.c.b16 %v3903, %v3895
    %v6720 = vpack.c.b16 %v3904, %v3896
    %v6721 = vpack.c.b16 %v3905, %v3897
    %v6722 = vpack.c.b16 %v3906, %v3898
    %v6723 = vpack.c.b16 %v3907, %v3899
    %v6724 = vpack.c.b16 %v3908, %v3900
    %v6725 = vpack.c.b16 %v3909, %v3901
    %v6726 = vpack.c.b16 %v3910, %v3902
    %v6727 = vpack.c.b16 %v3919, %v3911
    %v6728 = vpack.c.b16 %v3920, %v3912
    %v6729 = vpack.c.b16 %v3921, %v3913
    %v6730 = vpack.c.b16 %v3922, %v3914
    %v6731 = vpack.c.b16 %v3923, %v3915
    %v6732 = vpack.c.b16 %v3924, %v3916
    %v6733 = vpack.c.b16 %v3925, %v3917
    %v6734 = vpack.c.b16 %v3926, %v3918
    %v6735 = vpack.c.b16 %v3935, %v3927
    %v6736 = vpack.c.b16 %v3936, %v3928
    %v6737 = vpack.c.b16 %v3937, %v3929
    %v6738 = vpack.c.b16 %v3938, %v3930
    %v6739 = vpack.c.b16 %v3939, %v3931
    %v6740 = vpack.c.b16 %v3940, %v3932
    %v6741 = vpack.c.b16 %v3941, %v3933
    %v6742 = vpack.c.b16 %v3942, %v3934
    %v6743 = vpack.c.b16 %v3951, %v3943
    %v6744 = vpack.c.b16 %v3952, %v3944
    %v6745 = vpack.c.b16 %v3953, %v3945
    %v6746 = vpack.c.b16 %v3954, %v3946
    %v6747 = vpack.c.b16 %v3955, %v3947
    %v6748 = vpack.c.b16 %v3956, %v3948
    %v6749 = vpack.c.b16 %v3957, %v3949
    %v6750 = vpack.c.b16 %v3958, %v3950
    %v6751 = vpack.c.b16 %v3967, %v3959
    %v6752 = vpack.c.b16 %v3968, %v3960
    %v6753 = vpack.c.b16 %v3969, %v3961
    %v6754 = vpack.c.b16 %v3970, %v3962
    %v6755 = vpack.c.b16 %v3971, %v3963
    %v6756 = vpack.c.b16 %v3972, %v3964
    %v6757 = vpack.c.b16 %v3973, %v3965
    %v6758 = vpack.c.b16 %v3974, %v3966
    %v6759 = vpack.c.b16 %v3983, %v3975
    %v6760 = vpack.c.b16 %v3984, %v3976
    %v6761 = vpack.c.b16 %v3985, %v3977
    %v6762 = vpack.c.b16 %v3986, %v3978
    %v6763 = vpack.c.b16 %v3987, %v3979
    %v6764 = vpack.c.b16 %v3988, %v3980
    %v6765 = vpack.c.b16 %v3989, %v3981
    %v6766 = vpack.c.b16 %v3990, %v3982
    %v6767 = vpack.c.b16 %v3999, %v3991
    %v6768 = vpack.c.b16 %v4000, %v3992
    %v6769 = vpack.c.b16 %v4001, %v3993
    %v6770 = vpack.c.b16 %v4002, %v3994
    %v6771 = vpack.c.b16 %v4003, %v3995
    %v6772 = vpack.c.b16 %v4004, %v3996
    %v6773 = vpack.c.b16 %v4005, %v3997
    %v6774 = vpack.c.b16 %v4006, %v3998
    %v6775 = vpack.c.b16 %v4015, %v4007
    %v6776 = vpack.c.b16 %v4016, %v4008
    %v6777 = vpack.c.b16 %v4017, %v4009
    %v6778 = vpack.c.b16 %v4018, %v4010
    %v6779 = vpack.c.b16 %v4019, %v4011
    %v6780 = vpack.c.b16 %v4020, %v4012
    %v6781 = vpack.c.b16 %v4021, %v4013
    %v6782 = vpack.c.b16 %v4022, %v4014
    %v6783 = vpack.c.b16 %v4031, %v4023
    %v6784 = vpack.c.b16 %v4032, %v4024
    %v6785 = vpack.c.b16 %v4033, %v4025
    %v6786 = vpack.c.b16 %v4034, %v4026
    %v6787 = vpack.c.b16 %v4035, %v4027
    %v6788 = vpack.c.b16 %v4036, %v4028
    %v6789 = vpack.c.b16 %v4037, %v4029
    %v6790 = vpack.c.b16 %v4038, %v4030
    %v6791 = vpack.c.b16 %v4047, %v4039
    %v6792 = vpack.c.b16 %v4048, %v4040
    %v6793 = vpack.c.b16 %v4049, %v4041
    %v6794 = vpack.c.b16 %v4050, %v4042
    %v6795 = vpack.c.b16 %v4051, %v4043
    %v6796 = vpack.c.b16 %v4052, %v4044
    %v6797 = vpack.c.b16 %v4053, %v4045
    %v6798 = vpack.c.b16 %v4054, %v4046
    %v6799 = vpack.c.b16 %v4063, %v4055
    %v6800 = vpack.c.b16 %v4064, %v4056
    %v6801 = vpack.c.b16 %v4065, %v4057
    %v6802 = vpack.c.b16 %v4066, %v4058
    %v6803 = vpack.c.b16 %v4067, %v4059
    %v6804 = vpack.c.b16 %v4068, %v4060
    %v6805 = vpack.c.b16 %v4069, %v4061
    %v6806 = vpack.c.b16 %v4070, %v4062
    %v6807 = vpack.c.b16 %v4079, %v4071
    %v6808 = vpack.c.b16 %v4080, %v4072
    %v6809 = vpack.c.b16 %v4081, %v4073
    %v6810 = vpack.c.b16 %v4082, %v4074
    %v6811 = vpack.c.b16 %v4083, %v4075
    %v6812 = vpack.c.b16 %v4084, %v4076
    %v6813 = vpack.c.b16 %v4085, %v4077
    %v6814 = vpack.c.b16 %v4086, %v4078
    %v6815 = vpack.c.b16 %v4095, %v4087
    %v6816 = vpack.c.b16 %v4096, %v4088
    %v6817 = vpack.c.b16 %v4097, %v4089
    %v6818 = vpack.c.b16 %v4098, %v4090
    %v6819 = vpack.c.b16 %v4099, %v4091
    %v6820 = vpack.c.b16 %v4100, %v4092
    %v6821 = vpack.c.b16 %v4101, %v4093
    %v6822 = vpack.c.b16 %v4102, %v4094
    %v6823 = vpack.c.b16 %v4111, %v4103
    %v6824 = vpack.c.b16 %v4112, %v4104
    %v6825 = vpack.c.b16 %v4113, %v4105
    %v6826 = vpack.c.b16 %v4114, %v4106
    %v6827 = vpack.c.b16 %v4115, %v4107
    %v6828 = vpack.c.b16 %v4116, %v4108
    %v6829 = vpack.c.b16 %v4117, %v4109
    %v6830 = vpack.c.b16 %v4118, %v4110
    %v6831 = vpack.c.b16 %v4127, %v4119
    %v6832 = vpack.c.b16 %v4128, %v4120
    %v6833 = vpack.c.b16 %v4129, %v4121
    %v6834 = vpack.c.b16 %v4130, %v4122
    %v6835 = vpack.c.b16 %v4131, %v4123
    %v6836 = vpack.c.b16 %v4132, %v4124
    %v6837 = vpack.c.b16 %v4133, %v4125
    %v6838 = vpack.c.b16 %v4134, %v4126
    %v6839 = vpack.c.b16 %v4143, %v4135
    %v6840 = vpack.c.b16 %v4144, %v4136
    %v6841 = vpack.c.b16 %v4145, %v4137
    %v6842 = vpack.c.b16 %v4146, %v4138
    %v6843 = vpack.c.b16 %v4147, %v4139
    %v6844 = vpack.c.b16 %v4148, %v4140
    %v6845 = vpack.c.b16 %v4149, %v4141
    %v6846 = vpack.c.b16 %v4150, %v4142
    %v6847 = vpack.c.b16 %v4159, %v4151
    %v6848 = vpack.c.b16 %v4160, %v4152
    %v6849 = vpack.c.b16 %v4161, %v4153
    %v6850 = vpack.c.b16 %v4162, %v4154
    %v6851 = vpack.c.b16 %v4163, %v4155
    %v6852 = vpack.c.b16 %v4164, %v4156
    %v6853 = vpack.c.b16 %v4165, %v4157
    %v6854 = vpack.c.b16 %v4166, %v4158
    %v6855 = vpack.c.b16 %v4175, %v4167
    %v6856 = vpack.c.b16 %v4176, %v4168
    %v6857 = vpack.c.b16 %v4177, %v4169
    %v6858 = vpack.c.b16 %v4178, %v4170
    %v6859 = vpack.c.b16 %v4179, %v4171
    %v6860 = vpack.c.b16 %v4180, %v4172
    %v6861 = vpack.c.b16 %v4181, %v4173
    %v6862 = vpack.c.b16 %v4182, %v4174
    %v6863 = vpack.c.b16 %v4191, %v4183
    %v6864 = vpack.c.b16 %v4192, %v4184
    %v6865 = vpack.c.b16 %v4193, %v4185
    %v6866 = vpack.c.b16 %v4194, %v4186
    %v6867 = vpack.c.b16 %v4195, %v4187
    %v6868 = vpack.c.b16 %v4196, %v4188
    %v6869 = vpack.c.b16 %v4197, %v4189
    %v6870 = vpack.c.b16 %v4198, %v4190
    %v6871 = vpack.c.b16 %v4207, %v4199
    %v6872 = vpack.c.b16 %v4208, %v4200
    %v6873 = vpack.c.b16 %v4209, %v4201
    %v6874 = vpack.c.b16 %v4210, %v4202
    %v6875 = vpack.c.b16 %v4211, %v4203
    %v6876 = vpack.c.b16 %v4212, %v4204
    %v6877 = vpack.c.b16 %v4213, %v4205
    %v6878 = vpack.c.b16 %v4214, %v4206
    %v6879 = vpack.c.b16 %v4223, %v4215
    %v6880 = vpack.c.b16 %v4224, %v4216
    %v6881 = vpack.c.b16 %v4225, %v4217
    %v6882 = vpack.c.b16 %v4226, %v4218
    %v6883 = vpack.c.b16 %v4227, %v4219
    %v6884 = vpack.c.b16 %v4228, %v4220
    %v6885 = vpack.c.b16 %v4229, %v4221
    %v6886 = vpack.c.b16 %v4230, %v4222
    %v6887 = vpack.c.b16 %v4239, %v4231
    %v6888 = vpack.c.b16 %v4240, %v4232
    %v6889 = vpack.c.b16 %v4241, %v4233
    %v6890 = vpack.c.b16 %v4242, %v4234
    %v6891 = vpack.c.b16 %v4243, %v4235
    %v6892 = vpack.c.b16 %v4244, %v4236
    %v6893 = vpack.c.b16 %v4245, %v4237
    %v6894 = vpack.c.b16 %v4246, %v4238
    %v6895 = vpack.c.b16 %v4255, %v4247
    %v6896 = vpack.c.b16 %v4256, %v4248
    %v6897 = vpack.c.b16 %v4257, %v4249
    %v6898 = vpack.c.b16 %v4258, %v4250
    %v6899 = vpack.c.b16 %v4259, %v4251
    %v6900 = vpack.c.b16 %v4260, %v4252
    %v6901 = vpack.c.b16 %v4261, %v4253
    %v6902 = vpack.c.b16 %v4262, %v4254
    %v6903 = vpack.c.b16 %v4271, %v4263
    %v6904 = vpack.c.b16 %v4272, %v4264
    %v6905 = vpack.c.b16 %v4273, %v4265
    %v6906 = vpack.c.b16 %v4274, %v4266
    %v6907 = vpack.c.b16 %v4275, %v4267
    %v6908 = vpack.c.b16 %v4276, %v4268
    %v6909 = vpack.c.b16 %v4277, %v4269
    %v6910 = vpack.c.b16 %v4278, %v4270
    %v6911 = vpack.c.b16 %v4287, %v4279
    %v6912 = vpack.c.b16 %v4288, %v4280
    %v6913 = vpack.c.b16 %v4289, %v4281
    %v6914 = vpack.c.b16 %v4290, %v4282
    %v6915 = vpack.c.b16 %v4291, %v4283
    %v6916 = vpack.c.b16 %v4292, %v4284
    %v6917 = vpack.c.b16 %v4293, %v4285
    %v6918 = vpack.c.b16 %v4294, %v4286
    %v6919 = vpack.c.b16 %v4303, %v4295
    %v6920 = vpack.c.b16 %v4304, %v4296
    %v6921 = vpack.c.b16 %v4305, %v4297
    %v6922 = vpack.c.b16 %v4306, %v4298
    %v6923 = vpack.c.b16 %v4307, %v4299
    %v6924 = vpack.c.b16 %v4308, %v4300
    %v6925 = vpack.c.b16 %v4309, %v4301
    %v6926 = vpack.c.b16 %v4310, %v4302
    %v6927 = vpack.c.b16 %v4319, %v4311
    %v6928 = vpack.c.b16 %v4320, %v4312
    %v6929 = vpack.c.b16 %v4321, %v4313
    %v6930 = vpack.c.b16 %v4322, %v4314
    %v6931 = vpack.c.b16 %v4323, %v4315
    %v6932 = vpack.c.b16 %v4324, %v4316
    %v6933 = vpack.c.b16 %v4325, %v4317
    %v6934 = vpack.c.b16 %v4326, %v4318
    %v6935 = vpack.c.b16 %v4335, %v4327
    %v6936 = vpack.c.b16 %v4336, %v4328
    %v6937 = vpack.c.b16 %v4337, %v4329
    %v6938 = vpack.c.b16 %v4338, %v4330
    %v6939 = vpack.c.b16 %v4339, %v4331
    %v6940 = vpack.c.b16 %v4340, %v4332
    %v6941 = vpack.c.b16 %v4341, %v4333
    %v6942 = vpack.c.b16 %v4342, %v4334
    %v6943 = vpack.c.b16 %v4351, %v4343
    %v6944 = vpack.c.b16 %v4352, %v4344
    %v6945 = vpack.c.b16 %v4353, %v4345
    %v6946 = vpack.c.b16 %v4354, %v4346
    %v6947 = vpack.c.b16 %v4355, %v4347
    %v6948 = vpack.c.b16 %v4356, %v4348
    %v6949 = vpack.c.b16 %v4357, %v4349
    %v6950 = vpack.c.b16 %v4358, %v4350
    %v6951 = vpack.c.b16 %v4367, %v4359
    %v6952 = vpack.c.b16 %v4368, %v4360
    %v6953 = vpack.c.b16 %v4369, %v4361
    %v6954 = vpack.c.b16 %v4370, %v4362
    %v6955 = vpack.c.b16 %v4371, %v4363
    %v6956 = vpack.c.b16 %v4372, %v4364
    %v6957 = vpack.c.b16 %v4373, %v4365
    %v6958 = vpack.c.b16 %v4374, %v4366
    %v6959 = vpack.c.b16 %v4383, %v4375
    %v6960 = vpack.c.b16 %v4384, %v4376
    %v6961 = vpack.c.b16 %v4385, %v4377
    %v6962 = vpack.c.b16 %v4386, %v4378
    %v6963 = vpack.c.b16 %v4387, %v4379
    %v6964 = vpack.c.b16 %v4388, %v4380
    %v6965 = vpack.c.b16 %v4389, %v4381
    %v6966 = vpack.c.b16 %v4390, %v4382
    %v6967 = vpack.c.b16 %v4399, %v4391
    %v6968 = vpack.c.b16 %v4400, %v4392
    %v6969 = vpack.c.b16 %v4401, %v4393
    %v6970 = vpack.c.b16 %v4402, %v4394
    %v6971 = vpack.c.b16 %v4403, %v4395
    %v6972 = vpack.c.b16 %v4404, %v4396
    %v6973 = vpack.c.b16 %v4405, %v4397
    %v6974 = vpack.c.b16 %v4406, %v4398
    %v6975 = vpack.c.b16 %v4415, %v4407
    %v6976 = vpack.c.b16 %v4416, %v4408
    %v6977 = vpack.c.b16 %v4417, %v4409
    %v6978 = vpack.c.b16 %v4418, %v4410
    %v6979 = vpack.c.b16 %v4419, %v4411
    %v6980 = vpack.c.b16 %v4420, %v4412
    %v6981 = vpack.c.b16 %v4421, %v4413
    %v6982 = vpack.c.b16 %v4422, %v4414
    %v6983 = vpack.c.b16 %v4431, %v4423
    %v6984 = vpack.c.b16 %v4432, %v4424
    %v6985 = vpack.c.b16 %v4433, %v4425
    %v6986 = vpack.c.b16 %v4434, %v4426
    %v6987 = vpack.c.b16 %v4435, %v4427
    %v6988 = vpack.c.b16 %v4436, %v4428
    %v6989 = vpack.c.b16 %v4437, %v4429
    %v6990 = vpack.c.b16 %v4438, %v4430
    %v6991 = vpack.c.b16 %v4447, %v4439
    %v6992 = vpack.c.b16 %v4448, %v4440
    %v6993 = vpack.c.b16 %v4449, %v4441
    %v6994 = vpack.c.b16 %v4450, %v4442
    %v6995 = vpack.c.b16 %v4451, %v4443
    %v6996 = vpack.c.b16 %v4452, %v4444
    %v6997 = vpack.c.b16 %v4453, %v4445
    %v6998 = vpack.c.b16 %v4454, %v4446
    %v6999 = vpack.c.b16 %v4463, %v4455
    %v7000 = vpack.c.b16 %v4464, %v4456
    %v7001 = vpack.c.b16 %v4465, %v4457
    %v7002 = vpack.c.b16 %v4466, %v4458
    %v7003 = vpack.c.b16 %v4467, %v4459
    %v7004 = vpack.c.b16 %v4468, %v4460
    %v7005 = vpack.c.b16 %v4469, %v4461
    %v7006 = vpack.c.b16 %v4470, %v4462
    %v7007 = vpack.c.b16 %v4479, %v4471
    %v7008 = vpack.c.b16 %v4480, %v4472
    %v7009 = vpack.c.b16 %v4481, %v4473
    %v7010 = vpack.c.b16 %v4482, %v4474
    %v7011 = vpack.c.b16 %v4483, %v4475
    %v7012 = vpack.c.b16 %v4484, %v4476
    %v7013 = vpack.c.b16 %v4485, %v4477
    %v7014 = vpack.c.b16 %v4486, %v4478
    %v7015 = vpack.c.b16 %v4495, %v4487
    %v7016 = vpack.c.b16 %v4496, %v4488
    %v7017 = vpack.c.b16 %v4497, %v4489
    %v7018 = vpack.c.b16 %v4498, %v4490
    %v7019 = vpack.c.b16 %v4499, %v4491
    %v7020 = vpack.c.b16 %v4500, %v4492
    %v7021 = vpack.c.b16 %v4501, %v4493
    %v7022 = vpack.c.b16 %v4502, %v4494
    %v7023 = vpack.c.b16 %v4511, %v4503
    %v7024 = vpack.c.b16 %v4512, %v4504
    %v7025 = vpack.c.b16 %v4513, %v4505
    %v7026 = vpack.c.b16 %v4514, %v4506
    %v7027 = vpack.c.b16 %v4515, %v4507
    %v7028 = vpack.c.b16 %v4516, %v4508
    %v7029 = vpack.c.b16 %v4517, %v4509
    %v7030 = vpack.c.b16 %v4518, %v4510
    %v7031 = vpack.c.b16 %v4527, %v4519
    %v7032 = vpack.c.b16 %v4528, %v4520
    %v7033 = vpack.c.b16 %v4529, %v4521
    %v7034 = vpack.c.b16 %v4530, %v4522
    %v7035 = vpack.c.b16 %v4531, %v4523
    %v7036 = vpack.c.b16 %v4532, %v4524
    %v7037 = vpack.c.b16 %v4533, %v4525
    %v7038 = vpack.c.b16 %v4534, %v4526
    %v7039 = vpack.c.b16 %v4543, %v4535
    %v7040 = vpack.c.b16 %v4544, %v4536
    %v7041 = vpack.c.b16 %v4545, %v4537
    %v7042 = vpack.c.b16 %v4546, %v4538
    %v7043 = vpack.c.b16 %v4547, %v4539
    %v7044 = vpack.c.b16 %v4548, %v4540
    %v7045 = vpack.c.b16 %v4549, %v4541
    %v7046 = vpack.c.b16 %v4550, %v4542
    %v7047 = vpack.c.b16 %v4559, %v4551
    %v7048 = vpack.c.b16 %v4560, %v4552
    %v7049 = vpack.c.b16 %v4561, %v4553
    %v7050 = vpack.c.b16 %v4562, %v4554
    %v7051 = vpack.c.b16 %v4563, %v4555
    %v7052 = vpack.c.b16 %v4564, %v4556
    %v7053 = vpack.c.b16 %v4565, %v4557
    %v7054 = vpack.c.b16 %v4566, %v4558
    %v7055 = vpack.c.b16 %v4575, %v4567
    %v7056 = vpack.c.b16 %v4576, %v4568
    %v7057 = vpack.c.b16 %v4577, %v4569
    %v7058 = vpack.c.b16 %v4578, %v4570
    %v7059 = vpack.c.b16 %v4579, %v4571
    %v7060 = vpack.c.b16 %v4580, %v4572
    %v7061 = vpack.c.b16 %v4581, %v4573
    %v7062 = vpack.c.b16 %v4582, %v4574
    %v7063 = vpack.c.b16 %v4591, %v4583
    %v7064 = vpack.c.b16 %v4592, %v4584
    %v7065 = vpack.c.b16 %v4593, %v4585
    %v7066 = vpack.c.b16 %v4594, %v4586
    %v7067 = vpack.c.b16 %v4595, %v4587
    %v7068 = vpack.c.b16 %v4596, %v4588
    %v7069 = vpack.c.b16 %v4597, %v4589
    %v7070 = vpack.c.b16 %v4598, %v4590
    %v7071 = vpack.c.b16 %v4607, %v4599
    %v7072 = vpack.c.b16 %v4608, %v4600
    %v7073 = vpack.c.b16 %v4609, %v4601
    %v7074 = vpack.c.b16 %v4610, %v4602
    %v7075 = vpack.c.b16 %v4611, %v4603
    %v7076 = vpack.c.b16 %v4612, %v4604
    %v7077 = vpack.c.b16 %v4613, %v4605
    %v7078 = vpack.c.b16 %v4614, %v4606
    %v7079 = vpack.c.b16 %v4623, %v4615
    %v7080 = vpack.c.b16 %v4624, %v4616
    %v7081 = vpack.c.b16 %v4625, %v4617
    %v7082 = vpack.c.b16 %v4626, %v4618
    %v7083 = vpack.c.b16 %v4627, %v4619
    %v7084 = vpack.c.b16 %v4628, %v4620
    %v7085 = vpack.c.b16 %v4629, %v4621
    %v7086 = vpack.c.b16 %v4630, %v4622
    %v7087 = vpack.c.b16 %v4639, %v4631
    %v7088 = vpack.c.b16 %v4640, %v4632
    %v7089 = vpack.c.b16 %v4641, %v4633
    %v7090 = vpack.c.b16 %v4642, %v4634
    %v7091 = vpack.c.b16 %v4643, %v4635
    %v7092 = vpack.c.b16 %v4644, %v4636
    %v7093 = vpack.c.b16 %v4645, %v4637
    %v7094 = vpack.c.b16 %v4646, %v4638
    %v7095 = vpack.c.b16 %v4655, %v4647
    %v7096 = vpack.c.b16 %v4656, %v4648
    %v7097 = vpack.c.b16 %v4657, %v4649
    %v7098 = vpack.c.b16 %v4658, %v4650
    %v7099 = vpack.c.b16 %v4659, %v4651
    %v7100 = vpack.c.b16 %v4660, %v4652
    %v7101 = vpack.c.b16 %v4661, %v4653
    %v7102 = vpack.c.b16 %v4662, %v4654
    %v7103 = vpack.c.b16 %v4671, %v4663
    %v7104 = vpack.c.b16 %v4672, %v4664
    %v7105 = vpack.c.b16 %v4673, %v4665
    %v7106 = vpack.c.b16 %v4674, %v4666
    %v7107 = vpack.c.b16 %v4675, %v4667
    %v7108 = vpack.c.b16 %v4676, %v4668
    %v7109 = vpack.c.b16 %v4677, %v4669
    %v7110 = vpack.c.b16 %v4678, %v4670
    %v7111 = vpack.c.b16 %v4687, %v4679
    %v7112 = vpack.c.b16 %v4688, %v4680
    %v7113 = vpack.c.b16 %v4689, %v4681
    %v7114 = vpack.c.b16 %v4690, %v4682
    %v7115 = vpack.c.b16 %v4691, %v4683
    %v7116 = vpack.c.b16 %v4692, %v4684
    %v7117 = vpack.c.b16 %v4693, %v4685
    %v7118 = vpack.c.b16 %v4694, %v4686
    %v7119 = vpack.c.b16 %v4703, %v4695
    %v7120 = vpack.c.b16 %v4704, %v4696
    %v7121 = vpack.c.b16 %v4705, %v4697
    %v7122 = vpack.c.b16 %v4706, %v4698
    %v7123 = vpack.c.b16 %v4707, %v4699
    %v7124 = vpack.c.b16 %v4708, %v4700
    %v7125 = vpack.c.b16 %v4709, %v4701
    %v7126 = vpack.c.b16 %v4710, %v4702
    %v7127 = vpack.c.b16 %v4719, %v4711
    %v7128 = vpack.c.b16 %v4720, %v4712
    %v7129 = vpack.c.b16 %v4721, %v4713
    %v7130 = vpack.c.b16 %v4722, %v4714
    %v7131 = vpack.c.b16 %v4723, %v4715
    %v7132 = vpack.c.b16 %v4724, %v4716
    %v7133 = vpack.c.b16 %v4725, %v4717
    %v7134 = vpack.c.b16 %v4726, %v4718
    %v7135 = vpack.c.b16 %v4735, %v4727
    %v7136 = vpack.c.b16 %v4736, %v4728
    %v7137 = vpack.c.b16 %v4737, %v4729
    %v7138 = vpack.c.b16 %v4738, %v4730
    %v7139 = vpack.c.b16 %v4739, %v4731
    %v7140 = vpack.c.b16 %v4740, %v4732
    %v7141 = vpack.c.b16 %v4741, %v4733
    %v7142 = vpack.c.b16 %v4742, %v4734
    %v7143 = vpack.c.b16 %v4751, %v4743
    %v7144 = vpack.c.b16 %v4752, %v4744
    %v7145 = vpack.c.b16 %v4753, %v4745
    %v7146 = vpack.c.b16 %v4754, %v4746
    %v7147 = vpack.c.b16 %v4755, %v4747
    %v7148 = vpack.c.b16 %v4756, %v4748
    %v7149 = vpack.c.b16 %v4757, %v4749
    %v7150 = vpack.c.b16 %v4758, %v4750
    %v7151 = vpack.c.b16 %v4767, %v4759
    %v7152 = vpack.c.b16 %v4768, %v4760
    %v7153 = vpack.c.b16 %v4769, %v4761
    %v7154 = vpack.c.b16 %v4770, %v4762
    %v7155 = vpack.c.b16 %v4771, %v4763
    %v7156 = vpack.c.b16 %v4772, %v4764
    %v7157 = vpack.c.b16 %v4773, %v4765
    %v7158 = vpack.c.b16 %v4774, %v4766
    %v7159 = vpack.c.b16 %v4783, %v4775
    %v7160 = vpack.c.b16 %v4784, %v4776
    %v7161 = vpack.c.b16 %v4785, %v4777
    %v7162 = vpack.c.b16 %v4786, %v4778
    %v7163 = vpack.c.b16 %v4787, %v4779
    %v7164 = vpack.c.b16 %v4788, %v4780
    %v7165 = vpack.c.b16 %v4789, %v4781
    %v7166 = vpack.c.b16 %v4790, %v4782
    %v7167 = vpack.c.b16 %v4799, %v4791
    %v7168 = vpack.c.b16 %v4800, %v4792
    %v7169 = vpack.c.b16 %v4801, %v4793
    %v7170 = vpack.c.b16 %v4802, %v4794
    %v7171 = vpack.c.b16 %v4803, %v4795
    %v7172 = vpack.c.b16 %v4804, %v4796
    %v7173 = vpack.c.b16 %v4805, %v4797
    %v7174 = vpack.c.b16 %v4806, %v4798
    %v7175 = vpack.c.b16 %v4815, %v4807
    %v7176 = vpack.c.b16 %v4816, %v4808
    %v7177 = vpack.c.b16 %v4817, %v4809
    %v7178 = vpack.c.b16 %v4818, %v4810
    %v7179 = vpack.c.b16 %v4819, %v4811
    %v7180 = vpack.c.b16 %v4820, %v4812
    %v7181 = vpack.c.b16 %v4821, %v4813
    %v7182 = vpack.c.b16 %v4822, %v4814
    %v7183 = vpack.c.b16 %v4831, %v4823
    %v7184 = vpack.c.b16 %v4832, %v4824
    %v7185 = vpack.c.b16 %v4833, %v4825
    %v7186 = vpack.c.b16 %v4834, %v4826
    %v7187 = vpack.c.b16 %v4835, %v4827
    %v7188 = vpack.c.b16 %v4836, %v4828
    %v7189 = vpack.c.b16 %v4837, %v4829
    %v7190 = vpack.c.b16 %v4838, %v4830
    %v7191 = vpack.c.b16 %v4847, %v4839
    %v7192 = vpack.c.b16 %v4848, %v4840
    %v7193 = vpack.c.b16 %v4849, %v4841
    %v7194 = vpack.c.b16 %v4850, %v4842
    %v7195 = vpack.c.b16 %v4851, %v4843
    %v7196 = vpack.c.b16 %v4852, %v4844
    %v7197 = vpack.c.b16 %v4853, %v4845
    %v7198 = vpack.c.b16 %v4854, %v4846
    %v7199 = vpack.c.b16 %v4863, %v4855
    %v7200 = vpack.c.b16 %v4864, %v4856
    %v7201 = vpack.c.b16 %v4865, %v4857
    %v7202 = vpack.c.b16 %v4866, %v4858
    %v7203 = vpack.c.b16 %v4867, %v4859
    %v7204 = vpack.c.b16 %v4868, %v4860
    %v7205 = vpack.c.b16 %v4869, %v4861
    %v7206 = vpack.c.b16 %v4870, %v4862
    %v7207 = vpack.c.b16 %v4879, %v4871
    %v7208 = vpack.c.b16 %v4880, %v4872
    %v7209 = vpack.c.b16 %v4881, %v4873
    %v7210 = vpack.c.b16 %v4882, %v4874
    %v7211 = vpack.c.b16 %v4883, %v4875
    %v7212 = vpack.c.b16 %v4884, %v4876
    %v7213 = vpack.c.b16 %v4885, %v4877
    %v7214 = vpack.c.b16 %v4886, %v4878
    %v7215 = vpack.c.b16 %v4895, %v4887
    %v7216 = vpack.c.b16 %v4896, %v4888
    %v7217 = vpack.c.b16 %v4897, %v4889
    %v7218 = vpack.c.b16 %v4898, %v4890
    %v7219 = vpack.c.b16 %v4899, %v4891
    %v7220 = vpack.c.b16 %v4900, %v4892
    %v7221 = vpack.c.b16 %v4901, %v4893
    %v7222 = vpack.c.b16 %v4902, %v4894
    %v7223 = vpack.c.b16 %v4911, %v4903
    %v7224 = vpack.c.b16 %v4912, %v4904
    %v7225 = vpack.c.b16 %v4913, %v4905
    %v7226 = vpack.c.b16 %v4914, %v4906
    %v7227 = vpack.c.b16 %v4915, %v4907
    %v7228 = vpack.c.b16 %v4916, %v4908
    %v7229 = vpack.c.b16 %v4917, %v4909
    %v7230 = vpack.c.b16 %v4918, %v4910
    %v7231 = vpack.c.b16 %v4927, %v4919
    %v7232 = vpack.c.b16 %v4928, %v4920
    %v7233 = vpack.c.b16 %v4929, %v4921
    %v7234 = vpack.c.b16 %v4930, %v4922
    %v7235 = vpack.c.b16 %v4931, %v4923
    %v7236 = vpack.c.b16 %v4932, %v4924
    %v7237 = vpack.c.b16 %v4933, %v4925
    %v7238 = vpack.c.b16 %v4934, %v4926
    %v7239 = vpack.c.b16 %v4943, %v4935
    %v7240 = vpack.c.b16 %v4944, %v4936
    %v7241 = vpack.c.b16 %v4945, %v4937
    %v7242 = vpack.c.b16 %v4946, %v4938
    %v7243 = vpack.c.b16 %v4947, %v4939
    %v7244 = vpack.c.b16 %v4948, %v4940
    %v7245 = vpack.c.b16 %v4949, %v4941
    %v7246 = vpack.c.b16 %v4950, %v4942
    %v7247 = vpack.c.b16 %v4959, %v4951
    %v7248 = vpack.c.b16 %v4960, %v4952
    %v7249 = vpack.c.b16 %v4961, %v4953
    %v7250 = vpack.c.b16 %v4962, %v4954
    %v7251 = vpack.c.b16 %v4963, %v4955
    %v7252 = vpack.c.b16 %v4964, %v4956
    %v7253 = vpack.c.b16 %v4965, %v4957
    %v7254 = vpack.c.b16 %v4966, %v4958
    %v7255 = vpack.c.b16 %v4975, %v4967
    %v7256 = vpack.c.b16 %v4976, %v4968
    %v7257 = vpack.c.b16 %v4977, %v4969
    %v7258 = vpack.c.b16 %v4978, %v4970
    %v7259 = vpack.c.b16 %v4979, %v4971
    %v7260 = vpack.c.b16 %v4980, %v4972
    %v7261 = vpack.c.b16 %v4981, %v4973
    %v7262 = vpack.c.b16 %v4982, %v4974
    %v7263 = vpack.c.b16 %v4991, %v4983
    %v7264 = vpack.c.b16 %v4992, %v4984
    %v7265 = vpack.c.b16 %v4993, %v4985
    %v7266 = vpack.c.b16 %v4994, %v4986
    %v7267 = vpack.c.b16 %v4995, %v4987
    %v7268 = vpack.c.b16 %v4996, %v4988
    %v7269 = vpack.c.b16 %v4997, %v4989
    %v7270 = vpack.c.b16 %v4998, %v4990
    %v7271 = vpack.c.b16 %v5007, %v4999
    %v7272 = vpack.c.b16 %v5008, %v5000
    %v7273 = vpack.c.b16 %v5009, %v5001
    %v7274 = vpack.c.b16 %v5010, %v5002
    %v7275 = vpack.c.b16 %v5011, %v5003
    %v7276 = vpack.c.b16 %v5012, %v5004
    %v7277 = vpack.c.b16 %v5013, %v5005
    %v7278 = vpack.c.b16 %v5014, %v5006
    %v7279 = vpack.c.b16 %v5023, %v5015
    %v7280 = vpack.c.b16 %v5024, %v5016
    %v7281 = vpack.c.b16 %v5025, %v5017
    %v7282 = vpack.c.b16 %v5026, %v5018
    %v7283 = vpack.c.b16 %v5027, %v5019
    %v7284 = vpack.c.b16 %v5028, %v5020
    %v7285 = vpack.c.b16 %v5029, %v5021
    %v7286 = vpack.c.b16 %v5030, %v5022
    %v7287 = vpack.c.b16 %v5039, %v5031
    %v7288 = vpack.c.b16 %v5040, %v5032
    %v7289 = vpack.c.b16 %v5041, %v5033
    %v7290 = vpack.c.b16 %v5042, %v5034
    %v7291 = vpack.c.b16 %v5043, %v5035
    %v7292 = vpack.c.b16 %v5044, %v5036
    %v7293 = vpack.c.b16 %v5045, %v5037
    %v7294 = vpack.c.b16 %v5046, %v5038
    %v7295 = vpack.c.b16 %v5055, %v5047
    %v7296 = vpack.c.b16 %v5056, %v5048
    %v7297 = vpack.c.b16 %v5057, %v5049
    %v7298 = vpack.c.b16 %v5058, %v5050
    %v7299 = vpack.c.b16 %v5059, %v5051
    %v7300 = vpack.c.b16 %v5060, %v5052
    %v7301 = vpack.c.b16 %v5061, %v5053
    %v7302 = vpack.c.b16 %v5062, %v5054
    %v7303 = vpack.c.b16 %v5071, %v5063
    %v7304 = vpack.c.b16 %v5072, %v5064
    %v7305 = vpack.c.b16 %v5073, %v5065
    %v7306 = vpack.c.b16 %v5074, %v5066
    %v7307 = vpack.c.b16 %v5075, %v5067
    %v7308 = vpack.c.b16 %v5076, %v5068
    %v7309 = vpack.c.b16 %v5077, %v5069
    %v7310 = vpack.c.b16 %v5078, %v5070
    %v7311 = vpack.c.b16 %v5087, %v5079
    %v7312 = vpack.c.b16 %v5088, %v5080
    %v7313 = vpack.c.b16 %v5089, %v5081
    %v7314 = vpack.c.b16 %v5090, %v5082
    %v7315 = vpack.c.b16 %v5091, %v5083
    %v7316 = vpack.c.b16 %v5092, %v5084
    %v7317 = vpack.c.b16 %v5093, %v5085
    %v7318 = vpack.c.b16 %v5094, %v5086
    %v7319 = vpack.c.b16 %v5103, %v5095
    %v7320 = vpack.c.b16 %v5104, %v5096
    %v7321 = vpack.c.b16 %v5105, %v5097
    %v7322 = vpack.c.b16 %v5106, %v5098
    %v7323 = vpack.c.b16 %v5107, %v5099
    %v7324 = vpack.c.b16 %v5108, %v5100
    %v7325 = vpack.c.b16 %v5109, %v5101
    %v7326 = vpack.c.b16 %v5110, %v5102
    %v7327 = vpack.c.b16 %v5119, %v5111
    %v7328 = vpack.c.b16 %v5120, %v5112
    %v7329 = vpack.c.b16 %v5121, %v5113
    %v7330 = vpack.c.b16 %v5122, %v5114
    %v7331 = vpack.c.b16 %v5123, %v5115
    %v7332 = vpack.c.b16 %v5124, %v5116
    %v7333 = vpack.c.b16 %v5125, %v5117
    %v7334 = vpack.c.b16 %v5126, %v5118
    %v7335 = vpack.c.b16 %v5135, %v5127
    %v7336 = vpack.c.b16 %v5136, %v5128
    %v7337 = vpack.c.b16 %v5137, %v5129
    %v7338 = vpack.c.b16 %v5138, %v5130
    %v7339 = vpack.c.b16 %v5139, %v5131
    %v7340 = vpack.c.b16 %v5140, %v5132
    %v7341 = vpack.c.b16 %v5141, %v5133
    %v7342 = vpack.c.b16 %v5142, %v5134
    %v7343 = vpack.c.b16 %v5151, %v5143
    %v7344 = vpack.c.b16 %v5152, %v5144
    %v7345 = vpack.c.b16 %v5153, %v5145
    %v7346 = vpack.c.b16 %v5154, %v5146
    %v7347 = vpack.c.b16 %v5155, %v5147
    %v7348 = vpack.c.b16 %v5156, %v5148
    %v7349 = vpack.c.b16 %v5157, %v5149
    %v7350 = vpack.c.b16 %v5158, %v5150
    %v7351 = vpack.c.b16 %v5167, %v5159
    %v7352 = vpack.c.b16 %v5168, %v5160
    %v7353 = vpack.c.b16 %v5169, %v5161
    %v7354 = vpack.c.b16 %v5170, %v5162
    %v7355 = vpack.c.b16 %v5171, %v5163
    %v7356 = vpack.c.b16 %v5172, %v5164
    %v7357 = vpack.c.b16 %v5173, %v5165
    %v7358 = vpack.c.b16 %v5174, %v5166
    %v7359 = vpack.c.b16 %v5183, %v5175
    %v7360 = vpack.c.b16 %v5184, %v5176
    %v7361 = vpack.c.b16 %v5185, %v5177
    %v7362 = vpack.c.b16 %v5186, %v5178
    %v7363 = vpack.c.b16 %v5187, %v5179
    %v7364 = vpack.c.b16 %v5188, %v5180
    %v7365 = vpack.c.b16 %v5189, %v5181
    %v7366 = vpack.c.b16 %v5190, %v5182
    %v7367 = vpack.c.b16 %v5199, %v5191
    %v7368 = vpack.c.b16 %v5200, %v5192
    %v7369 = vpack.c.b16 %v5201, %v5193
    %v7370 = vpack.c.b16 %v5202, %v5194
    %v7371 = vpack.c.b16 %v5203, %v5195
    %v7372 = vpack.c.b16 %v5204, %v5196
    %v7373 = vpack.c.b16 %v5205, %v5197
    %v7374 = vpack.c.b16 %v5206, %v5198
    %v7375 = vpack.c.b16 %v5215, %v5207
    %v7376 = vpack.c.b16 %v5216, %v5208
    %v7377 = vpack.c.b16 %v5217, %v5209
    %v7378 = vpack.c.b16 %v5218, %v5210
    %v7379 = vpack.c.b16 %v5219, %v5211
    %v7380 = vpack.c.b16 %v5220, %v5212
    %v7381 = vpack.c.b16 %v5221, %v5213
    %v7382 = vpack.c.b16 %v5222, %v5214
    %v7383 = vpack.c.b16 %v5231, %v5223
    %v7384 = vpack.c.b16 %v5232, %v5224
    %v7385 = vpack.c.b16 %v5233, %v5225
    %v7386 = vpack.c.b16 %v5234, %v5226
    %v7387 = vpack.c.b16 %v5235, %v5227
    %v7388 = vpack.c.b16 %v5236, %v5228
    %v7389 = vpack.c.b16 %v5237, %v5229
    %v7390 = vpack.c.b16 %v5238, %v5230
    %v7391 = vpack.c.b16 %v5247, %v5239
    %v7392 = vpack.c.b16 %v5248, %v5240
    %v7393 = vpack.c.b16 %v5249, %v5241
    %v7394 = vpack.c.b16 %v5250, %v5242
    %v7395 = vpack.c.b16 %v5251, %v5243
    %v7396 = vpack.c.b16 %v5252, %v5244
    %v7397 = vpack.c.b16 %v5253, %v5245
    %v7398 = vpack.c.b16 %v5254, %v5246
    %v7399 = vpack.c.b16 %v5263, %v5255
    %v7400 = vpack.c.b16 %v5264, %v5256
    %v7401 = vpack.c.b16 %v5265, %v5257
    %v7402 = vpack.c.b16 %v5266, %v5258
    %v7403 = vpack.c.b16 %v5267, %v5259
    %v7404 = vpack.c.b16 %v5268, %v5260
    %v7405 = vpack.c.b16 %v5269, %v5261
    %v7406 = vpack.c.b16 %v5270, %v5262
    %v7407 = vpack.c.b16 %v5279, %v5271
    %v7408 = vpack.c.b16 %v5280, %v5272
    %v7409 = vpack.c.b16 %v5281, %v5273
    %v7410 = vpack.c.b16 %v5282, %v5274
    %v7411 = vpack.c.b16 %v5283, %v5275
    %v7412 = vpack.c.b16 %v5284, %v5276
    %v7413 = vpack.c.b16 %v5285, %v5277
    %v7414 = vpack.c.b16 %v5286, %v5278
    %v7415 = vpack.c.b16 %v5295, %v5287
    %v7416 = vpack.c.b16 %v5296, %v5288
    %v7417 = vpack.c.b16 %v5297, %v5289
    %v7418 = vpack.c.b16 %v5298, %v5290
    %v7419 = vpack.c.b16 %v5299, %v5291
    %v7420 = vpack.c.b16 %v5300, %v5292
    %v7421 = vpack.c.b16 %v5301, %v5293
    %v7422 = vpack.c.b16 %v5302, %v5294
    %v7423 = vpack.c.b16 %v5311, %v5303
    %v7424 = vpack.c.b16 %v5312, %v5304
    %v7425 = vpack.c.b16 %v5313, %v5305
    %v7426 = vpack.c.b16 %v5314, %v5306
    %v7427 = vpack.c.b16 %v5315, %v5307
    %v7428 = vpack.c.b16 %v5316, %v5308
    %v7429 = vpack.c.b16 %v5317, %v5309
    %v7430 = vpack.c.b16 %v5318, %v5310
    %v7431 = vpack.c.b16 %v5327, %v5319
    %v7432 = vpack.c.b16 %v5328, %v5320
    %v7433 = vpack.c.b16 %v5329, %v5321
    %v7434 = vpack.c.b16 %v5330, %v5322
    %v7435 = vpack.c.b16 %v5331, %v5323
    %v7436 = vpack.c.b16 %v5332, %v5324
    %v7437 = vpack.c.b16 %v5333, %v5325
    %v7438 = vpack.c.b16 %v5334, %v5326
    %v7439 = vpack.c.b16 %v5343, %v5335
    %v7440 = vpack.c.b16 %v5344, %v5336
    %v7441 = vpack.c.b16 %v5345, %v5337
    %v7442 = vpack.c.b16 %v5346, %v5338
    %v7443 = vpack.c.b16 %v5347, %v5339
    %v7444 = vpack.c.b16 %v5348, %v5340
    %v7445 = vpack.c.b16 %v5349, %v5341
    %v7446 = vpack.c.b16 %v5350, %v5342
    %v7447 = vpack.c.b16 %v5359, %v5351
    %v7448 = vpack.c.b16 %v5360, %v5352
    %v7449 = vpack.c.b16 %v5361, %v5353
    %v7450 = vpack.c.b16 %v5362, %v5354
    %v7451 = vpack.c.b16 %v5363, %v5355
    %v7452 = vpack.c.b16 %v5364, %v5356
    %v7453 = vpack.c.b16 %v5365, %v5357
    %v7454 = vpack.c.b16 %v5366, %v5358
    %v7455 = vpack.c.b16 %v5375, %v5367
    %v7456 = vpack.c.b16 %v5376, %v5368
    %v7457 = vpack.c.b16 %v5377, %v5369
    %v7458 = vpack.c.b16 %v5378, %v5370
    %v7459 = vpack.c.b16 %v5379, %v5371
    %v7460 = vpack.c.b16 %v5380, %v5372
    %v7461 = vpack.c.b16 %v5381, %v5373
    %v7462 = vpack.c.b16 %v5382, %v5374
    %v7463 = vpack.c.b16 %v5391, %v5383
    %v7464 = vpack.c.b16 %v5392, %v5384
    %v7465 = vpack.c.b16 %v5393, %v5385
    %v7466 = vpack.c.b16 %v5394, %v5386
    %v7467 = vpack.c.b16 %v5395, %v5387
    %v7468 = vpack.c.b16 %v5396, %v5388
    %v7469 = vpack.c.b16 %v5397, %v5389
    %v7470 = vpack.c.b16 %v5398, %v5390
    %v7471 = vpack.c.b16 %v5407, %v5399
    %v7472 = vpack.c.b16 %v5408, %v5400
    %v7473 = vpack.c.b16 %v5409, %v5401
    %v7474 = vpack.c.b16 %v5410, %v5402
    %v7475 = vpack.c.b16 %v5411, %v5403
    %v7476 = vpack.c.b16 %v5412, %v5404
    %v7477 = vpack.c.b16 %v5413, %v5405
    %v7478 = vpack.c.b16 %v5414, %v5406
    %v7479 = vpack.c.b16 %v5423, %v5415
    %v7480 = vpack.c.b16 %v5424, %v5416
    %v7481 = vpack.c.b16 %v5425, %v5417
    %v7482 = vpack.c.b16 %v5426, %v5418
    %v7483 = vpack.c.b16 %v5427, %v5419
    %v7484 = vpack.c.b16 %v5428, %v5420
    %v7485 = vpack.c.b16 %v5429, %v5421
    %v7486 = vpack.c.b16 %v5430, %v5422
    %v7487 = vpack.c.b16 %v5439, %v5431
    %v7488 = vpack.c.b16 %v5440, %v5432
    %v7489 = vpack.c.b16 %v5441, %v5433
    %v7490 = vpack.c.b16 %v5442, %v5434
    %v7491 = vpack.c.b16 %v5443, %v5435
    %v7492 = vpack.c.b16 %v5444, %v5436
    %v7493 = vpack.c.b16 %v5445, %v5437
    %v7494 = vpack.c.b16 %v5446, %v5438
    %v7495 = vpack.c.b16 %v5455, %v5447
    %v7496 = vpack.c.b16 %v5456, %v5448
    %v7497 = vpack.c.b16 %v5457, %v5449
    %v7498 = vpack.c.b16 %v5458, %v5450
    %v7499 = vpack.c.b16 %v5459, %v5451
    %v7500 = vpack.c.b16 %v5460, %v5452
    %v7501 = vpack.c.b16 %v5461, %v5453
    %v7502 = vpack.c.b16 %v5462, %v5454
    %v7503 = vpack.c.b16 %v5471, %v5463
    %v7504 = vpack.c.b16 %v5472, %v5464
    %v7505 = vpack.c.b16 %v5473, %v5465
    %v7506 = vpack.c.b16 %v5474, %v5466
    %v7507 = vpack.c.b16 %v5475, %v5467
    %v7508 = vpack.c.b16 %v5476, %v5468
    %v7509 = vpack.c.b16 %v5477, %v5469
    %v7510 = vpack.c.b16 %v5478, %v5470
    %v7511 = vpack.c.b16 %v5487, %v5479
    %v7512 = vpack.c.b16 %v5488, %v5480
    %v7513 = vpack.c.b16 %v5489, %v5481
    %v7514 = vpack.c.b16 %v5490, %v5482
    %v7515 = vpack.c.b16 %v5491, %v5483
    %v7516 = vpack.c.b16 %v5492, %v5484
    %v7517 = vpack.c.b16 %v5493, %v5485
    %v7518 = vpack.c.b16 %v5494, %v5486
    %v7519 = vpack.c.b16 %v5503, %v5495
    %v7520 = vpack.c.b16 %v5504, %v5496
    %v7521 = vpack.c.b16 %v5505, %v5497
    %v7522 = vpack.c.b16 %v5506, %v5498
    %v7523 = vpack.c.b16 %v5507, %v5499
    %v7524 = vpack.c.b16 %v5508, %v5500
    %v7525 = vpack.c.b16 %v5509, %v5501
    %v7526 = vpack.c.b16 %v5510, %v5502
    %v7527 = vpack.c.b16 %v5519, %v5511
    %v7528 = vpack.c.b16 %v5520, %v5512
    %v7529 = vpack.c.b16 %v5521, %v5513
    %v7530 = vpack.c.b16 %v5522, %v5514
    %v7531 = vpack.c.b16 %v5523, %v5515
    %v7532 = vpack.c.b16 %v5524, %v5516
    %v7533 = vpack.c.b16 %v5525, %v5517
    %v7534 = vpack.c.b16 %v5526, %v5518
    %v7535 = vpack.c.b16 %v5535, %v5527
    %v7536 = vpack.c.b16 %v5536, %v5528
    %v7537 = vpack.c.b16 %v5537, %v5529
    %v7538 = vpack.c.b16 %v5538, %v5530
    %v7539 = vpack.c.b16 %v5539, %v5531
    %v7540 = vpack.c.b16 %v5540, %v5532
    %v7541 = vpack.c.b16 %v5541, %v5533
    %v7542 = vpack.c.b16 %v5542, %v5534
    %v7543 = vpack.c.b16 %v5551, %v5543
    %v7544 = vpack.c.b16 %v5552, %v5544
    %v7545 = vpack.c.b16 %v5553, %v5545
    %v7546 = vpack.c.b16 %v5554, %v5546
    %v7547 = vpack.c.b16 %v5555, %v5547
    %v7548 = vpack.c.b16 %v5556, %v5548
    %v7549 = vpack.c.b16 %v5557, %v5549
    %v7550 = vpack.c.b16 %v5558, %v5550
    %v7551 = vpack.c.b16 %v5567, %v5559
    %v7552 = vpack.c.b16 %v5568, %v5560
    %v7553 = vpack.c.b16 %v5569, %v5561
    %v7554 = vpack.c.b16 %v5570, %v5562
    %v7555 = vpack.c.b16 %v5571, %v5563
    %v7556 = vpack.c.b16 %v5572, %v5564
    %v7557 = vpack.c.b16 %v5573, %v5565
    %v7558 = vpack.c.b16 %v5574, %v5566
    %v7559 = vpack.c.b16 %v5583, %v5575
    %v7560 = vpack.c.b16 %v5584, %v5576
    %v7561 = vpack.c.b16 %v5585, %v5577
    %v7562 = vpack.c.b16 %v5586, %v5578
    %v7563 = vpack.c.b16 %v5587, %v5579
    %v7564 = vpack.c.b16 %v5588, %v5580
    %v7565 = vpack.c.b16 %v5589, %v5581
    %v7566 = vpack.c.b16 %v5590, %v5582
    %v7567 = vpack.c.b16 %v5599, %v5591
    %v7568 = vpack.c.b16 %v5600, %v5592
    %v7569 = vpack.c.b16 %v5601, %v5593
    %v7570 = vpack.c.b16 %v5602, %v5594
    %v7571 = vpack.c.b16 %v5603, %v5595
    %v7572 = vpack.c.b16 %v5604, %v5596
    %v7573 = vpack.c.b16 %v5605, %v5597
    %v7574 = vpack.c.b16 %v5606, %v5598
    %v7575 = vpack.c.b16 %v5615, %v5607
    %v7576 = vpack.c.b16 %v5616, %v5608
    %v7577 = vpack.c.b16 %v5617, %v5609
    %v7578 = vpack.c.b16 %v5618, %v5610
    %v7579 = vpack.c.b16 %v5619, %v5611
    %v7580 = vpack.c.b16 %v5620, %v5612
    %v7581 = vpack.c.b16 %v5621, %v5613
    %v7582 = vpack.c.b16 %v5622, %v5614
    %v7583 = vpack.c.b16 %v5631, %v5623
    %v7584 = vpack.c.b16 %v5632, %v5624
    %v7585 = vpack.c.b16 %v5633, %v5625
    %v7586 = vpack.c.b16 %v5634, %v5626
    %v7587 = vpack.c.b16 %v5635, %v5627
    %v7588 = vpack.c.b16 %v5636, %v5628
    %v7589 = vpack.c.b16 %v5637, %v5629
    %v7590 = vpack.c.b16 %v5638, %v5630
    %v7591 = vpack.c.b16 %v5647, %v5639
    %v7592 = vpack.c.b16 %v5648, %v5640
    %v7593 = vpack.c.b16 %v5649, %v5641
    %v7594 = vpack.c.b16 %v5650, %v5642
    %v7595 = vpack.c.b16 %v5651, %v5643
    %v7596 = vpack.c.b16 %v5652, %v5644
    %v7597 = vpack.c.b16 %v5653, %v5645
    %v7598 = vpack.c.b16 %v5654, %v5646
    %v7599 = vpack.c.b16 %v5663, %v5655
    %v7600 = vpack.c.b16 %v5664, %v5656
    %v7601 = vpack.c.b16 %v5665, %v5657
    %v7602 = vpack.c.b16 %v5666, %v5658
    %v7603 = vpack.c.b16 %v5667, %v5659
    %v7604 = vpack.c.b16 %v5668, %v5660
    %v7605 = vpack.c.b16 %v5669, %v5661
    %v7606 = vpack.c.b16 %v5670, %v5662
    %v7607 = vpack.c.b16 %v5679, %v5671
    %v7608 = vpack.c.b16 %v5680, %v5672
    %v7609 = vpack.c.b16 %v5681, %v5673
    %v7610 = vpack.c.b16 %v5682, %v5674
    %v7611 = vpack.c.b16 %v5683, %v5675
    %v7612 = vpack.c.b16 %v5684, %v5676
    %v7613 = vpack.c.b16 %v5685, %v5677
    %v7614 = vpack.c.b16 %v5686, %v5678
    %v7615 = vpack.c.b16 %v5695, %v5687
    %v7616 = vpack.c.b16 %v5696, %v5688
    %v7617 = vpack.c.b16 %v5697, %v5689
    %v7618 = vpack.c.b16 %v5698, %v5690
    %v7619 = vpack.c.b16 %v5699, %v5691
    %v7620 = vpack.c.b16 %v5700, %v5692
    %v7621 = vpack.c.b16 %v5701, %v5693
    %v7622 = vpack.c.b16 %v5702, %v5694
    %v7623 = vpack.c.b16 %v5711, %v5703
    %v7624 = vpack.c.b16 %v5712, %v5704
    %v7625 = vpack.c.b16 %v5713, %v5705
    %v7626 = vpack.c.b16 %v5714, %v5706
    %v7627 = vpack.c.b16 %v5715, %v5707
    %v7628 = vpack.c.b16 %v5716, %v5708
    %v7629 = vpack.c.b16 %v5717, %v5709
    %v7630 = vpack.c.b16 %v5718, %v5710
    %v7631 = vpack.c.b16 %v5727, %v5719
    %v7632 = vpack.c.b16 %v5728, %v5720
    %v7633 = vpack.c.b16 %v5729, %v5721
    %v7634 = vpack.c.b16 %v5730, %v5722
    %v7635 = vpack.c.b16 %v5731, %v5723
    %v7636 = vpack.c.b16 %v5732, %v5724
    %v7637 = vpack.c.b16 %v5733, %v5725
    %v7638 = vpack.c.b16 %v5734, %v5726
    %v7639 = vpack.c.b16 %v5743, %v5735
    %v7640 = vpack.c.b16 %v5744, %v5736
    %v7641 = vpack.c.b16 %v5745, %v5737
    %v7642 = vpack.c.b16 %v5746, %v5738
    %v7643 = vpack.c.b16 %v5747, %v5739
    %v7644 = vpack.c.b16 %v5748, %v5740
    %v7645 = vpack.c.b16 %v5749, %v5741
    %v7646 = vpack.c.b16 %v5750, %v5742
    %v7647 = vpack.c.b16 %v5759, %v5751
    %v7648 = vpack.c.b16 %v5760, %v5752
    %v7649 = vpack.c.b16 %v5761, %v5753
    %v7650 = vpack.c.b16 %v5762, %v5754
    %v7651 = vpack.c.b16 %v5763, %v5755
    %v7652 = vpack.c.b16 %v5764, %v5756
    %v7653 = vpack.c.b16 %v5765, %v5757
    %v7654 = vpack.c.b16 %v5766, %v5758
    %v7655 = vpack.c.b16 %v5775, %v5767
    %v7656 = vpack.c.b16 %v5776, %v5768
    %v7657 = vpack.c.b16 %v5777, %v5769
    %v7658 = vpack.c.b16 %v5778, %v5770
    %v7659 = vpack.c.b16 %v5779, %v5771
    %v7660 = vpack.c.b16 %v5780, %v5772
    %v7661 = vpack.c.b16 %v5781, %v5773
    %v7662 = vpack.c.b16 %v5782, %v5774
    %v7663 = vpack.c.b16 %v5791, %v5783
    %v7664 = vpack.c.b16 %v5792, %v5784
    %v7665 = vpack.c.b16 %v5793, %v5785
    %v7666 = vpack.c.b16 %v5794, %v5786
    %v7667 = vpack.c.b16 %v5795, %v5787
    %v7668 = vpack.c.b16 %v5796, %v5788
    %v7669 = vpack.c.b16 %v5797, %v5789
    %v7670 = vpack.c.b16 %v5798, %v5790
    %v7671 = vpack.c.b16 %v5807, %v5799
    %v7672 = vpack.c.b16 %v5808, %v5800
    %v7673 = vpack.c.b16 %v5809, %v5801
    %v7674 = vpack.c.b16 %v5810, %v5802
    %v7675 = vpack.c.b16 %v5811, %v5803
    %v7676 = vpack.c.b16 %v5812, %v5804
    %v7677 = vpack.c.b16 %v5813, %v5805
    %v7678 = vpack.c.b16 %v5814, %v5806
    %v7679 = vpack.c.b16 %v5823, %v5815
    %v7680 = vpack.c.b16 %v5824, %v5816
    %v7681 = vpack.c.b16 %v5825, %v5817
    %v7682 = vpack.c.b16 %v5826, %v5818
    %v7683 = vpack.c.b16 %v5827, %v5819
    %v7684 = vpack.c.b16 %v5828, %v5820
    %v7685 = vpack.c.b16 %v5829, %v5821
    %v7686 = vpack.c.b16 %v5830, %v5822
    %v7687 = vpack.c.b16 %v5839, %v5831
    %v7688 = vpack.c.b16 %v5840, %v5832
    %v7689 = vpack.c.b16 %v5841, %v5833
    %v7690 = vpack.c.b16 %v5842, %v5834
    %v7691 = vpack.c.b16 %v5843, %v5835
    %v7692 = vpack.c.b16 %v5844, %v5836
    %v7693 = vpack.c.b16 %v5845, %v5837
    %v7694 = vpack.c.b16 %v5846, %v5838
    %v7695 = vpack.c.b16 %v5855, %v5847
    %v7696 = vpack.c.b16 %v5856, %v5848
    %v7697 = vpack.c.b16 %v5857, %v5849
    %v7698 = vpack.c.b16 %v5858, %v5850
    %v7699 = vpack.c.b16 %v5859, %v5851
    %v7700 = vpack.c.b16 %v5860, %v5852
    %v7701 = vpack.c.b16 %v5861, %v5853
    %v7702 = vpack.c.b16 %v5862, %v5854
    %v7703 = vpack.c.b16 %v5871, %v5863
    %v7704 = vpack.c.b16 %v5872, %v5864
    %v7705 = vpack.c.b16 %v5873, %v5865
    %v7706 = vpack.c.b16 %v5874, %v5866
    %v7707 = vpack.c.b16 %v5875, %v5867
    %v7708 = vpack.c.b16 %v5876, %v5868
    %v7709 = vpack.c.b16 %v5877, %v5869
    %v7710 = vpack.c.b16 %v5878, %v5870
    %v7711 = vpack.c.b16 %v5887, %v5879
    %v7712 = vpack.c.b16 %v5888, %v5880
    %v7713 = vpack.c.b16 %v5889, %v5881
    %v7714 = vpack.c.b16 %v5890, %v5882
    %v7715 = vpack.c.b16 %v5891, %v5883
    %v7716 = vpack.c.b16 %v5892, %v5884
    %v7717 = vpack.c.b16 %v5893, %v5885
    %v7718 = vpack.c.b16 %v5894, %v5886
    %v7719 = vpack.c.b16 %v5903, %v5895
    %v7720 = vpack.c.b16 %v5904, %v5896
    %v7721 = vpack.c.b16 %v5905, %v5897
    %v7722 = vpack.c.b16 %v5906, %v5898
    %v7723 = vpack.c.b16 %v5907, %v5899
    %v7724 = vpack.c.b16 %v5908, %v5900
    %v7725 = vpack.c.b16 %v5909, %v5901
    %v7726 = vpack.c.b16 %v5910, %v5902
    %v7727 = vpack.c.b16 %v5919, %v5911
    %v7728 = vpack.c.b16 %v5920, %v5912
    %v7729 = vpack.c.b16 %v5921, %v5913
    %v7730 = vpack.c.b16 %v5922, %v5914
    %v7731 = vpack.c.b16 %v5923, %v5915
    %v7732 = vpack.c.b16 %v5924, %v5916
    %v7733 = vpack.c.b16 %v5925, %v5917
    %v7734 = vpack.c.b16 %v5926, %v5918
    %v7735 = vpack.c.b16 %v5935, %v5927
    %v7736 = vpack.c.b16 %v5936, %v5928
    %v7737 = vpack.c.b16 %v5937, %v5929
    %v7738 = vpack.c.b16 %v5938, %v5930
    %v7739 = vpack.c.b16 %v5939, %v5931
    %v7740 = vpack.c.b16 %v5940, %v5932
    %v7741 = vpack.c.b16 %v5941, %v5933
    %v7742 = vpack.c.b16 %v5942, %v5934
    %v7743 = vpack.c.b16 %v5951, %v5943
    %v7744 = vpack.c.b16 %v5952, %v5944
    %v7745 = vpack.c.b16 %v5953, %v5945
    %v7746 = vpack.c.b16 %v5954, %v5946
    %v7747 = vpack.c.b16 %v5955, %v5947
    %v7748 = vpack.c.b16 %v5956, %v5948
    %v7749 = vpack.c.b16 %v5957, %v5949
    %v7750 = vpack.c.b16 %v5958, %v5950
    %v7751 = vpack.c.b16 %v5967, %v5959
    %v7752 = vpack.c.b16 %v5968, %v5960
    %v7753 = vpack.c.b16 %v5969, %v5961
    %v7754 = vpack.c.b16 %v5970, %v5962
    %v7755 = vpack.c.b16 %v5971, %v5963
    %v7756 = vpack.c.b16 %v5972, %v5964
    %v7757 = vpack.c.b16 %v5973, %v5965
    %v7758 = vpack.c.b16 %v5974, %v5966
    %v7759 = vpack.c.b16 %v5983, %v5975
    %v7760 = vpack.c.b16 %v5984, %v5976
    %v7761 = vpack.c.b16 %v5985, %v5977
    %v7762 = vpack.c.b16 %v5986, %v5978
    %v7763 = vpack.c.b16 %v5987, %v5979
    %v7764 = vpack.c.b16 %v5988, %v5980
    %v7765 = vpack.c.b16 %v5989, %v5981
    %v7766 = vpack.c.b16 %v5990, %v5982
    %v7767 = vpack.c.b16 %v5999, %v5991
    %v7768 = vpack.c.b16 %v6000, %v5992
    %v7769 = vpack.c.b16 %v6001, %v5993
    %v7770 = vpack.c.b16 %v6002, %v5994
    %v7771 = vpack.c.b16 %v6003, %v5995
    %v7772 = vpack.c.b16 %v6004, %v5996
    %v7773 = vpack.c.b16 %v6005, %v5997
    %v7774 = vpack.c.b16 %v6006, %v5998
    %v7775 = vpack.c.b16 %v6015, %v6007
    %v7776 = vpack.c.b16 %v6016, %v6008
    %v7777 = vpack.c.b16 %v6017, %v6009
    %v7778 = vpack.c.b16 %v6018, %v6010
    %v7779 = vpack.c.b16 %v6019, %v6011
    %v7780 = vpack.c.b16 %v6020, %v6012
    %v7781 = vpack.c.b16 %v6021, %v6013
    %v7782 = vpack.c.b16 %v6022, %v6014
    %v7783 = vpack.c.b16 %v6031, %v6023
    %v7784 = vpack.c.b16 %v6032, %v6024
    %v7785 = vpack.c.b16 %v6033, %v6025
    %v7786 = vpack.c.b16 %v6034, %v6026
    %v7787 = vpack.c.b16 %v6035, %v6027
    %v7788 = vpack.c.b16 %v6036, %v6028
    %v7789 = vpack.c.b16 %v6037, %v6029
    %v7790 = vpack.c.b16 %v6038, %v6030
    %v7791 = vpack.c.b16 %v6047, %v6039
    %v7792 = vpack.c.b16 %v6048, %v6040
    %v7793 = vpack.c.b16 %v6049, %v6041
    %v7794 = vpack.c.b16 %v6050, %v6042
    %v7795 = vpack.c.b16 %v6051, %v6043
    %v7796 = vpack.c.b16 %v6052, %v6044
    %v7797 = vpack.c.b16 %v6053, %v6045
    %v7798 = vpack.c.b16 %v6054, %v6046
    %v7799 = vpack.c.b16 %v6063, %v6055
    %v7800 = vpack.c.b16 %v6064, %v6056
    %v7801 = vpack.c.b16 %v6065, %v6057
    %v7802 = vpack.c.b16 %v6066, %v6058
    %v7803 = vpack.c.b16 %v6067, %v6059
    %v7804 = vpack.c.b16 %v6068, %v6060
    %v7805 = vpack.c.b16 %v6069, %v6061
    %v7806 = vpack.c.b16 %v6070, %v6062
    %v7807 = vpack.c.b16 %v6079, %v6071
    %v7808 = vpack.c.b16 %v6080, %v6072
    %v7809 = vpack.c.b16 %v6081, %v6073
    %v7810 = vpack.c.b16 %v6082, %v6074
    %v7811 = vpack.c.b16 %v6083, %v6075
    %v7812 = vpack.c.b16 %v6084, %v6076
    %v7813 = vpack.c.b16 %v6085, %v6077
    %v7814 = vpack.c.b16 %v6086, %v6078
    %v7815 = vpack.c.b16 %v6095, %v6087
    %v7816 = vpack.c.b16 %v6096, %v6088
    %v7817 = vpack.c.b16 %v6097, %v6089
    %v7818 = vpack.c.b16 %v6098, %v6090
    %v7819 = vpack.c.b16 %v6099, %v6091
    %v7820 = vpack.c.b16 %v6100, %v6092
    %v7821 = vpack.c.b16 %v6101, %v6093
    %v7822 = vpack.c.b16 %v6102, %v6094
    %v7823 = vpack.c.b16 %v6111, %v6103
    %v7824 = vpack.c.b16 %v6112, %v6104
    %v7825 = vpack.c.b16 %v6113, %v6105
    %v7826 = vpack.c.b16 %v6114, %v6106
    %v7827 = vpack.c.b16 %v6115, %v6107
    %v7828 = vpack.c.b16 %v6116, %v6108
    %v7829 = vpack.c.b16 %v6117, %v6109
    %v7830 = vpack.c.b16 %v6118, %v6110
    %v7831 = vpack.c.b16 %v6127, %v6119
    %v7832 = vpack.c.b16 %v6128, %v6120
    %v7833 = vpack.c.b16 %v6129, %v6121
    %v7834 = vpack.c.b16 %v6130, %v6122
    %v7835 = vpack.c.b16 %v6131, %v6123
    %v7836 = vpack.c.b16 %v6132, %v6124
    %v7837 = vpack.c.b16 %v6133, %v6125
    %v7838 = vpack.c.b16 %v6134, %v6126
    %v7839 = vpack.c.b16 %v6143, %v6135
    %v7840 = vpack.c.b16 %v6144, %v6136
    %v7841 = vpack.c.b16 %v6145, %v6137
    %v7842 = vpack.c.b16 %v6146, %v6138
    %v7843 = vpack.c.b16 %v6147, %v6139
    %v7844 = vpack.c.b16 %v6148, %v6140
    %v7845 = vpack.c.b16 %v6149, %v6141
    %v7846 = vpack.c.b16 %v6150, %v6142
    %v7847 = vpack.c.b16 %v6159, %v6151
    %v7848 = vpack.c.b16 %v6160, %v6152
    %v7849 = vpack.c.b16 %v6161, %v6153
    %v7850 = vpack.c.b16 %v6162, %v6154
    %v7851 = vpack.c.b16 %v6163, %v6155
    %v7852 = vpack.c.b16 %v6164, %v6156
    %v7853 = vpack.c.b16 %v6165, %v6157
    %v7854 = vpack.c.b16 %v6166, %v6158
    %v7855 = vpack.c.b16 %v6175, %v6167
    %v7856 = vpack.c.b16 %v6176, %v6168
    %v7857 = vpack.c.b16 %v6177, %v6169
    %v7858 = vpack.c.b16 %v6178, %v6170
    %v7859 = vpack.c.b16 %v6179, %v6171
    %v7860 = vpack.c.b16 %v6180, %v6172
    %v7861 = vpack.c.b16 %v6181, %v6173
    %v7862 = vpack.c.b16 %v6182, %v6174
    %v7863 = vpack.c.b16 %v6191, %v6183
    %v7864 = vpack.c.b16 %v6192, %v6184
    %v7865 = vpack.c.b16 %v6193, %v6185
    %v7866 = vpack.c.b16 %v6194, %v6186
    %v7867 = vpack.c.b16 %v6195, %v6187
    %v7868 = vpack.c.b16 %v6196, %v6188
    %v7869 = vpack.c.b16 %v6197, %v6189
    %v7870 = vpack.c.b16 %v6198, %v6190
    %v7871 = vpack.c.b16 %v6207, %v6199
    %v7872 = vpack.c.b16 %v6208, %v6200
    %v7873 = vpack.c.b16 %v6209, %v6201
    %v7874 = vpack.c.b16 %v6210, %v6202
    %v7875 = vpack.c.b16 %v6211, %v6203
    %v7876 = vpack.c.b16 %v6212, %v6204
    %v7877 = vpack.c.b16 %v6213, %v6205
    %v7878 = vpack.c.b16 %v6214, %v6206
    %v7879 = vpack.c.b16 %v6223, %v6215
    %v7880 = vpack.c.b16 %v6224, %v6216
    %v7881 = vpack.c.b16 %v6225, %v6217
    %v7882 = vpack.c.b16 %v6226, %v6218
    %v7883 = vpack.c.b16 %v6227, %v6219
    %v7884 = vpack.c.b16 %v6228, %v6220
    %v7885 = vpack.c.b16 %v6229, %v6221
    %v7886 = vpack.c.b16 %v6230, %v6222
    %v7887 = vpack.c.b16 %v6239, %v6231
    %v7888 = vpack.c.b16 %v6240, %v6232
    %v7889 = vpack.c.b16 %v6241, %v6233
    %v7890 = vpack.c.b16 %v6242, %v6234
    %v7891 = vpack.c.b16 %v6243, %v6235
    %v7892 = vpack.c.b16 %v6244, %v6236
    %v7893 = vpack.c.b16 %v6245, %v6237
    %v7894 = vpack.c.b16 %v6246, %v6238
    %v7895 = vpack.c.b16 %v6255, %v6247
    %v7896 = vpack.c.b16 %v6256, %v6248
    %v7897 = vpack.c.b16 %v6257, %v6249
    %v7898 = vpack.c.b16 %v6258, %v6250
    %v7899 = vpack.c.b16 %v6259, %v6251
    %v7900 = vpack.c.b16 %v6260, %v6252
    %v7901 = vpack.c.b16 %v6261, %v6253
    %v7902 = vpack.c.b16 %v6262, %v6254
    %v7903 = vpack.c.b16 %v6271, %v6263
    %v7904 = vpack.c.b16 %v6272, %v6264
    %v7905 = vpack.c.b16 %v6273, %v6265
    %v7906 = vpack.c.b16 %v6274, %v6266
    %v7907 = vpack.c.b16 %v6275, %v6267
    %v7908 = vpack.c.b16 %v6276, %v6268
    %v7909 = vpack.c.b16 %v6277, %v6269
    %v7910 = vpack.c.b16 %v6278, %v6270
    %v7911 = vpack.c.b16 %v6287, %v6279
    %v7912 = vpack.c.b16 %v6288, %v6280
    %v7913 = vpack.c.b16 %v6289, %v6281
    %v7914 = vpack.c.b16 %v6290, %v6282
    %v7915 = vpack.c.b16 %v6291, %v6283
    %v7916 = vpack.c.b16 %v6292, %v6284
    %v7917 = vpack.c.b16 %v6293, %v6285
    %v7918 = vpack.c.b16 %v6294, %v6286
    %v7919 = vpack.c.b16 %v6303, %v6295
    %v7920 = vpack.c.b16 %v6304, %v6296
    %v7921 = vpack.c.b16 %v6305, %v6297
    %v7922 = vpack.c.b16 %v6306, %v6298
    %v7923 = vpack.c.b16 %v6307, %v6299
    %v7924 = vpack.c.b16 %v6308, %v6300
    %v7925 = vpack.c.b16 %v6309, %v6301
    %v7926 = vpack.c.b16 %v6310, %v6302
    %v7927 = vpack.c.b16 %v6319, %v6311
    %v7928 = vpack.c.b16 %v6320, %v6312
    %v7929 = vpack.c.b16 %v6321, %v6313
    %v7930 = vpack.c.b16 %v6322, %v6314
    %v7931 = vpack.c.b16 %v6323, %v6315
    %v7932 = vpack.c.b16 %v6324, %v6316
    %v7933 = vpack.c.b16 %v6325, %v6317
    %v7934 = vpack.c.b16 %v6326, %v6318
    %v7935 = vpack.c.b16 %v6335, %v6327
    %v7936 = vpack.c.b16 %v6336, %v6328
    %v7937 = vpack.c.b16 %v6337, %v6329
    %v7938 = vpack.c.b16 %v6338, %v6330
    %v7939 = vpack.c.b16 %v6339, %v6331
    %v7940 = vpack.c.b16 %v6340, %v6332
    %v7941 = vpack.c.b16 %v6341, %v6333
    %v7942 = vpack.c.b16 %v6342, %v6334
    %v7943 = vpack.c.b16 %v6351, %v6343
    %v7944 = vpack.c.b16 %v6352, %v6344
    %v7945 = vpack.c.b16 %v6353, %v6345
    %v7946 = vpack.c.b16 %v6354, %v6346
    %v7947 = vpack.c.b16 %v6355, %v6347
    %v7948 = vpack.c.b16 %v6356, %v6348
    %v7949 = vpack.c.b16 %v6357, %v6349
    %v7950 = vpack.c.b16 %v6358, %v6350
    %v7951 = vpack.c.b16 %v6367, %v6359
    %v7952 = vpack.c.b16 %v6368, %v6360
    %v7953 = vpack.c.b16 %v6369, %v6361
    %v7954 = vpack.c.b16 %v6370, %v6362
    %v7955 = vpack.c.b16 %v6371, %v6363
    %v7956 = vpack.c.b16 %v6372, %v6364
    %v7957 = vpack.c.b16 %v6373, %v6365
    %v7958 = vpack.c.b16 %v6374, %v6366
    %v7959 = vpack.c.b16 %v6383, %v6375
    %v7960 = vpack.c.b16 %v6384, %v6376
    %v7961 = vpack.c.b16 %v6385, %v6377
    %v7962 = vpack.c.b16 %v6386, %v6378
    %v7963 = vpack.c.b16 %v6387, %v6379
    %v7964 = vpack.c.b16 %v6388, %v6380
    %v7965 = vpack.c.b16 %v6389, %v6381
    %v7966 = vpack.c.b16 %v6390, %v6382
    %v7967 = vpack.c.b16 %v6399, %v6391
    %v7968 = vpack.c.b16 %v6400, %v6392
    %v7969 = vpack.c.b16 %v6401, %v6393
    %v7970 = vpack.c.b16 %v6402, %v6394
    %v7971 = vpack.c.b16 %v6403, %v6395
    %v7972 = vpack.c.b16 %v6404, %v6396
    %v7973 = vpack.c.b16 %v6405, %v6397
    %v7974 = vpack.c.b16 %v6406, %v6398
    %v7975 = vpack.c.b16 %v6415, %v6407
    %v7976 = vpack.c.b16 %v6416, %v6408
    %v7977 = vpack.c.b16 %v6417, %v6409
    %v7978 = vpack.c.b16 %v6418, %v6410
    %v7979 = vpack.c.b16 %v6419, %v6411
    %v7980 = vpack.c.b16 %v6420, %v6412
    %v7981 = vpack.c.b16 %v6421, %v6413
    %v7982 = vpack.c.b16 %v6422, %v6414
    %v7983 = vpack.c.b16 %v6431, %v6423
    %v7984 = vpack.c.b16 %v6432, %v6424
    %v7985 = vpack.c.b16 %v6433, %v6425
    %v7986 = vpack.c.b16 %v6434, %v6426
    %v7987 = vpack.c.b16 %v6435, %v6427
    %v7988 = vpack.c.b16 %v6436, %v6428
    %v7989 = vpack.c.b16 %v6437, %v6429
    %v7990 = vpack.c.b16 %v6438, %v6430
    %v7991 = vpack.c.b16 %v6447, %v6439
    %v7992 = vpack.c.b16 %v6448, %v6440
    %v7993 = vpack.c.b16 %v6449, %v6441
    %v7994 = vpack.c.b16 %v6450, %v6442
    %v7995 = vpack.c.b16 %v6451, %v6443
    %v7996 = vpack.c.b16 %v6452, %v6444
    %v7997 = vpack.c.b16 %v6453, %v6445
    %v7998 = vpack.c.b16 %v6454, %v6446
    %v7999 = vpack.c.b16 %v6463, %v6455
    %v8000 = vpack.c.b16 %v6464, %v6456
    %v8001 = vpack.c.b16 %v6465, %v6457
    %v8002 = vpack.c.b16 %v6466, %v6458
    %v8003 = vpack.c.b16 %v6467, %v6459
    %v8004 = vpack.c.b16 %v6468, %v6460
    %v8005 = vpack.c.b16 %v6469, %v6461
    %v8006 = vpack.c.b16 %v6470, %v6462
    %9543 = vmatpush.bf16.msra.mxu0 %v6527
    %9544 = vmatpush.bf16.msra.mxu0 %v6519
    %9545 = vmatpush.bf16.msra.mxu0 %v6511
    %9546 = vmatpush.bf16.msra.mxu0 %v6503
    %9547 = vmatpush.bf16.msra.mxu0 %v6495
    %9548 = vmatpush.bf16.msra.mxu0 %v6487
    %9549 = vmatpush.bf16.msra.mxu0 %v6479
    %9550 = vmatpush.bf16.msra.mxu0 %v6471
    %9551 = vmatmul.bf16.gmra.mxu0 %v1815
    %v9552 = vpop.f32.mrf.mxu0
    %v9553 = vadd.f32 %v1727, %v9552
    %v9554 = vpop.f32.mrf.mxu0
    %v9555 = vadd.f32 %v1727, %v9554
    %9556 = vdwg.mxu0
    %9557 = vmatpush.bf16.msra.mxu0 %v6591
    %9558 = vmatpush.bf16.msra.mxu0 %v6583
    %9559 = vmatpush.bf16.msra.mxu0 %v6575
    %9560 = vmatpush.bf16.msra.mxu0 %v6567
    %9561 = vmatpush.bf16.msra.mxu0 %v6559
    %9562 = vmatpush.bf16.msra.mxu0 %v6551
    %9563 = vmatpush.bf16.msra.mxu0 %v6543
    %9564 = vmatpush.bf16.msra.mxu0 %v6535
    %9565 = vmatmul.bf16.gmra.mxu0 %v1816
    %v9566 = vpop.f32.mrf.mxu0
    %v9567 = vadd.f32 %v9553, %v9566
    %v9568 = vpop.f32.mrf.mxu0
    %v9569 = vadd.f32 %v9555, %v9568
    %9570 = vdwg.mxu0
    %9571 = vmatpush.bf16.msra.mxu0 %v6655
    %9572 = vmatpush.bf16.msra.mxu0 %v6647
    %9573 = vmatpush.bf16.msra.mxu0 %v6639
    %9574 = vmatpush.bf16.msra.mxu0 %v6631
    %9575 = vmatpush.bf16.msra.mxu0 %v6623
    %9576 = vmatpush.bf16.msra.mxu0 %v6615
    %9577 = vmatpush.bf16.msra.mxu0 %v6607
    %9578 = vmatpush.bf16.msra.mxu0 %v6599
    %9579 = vmatmul.bf16.gmra.mxu0 %v1817
    %v9580 = vpop.f32.mrf.mxu0
    %v9581 = vadd.f32 %v9567, %v9580
    %v9582 = vpop.f32.mrf.mxu0
    %v9583 = vadd.f32 %v9569, %v9582
    %9584 = vdwg.mxu0
    %9585 = vmatpush.bf16.msra.mxu0 %v6719
    %9586 = vmatpush.bf16.msra.mxu0 %v6711
    %9587 = vmatpush.bf16.msra.mxu0 %v6703
    %9588 = vmatpush.bf16.msra.mxu0 %v6695
    %9589 = vmatpush.bf16.msra.mxu0 %v6687
    %9590 = vmatpush.bf16.msra.mxu0 %v6679
    %9591 = vmatpush.bf16.msra.mxu0 %v6671
    %9592 = vmatpush.bf16.msra.mxu0 %v6663
    %9593 = vmatmul.bf16.gmra.mxu0 %v1818
    %v9594 = vpop.f32.mrf.mxu0
    %v9595 = vadd.f32 %v9581, %v9594
    %v9596 = vpop.f32.mrf.mxu0
    %v9597 = vadd.f32 %v9583, %v9596
    %9598 = vdwg.mxu0
    %9599 = vmatpush.bf16.msra.mxu0 %v6783
    %9600 = vmatpush.bf16.msra.mxu0 %v6775
    %9601 = vmatpush.bf16.msra.mxu0 %v6767
    %9602 = vmatpush.bf16.msra.mxu0 %v6759
    %9603 = vmatpush.bf16.msra.mxu0 %v6751
    %9604 = vmatpush.bf16.msra.mxu0 %v6743
    %9605 = vmatpush.bf16.msra.mxu0 %v6735
    %9606 = vmatpush.bf16.msra.mxu0 %v6727
    %9607 = vmatmul.bf16.gmra.mxu0 %v1819
    %v9608 = vpop.f32.mrf.mxu0
    %v9609 = vadd.f32 %v9595, %v9608
    %v9610 = vpop.f32.mrf.mxu0
    %v9611 = vadd.f32 %v9597, %v9610
    %9612 = vdwg.mxu0
    %9613 = vmatpush.bf16.msra.mxu0 %v6847
    %9614 = vmatpush.bf16.msra.mxu0 %v6839
    %9615 = vmatpush.bf16.msra.mxu0 %v6831
    %9616 = vmatpush.bf16.msra.mxu0 %v6823
    %9617 = vmatpush.bf16.msra.mxu0 %v6815
    %9618 = vmatpush.bf16.msra.mxu0 %v6807
    %9619 = vmatpush.bf16.msra.mxu0 %v6799
    %9620 = vmatpush.bf16.msra.mxu0 %v6791
    %9621 = vmatmul.bf16.gmra.mxu0 %v1820
    %v9622 = vpop.f32.mrf.mxu0
    %v9623 = vadd.f32 %v9609, %v9622
    %v9624 = vpop.f32.mrf.mxu0
    %v9625 = vadd.f32 %v9611, %v9624
    %9626 = vdwg.mxu0
    %9627 = vmatpush.bf16.msra.mxu0 %v6911
    %9628 = vmatpush.bf16.msra.mxu0 %v6903
    %9629 = vmatpush.bf16.msra.mxu0 %v6895
    %9630 = vmatpush.bf16.msra.mxu0 %v6887
    %9631 = vmatpush.bf16.msra.mxu0 %v6879
    %9632 = vmatpush.bf16.msra.mxu0 %v6871
    %9633 = vmatpush.bf16.msra.mxu0 %v6863
    %9634 = vmatpush.bf16.msra.mxu0 %v6855
    %9635 = vmatmul.bf16.gmra.mxu0 %v1821
    %v9636 = vpop.f32.mrf.mxu0
    %v9637 = vadd.f32 %v9623, %v9636
    %v9638 = vpop.f32.mrf.mxu0
    %v9639 = vadd.f32 %v9625, %v9638
    %9640 = vdwg.mxu0
    %9641 = vmatpush.bf16.msra.mxu0 %v6975
    %9642 = vmatpush.bf16.msra.mxu0 %v6967
    %9643 = vmatpush.bf16.msra.mxu0 %v6959
    %9644 = vmatpush.bf16.msra.mxu0 %v6951
    %9645 = vmatpush.bf16.msra.mxu0 %v6943
    %9646 = vmatpush.bf16.msra.mxu0 %v6935
    %9647 = vmatpush.bf16.msra.mxu0 %v6927
    %9648 = vmatpush.bf16.msra.mxu0 %v6919
    %9649 = vmatmul.bf16.gmra.mxu0 %v1822
    %v9650 = vpop.f32.mrf.mxu0
    %v9651 = vadd.f32 %v9637, %v9650
    %v9652 = vpop.f32.mrf.mxu0
    %v9653 = vadd.f32 %v9639, %v9652
    %9654 = vdwg.mxu0
    %9655 = vmatpush.bf16.msra.mxu0 %v7039
    %9656 = vmatpush.bf16.msra.mxu0 %v7031
    %9657 = vmatpush.bf16.msra.mxu0 %v7023
    %9658 = vmatpush.bf16.msra.mxu0 %v7015
    %9659 = vmatpush.bf16.msra.mxu0 %v7007
    %9660 = vmatpush.bf16.msra.mxu0 %v6999
    %9661 = vmatpush.bf16.msra.mxu0 %v6991
    %9662 = vmatpush.bf16.msra.mxu0 %v6983
    %9663 = vmatmul.bf16.gmra.mxu0 %v1823
    %v9664 = vpop.f32.mrf.mxu0
    %v9665 = vadd.f32 %v9651, %v9664
    %v9666 = vpop.f32.mrf.mxu0
    %v9667 = vadd.f32 %v9653, %v9666
    %9668 = vdwg.mxu0
    %9669 = vmatpush.bf16.msra.mxu0 %v7103
    %9670 = vmatpush.bf16.msra.mxu0 %v7095
    %9671 = vmatpush.bf16.msra.mxu0 %v7087
    %9672 = vmatpush.bf16.msra.mxu0 %v7079
    %9673 = vmatpush.bf16.msra.mxu0 %v7071
    %9674 = vmatpush.bf16.msra.mxu0 %v7063
    %9675 = vmatpush.bf16.msra.mxu0 %v7055
    %9676 = vmatpush.bf16.msra.mxu0 %v7047
    %9677 = vmatmul.bf16.gmra.mxu0 %v1824
    %v9678 = vpop.f32.mrf.mxu0
    %v9679 = vadd.f32 %v9665, %v9678
    %v9680 = vpop.f32.mrf.mxu0
    %v9681 = vadd.f32 %v9667, %v9680
    %9682 = vdwg.mxu0
    %9683 = vmatpush.bf16.msra.mxu0 %v7167
    %9684 = vmatpush.bf16.msra.mxu0 %v7159
    %9685 = vmatpush.bf16.msra.mxu0 %v7151
    %9686 = vmatpush.bf16.msra.mxu0 %v7143
    %9687 = vmatpush.bf16.msra.mxu0 %v7135
    %9688 = vmatpush.bf16.msra.mxu0 %v7127
    %9689 = vmatpush.bf16.msra.mxu0 %v7119
    %9690 = vmatpush.bf16.msra.mxu0 %v7111
    %9691 = vmatmul.bf16.gmra.mxu0 %v1825
    %v9692 = vpop.f32.mrf.mxu0
    %v9693 = vadd.f32 %v9679, %v9692
    %v9694 = vpop.f32.mrf.mxu0
    %v9695 = vadd.f32 %v9681, %v9694
    %9696 = vdwg.mxu0
    %9697 = vmatpush.bf16.msra.mxu0 %v7231
    %9698 = vmatpush.bf16.msra.mxu0 %v7223
    %9699 = vmatpush.bf16.msra.mxu0 %v7215
    %9700 = vmatpush.bf16.msra.mxu0 %v7207
    %9701 = vmatpush.bf16.msra.mxu0 %v7199
    %9702 = vmatpush.bf16.msra.mxu0 %v7191
    %9703 = vmatpush.bf16.msra.mxu0 %v7183
    %9704 = vmatpush.bf16.msra.mxu0 %v7175
    %9705 = vmatmul.bf16.gmra.mxu0 %v1826
    %v9706 = vpop.f32.mrf.mxu0
    %v9707 = vadd.f32 %v9693, %v9706
    %v9708 = vpop.f32.mrf.mxu0
    %v9709 = vadd.f32 %v9695, %v9708
    %9710 = vdwg.mxu0
    %9711 = vmatpush.bf16.msra.mxu0 %v7295
    %9712 = vmatpush.bf16.msra.mxu0 %v7287
    %9713 = vmatpush.bf16.msra.mxu0 %v7279
    %9714 = vmatpush.bf16.msra.mxu0 %v7271
    %9715 = vmatpush.bf16.msra.mxu0 %v7263
    %9716 = vmatpush.bf16.msra.mxu0 %v7255
    %9717 = vmatpush.bf16.msra.mxu0 %v7247
    %9718 = vmatpush.bf16.msra.mxu0 %v7239
    %9719 = vmatmul.bf16.gmra.mxu0 %v1827
    %v9720 = vpop.f32.mrf.mxu0
    %v9721 = vadd.f32 %v9707, %v9720
    %v9722 = vpop.f32.mrf.mxu0
    %v9723 = vadd.f32 %v9709, %v9722
    %9724 = vdwg.mxu0
    %9725 = vmatpush.bf16.msra.mxu0 %v7359
    %9726 = vmatpush.bf16.msra.mxu0 %v7351
    %9727 = vmatpush.bf16.msra.mxu0 %v7343
    %9728 = vmatpush.bf16.msra.mxu0 %v7335
    %9729 = vmatpush.bf16.msra.mxu0 %v7327
    %9730 = vmatpush.bf16.msra.mxu0 %v7319
    %9731 = vmatpush.bf16.msra.mxu0 %v7311
    %9732 = vmatpush.bf16.msra.mxu0 %v7303
    %9733 = vmatmul.bf16.gmra.mxu0 %v1828
    %v9734 = vpop.f32.mrf.mxu0
    %v9735 = vadd.f32 %v9721, %v9734
    %v9736 = vpop.f32.mrf.mxu0
    %v9737 = vadd.f32 %v9723, %v9736
    %9738 = vdwg.mxu0
    %9739 = vmatpush.bf16.msra.mxu0 %v7423
    %9740 = vmatpush.bf16.msra.mxu0 %v7415
    %9741 = vmatpush.bf16.msra.mxu0 %v7407
    %9742 = vmatpush.bf16.msra.mxu0 %v7399
    %9743 = vmatpush.bf16.msra.mxu0 %v7391
    %9744 = vmatpush.bf16.msra.mxu0 %v7383
    %9745 = vmatpush.bf16.msra.mxu0 %v7375
    %9746 = vmatpush.bf16.msra.mxu0 %v7367
    %9747 = vmatmul.bf16.gmra.mxu0 %v1829
    %v9748 = vpop.f32.mrf.mxu0
    %v9749 = vadd.f32 %v9735, %v9748
    %v9750 = vpop.f32.mrf.mxu0
    %v9751 = vadd.f32 %v9737, %v9750
    %9752 = vdwg.mxu0
    %9753 = vmatpush.bf16.msra.mxu0 %v7487
    %9754 = vmatpush.bf16.msra.mxu0 %v7479
    %9755 = vmatpush.bf16.msra.mxu0 %v7471
    %9756 = vmatpush.bf16.msra.mxu0 %v7463
    %9757 = vmatpush.bf16.msra.mxu0 %v7455
    %9758 = vmatpush.bf16.msra.mxu0 %v7447
    %9759 = vmatpush.bf16.msra.mxu0 %v7439
    %9760 = vmatpush.bf16.msra.mxu0 %v7431
    %9761 = vmatmul.bf16.gmra.mxu0 %v1830
    %v9762 = vpop.f32.mrf.mxu0
    %v9763 = vadd.f32 %v9749, %v9762
    %v9764 = vpop.f32.mrf.mxu0
    %v9765 = vadd.f32 %v9751, %v9764
    %9766 = vdwg.mxu0
    %9767 = vmatpush.bf16.msra.mxu0 %v7551
    %9768 = vmatpush.bf16.msra.mxu0 %v7543
    %9769 = vmatpush.bf16.msra.mxu0 %v7535
    %9770 = vmatpush.bf16.msra.mxu0 %v7527
    %9771 = vmatpush.bf16.msra.mxu0 %v7519
    %9772 = vmatpush.bf16.msra.mxu0 %v7511
    %9773 = vmatpush.bf16.msra.mxu0 %v7503
    %9774 = vmatpush.bf16.msra.mxu0 %v7495
    %9775 = vmatmul.bf16.gmra.mxu0 %v1831
    %v9776 = vpop.f32.mrf.mxu0
    %v9777 = vadd.f32 %v9763, %v9776
    %v9778 = vpop.f32.mrf.mxu0
    %v9779 = vadd.f32 %v9765, %v9778
    %9780 = vdwg.mxu0
    %9781 = vmatpush.bf16.msra.mxu0 %v7615
    %9782 = vmatpush.bf16.msra.mxu0 %v7607
    %9783 = vmatpush.bf16.msra.mxu0 %v7599
    %9784 = vmatpush.bf16.msra.mxu0 %v7591
    %9785 = vmatpush.bf16.msra.mxu0 %v7583
    %9786 = vmatpush.bf16.msra.mxu0 %v7575
    %9787 = vmatpush.bf16.msra.mxu0 %v7567
    %9788 = vmatpush.bf16.msra.mxu0 %v7559
    %9789 = vmatmul.bf16.gmra.mxu0 %v1832
    %v9790 = vpop.f32.mrf.mxu0
    %v9791 = vadd.f32 %v9777, %v9790
    %v9792 = vpop.f32.mrf.mxu0
    %v9793 = vadd.f32 %v9779, %v9792
    %9794 = vdwg.mxu0
    %9795 = vmatpush.bf16.msra.mxu0 %v7679
    %9796 = vmatpush.bf16.msra.mxu0 %v7671
    %9797 = vmatpush.bf16.msra.mxu0 %v7663
    %9798 = vmatpush.bf16.msra.mxu0 %v7655
    %9799 = vmatpush.bf16.msra.mxu0 %v7647
    %9800 = vmatpush.bf16.msra.mxu0 %v7639
    %9801 = vmatpush.bf16.msra.mxu0 %v7631
    %9802 = vmatpush.bf16.msra.mxu0 %v7623
    %9803 = vmatmul.bf16.gmra.mxu0 %v1833
    %v9804 = vpop.f32.mrf.mxu0
    %v9805 = vadd.f32 %v9791, %v9804
    %v9806 = vpop.f32.mrf.mxu0
    %v9807 = vadd.f32 %v9793, %v9806
    %9808 = vdwg.mxu0
    %9809 = vmatpush.bf16.msra.mxu0 %v7743
    %9810 = vmatpush.bf16.msra.mxu0 %v7735
    %9811 = vmatpush.bf16.msra.mxu0 %v7727
    %9812 = vmatpush.bf16.msra.mxu0 %v7719
    %9813 = vmatpush.bf16.msra.mxu0 %v7711
    %9814 = vmatpush.bf16.msra.mxu0 %v7703
    %9815 = vmatpush.bf16.msra.mxu0 %v7695
    %9816 = vmatpush.bf16.msra.mxu0 %v7687
    %9817 = vmatmul.bf16.gmra.mxu0 %v1834
    %v9818 = vpop.f32.mrf.mxu0
    %v9819 = vadd.f32 %v9805, %v9818
    %v9820 = vpop.f32.mrf.mxu0
    %v9821 = vadd.f32 %v9807, %v9820
    %9822 = vdwg.mxu0
    %9823 = vmatpush.bf16.msra.mxu0 %v7807
    %9824 = vmatpush.bf16.msra.mxu0 %v7799
    %9825 = vmatpush.bf16.msra.mxu0 %v7791
    %9826 = vmatpush.bf16.msra.mxu0 %v7783
    %9827 = vmatpush.bf16.msra.mxu0 %v7775
    %9828 = vmatpush.bf16.msra.mxu0 %v7767
    %9829 = vmatpush.bf16.msra.mxu0 %v7759
    %9830 = vmatpush.bf16.msra.mxu0 %v7751
    %9831 = vmatmul.bf16.gmra.mxu0 %v1835
    %v9832 = vpop.f32.mrf.mxu0
    %v9833 = vadd.f32 %v9819, %v9832
    %v9834 = vpop.f32.mrf.mxu0
    %v9835 = vadd.f32 %v9821, %v9834
    %9836 = vdwg.mxu0
    %9837 = vmatpush.bf16.msra.mxu0 %v7871
    %9838 = vmatpush.bf16.msra.mxu0 %v7863
    %9839 = vmatpush.bf16.msra.mxu0 %v7855
    %9840 = vmatpush.bf16.msra.mxu0 %v7847
    %9841 = vmatpush.bf16.msra.mxu0 %v7839
    %9842 = vmatpush.bf16.msra.mxu0 %v7831
    %9843 = vmatpush.bf16.msra.mxu0 %v7823
    %9844 = vmatpush.bf16.msra.mxu0 %v7815
    %9845 = vmatmul.bf16.gmra.mxu0 %v1836
    %v9846 = vpop.f32.mrf.mxu0
    %v9847 = vadd.f32 %v9833, %v9846
    %v9848 = vpop.f32.mrf.mxu0
    %v9849 = vadd.f32 %v9835, %v9848
    %9850 = vdwg.mxu0
    %9851 = vmatpush.bf16.msra.mxu0 %v7935
    %9852 = vmatpush.bf16.msra.mxu0 %v7927
    %9853 = vmatpush.bf16.msra.mxu0 %v7919
    %9854 = vmatpush.bf16.msra.mxu0 %v7911
    %9855 = vmatpush.bf16.msra.mxu0 %v7903
    %9856 = vmatpush.bf16.msra.mxu0 %v7895
    %9857 = vmatpush.bf16.msra.mxu0 %v7887
    %9858 = vmatpush.bf16.msra.mxu0 %v7879
    %9859 = vmatmul.bf16.gmra.mxu0 %v1837
    %v9860 = vpop.f32.mrf.mxu0
    %v9861 = vadd.f32 %v9847, %v9860
    %v9862 = vpop.f32.mrf.mxu0
    %v9863 = vadd.f32 %v9849, %v9862
    %9864 = vdwg.mxu0
    %9865 = vmatpush.bf16.msra.mxu0 %v7999
    %9866 = vmatpush.bf16.msra.mxu0 %v7991
    %9867 = vmatpush.bf16.msra.mxu0 %v7983
    %9868 = vmatpush.bf16.msra.mxu0 %v7975
    %9869 = vmatpush.bf16.msra.mxu0 %v7967
    %9870 = vmatpush.bf16.msra.mxu0 %v7959
    %9871 = vmatpush.bf16.msra.mxu0 %v7951
    %9872 = vmatpush.bf16.msra.mxu0 %v7943
    %9873 = vmatmul.bf16.gmra.mxu0 %v1838
    %v9874 = vpop.f32.mrf.mxu0
    %v9875 = vadd.f32 %v9861, %v9874
    %v9876 = vpop.f32.mrf.mxu0
    %v9877 = vadd.f32 %v9863, %v9876
    %9878 = vdwg.mxu0
    %9879 = vmatpush.bf16.msra.mxu0 %v6528
    %9880 = vmatpush.bf16.msra.mxu0 %v6520
    %9881 = vmatpush.bf16.msra.mxu0 %v6512
    %9882 = vmatpush.bf16.msra.mxu0 %v6504
    %9883 = vmatpush.bf16.msra.mxu0 %v6496
    %9884 = vmatpush.bf16.msra.mxu0 %v6488
    %9885 = vmatpush.bf16.msra.mxu0 %v6480
    %9886 = vmatpush.bf16.msra.mxu0 %v6472
    %9887 = vmatmul.bf16.gmra.mxu0 %v1815
    %v9888 = vpop.f32.mrf.mxu0
    %v9889 = vadd.f32 %v1728, %v9888
    %v9890 = vpop.f32.mrf.mxu0
    %v9891 = vadd.f32 %v1728, %v9890
    %9892 = vdwg.mxu0
    %9893 = vmatpush.bf16.msra.mxu0 %v6592
    %9894 = vmatpush.bf16.msra.mxu0 %v6584
    %9895 = vmatpush.bf16.msra.mxu0 %v6576
    %9896 = vmatpush.bf16.msra.mxu0 %v6568
    %9897 = vmatpush.bf16.msra.mxu0 %v6560
    %9898 = vmatpush.bf16.msra.mxu0 %v6552
    %9899 = vmatpush.bf16.msra.mxu0 %v6544
    %9900 = vmatpush.bf16.msra.mxu0 %v6536
    %9901 = vmatmul.bf16.gmra.mxu0 %v1816
    %v9902 = vpop.f32.mrf.mxu0
    %v9903 = vadd.f32 %v9889, %v9902
    %v9904 = vpop.f32.mrf.mxu0
    %v9905 = vadd.f32 %v9891, %v9904
    %9906 = vdwg.mxu0
    %9907 = vmatpush.bf16.msra.mxu0 %v6656
    %9908 = vmatpush.bf16.msra.mxu0 %v6648
    %9909 = vmatpush.bf16.msra.mxu0 %v6640
    %9910 = vmatpush.bf16.msra.mxu0 %v6632
    %9911 = vmatpush.bf16.msra.mxu0 %v6624
    %9912 = vmatpush.bf16.msra.mxu0 %v6616
    %9913 = vmatpush.bf16.msra.mxu0 %v6608
    %9914 = vmatpush.bf16.msra.mxu0 %v6600
    %9915 = vmatmul.bf16.gmra.mxu0 %v1817
    %v9916 = vpop.f32.mrf.mxu0
    %v9917 = vadd.f32 %v9903, %v9916
    %v9918 = vpop.f32.mrf.mxu0
    %v9919 = vadd.f32 %v9905, %v9918
    %9920 = vdwg.mxu0
    %9921 = vmatpush.bf16.msra.mxu0 %v6720
    %9922 = vmatpush.bf16.msra.mxu0 %v6712
    %9923 = vmatpush.bf16.msra.mxu0 %v6704
    %9924 = vmatpush.bf16.msra.mxu0 %v6696
    %9925 = vmatpush.bf16.msra.mxu0 %v6688
    %9926 = vmatpush.bf16.msra.mxu0 %v6680
    %9927 = vmatpush.bf16.msra.mxu0 %v6672
    %9928 = vmatpush.bf16.msra.mxu0 %v6664
    %9929 = vmatmul.bf16.gmra.mxu0 %v1818
    %v9930 = vpop.f32.mrf.mxu0
    %v9931 = vadd.f32 %v9917, %v9930
    %v9932 = vpop.f32.mrf.mxu0
    %v9933 = vadd.f32 %v9919, %v9932
    %9934 = vdwg.mxu0
    %9935 = vmatpush.bf16.msra.mxu0 %v6784
    %9936 = vmatpush.bf16.msra.mxu0 %v6776
    %9937 = vmatpush.bf16.msra.mxu0 %v6768
    %9938 = vmatpush.bf16.msra.mxu0 %v6760
    %9939 = vmatpush.bf16.msra.mxu0 %v6752
    %9940 = vmatpush.bf16.msra.mxu0 %v6744
    %9941 = vmatpush.bf16.msra.mxu0 %v6736
    %9942 = vmatpush.bf16.msra.mxu0 %v6728
    %9943 = vmatmul.bf16.gmra.mxu0 %v1819
    %v9944 = vpop.f32.mrf.mxu0
    %v9945 = vadd.f32 %v9931, %v9944
    %v9946 = vpop.f32.mrf.mxu0
    %v9947 = vadd.f32 %v9933, %v9946
    %9948 = vdwg.mxu0
    %9949 = vmatpush.bf16.msra.mxu0 %v6848
    %9950 = vmatpush.bf16.msra.mxu0 %v6840
    %9951 = vmatpush.bf16.msra.mxu0 %v6832
    %9952 = vmatpush.bf16.msra.mxu0 %v6824
    %9953 = vmatpush.bf16.msra.mxu0 %v6816
    %9954 = vmatpush.bf16.msra.mxu0 %v6808
    %9955 = vmatpush.bf16.msra.mxu0 %v6800
    %9956 = vmatpush.bf16.msra.mxu0 %v6792
    %9957 = vmatmul.bf16.gmra.mxu0 %v1820
    %v9958 = vpop.f32.mrf.mxu0
    %v9959 = vadd.f32 %v9945, %v9958
    %v9960 = vpop.f32.mrf.mxu0
    %v9961 = vadd.f32 %v9947, %v9960
    %9962 = vdwg.mxu0
    %9963 = vmatpush.bf16.msra.mxu0 %v6912
    %9964 = vmatpush.bf16.msra.mxu0 %v6904
    %9965 = vmatpush.bf16.msra.mxu0 %v6896
    %9966 = vmatpush.bf16.msra.mxu0 %v6888
    %9967 = vmatpush.bf16.msra.mxu0 %v6880
    %9968 = vmatpush.bf16.msra.mxu0 %v6872
    %9969 = vmatpush.bf16.msra.mxu0 %v6864
    %9970 = vmatpush.bf16.msra.mxu0 %v6856
    %9971 = vmatmul.bf16.gmra.mxu0 %v1821
    %v9972 = vpop.f32.mrf.mxu0
    %v9973 = vadd.f32 %v9959, %v9972
    %v9974 = vpop.f32.mrf.mxu0
    %v9975 = vadd.f32 %v9961, %v9974
    %9976 = vdwg.mxu0
    %9977 = vmatpush.bf16.msra.mxu0 %v6976
    %9978 = vmatpush.bf16.msra.mxu0 %v6968
    %9979 = vmatpush.bf16.msra.mxu0 %v6960
    %9980 = vmatpush.bf16.msra.mxu0 %v6952
    %9981 = vmatpush.bf16.msra.mxu0 %v6944
    %9982 = vmatpush.bf16.msra.mxu0 %v6936
    %9983 = vmatpush.bf16.msra.mxu0 %v6928
    %9984 = vmatpush.bf16.msra.mxu0 %v6920
    %9985 = vmatmul.bf16.gmra.mxu0 %v1822
    %v9986 = vpop.f32.mrf.mxu0
    %v9987 = vadd.f32 %v9973, %v9986
    %v9988 = vpop.f32.mrf.mxu0
    %v9989 = vadd.f32 %v9975, %v9988
    %9990 = vdwg.mxu0
    %9991 = vmatpush.bf16.msra.mxu0 %v7040
    %9992 = vmatpush.bf16.msra.mxu0 %v7032
    %9993 = vmatpush.bf16.msra.mxu0 %v7024
    %9994 = vmatpush.bf16.msra.mxu0 %v7016
    %9995 = vmatpush.bf16.msra.mxu0 %v7008
    %9996 = vmatpush.bf16.msra.mxu0 %v7000
    %9997 = vmatpush.bf16.msra.mxu0 %v6992
    %9998 = vmatpush.bf16.msra.mxu0 %v6984
    %9999 = vmatmul.bf16.gmra.mxu0 %v1823
    %v10000 = vpop.f32.mrf.mxu0
    %v10001 = vadd.f32 %v9987, %v10000
    %v10002 = vpop.f32.mrf.mxu0
    %v10003 = vadd.f32 %v9989, %v10002
    %10004 = vdwg.mxu0
    %10005 = vmatpush.bf16.msra.mxu0 %v7104
    %10006 = vmatpush.bf16.msra.mxu0 %v7096
    %10007 = vmatpush.bf16.msra.mxu0 %v7088
    %10008 = vmatpush.bf16.msra.mxu0 %v7080
    %10009 = vmatpush.bf16.msra.mxu0 %v7072
    %10010 = vmatpush.bf16.msra.mxu0 %v7064
    %10011 = vmatpush.bf16.msra.mxu0 %v7056
    %10012 = vmatpush.bf16.msra.mxu0 %v7048
    %10013 = vmatmul.bf16.gmra.mxu0 %v1824
    %v10014 = vpop.f32.mrf.mxu0
    %v10015 = vadd.f32 %v10001, %v10014
    %v10016 = vpop.f32.mrf.mxu0
    %v10017 = vadd.f32 %v10003, %v10016
    %10018 = vdwg.mxu0
    %10019 = vmatpush.bf16.msra.mxu0 %v7168
    %10020 = vmatpush.bf16.msra.mxu0 %v7160
    %10021 = vmatpush.bf16.msra.mxu0 %v7152
    %10022 = vmatpush.bf16.msra.mxu0 %v7144
    %10023 = vmatpush.bf16.msra.mxu0 %v7136
    %10024 = vmatpush.bf16.msra.mxu0 %v7128
    %10025 = vmatpush.bf16.msra.mxu0 %v7120
    %10026 = vmatpush.bf16.msra.mxu0 %v7112
    %10027 = vmatmul.bf16.gmra.mxu0 %v1825
    %v10028 = vpop.f32.mrf.mxu0
    %v10029 = vadd.f32 %v10015, %v10028
    %v10030 = vpop.f32.mrf.mxu0
    %v10031 = vadd.f32 %v10017, %v10030
    %10032 = vdwg.mxu0
    %10033 = vmatpush.bf16.msra.mxu0 %v7232
    %10034 = vmatpush.bf16.msra.mxu0 %v7224
    %10035 = vmatpush.bf16.msra.mxu0 %v7216
    %10036 = vmatpush.bf16.msra.mxu0 %v7208
    %10037 = vmatpush.bf16.msra.mxu0 %v7200
    %10038 = vmatpush.bf16.msra.mxu0 %v7192
    %10039 = vmatpush.bf16.msra.mxu0 %v7184
    %10040 = vmatpush.bf16.msra.mxu0 %v7176
    %10041 = vmatmul.bf16.gmra.mxu0 %v1826
    %v10042 = vpop.f32.mrf.mxu0
    %v10043 = vadd.f32 %v10029, %v10042
    %v10044 = vpop.f32.mrf.mxu0
    %v10045 = vadd.f32 %v10031, %v10044
    %10046 = vdwg.mxu0
    %10047 = vmatpush.bf16.msra.mxu0 %v7296
    %10048 = vmatpush.bf16.msra.mxu0 %v7288
    %10049 = vmatpush.bf16.msra.mxu0 %v7280
    %10050 = vmatpush.bf16.msra.mxu0 %v7272
    %10051 = vmatpush.bf16.msra.mxu0 %v7264
    %10052 = vmatpush.bf16.msra.mxu0 %v7256
    %10053 = vmatpush.bf16.msra.mxu0 %v7248
    %10054 = vmatpush.bf16.msra.mxu0 %v7240
    %10055 = vmatmul.bf16.gmra.mxu0 %v1827
    %v10056 = vpop.f32.mrf.mxu0
    %v10057 = vadd.f32 %v10043, %v10056
    %v10058 = vpop.f32.mrf.mxu0
    %v10059 = vadd.f32 %v10045, %v10058
    %10060 = vdwg.mxu0
    %10061 = vmatpush.bf16.msra.mxu0 %v7360
    %10062 = vmatpush.bf16.msra.mxu0 %v7352
    %10063 = vmatpush.bf16.msra.mxu0 %v7344
    %10064 = vmatpush.bf16.msra.mxu0 %v7336
    %10065 = vmatpush.bf16.msra.mxu0 %v7328
    %10066 = vmatpush.bf16.msra.mxu0 %v7320
    %10067 = vmatpush.bf16.msra.mxu0 %v7312
    %10068 = vmatpush.bf16.msra.mxu0 %v7304
    %10069 = vmatmul.bf16.gmra.mxu0 %v1828
    %v10070 = vpop.f32.mrf.mxu0
    %v10071 = vadd.f32 %v10057, %v10070
    %v10072 = vpop.f32.mrf.mxu0
    %v10073 = vadd.f32 %v10059, %v10072
    %10074 = vdwg.mxu0
    %10075 = vmatpush.bf16.msra.mxu0 %v7424
    %10076 = vmatpush.bf16.msra.mxu0 %v7416
    %10077 = vmatpush.bf16.msra.mxu0 %v7408
    %10078 = vmatpush.bf16.msra.mxu0 %v7400
    %10079 = vmatpush.bf16.msra.mxu0 %v7392
    %10080 = vmatpush.bf16.msra.mxu0 %v7384
    %10081 = vmatpush.bf16.msra.mxu0 %v7376
    %10082 = vmatpush.bf16.msra.mxu0 %v7368
    %10083 = vmatmul.bf16.gmra.mxu0 %v1829
    %v10084 = vpop.f32.mrf.mxu0
    %v10085 = vadd.f32 %v10071, %v10084
    %v10086 = vpop.f32.mrf.mxu0
    %v10087 = vadd.f32 %v10073, %v10086
    %10088 = vdwg.mxu0
    %10089 = vmatpush.bf16.msra.mxu0 %v7488
    %10090 = vmatpush.bf16.msra.mxu0 %v7480
    %10091 = vmatpush.bf16.msra.mxu0 %v7472
    %10092 = vmatpush.bf16.msra.mxu0 %v7464
    %10093 = vmatpush.bf16.msra.mxu0 %v7456
    %10094 = vmatpush.bf16.msra.mxu0 %v7448
    %10095 = vmatpush.bf16.msra.mxu0 %v7440
    %10096 = vmatpush.bf16.msra.mxu0 %v7432
    %10097 = vmatmul.bf16.gmra.mxu0 %v1830
    %v10098 = vpop.f32.mrf.mxu0
    %v10099 = vadd.f32 %v10085, %v10098
    %v10100 = vpop.f32.mrf.mxu0
    %v10101 = vadd.f32 %v10087, %v10100
    %10102 = vdwg.mxu0
    %10103 = vmatpush.bf16.msra.mxu0 %v7552
    %10104 = vmatpush.bf16.msra.mxu0 %v7544
    %10105 = vmatpush.bf16.msra.mxu0 %v7536
    %10106 = vmatpush.bf16.msra.mxu0 %v7528
    %10107 = vmatpush.bf16.msra.mxu0 %v7520
    %10108 = vmatpush.bf16.msra.mxu0 %v7512
    %10109 = vmatpush.bf16.msra.mxu0 %v7504
    %10110 = vmatpush.bf16.msra.mxu0 %v7496
    %10111 = vmatmul.bf16.gmra.mxu0 %v1831
    %v10112 = vpop.f32.mrf.mxu0
    %v10113 = vadd.f32 %v10099, %v10112
    %v10114 = vpop.f32.mrf.mxu0
    %v10115 = vadd.f32 %v10101, %v10114
    %10116 = vdwg.mxu0
    %10117 = vmatpush.bf16.msra.mxu0 %v7616
    %10118 = vmatpush.bf16.msra.mxu0 %v7608
    %10119 = vmatpush.bf16.msra.mxu0 %v7600
    %10120 = vmatpush.bf16.msra.mxu0 %v7592
    %10121 = vmatpush.bf16.msra.mxu0 %v7584
    %10122 = vmatpush.bf16.msra.mxu0 %v7576
    %10123 = vmatpush.bf16.msra.mxu0 %v7568
    %10124 = vmatpush.bf16.msra.mxu0 %v7560
    %10125 = vmatmul.bf16.gmra.mxu0 %v1832
    %v10126 = vpop.f32.mrf.mxu0
    %v10127 = vadd.f32 %v10113, %v10126
    %v10128 = vpop.f32.mrf.mxu0
    %v10129 = vadd.f32 %v10115, %v10128
    %10130 = vdwg.mxu0
    %10131 = vmatpush.bf16.msra.mxu0 %v7680
    %10132 = vmatpush.bf16.msra.mxu0 %v7672
    %10133 = vmatpush.bf16.msra.mxu0 %v7664
    %10134 = vmatpush.bf16.msra.mxu0 %v7656
    %10135 = vmatpush.bf16.msra.mxu0 %v7648
    %10136 = vmatpush.bf16.msra.mxu0 %v7640
    %10137 = vmatpush.bf16.msra.mxu0 %v7632
    %10138 = vmatpush.bf16.msra.mxu0 %v7624
    %10139 = vmatmul.bf16.gmra.mxu0 %v1833
    %v10140 = vpop.f32.mrf.mxu0
    %v10141 = vadd.f32 %v10127, %v10140
    %v10142 = vpop.f32.mrf.mxu0
    %v10143 = vadd.f32 %v10129, %v10142
    %10144 = vdwg.mxu0
    %10145 = vmatpush.bf16.msra.mxu0 %v7744
    %10146 = vmatpush.bf16.msra.mxu0 %v7736
    %10147 = vmatpush.bf16.msra.mxu0 %v7728
    %10148 = vmatpush.bf16.msra.mxu0 %v7720
    %10149 = vmatpush.bf16.msra.mxu0 %v7712
    %10150 = vmatpush.bf16.msra.mxu0 %v7704
    %10151 = vmatpush.bf16.msra.mxu0 %v7696
    %10152 = vmatpush.bf16.msra.mxu0 %v7688
    %10153 = vmatmul.bf16.gmra.mxu0 %v1834
    %v10154 = vpop.f32.mrf.mxu0
    %v10155 = vadd.f32 %v10141, %v10154
    %v10156 = vpop.f32.mrf.mxu0
    %v10157 = vadd.f32 %v10143, %v10156
    %10158 = vdwg.mxu0
    %10159 = vmatpush.bf16.msra.mxu0 %v7808
    %10160 = vmatpush.bf16.msra.mxu0 %v7800
    %10161 = vmatpush.bf16.msra.mxu0 %v7792
    %10162 = vmatpush.bf16.msra.mxu0 %v7784
    %10163 = vmatpush.bf16.msra.mxu0 %v7776
    %10164 = vmatpush.bf16.msra.mxu0 %v7768
    %10165 = vmatpush.bf16.msra.mxu0 %v7760
    %10166 = vmatpush.bf16.msra.mxu0 %v7752
    %10167 = vmatmul.bf16.gmra.mxu0 %v1835
    %v10168 = vpop.f32.mrf.mxu0
    %v10169 = vadd.f32 %v10155, %v10168
    %v10170 = vpop.f32.mrf.mxu0
    %v10171 = vadd.f32 %v10157, %v10170
    %10172 = vdwg.mxu0
    %10173 = vmatpush.bf16.msra.mxu0 %v7872
    %10174 = vmatpush.bf16.msra.mxu0 %v7864
    %10175 = vmatpush.bf16.msra.mxu0 %v7856
    %10176 = vmatpush.bf16.msra.mxu0 %v7848
    %10177 = vmatpush.bf16.msra.mxu0 %v7840
    %10178 = vmatpush.bf16.msra.mxu0 %v7832
    %10179 = vmatpush.bf16.msra.mxu0 %v7824
    %10180 = vmatpush.bf16.msra.mxu0 %v7816
    %10181 = vmatmul.bf16.gmra.mxu0 %v1836
    %v10182 = vpop.f32.mrf.mxu0
    %v10183 = vadd.f32 %v10169, %v10182
    %v10184 = vpop.f32.mrf.mxu0
    %v10185 = vadd.f32 %v10171, %v10184
    %10186 = vdwg.mxu0
    %10187 = vmatpush.bf16.msra.mxu0 %v7936
    %10188 = vmatpush.bf16.msra.mxu0 %v7928
    %10189 = vmatpush.bf16.msra.mxu0 %v7920
    %10190 = vmatpush.bf16.msra.mxu0 %v7912
    %10191 = vmatpush.bf16.msra.mxu0 %v7904
    %10192 = vmatpush.bf16.msra.mxu0 %v7896
    %10193 = vmatpush.bf16.msra.mxu0 %v7888
    %10194 = vmatpush.bf16.msra.mxu0 %v7880
    %10195 = vmatmul.bf16.gmra.mxu0 %v1837
    %v10196 = vpop.f32.mrf.mxu0
    %v10197 = vadd.f32 %v10183, %v10196
    %v10198 = vpop.f32.mrf.mxu0
    %v10199 = vadd.f32 %v10185, %v10198
    %10200 = vdwg.mxu0
    %10201 = vmatpush.bf16.msra.mxu0 %v8000
    %10202 = vmatpush.bf16.msra.mxu0 %v7992
    %10203 = vmatpush.bf16.msra.mxu0 %v7984
    %10204 = vmatpush.bf16.msra.mxu0 %v7976
    %10205 = vmatpush.bf16.msra.mxu0 %v7968
    %10206 = vmatpush.bf16.msra.mxu0 %v7960
    %10207 = vmatpush.bf16.msra.mxu0 %v7952
    %10208 = vmatpush.bf16.msra.mxu0 %v7944
    %10209 = vmatmul.bf16.gmra.mxu0 %v1838
    %v10210 = vpop.f32.mrf.mxu0
    %v10211 = vadd.f32 %v10197, %v10210
    %v10212 = vpop.f32.mrf.mxu0
    %v10213 = vadd.f32 %v10199, %v10212
    %10214 = vdwg.mxu0
    %10215 = vmatpush.bf16.msra.mxu0 %v6529
    %10216 = vmatpush.bf16.msra.mxu0 %v6521
    %10217 = vmatpush.bf16.msra.mxu0 %v6513
    %10218 = vmatpush.bf16.msra.mxu0 %v6505
    %10219 = vmatpush.bf16.msra.mxu0 %v6497
    %10220 = vmatpush.bf16.msra.mxu0 %v6489
    %10221 = vmatpush.bf16.msra.mxu0 %v6481
    %10222 = vmatpush.bf16.msra.mxu0 %v6473
    %10223 = vmatmul.bf16.gmra.mxu0 %v1815
    %v10224 = vpop.f32.mrf.mxu0
    %v10225 = vadd.f32 %v1729, %v10224
    %v10226 = vpop.f32.mrf.mxu0
    %v10227 = vadd.f32 %v1729, %v10226
    %10228 = vdwg.mxu0
    %10229 = vmatpush.bf16.msra.mxu0 %v6593
    %10230 = vmatpush.bf16.msra.mxu0 %v6585
    %10231 = vmatpush.bf16.msra.mxu0 %v6577
    %10232 = vmatpush.bf16.msra.mxu0 %v6569
    %10233 = vmatpush.bf16.msra.mxu0 %v6561
    %10234 = vmatpush.bf16.msra.mxu0 %v6553
    %10235 = vmatpush.bf16.msra.mxu0 %v6545
    %10236 = vmatpush.bf16.msra.mxu0 %v6537
    %10237 = vmatmul.bf16.gmra.mxu0 %v1816
    %v10238 = vpop.f32.mrf.mxu0
    %v10239 = vadd.f32 %v10225, %v10238
    %v10240 = vpop.f32.mrf.mxu0
    %v10241 = vadd.f32 %v10227, %v10240
    %10242 = vdwg.mxu0
    %10243 = vmatpush.bf16.msra.mxu0 %v6657
    %10244 = vmatpush.bf16.msra.mxu0 %v6649
    %10245 = vmatpush.bf16.msra.mxu0 %v6641
    %10246 = vmatpush.bf16.msra.mxu0 %v6633
    %10247 = vmatpush.bf16.msra.mxu0 %v6625
    %10248 = vmatpush.bf16.msra.mxu0 %v6617
    %10249 = vmatpush.bf16.msra.mxu0 %v6609
    %10250 = vmatpush.bf16.msra.mxu0 %v6601
    %10251 = vmatmul.bf16.gmra.mxu0 %v1817
    %v10252 = vpop.f32.mrf.mxu0
    %v10253 = vadd.f32 %v10239, %v10252
    %v10254 = vpop.f32.mrf.mxu0
    %v10255 = vadd.f32 %v10241, %v10254
    %10256 = vdwg.mxu0
    %10257 = vmatpush.bf16.msra.mxu0 %v6721
    %10258 = vmatpush.bf16.msra.mxu0 %v6713
    %10259 = vmatpush.bf16.msra.mxu0 %v6705
    %10260 = vmatpush.bf16.msra.mxu0 %v6697
    %10261 = vmatpush.bf16.msra.mxu0 %v6689
    %10262 = vmatpush.bf16.msra.mxu0 %v6681
    %10263 = vmatpush.bf16.msra.mxu0 %v6673
    %10264 = vmatpush.bf16.msra.mxu0 %v6665
    %10265 = vmatmul.bf16.gmra.mxu0 %v1818
    %v10266 = vpop.f32.mrf.mxu0
    %v10267 = vadd.f32 %v10253, %v10266
    %v10268 = vpop.f32.mrf.mxu0
    %v10269 = vadd.f32 %v10255, %v10268
    %10270 = vdwg.mxu0
    %10271 = vmatpush.bf16.msra.mxu0 %v6785
    %10272 = vmatpush.bf16.msra.mxu0 %v6777
    %10273 = vmatpush.bf16.msra.mxu0 %v6769
    %10274 = vmatpush.bf16.msra.mxu0 %v6761
    %10275 = vmatpush.bf16.msra.mxu0 %v6753
    %10276 = vmatpush.bf16.msra.mxu0 %v6745
    %10277 = vmatpush.bf16.msra.mxu0 %v6737
    %10278 = vmatpush.bf16.msra.mxu0 %v6729
    %10279 = vmatmul.bf16.gmra.mxu0 %v1819
    %v10280 = vpop.f32.mrf.mxu0
    %v10281 = vadd.f32 %v10267, %v10280
    %v10282 = vpop.f32.mrf.mxu0
    %v10283 = vadd.f32 %v10269, %v10282
    %10284 = vdwg.mxu0
    %10285 = vmatpush.bf16.msra.mxu0 %v6849
    %10286 = vmatpush.bf16.msra.mxu0 %v6841
    %10287 = vmatpush.bf16.msra.mxu0 %v6833
    %10288 = vmatpush.bf16.msra.mxu0 %v6825
    %10289 = vmatpush.bf16.msra.mxu0 %v6817
    %10290 = vmatpush.bf16.msra.mxu0 %v6809
    %10291 = vmatpush.bf16.msra.mxu0 %v6801
    %10292 = vmatpush.bf16.msra.mxu0 %v6793
    %10293 = vmatmul.bf16.gmra.mxu0 %v1820
    %v10294 = vpop.f32.mrf.mxu0
    %v10295 = vadd.f32 %v10281, %v10294
    %v10296 = vpop.f32.mrf.mxu0
    %v10297 = vadd.f32 %v10283, %v10296
    %10298 = vdwg.mxu0
    %10299 = vmatpush.bf16.msra.mxu0 %v6913
    %10300 = vmatpush.bf16.msra.mxu0 %v6905
    %10301 = vmatpush.bf16.msra.mxu0 %v6897
    %10302 = vmatpush.bf16.msra.mxu0 %v6889
    %10303 = vmatpush.bf16.msra.mxu0 %v6881
    %10304 = vmatpush.bf16.msra.mxu0 %v6873
    %10305 = vmatpush.bf16.msra.mxu0 %v6865
    %10306 = vmatpush.bf16.msra.mxu0 %v6857
    %10307 = vmatmul.bf16.gmra.mxu0 %v1821
    %v10308 = vpop.f32.mrf.mxu0
    %v10309 = vadd.f32 %v10295, %v10308
    %v10310 = vpop.f32.mrf.mxu0
    %v10311 = vadd.f32 %v10297, %v10310
    %10312 = vdwg.mxu0
    %10313 = vmatpush.bf16.msra.mxu0 %v6977
    %10314 = vmatpush.bf16.msra.mxu0 %v6969
    %10315 = vmatpush.bf16.msra.mxu0 %v6961
    %10316 = vmatpush.bf16.msra.mxu0 %v6953
    %10317 = vmatpush.bf16.msra.mxu0 %v6945
    %10318 = vmatpush.bf16.msra.mxu0 %v6937
    %10319 = vmatpush.bf16.msra.mxu0 %v6929
    %10320 = vmatpush.bf16.msra.mxu0 %v6921
    %10321 = vmatmul.bf16.gmra.mxu0 %v1822
    %v10322 = vpop.f32.mrf.mxu0
    %v10323 = vadd.f32 %v10309, %v10322
    %v10324 = vpop.f32.mrf.mxu0
    %v10325 = vadd.f32 %v10311, %v10324
    %10326 = vdwg.mxu0
    %10327 = vmatpush.bf16.msra.mxu0 %v7041
    %10328 = vmatpush.bf16.msra.mxu0 %v7033
    %10329 = vmatpush.bf16.msra.mxu0 %v7025
    %10330 = vmatpush.bf16.msra.mxu0 %v7017
    %10331 = vmatpush.bf16.msra.mxu0 %v7009
    %10332 = vmatpush.bf16.msra.mxu0 %v7001
    %10333 = vmatpush.bf16.msra.mxu0 %v6993
    %10334 = vmatpush.bf16.msra.mxu0 %v6985
    %10335 = vmatmul.bf16.gmra.mxu0 %v1823
    %v10336 = vpop.f32.mrf.mxu0
    %v10337 = vadd.f32 %v10323, %v10336
    %v10338 = vpop.f32.mrf.mxu0
    %v10339 = vadd.f32 %v10325, %v10338
    %10340 = vdwg.mxu0
    %10341 = vmatpush.bf16.msra.mxu0 %v7105
    %10342 = vmatpush.bf16.msra.mxu0 %v7097
    %10343 = vmatpush.bf16.msra.mxu0 %v7089
    %10344 = vmatpush.bf16.msra.mxu0 %v7081
    %10345 = vmatpush.bf16.msra.mxu0 %v7073
    %10346 = vmatpush.bf16.msra.mxu0 %v7065
    %10347 = vmatpush.bf16.msra.mxu0 %v7057
    %10348 = vmatpush.bf16.msra.mxu0 %v7049
    %10349 = vmatmul.bf16.gmra.mxu0 %v1824
    %v10350 = vpop.f32.mrf.mxu0
    %v10351 = vadd.f32 %v10337, %v10350
    %v10352 = vpop.f32.mrf.mxu0
    %v10353 = vadd.f32 %v10339, %v10352
    %10354 = vdwg.mxu0
    %10355 = vmatpush.bf16.msra.mxu0 %v7169
    %10356 = vmatpush.bf16.msra.mxu0 %v7161
    %10357 = vmatpush.bf16.msra.mxu0 %v7153
    %10358 = vmatpush.bf16.msra.mxu0 %v7145
    %10359 = vmatpush.bf16.msra.mxu0 %v7137
    %10360 = vmatpush.bf16.msra.mxu0 %v7129
    %10361 = vmatpush.bf16.msra.mxu0 %v7121
    %10362 = vmatpush.bf16.msra.mxu0 %v7113
    %10363 = vmatmul.bf16.gmra.mxu0 %v1825
    %v10364 = vpop.f32.mrf.mxu0
    %v10365 = vadd.f32 %v10351, %v10364
    %v10366 = vpop.f32.mrf.mxu0
    %v10367 = vadd.f32 %v10353, %v10366
    %10368 = vdwg.mxu0
    %10369 = vmatpush.bf16.msra.mxu0 %v7233
    %10370 = vmatpush.bf16.msra.mxu0 %v7225
    %10371 = vmatpush.bf16.msra.mxu0 %v7217
    %10372 = vmatpush.bf16.msra.mxu0 %v7209
    %10373 = vmatpush.bf16.msra.mxu0 %v7201
    %10374 = vmatpush.bf16.msra.mxu0 %v7193
    %10375 = vmatpush.bf16.msra.mxu0 %v7185
    %10376 = vmatpush.bf16.msra.mxu0 %v7177
    %10377 = vmatmul.bf16.gmra.mxu0 %v1826
    %v10378 = vpop.f32.mrf.mxu0
    %v10379 = vadd.f32 %v10365, %v10378
    %v10380 = vpop.f32.mrf.mxu0
    %v10381 = vadd.f32 %v10367, %v10380
    %10382 = vdwg.mxu0
    %10383 = vmatpush.bf16.msra.mxu0 %v7297
    %10384 = vmatpush.bf16.msra.mxu0 %v7289
    %10385 = vmatpush.bf16.msra.mxu0 %v7281
    %10386 = vmatpush.bf16.msra.mxu0 %v7273
    %10387 = vmatpush.bf16.msra.mxu0 %v7265
    %10388 = vmatpush.bf16.msra.mxu0 %v7257
    %10389 = vmatpush.bf16.msra.mxu0 %v7249
    %10390 = vmatpush.bf16.msra.mxu0 %v7241
    %10391 = vmatmul.bf16.gmra.mxu0 %v1827
    %v10392 = vpop.f32.mrf.mxu0
    %v10393 = vadd.f32 %v10379, %v10392
    %v10394 = vpop.f32.mrf.mxu0
    %v10395 = vadd.f32 %v10381, %v10394
    %10396 = vdwg.mxu0
    %10397 = vmatpush.bf16.msra.mxu0 %v7361
    %10398 = vmatpush.bf16.msra.mxu0 %v7353
    %10399 = vmatpush.bf16.msra.mxu0 %v7345
    %10400 = vmatpush.bf16.msra.mxu0 %v7337
    %10401 = vmatpush.bf16.msra.mxu0 %v7329
    %10402 = vmatpush.bf16.msra.mxu0 %v7321
    %10403 = vmatpush.bf16.msra.mxu0 %v7313
    %10404 = vmatpush.bf16.msra.mxu0 %v7305
    %10405 = vmatmul.bf16.gmra.mxu0 %v1828
    %v10406 = vpop.f32.mrf.mxu0
    %v10407 = vadd.f32 %v10393, %v10406
    %v10408 = vpop.f32.mrf.mxu0
    %v10409 = vadd.f32 %v10395, %v10408
    %10410 = vdwg.mxu0
    %10411 = vmatpush.bf16.msra.mxu0 %v7425
    %10412 = vmatpush.bf16.msra.mxu0 %v7417
    %10413 = vmatpush.bf16.msra.mxu0 %v7409
    %10414 = vmatpush.bf16.msra.mxu0 %v7401
    %10415 = vmatpush.bf16.msra.mxu0 %v7393
    %10416 = vmatpush.bf16.msra.mxu0 %v7385
    %10417 = vmatpush.bf16.msra.mxu0 %v7377
    %10418 = vmatpush.bf16.msra.mxu0 %v7369
    %10419 = vmatmul.bf16.gmra.mxu0 %v1829
    %v10420 = vpop.f32.mrf.mxu0
    %v10421 = vadd.f32 %v10407, %v10420
    %v10422 = vpop.f32.mrf.mxu0
    %v10423 = vadd.f32 %v10409, %v10422
    %10424 = vdwg.mxu0
    %10425 = vmatpush.bf16.msra.mxu0 %v7489
    %10426 = vmatpush.bf16.msra.mxu0 %v7481
    %10427 = vmatpush.bf16.msra.mxu0 %v7473
    %10428 = vmatpush.bf16.msra.mxu0 %v7465
    %10429 = vmatpush.bf16.msra.mxu0 %v7457
    %10430 = vmatpush.bf16.msra.mxu0 %v7449
    %10431 = vmatpush.bf16.msra.mxu0 %v7441
    %10432 = vmatpush.bf16.msra.mxu0 %v7433
    %10433 = vmatmul.bf16.gmra.mxu0 %v1830
    %v10434 = vpop.f32.mrf.mxu0
    %v10435 = vadd.f32 %v10421, %v10434
    %v10436 = vpop.f32.mrf.mxu0
    %v10437 = vadd.f32 %v10423, %v10436
    %10438 = vdwg.mxu0
    %10439 = vmatpush.bf16.msra.mxu0 %v7553
    %10440 = vmatpush.bf16.msra.mxu0 %v7545
    %10441 = vmatpush.bf16.msra.mxu0 %v7537
    %10442 = vmatpush.bf16.msra.mxu0 %v7529
    %10443 = vmatpush.bf16.msra.mxu0 %v7521
    %10444 = vmatpush.bf16.msra.mxu0 %v7513
    %10445 = vmatpush.bf16.msra.mxu0 %v7505
    %10446 = vmatpush.bf16.msra.mxu0 %v7497
    %10447 = vmatmul.bf16.gmra.mxu0 %v1831
    %v10448 = vpop.f32.mrf.mxu0
    %v10449 = vadd.f32 %v10435, %v10448
    %v10450 = vpop.f32.mrf.mxu0
    %v10451 = vadd.f32 %v10437, %v10450
    %10452 = vdwg.mxu0
    %10453 = vmatpush.bf16.msra.mxu0 %v7617
    %10454 = vmatpush.bf16.msra.mxu0 %v7609
    %10455 = vmatpush.bf16.msra.mxu0 %v7601
    %10456 = vmatpush.bf16.msra.mxu0 %v7593
    %10457 = vmatpush.bf16.msra.mxu0 %v7585
    %10458 = vmatpush.bf16.msra.mxu0 %v7577
    %10459 = vmatpush.bf16.msra.mxu0 %v7569
    %10460 = vmatpush.bf16.msra.mxu0 %v7561
    %10461 = vmatmul.bf16.gmra.mxu0 %v1832
    %v10462 = vpop.f32.mrf.mxu0
    %v10463 = vadd.f32 %v10449, %v10462
    %v10464 = vpop.f32.mrf.mxu0
    %v10465 = vadd.f32 %v10451, %v10464
    %10466 = vdwg.mxu0
    %10467 = vmatpush.bf16.msra.mxu0 %v7681
    %10468 = vmatpush.bf16.msra.mxu0 %v7673
    %10469 = vmatpush.bf16.msra.mxu0 %v7665
    %10470 = vmatpush.bf16.msra.mxu0 %v7657
    %10471 = vmatpush.bf16.msra.mxu0 %v7649
    %10472 = vmatpush.bf16.msra.mxu0 %v7641
    %10473 = vmatpush.bf16.msra.mxu0 %v7633
    %10474 = vmatpush.bf16.msra.mxu0 %v7625
    %10475 = vmatmul.bf16.gmra.mxu0 %v1833
    %v10476 = vpop.f32.mrf.mxu0
    %v10477 = vadd.f32 %v10463, %v10476
    %v10478 = vpop.f32.mrf.mxu0
    %v10479 = vadd.f32 %v10465, %v10478
    %10480 = vdwg.mxu0
    %10481 = vmatpush.bf16.msra.mxu0 %v7745
    %10482 = vmatpush.bf16.msra.mxu0 %v7737
    %10483 = vmatpush.bf16.msra.mxu0 %v7729
    %10484 = vmatpush.bf16.msra.mxu0 %v7721
    %10485 = vmatpush.bf16.msra.mxu0 %v7713
    %10486 = vmatpush.bf16.msra.mxu0 %v7705
    %10487 = vmatpush.bf16.msra.mxu0 %v7697
    %10488 = vmatpush.bf16.msra.mxu0 %v7689
    %10489 = vmatmul.bf16.gmra.mxu0 %v1834
    %v10490 = vpop.f32.mrf.mxu0
    %v10491 = vadd.f32 %v10477, %v10490
    %v10492 = vpop.f32.mrf.mxu0
    %v10493 = vadd.f32 %v10479, %v10492
    %10494 = vdwg.mxu0
    %10495 = vmatpush.bf16.msra.mxu0 %v7809
    %10496 = vmatpush.bf16.msra.mxu0 %v7801
    %10497 = vmatpush.bf16.msra.mxu0 %v7793
    %10498 = vmatpush.bf16.msra.mxu0 %v7785
    %10499 = vmatpush.bf16.msra.mxu0 %v7777
    %10500 = vmatpush.bf16.msra.mxu0 %v7769
    %10501 = vmatpush.bf16.msra.mxu0 %v7761
    %10502 = vmatpush.bf16.msra.mxu0 %v7753
    %10503 = vmatmul.bf16.gmra.mxu0 %v1835
    %v10504 = vpop.f32.mrf.mxu0
    %v10505 = vadd.f32 %v10491, %v10504
    %v10506 = vpop.f32.mrf.mxu0
    %v10507 = vadd.f32 %v10493, %v10506
    %10508 = vdwg.mxu0
    %10509 = vmatpush.bf16.msra.mxu0 %v7873
    %10510 = vmatpush.bf16.msra.mxu0 %v7865
    %10511 = vmatpush.bf16.msra.mxu0 %v7857
    %10512 = vmatpush.bf16.msra.mxu0 %v7849
    %10513 = vmatpush.bf16.msra.mxu0 %v7841
    %10514 = vmatpush.bf16.msra.mxu0 %v7833
    %10515 = vmatpush.bf16.msra.mxu0 %v7825
    %10516 = vmatpush.bf16.msra.mxu0 %v7817
    %10517 = vmatmul.bf16.gmra.mxu0 %v1836
    %v10518 = vpop.f32.mrf.mxu0
    %v10519 = vadd.f32 %v10505, %v10518
    %v10520 = vpop.f32.mrf.mxu0
    %v10521 = vadd.f32 %v10507, %v10520
    %10522 = vdwg.mxu0
    %10523 = vmatpush.bf16.msra.mxu0 %v7937
    %10524 = vmatpush.bf16.msra.mxu0 %v7929
    %10525 = vmatpush.bf16.msra.mxu0 %v7921
    %10526 = vmatpush.bf16.msra.mxu0 %v7913
    %10527 = vmatpush.bf16.msra.mxu0 %v7905
    %10528 = vmatpush.bf16.msra.mxu0 %v7897
    %10529 = vmatpush.bf16.msra.mxu0 %v7889
    %10530 = vmatpush.bf16.msra.mxu0 %v7881
    %10531 = vmatmul.bf16.gmra.mxu0 %v1837
    %v10532 = vpop.f32.mrf.mxu0
    %v10533 = vadd.f32 %v10519, %v10532
    %v10534 = vpop.f32.mrf.mxu0
    %v10535 = vadd.f32 %v10521, %v10534
    %10536 = vdwg.mxu0
    %10537 = vmatpush.bf16.msra.mxu0 %v8001
    %10538 = vmatpush.bf16.msra.mxu0 %v7993
    %10539 = vmatpush.bf16.msra.mxu0 %v7985
    %10540 = vmatpush.bf16.msra.mxu0 %v7977
    %10541 = vmatpush.bf16.msra.mxu0 %v7969
    %10542 = vmatpush.bf16.msra.mxu0 %v7961
    %10543 = vmatpush.bf16.msra.mxu0 %v7953
    %10544 = vmatpush.bf16.msra.mxu0 %v7945
    %10545 = vmatmul.bf16.gmra.mxu0 %v1838
    %v10546 = vpop.f32.mrf.mxu0
    %v10547 = vadd.f32 %v10533, %v10546
    %v10548 = vpop.f32.mrf.mxu0
    %v10549 = vadd.f32 %v10535, %v10548
    %10550 = vdwg.mxu0
    %10551 = vmatpush.bf16.msra.mxu0 %v6530
    %10552 = vmatpush.bf16.msra.mxu0 %v6522
    %10553 = vmatpush.bf16.msra.mxu0 %v6514
    %10554 = vmatpush.bf16.msra.mxu0 %v6506
    %10555 = vmatpush.bf16.msra.mxu0 %v6498
    %10556 = vmatpush.bf16.msra.mxu0 %v6490
    %10557 = vmatpush.bf16.msra.mxu0 %v6482
    %10558 = vmatpush.bf16.msra.mxu0 %v6474
    %10559 = vmatmul.bf16.gmra.mxu0 %v1815
    %v10560 = vpop.f32.mrf.mxu0
    %v10561 = vadd.f32 %v1730, %v10560
    %v10562 = vpop.f32.mrf.mxu0
    %v10563 = vadd.f32 %v1730, %v10562
    %10564 = vdwg.mxu0
    %10565 = vmatpush.bf16.msra.mxu0 %v6594
    %10566 = vmatpush.bf16.msra.mxu0 %v6586
    %10567 = vmatpush.bf16.msra.mxu0 %v6578
    %10568 = vmatpush.bf16.msra.mxu0 %v6570
    %10569 = vmatpush.bf16.msra.mxu0 %v6562
    %10570 = vmatpush.bf16.msra.mxu0 %v6554
    %10571 = vmatpush.bf16.msra.mxu0 %v6546
    %10572 = vmatpush.bf16.msra.mxu0 %v6538
    %10573 = vmatmul.bf16.gmra.mxu0 %v1816
    %v10574 = vpop.f32.mrf.mxu0
    %v10575 = vadd.f32 %v10561, %v10574
    %v10576 = vpop.f32.mrf.mxu0
    %v10577 = vadd.f32 %v10563, %v10576
    %10578 = vdwg.mxu0
    %10579 = vmatpush.bf16.msra.mxu0 %v6658
    %10580 = vmatpush.bf16.msra.mxu0 %v6650
    %10581 = vmatpush.bf16.msra.mxu0 %v6642
    %10582 = vmatpush.bf16.msra.mxu0 %v6634
    %10583 = vmatpush.bf16.msra.mxu0 %v6626
    %10584 = vmatpush.bf16.msra.mxu0 %v6618
    %10585 = vmatpush.bf16.msra.mxu0 %v6610
    %10586 = vmatpush.bf16.msra.mxu0 %v6602
    %10587 = vmatmul.bf16.gmra.mxu0 %v1817
    %v10588 = vpop.f32.mrf.mxu0
    %v10589 = vadd.f32 %v10575, %v10588
    %v10590 = vpop.f32.mrf.mxu0
    %v10591 = vadd.f32 %v10577, %v10590
    %10592 = vdwg.mxu0
    %10593 = vmatpush.bf16.msra.mxu0 %v6722
    %10594 = vmatpush.bf16.msra.mxu0 %v6714
    %10595 = vmatpush.bf16.msra.mxu0 %v6706
    %10596 = vmatpush.bf16.msra.mxu0 %v6698
    %10597 = vmatpush.bf16.msra.mxu0 %v6690
    %10598 = vmatpush.bf16.msra.mxu0 %v6682
    %10599 = vmatpush.bf16.msra.mxu0 %v6674
    %10600 = vmatpush.bf16.msra.mxu0 %v6666
    %10601 = vmatmul.bf16.gmra.mxu0 %v1818
    %v10602 = vpop.f32.mrf.mxu0
    %v10603 = vadd.f32 %v10589, %v10602
    %v10604 = vpop.f32.mrf.mxu0
    %v10605 = vadd.f32 %v10591, %v10604
    %10606 = vdwg.mxu0
    %10607 = vmatpush.bf16.msra.mxu0 %v6786
    %10608 = vmatpush.bf16.msra.mxu0 %v6778
    %10609 = vmatpush.bf16.msra.mxu0 %v6770
    %10610 = vmatpush.bf16.msra.mxu0 %v6762
    %10611 = vmatpush.bf16.msra.mxu0 %v6754
    %10612 = vmatpush.bf16.msra.mxu0 %v6746
    %10613 = vmatpush.bf16.msra.mxu0 %v6738
    %10614 = vmatpush.bf16.msra.mxu0 %v6730
    %10615 = vmatmul.bf16.gmra.mxu0 %v1819
    %v10616 = vpop.f32.mrf.mxu0
    %v10617 = vadd.f32 %v10603, %v10616
    %v10618 = vpop.f32.mrf.mxu0
    %v10619 = vadd.f32 %v10605, %v10618
    %10620 = vdwg.mxu0
    %10621 = vmatpush.bf16.msra.mxu0 %v6850
    %10622 = vmatpush.bf16.msra.mxu0 %v6842
    %10623 = vmatpush.bf16.msra.mxu0 %v6834
    %10624 = vmatpush.bf16.msra.mxu0 %v6826
    %10625 = vmatpush.bf16.msra.mxu0 %v6818
    %10626 = vmatpush.bf16.msra.mxu0 %v6810
    %10627 = vmatpush.bf16.msra.mxu0 %v6802
    %10628 = vmatpush.bf16.msra.mxu0 %v6794
    %10629 = vmatmul.bf16.gmra.mxu0 %v1820
    %v10630 = vpop.f32.mrf.mxu0
    %v10631 = vadd.f32 %v10617, %v10630
    %v10632 = vpop.f32.mrf.mxu0
    %v10633 = vadd.f32 %v10619, %v10632
    %10634 = vdwg.mxu0
    %10635 = vmatpush.bf16.msra.mxu0 %v6914
    %10636 = vmatpush.bf16.msra.mxu0 %v6906
    %10637 = vmatpush.bf16.msra.mxu0 %v6898
    %10638 = vmatpush.bf16.msra.mxu0 %v6890
    %10639 = vmatpush.bf16.msra.mxu0 %v6882
    %10640 = vmatpush.bf16.msra.mxu0 %v6874
    %10641 = vmatpush.bf16.msra.mxu0 %v6866
    %10642 = vmatpush.bf16.msra.mxu0 %v6858
    %10643 = vmatmul.bf16.gmra.mxu0 %v1821
    %v10644 = vpop.f32.mrf.mxu0
    %v10645 = vadd.f32 %v10631, %v10644
    %v10646 = vpop.f32.mrf.mxu0
    %v10647 = vadd.f32 %v10633, %v10646
    %10648 = vdwg.mxu0
    %10649 = vmatpush.bf16.msra.mxu0 %v6978
    %10650 = vmatpush.bf16.msra.mxu0 %v6970
    %10651 = vmatpush.bf16.msra.mxu0 %v6962
    %10652 = vmatpush.bf16.msra.mxu0 %v6954
    %10653 = vmatpush.bf16.msra.mxu0 %v6946
    %10654 = vmatpush.bf16.msra.mxu0 %v6938
    %10655 = vmatpush.bf16.msra.mxu0 %v6930
    %10656 = vmatpush.bf16.msra.mxu0 %v6922
    %10657 = vmatmul.bf16.gmra.mxu0 %v1822
    %v10658 = vpop.f32.mrf.mxu0
    %v10659 = vadd.f32 %v10645, %v10658
    %v10660 = vpop.f32.mrf.mxu0
    %v10661 = vadd.f32 %v10647, %v10660
    %10662 = vdwg.mxu0
    %10663 = vmatpush.bf16.msra.mxu0 %v7042
    %10664 = vmatpush.bf16.msra.mxu0 %v7034
    %10665 = vmatpush.bf16.msra.mxu0 %v7026
    %10666 = vmatpush.bf16.msra.mxu0 %v7018
    %10667 = vmatpush.bf16.msra.mxu0 %v7010
    %10668 = vmatpush.bf16.msra.mxu0 %v7002
    %10669 = vmatpush.bf16.msra.mxu0 %v6994
    %10670 = vmatpush.bf16.msra.mxu0 %v6986
    %10671 = vmatmul.bf16.gmra.mxu0 %v1823
    %v10672 = vpop.f32.mrf.mxu0
    %v10673 = vadd.f32 %v10659, %v10672
    %v10674 = vpop.f32.mrf.mxu0
    %v10675 = vadd.f32 %v10661, %v10674
    %10676 = vdwg.mxu0
    %10677 = vmatpush.bf16.msra.mxu0 %v7106
    %10678 = vmatpush.bf16.msra.mxu0 %v7098
    %10679 = vmatpush.bf16.msra.mxu0 %v7090
    %10680 = vmatpush.bf16.msra.mxu0 %v7082
    %10681 = vmatpush.bf16.msra.mxu0 %v7074
    %10682 = vmatpush.bf16.msra.mxu0 %v7066
    %10683 = vmatpush.bf16.msra.mxu0 %v7058
    %10684 = vmatpush.bf16.msra.mxu0 %v7050
    %10685 = vmatmul.bf16.gmra.mxu0 %v1824
    %v10686 = vpop.f32.mrf.mxu0
    %v10687 = vadd.f32 %v10673, %v10686
    %v10688 = vpop.f32.mrf.mxu0
    %v10689 = vadd.f32 %v10675, %v10688
    %10690 = vdwg.mxu0
    %10691 = vmatpush.bf16.msra.mxu0 %v7170
    %10692 = vmatpush.bf16.msra.mxu0 %v7162
    %10693 = vmatpush.bf16.msra.mxu0 %v7154
    %10694 = vmatpush.bf16.msra.mxu0 %v7146
    %10695 = vmatpush.bf16.msra.mxu0 %v7138
    %10696 = vmatpush.bf16.msra.mxu0 %v7130
    %10697 = vmatpush.bf16.msra.mxu0 %v7122
    %10698 = vmatpush.bf16.msra.mxu0 %v7114
    %10699 = vmatmul.bf16.gmra.mxu0 %v1825
    %v10700 = vpop.f32.mrf.mxu0
    %v10701 = vadd.f32 %v10687, %v10700
    %v10702 = vpop.f32.mrf.mxu0
    %v10703 = vadd.f32 %v10689, %v10702
    %10704 = vdwg.mxu0
    %10705 = vmatpush.bf16.msra.mxu0 %v7234
    %10706 = vmatpush.bf16.msra.mxu0 %v7226
    %10707 = vmatpush.bf16.msra.mxu0 %v7218
    %10708 = vmatpush.bf16.msra.mxu0 %v7210
    %10709 = vmatpush.bf16.msra.mxu0 %v7202
    %10710 = vmatpush.bf16.msra.mxu0 %v7194
    %10711 = vmatpush.bf16.msra.mxu0 %v7186
    %10712 = vmatpush.bf16.msra.mxu0 %v7178
    %10713 = vmatmul.bf16.gmra.mxu0 %v1826
    %v10714 = vpop.f32.mrf.mxu0
    %v10715 = vadd.f32 %v10701, %v10714
    %v10716 = vpop.f32.mrf.mxu0
    %v10717 = vadd.f32 %v10703, %v10716
    %10718 = vdwg.mxu0
    %10719 = vmatpush.bf16.msra.mxu0 %v7298
    %10720 = vmatpush.bf16.msra.mxu0 %v7290
    %10721 = vmatpush.bf16.msra.mxu0 %v7282
    %10722 = vmatpush.bf16.msra.mxu0 %v7274
    %10723 = vmatpush.bf16.msra.mxu0 %v7266
    %10724 = vmatpush.bf16.msra.mxu0 %v7258
    %10725 = vmatpush.bf16.msra.mxu0 %v7250
    %10726 = vmatpush.bf16.msra.mxu0 %v7242
    %10727 = vmatmul.bf16.gmra.mxu0 %v1827
    %v10728 = vpop.f32.mrf.mxu0
    %v10729 = vadd.f32 %v10715, %v10728
    %v10730 = vpop.f32.mrf.mxu0
    %v10731 = vadd.f32 %v10717, %v10730
    %10732 = vdwg.mxu0
    %10733 = vmatpush.bf16.msra.mxu0 %v7362
    %10734 = vmatpush.bf16.msra.mxu0 %v7354
    %10735 = vmatpush.bf16.msra.mxu0 %v7346
    %10736 = vmatpush.bf16.msra.mxu0 %v7338
    %10737 = vmatpush.bf16.msra.mxu0 %v7330
    %10738 = vmatpush.bf16.msra.mxu0 %v7322
    %10739 = vmatpush.bf16.msra.mxu0 %v7314
    %10740 = vmatpush.bf16.msra.mxu0 %v7306
    %10741 = vmatmul.bf16.gmra.mxu0 %v1828
    %v10742 = vpop.f32.mrf.mxu0
    %v10743 = vadd.f32 %v10729, %v10742
    %v10744 = vpop.f32.mrf.mxu0
    %v10745 = vadd.f32 %v10731, %v10744
    %10746 = vdwg.mxu0
    %10747 = vmatpush.bf16.msra.mxu0 %v7426
    %10748 = vmatpush.bf16.msra.mxu0 %v7418
    %10749 = vmatpush.bf16.msra.mxu0 %v7410
    %10750 = vmatpush.bf16.msra.mxu0 %v7402
    %10751 = vmatpush.bf16.msra.mxu0 %v7394
    %10752 = vmatpush.bf16.msra.mxu0 %v7386
    %10753 = vmatpush.bf16.msra.mxu0 %v7378
    %10754 = vmatpush.bf16.msra.mxu0 %v7370
    %10755 = vmatmul.bf16.gmra.mxu0 %v1829
    %v10756 = vpop.f32.mrf.mxu0
    %v10757 = vadd.f32 %v10743, %v10756
    %v10758 = vpop.f32.mrf.mxu0
    %v10759 = vadd.f32 %v10745, %v10758
    %10760 = vdwg.mxu0
    %10761 = vmatpush.bf16.msra.mxu0 %v7490
    %10762 = vmatpush.bf16.msra.mxu0 %v7482
    %10763 = vmatpush.bf16.msra.mxu0 %v7474
    %10764 = vmatpush.bf16.msra.mxu0 %v7466
    %10765 = vmatpush.bf16.msra.mxu0 %v7458
    %10766 = vmatpush.bf16.msra.mxu0 %v7450
    %10767 = vmatpush.bf16.msra.mxu0 %v7442
    %10768 = vmatpush.bf16.msra.mxu0 %v7434
    %10769 = vmatmul.bf16.gmra.mxu0 %v1830
    %v10770 = vpop.f32.mrf.mxu0
    %v10771 = vadd.f32 %v10757, %v10770
    %v10772 = vpop.f32.mrf.mxu0
    %v10773 = vadd.f32 %v10759, %v10772
    %10774 = vdwg.mxu0
    %10775 = vmatpush.bf16.msra.mxu0 %v7554
    %10776 = vmatpush.bf16.msra.mxu0 %v7546
    %10777 = vmatpush.bf16.msra.mxu0 %v7538
    %10778 = vmatpush.bf16.msra.mxu0 %v7530
    %10779 = vmatpush.bf16.msra.mxu0 %v7522
    %10780 = vmatpush.bf16.msra.mxu0 %v7514
    %10781 = vmatpush.bf16.msra.mxu0 %v7506
    %10782 = vmatpush.bf16.msra.mxu0 %v7498
    %10783 = vmatmul.bf16.gmra.mxu0 %v1831
    %v10784 = vpop.f32.mrf.mxu0
    %v10785 = vadd.f32 %v10771, %v10784
    %v10786 = vpop.f32.mrf.mxu0
    %v10787 = vadd.f32 %v10773, %v10786
    %10788 = vdwg.mxu0
    %10789 = vmatpush.bf16.msra.mxu0 %v7618
    %10790 = vmatpush.bf16.msra.mxu0 %v7610
    %10791 = vmatpush.bf16.msra.mxu0 %v7602
    %10792 = vmatpush.bf16.msra.mxu0 %v7594
    %10793 = vmatpush.bf16.msra.mxu0 %v7586
    %10794 = vmatpush.bf16.msra.mxu0 %v7578
    %10795 = vmatpush.bf16.msra.mxu0 %v7570
    %10796 = vmatpush.bf16.msra.mxu0 %v7562
    %10797 = vmatmul.bf16.gmra.mxu0 %v1832
    %v10798 = vpop.f32.mrf.mxu0
    %v10799 = vadd.f32 %v10785, %v10798
    %v10800 = vpop.f32.mrf.mxu0
    %v10801 = vadd.f32 %v10787, %v10800
    %10802 = vdwg.mxu0
    %10803 = vmatpush.bf16.msra.mxu0 %v7682
    %10804 = vmatpush.bf16.msra.mxu0 %v7674
    %10805 = vmatpush.bf16.msra.mxu0 %v7666
    %10806 = vmatpush.bf16.msra.mxu0 %v7658
    %10807 = vmatpush.bf16.msra.mxu0 %v7650
    %10808 = vmatpush.bf16.msra.mxu0 %v7642
    %10809 = vmatpush.bf16.msra.mxu0 %v7634
    %10810 = vmatpush.bf16.msra.mxu0 %v7626
    %10811 = vmatmul.bf16.gmra.mxu0 %v1833
    %v10812 = vpop.f32.mrf.mxu0
    %v10813 = vadd.f32 %v10799, %v10812
    %v10814 = vpop.f32.mrf.mxu0
    %v10815 = vadd.f32 %v10801, %v10814
    %10816 = vdwg.mxu0
    %10817 = vmatpush.bf16.msra.mxu0 %v7746
    %10818 = vmatpush.bf16.msra.mxu0 %v7738
    %10819 = vmatpush.bf16.msra.mxu0 %v7730
    %10820 = vmatpush.bf16.msra.mxu0 %v7722
    %10821 = vmatpush.bf16.msra.mxu0 %v7714
    %10822 = vmatpush.bf16.msra.mxu0 %v7706
    %10823 = vmatpush.bf16.msra.mxu0 %v7698
    %10824 = vmatpush.bf16.msra.mxu0 %v7690
    %10825 = vmatmul.bf16.gmra.mxu0 %v1834
    %v10826 = vpop.f32.mrf.mxu0
    %v10827 = vadd.f32 %v10813, %v10826
    %v10828 = vpop.f32.mrf.mxu0
    %v10829 = vadd.f32 %v10815, %v10828
    %10830 = vdwg.mxu0
    %10831 = vmatpush.bf16.msra.mxu0 %v7810
    %10832 = vmatpush.bf16.msra.mxu0 %v7802
    %10833 = vmatpush.bf16.msra.mxu0 %v7794
    %10834 = vmatpush.bf16.msra.mxu0 %v7786
    %10835 = vmatpush.bf16.msra.mxu0 %v7778
    %10836 = vmatpush.bf16.msra.mxu0 %v7770
    %10837 = vmatpush.bf16.msra.mxu0 %v7762
    %10838 = vmatpush.bf16.msra.mxu0 %v7754
    %10839 = vmatmul.bf16.gmra.mxu0 %v1835
    %v10840 = vpop.f32.mrf.mxu0
    %v10841 = vadd.f32 %v10827, %v10840
    %v10842 = vpop.f32.mrf.mxu0
    %v10843 = vadd.f32 %v10829, %v10842
    %10844 = vdwg.mxu0
    %10845 = vmatpush.bf16.msra.mxu0 %v7874
    %10846 = vmatpush.bf16.msra.mxu0 %v7866
    %10847 = vmatpush.bf16.msra.mxu0 %v7858
    %10848 = vmatpush.bf16.msra.mxu0 %v7850
    %10849 = vmatpush.bf16.msra.mxu0 %v7842
    %10850 = vmatpush.bf16.msra.mxu0 %v7834
    %10851 = vmatpush.bf16.msra.mxu0 %v7826
    %10852 = vmatpush.bf16.msra.mxu0 %v7818
    %10853 = vmatmul.bf16.gmra.mxu0 %v1836
    %v10854 = vpop.f32.mrf.mxu0
    %v10855 = vadd.f32 %v10841, %v10854
    %v10856 = vpop.f32.mrf.mxu0
    %v10857 = vadd.f32 %v10843, %v10856
    %10858 = vdwg.mxu0
    %10859 = vmatpush.bf16.msra.mxu0 %v7938
    %10860 = vmatpush.bf16.msra.mxu0 %v7930
    %10861 = vmatpush.bf16.msra.mxu0 %v7922
    %10862 = vmatpush.bf16.msra.mxu0 %v7914
    %10863 = vmatpush.bf16.msra.mxu0 %v7906
    %10864 = vmatpush.bf16.msra.mxu0 %v7898
    %10865 = vmatpush.bf16.msra.mxu0 %v7890
    %10866 = vmatpush.bf16.msra.mxu0 %v7882
    %10867 = vmatmul.bf16.gmra.mxu0 %v1837
    %v10868 = vpop.f32.mrf.mxu0
    %v10869 = vadd.f32 %v10855, %v10868
    %v10870 = vpop.f32.mrf.mxu0
    %v10871 = vadd.f32 %v10857, %v10870
    %10872 = vdwg.mxu0
    %10873 = vmatpush.bf16.msra.mxu0 %v8002
    %10874 = vmatpush.bf16.msra.mxu0 %v7994
    %10875 = vmatpush.bf16.msra.mxu0 %v7986
    %10876 = vmatpush.bf16.msra.mxu0 %v7978
    %10877 = vmatpush.bf16.msra.mxu0 %v7970
    %10878 = vmatpush.bf16.msra.mxu0 %v7962
    %10879 = vmatpush.bf16.msra.mxu0 %v7954
    %10880 = vmatpush.bf16.msra.mxu0 %v7946
    %10881 = vmatmul.bf16.gmra.mxu0 %v1838
    %v10882 = vpop.f32.mrf.mxu0
    %v10883 = vadd.f32 %v10869, %v10882
    %v10884 = vpop.f32.mrf.mxu0
    %v10885 = vadd.f32 %v10871, %v10884
    %10886 = vdwg.mxu0
    %10887 = vmatpush.bf16.msra.mxu0 %v6531
    %10888 = vmatpush.bf16.msra.mxu0 %v6523
    %10889 = vmatpush.bf16.msra.mxu0 %v6515
    %10890 = vmatpush.bf16.msra.mxu0 %v6507
    %10891 = vmatpush.bf16.msra.mxu0 %v6499
    %10892 = vmatpush.bf16.msra.mxu0 %v6491
    %10893 = vmatpush.bf16.msra.mxu0 %v6483
    %10894 = vmatpush.bf16.msra.mxu0 %v6475
    %10895 = vmatmul.bf16.gmra.mxu0 %v1815
    %v10896 = vpop.f32.mrf.mxu0
    %v10897 = vadd.f32 %v1731, %v10896
    %v10898 = vpop.f32.mrf.mxu0
    %v10899 = vadd.f32 %v1731, %v10898
    %10900 = vdwg.mxu0
    %10901 = vmatpush.bf16.msra.mxu0 %v6595
    %10902 = vmatpush.bf16.msra.mxu0 %v6587
    %10903 = vmatpush.bf16.msra.mxu0 %v6579
    %10904 = vmatpush.bf16.msra.mxu0 %v6571
    %10905 = vmatpush.bf16.msra.mxu0 %v6563
    %10906 = vmatpush.bf16.msra.mxu0 %v6555
    %10907 = vmatpush.bf16.msra.mxu0 %v6547
    %10908 = vmatpush.bf16.msra.mxu0 %v6539
    %10909 = vmatmul.bf16.gmra.mxu0 %v1816
    %v10910 = vpop.f32.mrf.mxu0
    %v10911 = vadd.f32 %v10897, %v10910
    %v10912 = vpop.f32.mrf.mxu0
    %v10913 = vadd.f32 %v10899, %v10912
    %10914 = vdwg.mxu0
    %10915 = vmatpush.bf16.msra.mxu0 %v6659
    %10916 = vmatpush.bf16.msra.mxu0 %v6651
    %10917 = vmatpush.bf16.msra.mxu0 %v6643
    %10918 = vmatpush.bf16.msra.mxu0 %v6635
    %10919 = vmatpush.bf16.msra.mxu0 %v6627
    %10920 = vmatpush.bf16.msra.mxu0 %v6619
    %10921 = vmatpush.bf16.msra.mxu0 %v6611
    %10922 = vmatpush.bf16.msra.mxu0 %v6603
    %10923 = vmatmul.bf16.gmra.mxu0 %v1817
    %v10924 = vpop.f32.mrf.mxu0
    %v10925 = vadd.f32 %v10911, %v10924
    %v10926 = vpop.f32.mrf.mxu0
    %v10927 = vadd.f32 %v10913, %v10926
    %10928 = vdwg.mxu0
    %10929 = vmatpush.bf16.msra.mxu0 %v6723
    %10930 = vmatpush.bf16.msra.mxu0 %v6715
    %10931 = vmatpush.bf16.msra.mxu0 %v6707
    %10932 = vmatpush.bf16.msra.mxu0 %v6699
    %10933 = vmatpush.bf16.msra.mxu0 %v6691
    %10934 = vmatpush.bf16.msra.mxu0 %v6683
    %10935 = vmatpush.bf16.msra.mxu0 %v6675
    %10936 = vmatpush.bf16.msra.mxu0 %v6667
    %10937 = vmatmul.bf16.gmra.mxu0 %v1818
    %v10938 = vpop.f32.mrf.mxu0
    %v10939 = vadd.f32 %v10925, %v10938
    %v10940 = vpop.f32.mrf.mxu0
    %v10941 = vadd.f32 %v10927, %v10940
    %10942 = vdwg.mxu0
    %10943 = vmatpush.bf16.msra.mxu0 %v6787
    %10944 = vmatpush.bf16.msra.mxu0 %v6779
    %10945 = vmatpush.bf16.msra.mxu0 %v6771
    %10946 = vmatpush.bf16.msra.mxu0 %v6763
    %10947 = vmatpush.bf16.msra.mxu0 %v6755
    %10948 = vmatpush.bf16.msra.mxu0 %v6747
    %10949 = vmatpush.bf16.msra.mxu0 %v6739
    %10950 = vmatpush.bf16.msra.mxu0 %v6731
    %10951 = vmatmul.bf16.gmra.mxu0 %v1819
    %v10952 = vpop.f32.mrf.mxu0
    %v10953 = vadd.f32 %v10939, %v10952
    %v10954 = vpop.f32.mrf.mxu0
    %v10955 = vadd.f32 %v10941, %v10954
    %10956 = vdwg.mxu0
    %10957 = vmatpush.bf16.msra.mxu0 %v6851
    %10958 = vmatpush.bf16.msra.mxu0 %v6843
    %10959 = vmatpush.bf16.msra.mxu0 %v6835
    %10960 = vmatpush.bf16.msra.mxu0 %v6827
    %10961 = vmatpush.bf16.msra.mxu0 %v6819
    %10962 = vmatpush.bf16.msra.mxu0 %v6811
    %10963 = vmatpush.bf16.msra.mxu0 %v6803
    %10964 = vmatpush.bf16.msra.mxu0 %v6795
    %10965 = vmatmul.bf16.gmra.mxu0 %v1820
    %v10966 = vpop.f32.mrf.mxu0
    %v10967 = vadd.f32 %v10953, %v10966
    %v10968 = vpop.f32.mrf.mxu0
    %v10969 = vadd.f32 %v10955, %v10968
    %10970 = vdwg.mxu0
    %10971 = vmatpush.bf16.msra.mxu0 %v6915
    %10972 = vmatpush.bf16.msra.mxu0 %v6907
    %10973 = vmatpush.bf16.msra.mxu0 %v6899
    %10974 = vmatpush.bf16.msra.mxu0 %v6891
    %10975 = vmatpush.bf16.msra.mxu0 %v6883
    %10976 = vmatpush.bf16.msra.mxu0 %v6875
    %10977 = vmatpush.bf16.msra.mxu0 %v6867
    %10978 = vmatpush.bf16.msra.mxu0 %v6859
    %10979 = vmatmul.bf16.gmra.mxu0 %v1821
    %v10980 = vpop.f32.mrf.mxu0
    %v10981 = vadd.f32 %v10967, %v10980
    %v10982 = vpop.f32.mrf.mxu0
    %v10983 = vadd.f32 %v10969, %v10982
    %10984 = vdwg.mxu0
    %10985 = vmatpush.bf16.msra.mxu0 %v6979
    %10986 = vmatpush.bf16.msra.mxu0 %v6971
    %10987 = vmatpush.bf16.msra.mxu0 %v6963
    %10988 = vmatpush.bf16.msra.mxu0 %v6955
    %10989 = vmatpush.bf16.msra.mxu0 %v6947
    %10990 = vmatpush.bf16.msra.mxu0 %v6939
    %10991 = vmatpush.bf16.msra.mxu0 %v6931
    %10992 = vmatpush.bf16.msra.mxu0 %v6923
    %10993 = vmatmul.bf16.gmra.mxu0 %v1822
    %v10994 = vpop.f32.mrf.mxu0
    %v10995 = vadd.f32 %v10981, %v10994
    %v10996 = vpop.f32.mrf.mxu0
    %v10997 = vadd.f32 %v10983, %v10996
    %10998 = vdwg.mxu0
    %10999 = vmatpush.bf16.msra.mxu0 %v7043
    %11000 = vmatpush.bf16.msra.mxu0 %v7035
    %11001 = vmatpush.bf16.msra.mxu0 %v7027
    %11002 = vmatpush.bf16.msra.mxu0 %v7019
    %11003 = vmatpush.bf16.msra.mxu0 %v7011
    %11004 = vmatpush.bf16.msra.mxu0 %v7003
    %11005 = vmatpush.bf16.msra.mxu0 %v6995
    %11006 = vmatpush.bf16.msra.mxu0 %v6987
    %11007 = vmatmul.bf16.gmra.mxu0 %v1823
    %v11008 = vpop.f32.mrf.mxu0
    %v11009 = vadd.f32 %v10995, %v11008
    %v11010 = vpop.f32.mrf.mxu0
    %v11011 = vadd.f32 %v10997, %v11010
    %11012 = vdwg.mxu0
    %11013 = vmatpush.bf16.msra.mxu0 %v7107
    %11014 = vmatpush.bf16.msra.mxu0 %v7099
    %11015 = vmatpush.bf16.msra.mxu0 %v7091
    %11016 = vmatpush.bf16.msra.mxu0 %v7083
    %11017 = vmatpush.bf16.msra.mxu0 %v7075
    %11018 = vmatpush.bf16.msra.mxu0 %v7067
    %11019 = vmatpush.bf16.msra.mxu0 %v7059
    %11020 = vmatpush.bf16.msra.mxu0 %v7051
    %11021 = vmatmul.bf16.gmra.mxu0 %v1824
    %v11022 = vpop.f32.mrf.mxu0
    %v11023 = vadd.f32 %v11009, %v11022
    %v11024 = vpop.f32.mrf.mxu0
    %v11025 = vadd.f32 %v11011, %v11024
    %11026 = vdwg.mxu0
    %11027 = vmatpush.bf16.msra.mxu0 %v7171
    %11028 = vmatpush.bf16.msra.mxu0 %v7163
    %11029 = vmatpush.bf16.msra.mxu0 %v7155
    %11030 = vmatpush.bf16.msra.mxu0 %v7147
    %11031 = vmatpush.bf16.msra.mxu0 %v7139
    %11032 = vmatpush.bf16.msra.mxu0 %v7131
    %11033 = vmatpush.bf16.msra.mxu0 %v7123
    %11034 = vmatpush.bf16.msra.mxu0 %v7115
    %11035 = vmatmul.bf16.gmra.mxu0 %v1825
    %v11036 = vpop.f32.mrf.mxu0
    %v11037 = vadd.f32 %v11023, %v11036
    %v11038 = vpop.f32.mrf.mxu0
    %v11039 = vadd.f32 %v11025, %v11038
    %11040 = vdwg.mxu0
    %11041 = vmatpush.bf16.msra.mxu0 %v7235
    %11042 = vmatpush.bf16.msra.mxu0 %v7227
    %11043 = vmatpush.bf16.msra.mxu0 %v7219
    %11044 = vmatpush.bf16.msra.mxu0 %v7211
    %11045 = vmatpush.bf16.msra.mxu0 %v7203
    %11046 = vmatpush.bf16.msra.mxu0 %v7195
    %11047 = vmatpush.bf16.msra.mxu0 %v7187
    %11048 = vmatpush.bf16.msra.mxu0 %v7179
    %11049 = vmatmul.bf16.gmra.mxu0 %v1826
    %v11050 = vpop.f32.mrf.mxu0
    %v11051 = vadd.f32 %v11037, %v11050
    %v11052 = vpop.f32.mrf.mxu0
    %v11053 = vadd.f32 %v11039, %v11052
    %11054 = vdwg.mxu0
    %11055 = vmatpush.bf16.msra.mxu0 %v7299
    %11056 = vmatpush.bf16.msra.mxu0 %v7291
    %11057 = vmatpush.bf16.msra.mxu0 %v7283
    %11058 = vmatpush.bf16.msra.mxu0 %v7275
    %11059 = vmatpush.bf16.msra.mxu0 %v7267
    %11060 = vmatpush.bf16.msra.mxu0 %v7259
    %11061 = vmatpush.bf16.msra.mxu0 %v7251
    %11062 = vmatpush.bf16.msra.mxu0 %v7243
    %11063 = vmatmul.bf16.gmra.mxu0 %v1827
    %v11064 = vpop.f32.mrf.mxu0
    %v11065 = vadd.f32 %v11051, %v11064
    %v11066 = vpop.f32.mrf.mxu0
    %v11067 = vadd.f32 %v11053, %v11066
    %11068 = vdwg.mxu0
    %11069 = vmatpush.bf16.msra.mxu0 %v7363
    %11070 = vmatpush.bf16.msra.mxu0 %v7355
    %11071 = vmatpush.bf16.msra.mxu0 %v7347
    %11072 = vmatpush.bf16.msra.mxu0 %v7339
    %11073 = vmatpush.bf16.msra.mxu0 %v7331
    %11074 = vmatpush.bf16.msra.mxu0 %v7323
    %11075 = vmatpush.bf16.msra.mxu0 %v7315
    %11076 = vmatpush.bf16.msra.mxu0 %v7307
    %11077 = vmatmul.bf16.gmra.mxu0 %v1828
    %v11078 = vpop.f32.mrf.mxu0
    %v11079 = vadd.f32 %v11065, %v11078
    %v11080 = vpop.f32.mrf.mxu0
    %v11081 = vadd.f32 %v11067, %v11080
    %11082 = vdwg.mxu0
    %11083 = vmatpush.bf16.msra.mxu0 %v7427
    %11084 = vmatpush.bf16.msra.mxu0 %v7419
    %11085 = vmatpush.bf16.msra.mxu0 %v7411
    %11086 = vmatpush.bf16.msra.mxu0 %v7403
    %11087 = vmatpush.bf16.msra.mxu0 %v7395
    %11088 = vmatpush.bf16.msra.mxu0 %v7387
    %11089 = vmatpush.bf16.msra.mxu0 %v7379
    %11090 = vmatpush.bf16.msra.mxu0 %v7371
    %11091 = vmatmul.bf16.gmra.mxu0 %v1829
    %v11092 = vpop.f32.mrf.mxu0
    %v11093 = vadd.f32 %v11079, %v11092
    %v11094 = vpop.f32.mrf.mxu0
    %v11095 = vadd.f32 %v11081, %v11094
    %11096 = vdwg.mxu0
    %11097 = vmatpush.bf16.msra.mxu0 %v7491
    %11098 = vmatpush.bf16.msra.mxu0 %v7483
    %11099 = vmatpush.bf16.msra.mxu0 %v7475
    %11100 = vmatpush.bf16.msra.mxu0 %v7467
    %11101 = vmatpush.bf16.msra.mxu0 %v7459
    %11102 = vmatpush.bf16.msra.mxu0 %v7451
    %11103 = vmatpush.bf16.msra.mxu0 %v7443
    %11104 = vmatpush.bf16.msra.mxu0 %v7435
    %11105 = vmatmul.bf16.gmra.mxu0 %v1830
    %v11106 = vpop.f32.mrf.mxu0
    %v11107 = vadd.f32 %v11093, %v11106
    %v11108 = vpop.f32.mrf.mxu0
    %v11109 = vadd.f32 %v11095, %v11108
    %11110 = vdwg.mxu0
    %11111 = vmatpush.bf16.msra.mxu0 %v7555
    %11112 = vmatpush.bf16.msra.mxu0 %v7547
    %11113 = vmatpush.bf16.msra.mxu0 %v7539
    %11114 = vmatpush.bf16.msra.mxu0 %v7531
    %11115 = vmatpush.bf16.msra.mxu0 %v7523
    %11116 = vmatpush.bf16.msra.mxu0 %v7515
    %11117 = vmatpush.bf16.msra.mxu0 %v7507
    %11118 = vmatpush.bf16.msra.mxu0 %v7499
    %11119 = vmatmul.bf16.gmra.mxu0 %v1831
    %v11120 = vpop.f32.mrf.mxu0
    %v11121 = vadd.f32 %v11107, %v11120
    %v11122 = vpop.f32.mrf.mxu0
    %v11123 = vadd.f32 %v11109, %v11122
    %11124 = vdwg.mxu0
    %11125 = vmatpush.bf16.msra.mxu0 %v7619
    %11126 = vmatpush.bf16.msra.mxu0 %v7611
    %11127 = vmatpush.bf16.msra.mxu0 %v7603
    %11128 = vmatpush.bf16.msra.mxu0 %v7595
    %11129 = vmatpush.bf16.msra.mxu0 %v7587
    %11130 = vmatpush.bf16.msra.mxu0 %v7579
    %11131 = vmatpush.bf16.msra.mxu0 %v7571
    %11132 = vmatpush.bf16.msra.mxu0 %v7563
    %11133 = vmatmul.bf16.gmra.mxu0 %v1832
    %v11134 = vpop.f32.mrf.mxu0
    %v11135 = vadd.f32 %v11121, %v11134
    %v11136 = vpop.f32.mrf.mxu0
    %v11137 = vadd.f32 %v11123, %v11136
    %11138 = vdwg.mxu0
    %11139 = vmatpush.bf16.msra.mxu0 %v7683
    %11140 = vmatpush.bf16.msra.mxu0 %v7675
    %11141 = vmatpush.bf16.msra.mxu0 %v7667
    %11142 = vmatpush.bf16.msra.mxu0 %v7659
    %11143 = vmatpush.bf16.msra.mxu0 %v7651
    %11144 = vmatpush.bf16.msra.mxu0 %v7643
    %11145 = vmatpush.bf16.msra.mxu0 %v7635
    %11146 = vmatpush.bf16.msra.mxu0 %v7627
    %11147 = vmatmul.bf16.gmra.mxu0 %v1833
    %v11148 = vpop.f32.mrf.mxu0
    %v11149 = vadd.f32 %v11135, %v11148
    %v11150 = vpop.f32.mrf.mxu0
    %v11151 = vadd.f32 %v11137, %v11150
    %11152 = vdwg.mxu0
    %11153 = vmatpush.bf16.msra.mxu0 %v7747
    %11154 = vmatpush.bf16.msra.mxu0 %v7739
    %11155 = vmatpush.bf16.msra.mxu0 %v7731
    %11156 = vmatpush.bf16.msra.mxu0 %v7723
    %11157 = vmatpush.bf16.msra.mxu0 %v7715
    %11158 = vmatpush.bf16.msra.mxu0 %v7707
    %11159 = vmatpush.bf16.msra.mxu0 %v7699
    %11160 = vmatpush.bf16.msra.mxu0 %v7691
    %11161 = vmatmul.bf16.gmra.mxu0 %v1834
    %v11162 = vpop.f32.mrf.mxu0
    %v11163 = vadd.f32 %v11149, %v11162
    %v11164 = vpop.f32.mrf.mxu0
    %v11165 = vadd.f32 %v11151, %v11164
    %11166 = vdwg.mxu0
    %11167 = vmatpush.bf16.msra.mxu0 %v7811
    %11168 = vmatpush.bf16.msra.mxu0 %v7803
    %11169 = vmatpush.bf16.msra.mxu0 %v7795
    %11170 = vmatpush.bf16.msra.mxu0 %v7787
    %11171 = vmatpush.bf16.msra.mxu0 %v7779
    %11172 = vmatpush.bf16.msra.mxu0 %v7771
    %11173 = vmatpush.bf16.msra.mxu0 %v7763
    %11174 = vmatpush.bf16.msra.mxu0 %v7755
    %11175 = vmatmul.bf16.gmra.mxu0 %v1835
    %v11176 = vpop.f32.mrf.mxu0
    %v11177 = vadd.f32 %v11163, %v11176
    %v11178 = vpop.f32.mrf.mxu0
    %v11179 = vadd.f32 %v11165, %v11178
    %11180 = vdwg.mxu0
    %11181 = vmatpush.bf16.msra.mxu0 %v7875
    %11182 = vmatpush.bf16.msra.mxu0 %v7867
    %11183 = vmatpush.bf16.msra.mxu0 %v7859
    %11184 = vmatpush.bf16.msra.mxu0 %v7851
    %11185 = vmatpush.bf16.msra.mxu0 %v7843
    %11186 = vmatpush.bf16.msra.mxu0 %v7835
    %11187 = vmatpush.bf16.msra.mxu0 %v7827
    %11188 = vmatpush.bf16.msra.mxu0 %v7819
    %11189 = vmatmul.bf16.gmra.mxu0 %v1836
    %v11190 = vpop.f32.mrf.mxu0
    %v11191 = vadd.f32 %v11177, %v11190
    %v11192 = vpop.f32.mrf.mxu0
    %v11193 = vadd.f32 %v11179, %v11192
    %11194 = vdwg.mxu0
    %11195 = vmatpush.bf16.msra.mxu0 %v7939
    %11196 = vmatpush.bf16.msra.mxu0 %v7931
    %11197 = vmatpush.bf16.msra.mxu0 %v7923
    %11198 = vmatpush.bf16.msra.mxu0 %v7915
    %11199 = vmatpush.bf16.msra.mxu0 %v7907
    %11200 = vmatpush.bf16.msra.mxu0 %v7899
    %11201 = vmatpush.bf16.msra.mxu0 %v7891
    %11202 = vmatpush.bf16.msra.mxu0 %v7883
    %11203 = vmatmul.bf16.gmra.mxu0 %v1837
    %v11204 = vpop.f32.mrf.mxu0
    %v11205 = vadd.f32 %v11191, %v11204
    %v11206 = vpop.f32.mrf.mxu0
    %v11207 = vadd.f32 %v11193, %v11206
    %11208 = vdwg.mxu0
    %11209 = vmatpush.bf16.msra.mxu0 %v8003
    %11210 = vmatpush.bf16.msra.mxu0 %v7995
    %11211 = vmatpush.bf16.msra.mxu0 %v7987
    %11212 = vmatpush.bf16.msra.mxu0 %v7979
    %11213 = vmatpush.bf16.msra.mxu0 %v7971
    %11214 = vmatpush.bf16.msra.mxu0 %v7963
    %11215 = vmatpush.bf16.msra.mxu0 %v7955
    %11216 = vmatpush.bf16.msra.mxu0 %v7947
    %11217 = vmatmul.bf16.gmra.mxu0 %v1838
    %v11218 = vpop.f32.mrf.mxu0
    %v11219 = vadd.f32 %v11205, %v11218
    %v11220 = vpop.f32.mrf.mxu0
    %v11221 = vadd.f32 %v11207, %v11220
    %11222 = vdwg.mxu0
    %11223 = vmatpush.bf16.msra.mxu0 %v6532
    %11224 = vmatpush.bf16.msra.mxu0 %v6524
    %11225 = vmatpush.bf16.msra.mxu0 %v6516
    %11226 = vmatpush.bf16.msra.mxu0 %v6508
    %11227 = vmatpush.bf16.msra.mxu0 %v6500
    %11228 = vmatpush.bf16.msra.mxu0 %v6492
    %11229 = vmatpush.bf16.msra.mxu0 %v6484
    %11230 = vmatpush.bf16.msra.mxu0 %v6476
    %11231 = vmatmul.bf16.gmra.mxu0 %v1815
    %v11232 = vpop.f32.mrf.mxu0
    %v11233 = vadd.f32 %v1732, %v11232
    %v11234 = vpop.f32.mrf.mxu0
    %v11235 = vadd.f32 %v1732, %v11234
    %11236 = vdwg.mxu0
    %11237 = vmatpush.bf16.msra.mxu0 %v6596
    %11238 = vmatpush.bf16.msra.mxu0 %v6588
    %11239 = vmatpush.bf16.msra.mxu0 %v6580
    %11240 = vmatpush.bf16.msra.mxu0 %v6572
    %11241 = vmatpush.bf16.msra.mxu0 %v6564
    %11242 = vmatpush.bf16.msra.mxu0 %v6556
    %11243 = vmatpush.bf16.msra.mxu0 %v6548
    %11244 = vmatpush.bf16.msra.mxu0 %v6540
    %11245 = vmatmul.bf16.gmra.mxu0 %v1816
    %v11246 = vpop.f32.mrf.mxu0
    %v11247 = vadd.f32 %v11233, %v11246
    %v11248 = vpop.f32.mrf.mxu0
    %v11249 = vadd.f32 %v11235, %v11248
    %11250 = vdwg.mxu0
    %11251 = vmatpush.bf16.msra.mxu0 %v6660
    %11252 = vmatpush.bf16.msra.mxu0 %v6652
    %11253 = vmatpush.bf16.msra.mxu0 %v6644
    %11254 = vmatpush.bf16.msra.mxu0 %v6636
    %11255 = vmatpush.bf16.msra.mxu0 %v6628
    %11256 = vmatpush.bf16.msra.mxu0 %v6620
    %11257 = vmatpush.bf16.msra.mxu0 %v6612
    %11258 = vmatpush.bf16.msra.mxu0 %v6604
    %11259 = vmatmul.bf16.gmra.mxu0 %v1817
    %v11260 = vpop.f32.mrf.mxu0
    %v11261 = vadd.f32 %v11247, %v11260
    %v11262 = vpop.f32.mrf.mxu0
    %v11263 = vadd.f32 %v11249, %v11262
    %11264 = vdwg.mxu0
    %11265 = vmatpush.bf16.msra.mxu0 %v6724
    %11266 = vmatpush.bf16.msra.mxu0 %v6716
    %11267 = vmatpush.bf16.msra.mxu0 %v6708
    %11268 = vmatpush.bf16.msra.mxu0 %v6700
    %11269 = vmatpush.bf16.msra.mxu0 %v6692
    %11270 = vmatpush.bf16.msra.mxu0 %v6684
    %11271 = vmatpush.bf16.msra.mxu0 %v6676
    %11272 = vmatpush.bf16.msra.mxu0 %v6668
    %11273 = vmatmul.bf16.gmra.mxu0 %v1818
    %v11274 = vpop.f32.mrf.mxu0
    %v11275 = vadd.f32 %v11261, %v11274
    %v11276 = vpop.f32.mrf.mxu0
    %v11277 = vadd.f32 %v11263, %v11276
    %11278 = vdwg.mxu0
    %11279 = vmatpush.bf16.msra.mxu0 %v6788
    %11280 = vmatpush.bf16.msra.mxu0 %v6780
    %11281 = vmatpush.bf16.msra.mxu0 %v6772
    %11282 = vmatpush.bf16.msra.mxu0 %v6764
    %11283 = vmatpush.bf16.msra.mxu0 %v6756
    %11284 = vmatpush.bf16.msra.mxu0 %v6748
    %11285 = vmatpush.bf16.msra.mxu0 %v6740
    %11286 = vmatpush.bf16.msra.mxu0 %v6732
    %11287 = vmatmul.bf16.gmra.mxu0 %v1819
    %v11288 = vpop.f32.mrf.mxu0
    %v11289 = vadd.f32 %v11275, %v11288
    %v11290 = vpop.f32.mrf.mxu0
    %v11291 = vadd.f32 %v11277, %v11290
    %11292 = vdwg.mxu0
    %11293 = vmatpush.bf16.msra.mxu0 %v6852
    %11294 = vmatpush.bf16.msra.mxu0 %v6844
    %11295 = vmatpush.bf16.msra.mxu0 %v6836
    %11296 = vmatpush.bf16.msra.mxu0 %v6828
    %11297 = vmatpush.bf16.msra.mxu0 %v6820
    %11298 = vmatpush.bf16.msra.mxu0 %v6812
    %11299 = vmatpush.bf16.msra.mxu0 %v6804
    %11300 = vmatpush.bf16.msra.mxu0 %v6796
    %11301 = vmatmul.bf16.gmra.mxu0 %v1820
    %v11302 = vpop.f32.mrf.mxu0
    %v11303 = vadd.f32 %v11289, %v11302
    %v11304 = vpop.f32.mrf.mxu0
    %v11305 = vadd.f32 %v11291, %v11304
    %11306 = vdwg.mxu0
    %11307 = vmatpush.bf16.msra.mxu0 %v6916
    %11308 = vmatpush.bf16.msra.mxu0 %v6908
    %11309 = vmatpush.bf16.msra.mxu0 %v6900
    %11310 = vmatpush.bf16.msra.mxu0 %v6892
    %11311 = vmatpush.bf16.msra.mxu0 %v6884
    %11312 = vmatpush.bf16.msra.mxu0 %v6876
    %11313 = vmatpush.bf16.msra.mxu0 %v6868
    %11314 = vmatpush.bf16.msra.mxu0 %v6860
    %11315 = vmatmul.bf16.gmra.mxu0 %v1821
    %v11316 = vpop.f32.mrf.mxu0
    %v11317 = vadd.f32 %v11303, %v11316
    %v11318 = vpop.f32.mrf.mxu0
    %v11319 = vadd.f32 %v11305, %v11318
    %11320 = vdwg.mxu0
    %11321 = vmatpush.bf16.msra.mxu0 %v6980
    %11322 = vmatpush.bf16.msra.mxu0 %v6972
    %11323 = vmatpush.bf16.msra.mxu0 %v6964
    %11324 = vmatpush.bf16.msra.mxu0 %v6956
    %11325 = vmatpush.bf16.msra.mxu0 %v6948
    %11326 = vmatpush.bf16.msra.mxu0 %v6940
    %11327 = vmatpush.bf16.msra.mxu0 %v6932
    %11328 = vmatpush.bf16.msra.mxu0 %v6924
    %11329 = vmatmul.bf16.gmra.mxu0 %v1822
    %v11330 = vpop.f32.mrf.mxu0
    %v11331 = vadd.f32 %v11317, %v11330
    %v11332 = vpop.f32.mrf.mxu0
    %v11333 = vadd.f32 %v11319, %v11332
    %11334 = vdwg.mxu0
    %11335 = vmatpush.bf16.msra.mxu0 %v7044
    %11336 = vmatpush.bf16.msra.mxu0 %v7036
    %11337 = vmatpush.bf16.msra.mxu0 %v7028
    %11338 = vmatpush.bf16.msra.mxu0 %v7020
    %11339 = vmatpush.bf16.msra.mxu0 %v7012
    %11340 = vmatpush.bf16.msra.mxu0 %v7004
    %11341 = vmatpush.bf16.msra.mxu0 %v6996
    %11342 = vmatpush.bf16.msra.mxu0 %v6988
    %11343 = vmatmul.bf16.gmra.mxu0 %v1823
    %v11344 = vpop.f32.mrf.mxu0
    %v11345 = vadd.f32 %v11331, %v11344
    %v11346 = vpop.f32.mrf.mxu0
    %v11347 = vadd.f32 %v11333, %v11346
    %11348 = vdwg.mxu0
    %11349 = vmatpush.bf16.msra.mxu0 %v7108
    %11350 = vmatpush.bf16.msra.mxu0 %v7100
    %11351 = vmatpush.bf16.msra.mxu0 %v7092
    %11352 = vmatpush.bf16.msra.mxu0 %v7084
    %11353 = vmatpush.bf16.msra.mxu0 %v7076
    %11354 = vmatpush.bf16.msra.mxu0 %v7068
    %11355 = vmatpush.bf16.msra.mxu0 %v7060
    %11356 = vmatpush.bf16.msra.mxu0 %v7052
    %11357 = vmatmul.bf16.gmra.mxu0 %v1824
    %v11358 = vpop.f32.mrf.mxu0
    %v11359 = vadd.f32 %v11345, %v11358
    %v11360 = vpop.f32.mrf.mxu0
    %v11361 = vadd.f32 %v11347, %v11360
    %11362 = vdwg.mxu0
    %11363 = vmatpush.bf16.msra.mxu0 %v7172
    %11364 = vmatpush.bf16.msra.mxu0 %v7164
    %11365 = vmatpush.bf16.msra.mxu0 %v7156
    %11366 = vmatpush.bf16.msra.mxu0 %v7148
    %11367 = vmatpush.bf16.msra.mxu0 %v7140
    %11368 = vmatpush.bf16.msra.mxu0 %v7132
    %11369 = vmatpush.bf16.msra.mxu0 %v7124
    %11370 = vmatpush.bf16.msra.mxu0 %v7116
    %11371 = vmatmul.bf16.gmra.mxu0 %v1825
    %v11372 = vpop.f32.mrf.mxu0
    %v11373 = vadd.f32 %v11359, %v11372
    %v11374 = vpop.f32.mrf.mxu0
    %v11375 = vadd.f32 %v11361, %v11374
    %11376 = vdwg.mxu0
    %11377 = vmatpush.bf16.msra.mxu0 %v7236
    %11378 = vmatpush.bf16.msra.mxu0 %v7228
    %11379 = vmatpush.bf16.msra.mxu0 %v7220
    %11380 = vmatpush.bf16.msra.mxu0 %v7212
    %11381 = vmatpush.bf16.msra.mxu0 %v7204
    %11382 = vmatpush.bf16.msra.mxu0 %v7196
    %11383 = vmatpush.bf16.msra.mxu0 %v7188
    %11384 = vmatpush.bf16.msra.mxu0 %v7180
    %11385 = vmatmul.bf16.gmra.mxu0 %v1826
    %v11386 = vpop.f32.mrf.mxu0
    %v11387 = vadd.f32 %v11373, %v11386
    %v11388 = vpop.f32.mrf.mxu0
    %v11389 = vadd.f32 %v11375, %v11388
    %11390 = vdwg.mxu0
    %11391 = vmatpush.bf16.msra.mxu0 %v7300
    %11392 = vmatpush.bf16.msra.mxu0 %v7292
    %11393 = vmatpush.bf16.msra.mxu0 %v7284
    %11394 = vmatpush.bf16.msra.mxu0 %v7276
    %11395 = vmatpush.bf16.msra.mxu0 %v7268
    %11396 = vmatpush.bf16.msra.mxu0 %v7260
    %11397 = vmatpush.bf16.msra.mxu0 %v7252
    %11398 = vmatpush.bf16.msra.mxu0 %v7244
    %11399 = vmatmul.bf16.gmra.mxu0 %v1827
    %v11400 = vpop.f32.mrf.mxu0
    %v11401 = vadd.f32 %v11387, %v11400
    %v11402 = vpop.f32.mrf.mxu0
    %v11403 = vadd.f32 %v11389, %v11402
    %11404 = vdwg.mxu0
    %11405 = vmatpush.bf16.msra.mxu0 %v7364
    %11406 = vmatpush.bf16.msra.mxu0 %v7356
    %11407 = vmatpush.bf16.msra.mxu0 %v7348
    %11408 = vmatpush.bf16.msra.mxu0 %v7340
    %11409 = vmatpush.bf16.msra.mxu0 %v7332
    %11410 = vmatpush.bf16.msra.mxu0 %v7324
    %11411 = vmatpush.bf16.msra.mxu0 %v7316
    %11412 = vmatpush.bf16.msra.mxu0 %v7308
    %11413 = vmatmul.bf16.gmra.mxu0 %v1828
    %v11414 = vpop.f32.mrf.mxu0
    %v11415 = vadd.f32 %v11401, %v11414
    %v11416 = vpop.f32.mrf.mxu0
    %v11417 = vadd.f32 %v11403, %v11416
    %11418 = vdwg.mxu0
    %11419 = vmatpush.bf16.msra.mxu0 %v7428
    %11420 = vmatpush.bf16.msra.mxu0 %v7420
    %11421 = vmatpush.bf16.msra.mxu0 %v7412
    %11422 = vmatpush.bf16.msra.mxu0 %v7404
    %11423 = vmatpush.bf16.msra.mxu0 %v7396
    %11424 = vmatpush.bf16.msra.mxu0 %v7388
    %11425 = vmatpush.bf16.msra.mxu0 %v7380
    %11426 = vmatpush.bf16.msra.mxu0 %v7372
    %11427 = vmatmul.bf16.gmra.mxu0 %v1829
    %v11428 = vpop.f32.mrf.mxu0
    %v11429 = vadd.f32 %v11415, %v11428
    %v11430 = vpop.f32.mrf.mxu0
    %v11431 = vadd.f32 %v11417, %v11430
    %11432 = vdwg.mxu0
    %11433 = vmatpush.bf16.msra.mxu0 %v7492
    %11434 = vmatpush.bf16.msra.mxu0 %v7484
    %11435 = vmatpush.bf16.msra.mxu0 %v7476
    %11436 = vmatpush.bf16.msra.mxu0 %v7468
    %11437 = vmatpush.bf16.msra.mxu0 %v7460
    %11438 = vmatpush.bf16.msra.mxu0 %v7452
    %11439 = vmatpush.bf16.msra.mxu0 %v7444
    %11440 = vmatpush.bf16.msra.mxu0 %v7436
    %11441 = vmatmul.bf16.gmra.mxu0 %v1830
    %v11442 = vpop.f32.mrf.mxu0
    %v11443 = vadd.f32 %v11429, %v11442
    %v11444 = vpop.f32.mrf.mxu0
    %v11445 = vadd.f32 %v11431, %v11444
    %11446 = vdwg.mxu0
    %11447 = vmatpush.bf16.msra.mxu0 %v7556
    %11448 = vmatpush.bf16.msra.mxu0 %v7548
    %11449 = vmatpush.bf16.msra.mxu0 %v7540
    %11450 = vmatpush.bf16.msra.mxu0 %v7532
    %11451 = vmatpush.bf16.msra.mxu0 %v7524
    %11452 = vmatpush.bf16.msra.mxu0 %v7516
    %11453 = vmatpush.bf16.msra.mxu0 %v7508
    %11454 = vmatpush.bf16.msra.mxu0 %v7500
    %11455 = vmatmul.bf16.gmra.mxu0 %v1831
    %v11456 = vpop.f32.mrf.mxu0
    %v11457 = vadd.f32 %v11443, %v11456
    %v11458 = vpop.f32.mrf.mxu0
    %v11459 = vadd.f32 %v11445, %v11458
    %11460 = vdwg.mxu0
    %11461 = vmatpush.bf16.msra.mxu0 %v7620
    %11462 = vmatpush.bf16.msra.mxu0 %v7612
    %11463 = vmatpush.bf16.msra.mxu0 %v7604
    %11464 = vmatpush.bf16.msra.mxu0 %v7596
    %11465 = vmatpush.bf16.msra.mxu0 %v7588
    %11466 = vmatpush.bf16.msra.mxu0 %v7580
    %11467 = vmatpush.bf16.msra.mxu0 %v7572
    %11468 = vmatpush.bf16.msra.mxu0 %v7564
    %11469 = vmatmul.bf16.gmra.mxu0 %v1832
    %v11470 = vpop.f32.mrf.mxu0
    %v11471 = vadd.f32 %v11457, %v11470
    %v11472 = vpop.f32.mrf.mxu0
    %v11473 = vadd.f32 %v11459, %v11472
    %11474 = vdwg.mxu0
    %11475 = vmatpush.bf16.msra.mxu0 %v7684
    %11476 = vmatpush.bf16.msra.mxu0 %v7676
    %11477 = vmatpush.bf16.msra.mxu0 %v7668
    %11478 = vmatpush.bf16.msra.mxu0 %v7660
    %11479 = vmatpush.bf16.msra.mxu0 %v7652
    %11480 = vmatpush.bf16.msra.mxu0 %v7644
    %11481 = vmatpush.bf16.msra.mxu0 %v7636
    %11482 = vmatpush.bf16.msra.mxu0 %v7628
    %11483 = vmatmul.bf16.gmra.mxu0 %v1833
    %v11484 = vpop.f32.mrf.mxu0
    %v11485 = vadd.f32 %v11471, %v11484
    %v11486 = vpop.f32.mrf.mxu0
    %v11487 = vadd.f32 %v11473, %v11486
    %11488 = vdwg.mxu0
    %11489 = vmatpush.bf16.msra.mxu0 %v7748
    %11490 = vmatpush.bf16.msra.mxu0 %v7740
    %11491 = vmatpush.bf16.msra.mxu0 %v7732
    %11492 = vmatpush.bf16.msra.mxu0 %v7724
    %11493 = vmatpush.bf16.msra.mxu0 %v7716
    %11494 = vmatpush.bf16.msra.mxu0 %v7708
    %11495 = vmatpush.bf16.msra.mxu0 %v7700
    %11496 = vmatpush.bf16.msra.mxu0 %v7692
    %11497 = vmatmul.bf16.gmra.mxu0 %v1834
    %v11498 = vpop.f32.mrf.mxu0
    %v11499 = vadd.f32 %v11485, %v11498
    %v11500 = vpop.f32.mrf.mxu0
    %v11501 = vadd.f32 %v11487, %v11500
    %11502 = vdwg.mxu0
    %11503 = vmatpush.bf16.msra.mxu0 %v7812
    %11504 = vmatpush.bf16.msra.mxu0 %v7804
    %11505 = vmatpush.bf16.msra.mxu0 %v7796
    %11506 = vmatpush.bf16.msra.mxu0 %v7788
    %11507 = vmatpush.bf16.msra.mxu0 %v7780
    %11508 = vmatpush.bf16.msra.mxu0 %v7772
    %11509 = vmatpush.bf16.msra.mxu0 %v7764
    %11510 = vmatpush.bf16.msra.mxu0 %v7756
    %11511 = vmatmul.bf16.gmra.mxu0 %v1835
    %v11512 = vpop.f32.mrf.mxu0
    %v11513 = vadd.f32 %v11499, %v11512
    %v11514 = vpop.f32.mrf.mxu0
    %v11515 = vadd.f32 %v11501, %v11514
    %11516 = vdwg.mxu0
    %11517 = vmatpush.bf16.msra.mxu0 %v7876
    %11518 = vmatpush.bf16.msra.mxu0 %v7868
    %11519 = vmatpush.bf16.msra.mxu0 %v7860
    %11520 = vmatpush.bf16.msra.mxu0 %v7852
    %11521 = vmatpush.bf16.msra.mxu0 %v7844
    %11522 = vmatpush.bf16.msra.mxu0 %v7836
    %11523 = vmatpush.bf16.msra.mxu0 %v7828
    %11524 = vmatpush.bf16.msra.mxu0 %v7820
    %11525 = vmatmul.bf16.gmra.mxu0 %v1836
    %v11526 = vpop.f32.mrf.mxu0
    %v11527 = vadd.f32 %v11513, %v11526
    %v11528 = vpop.f32.mrf.mxu0
    %v11529 = vadd.f32 %v11515, %v11528
    %11530 = vdwg.mxu0
    %11531 = vmatpush.bf16.msra.mxu0 %v7940
    %11532 = vmatpush.bf16.msra.mxu0 %v7932
    %11533 = vmatpush.bf16.msra.mxu0 %v7924
    %11534 = vmatpush.bf16.msra.mxu0 %v7916
    %11535 = vmatpush.bf16.msra.mxu0 %v7908
    %11536 = vmatpush.bf16.msra.mxu0 %v7900
    %11537 = vmatpush.bf16.msra.mxu0 %v7892
    %11538 = vmatpush.bf16.msra.mxu0 %v7884
    %11539 = vmatmul.bf16.gmra.mxu0 %v1837
    %v11540 = vpop.f32.mrf.mxu0
    %v11541 = vadd.f32 %v11527, %v11540
    %v11542 = vpop.f32.mrf.mxu0
    %v11543 = vadd.f32 %v11529, %v11542
    %11544 = vdwg.mxu0
    %11545 = vmatpush.bf16.msra.mxu0 %v8004
    %11546 = vmatpush.bf16.msra.mxu0 %v7996
    %11547 = vmatpush.bf16.msra.mxu0 %v7988
    %11548 = vmatpush.bf16.msra.mxu0 %v7980
    %11549 = vmatpush.bf16.msra.mxu0 %v7972
    %11550 = vmatpush.bf16.msra.mxu0 %v7964
    %11551 = vmatpush.bf16.msra.mxu0 %v7956
    %11552 = vmatpush.bf16.msra.mxu0 %v7948
    %11553 = vmatmul.bf16.gmra.mxu0 %v1838
    %v11554 = vpop.f32.mrf.mxu0
    %v11555 = vadd.f32 %v11541, %v11554
    %v11556 = vpop.f32.mrf.mxu0
    %v11557 = vadd.f32 %v11543, %v11556
    %11558 = vdwg.mxu0
    %11559 = vmatpush.bf16.msra.mxu0 %v6533
    %11560 = vmatpush.bf16.msra.mxu0 %v6525
    %11561 = vmatpush.bf16.msra.mxu0 %v6517
    %11562 = vmatpush.bf16.msra.mxu0 %v6509
    %11563 = vmatpush.bf16.msra.mxu0 %v6501
    %11564 = vmatpush.bf16.msra.mxu0 %v6493
    %11565 = vmatpush.bf16.msra.mxu0 %v6485
    %11566 = vmatpush.bf16.msra.mxu0 %v6477
    %11567 = vmatmul.bf16.gmra.mxu0 %v1815
    %v11568 = vpop.f32.mrf.mxu0
    %v11569 = vadd.f32 %v1733, %v11568
    %v11570 = vpop.f32.mrf.mxu0
    %v11571 = vadd.f32 %v1733, %v11570
    %11572 = vdwg.mxu0
    %11573 = vmatpush.bf16.msra.mxu0 %v6597
    %11574 = vmatpush.bf16.msra.mxu0 %v6589
    %11575 = vmatpush.bf16.msra.mxu0 %v6581
    %11576 = vmatpush.bf16.msra.mxu0 %v6573
    %11577 = vmatpush.bf16.msra.mxu0 %v6565
    %11578 = vmatpush.bf16.msra.mxu0 %v6557
    %11579 = vmatpush.bf16.msra.mxu0 %v6549
    %11580 = vmatpush.bf16.msra.mxu0 %v6541
    %11581 = vmatmul.bf16.gmra.mxu0 %v1816
    %v11582 = vpop.f32.mrf.mxu0
    %v11583 = vadd.f32 %v11569, %v11582
    %v11584 = vpop.f32.mrf.mxu0
    %v11585 = vadd.f32 %v11571, %v11584
    %11586 = vdwg.mxu0
    %11587 = vmatpush.bf16.msra.mxu0 %v6661
    %11588 = vmatpush.bf16.msra.mxu0 %v6653
    %11589 = vmatpush.bf16.msra.mxu0 %v6645
    %11590 = vmatpush.bf16.msra.mxu0 %v6637
    %11591 = vmatpush.bf16.msra.mxu0 %v6629
    %11592 = vmatpush.bf16.msra.mxu0 %v6621
    %11593 = vmatpush.bf16.msra.mxu0 %v6613
    %11594 = vmatpush.bf16.msra.mxu0 %v6605
    %11595 = vmatmul.bf16.gmra.mxu0 %v1817
    %v11596 = vpop.f32.mrf.mxu0
    %v11597 = vadd.f32 %v11583, %v11596
    %v11598 = vpop.f32.mrf.mxu0
    %v11599 = vadd.f32 %v11585, %v11598
    %11600 = vdwg.mxu0
    %11601 = vmatpush.bf16.msra.mxu0 %v6725
    %11602 = vmatpush.bf16.msra.mxu0 %v6717
    %11603 = vmatpush.bf16.msra.mxu0 %v6709
    %11604 = vmatpush.bf16.msra.mxu0 %v6701
    %11605 = vmatpush.bf16.msra.mxu0 %v6693
    %11606 = vmatpush.bf16.msra.mxu0 %v6685
    %11607 = vmatpush.bf16.msra.mxu0 %v6677
    %11608 = vmatpush.bf16.msra.mxu0 %v6669
    %11609 = vmatmul.bf16.gmra.mxu0 %v1818
    %v11610 = vpop.f32.mrf.mxu0
    %v11611 = vadd.f32 %v11597, %v11610
    %v11612 = vpop.f32.mrf.mxu0
    %v11613 = vadd.f32 %v11599, %v11612
    %11614 = vdwg.mxu0
    %11615 = vmatpush.bf16.msra.mxu0 %v6789
    %11616 = vmatpush.bf16.msra.mxu0 %v6781
    %11617 = vmatpush.bf16.msra.mxu0 %v6773
    %11618 = vmatpush.bf16.msra.mxu0 %v6765
    %11619 = vmatpush.bf16.msra.mxu0 %v6757
    %11620 = vmatpush.bf16.msra.mxu0 %v6749
    %11621 = vmatpush.bf16.msra.mxu0 %v6741
    %11622 = vmatpush.bf16.msra.mxu0 %v6733
    %11623 = vmatmul.bf16.gmra.mxu0 %v1819
    %v11624 = vpop.f32.mrf.mxu0
    %v11625 = vadd.f32 %v11611, %v11624
    %v11626 = vpop.f32.mrf.mxu0
    %v11627 = vadd.f32 %v11613, %v11626
    %11628 = vdwg.mxu0
    %11629 = vmatpush.bf16.msra.mxu0 %v6853
    %11630 = vmatpush.bf16.msra.mxu0 %v6845
    %11631 = vmatpush.bf16.msra.mxu0 %v6837
    %11632 = vmatpush.bf16.msra.mxu0 %v6829
    %11633 = vmatpush.bf16.msra.mxu0 %v6821
    %11634 = vmatpush.bf16.msra.mxu0 %v6813
    %11635 = vmatpush.bf16.msra.mxu0 %v6805
    %11636 = vmatpush.bf16.msra.mxu0 %v6797
    %11637 = vmatmul.bf16.gmra.mxu0 %v1820
    %v11638 = vpop.f32.mrf.mxu0
    %v11639 = vadd.f32 %v11625, %v11638
    %v11640 = vpop.f32.mrf.mxu0
    %v11641 = vadd.f32 %v11627, %v11640
    %11642 = vdwg.mxu0
    %11643 = vmatpush.bf16.msra.mxu0 %v6917
    %11644 = vmatpush.bf16.msra.mxu0 %v6909
    %11645 = vmatpush.bf16.msra.mxu0 %v6901
    %11646 = vmatpush.bf16.msra.mxu0 %v6893
    %11647 = vmatpush.bf16.msra.mxu0 %v6885
    %11648 = vmatpush.bf16.msra.mxu0 %v6877
    %11649 = vmatpush.bf16.msra.mxu0 %v6869
    %11650 = vmatpush.bf16.msra.mxu0 %v6861
    %11651 = vmatmul.bf16.gmra.mxu0 %v1821
    %v11652 = vpop.f32.mrf.mxu0
    %v11653 = vadd.f32 %v11639, %v11652
    %v11654 = vpop.f32.mrf.mxu0
    %v11655 = vadd.f32 %v11641, %v11654
    %11656 = vdwg.mxu0
    %11657 = vmatpush.bf16.msra.mxu0 %v6981
    %11658 = vmatpush.bf16.msra.mxu0 %v6973
    %11659 = vmatpush.bf16.msra.mxu0 %v6965
    %11660 = vmatpush.bf16.msra.mxu0 %v6957
    %11661 = vmatpush.bf16.msra.mxu0 %v6949
    %11662 = vmatpush.bf16.msra.mxu0 %v6941
    %11663 = vmatpush.bf16.msra.mxu0 %v6933
    %11664 = vmatpush.bf16.msra.mxu0 %v6925
    %11665 = vmatmul.bf16.gmra.mxu0 %v1822
    %v11666 = vpop.f32.mrf.mxu0
    %v11667 = vadd.f32 %v11653, %v11666
    %v11668 = vpop.f32.mrf.mxu0
    %v11669 = vadd.f32 %v11655, %v11668
    %11670 = vdwg.mxu0
    %11671 = vmatpush.bf16.msra.mxu0 %v7045
    %11672 = vmatpush.bf16.msra.mxu0 %v7037
    %11673 = vmatpush.bf16.msra.mxu0 %v7029
    %11674 = vmatpush.bf16.msra.mxu0 %v7021
    %11675 = vmatpush.bf16.msra.mxu0 %v7013
    %11676 = vmatpush.bf16.msra.mxu0 %v7005
    %11677 = vmatpush.bf16.msra.mxu0 %v6997
    %11678 = vmatpush.bf16.msra.mxu0 %v6989
    %11679 = vmatmul.bf16.gmra.mxu0 %v1823
    %v11680 = vpop.f32.mrf.mxu0
    %v11681 = vadd.f32 %v11667, %v11680
    %v11682 = vpop.f32.mrf.mxu0
    %v11683 = vadd.f32 %v11669, %v11682
    %11684 = vdwg.mxu0
    %11685 = vmatpush.bf16.msra.mxu0 %v7109
    %11686 = vmatpush.bf16.msra.mxu0 %v7101
    %11687 = vmatpush.bf16.msra.mxu0 %v7093
    %11688 = vmatpush.bf16.msra.mxu0 %v7085
    %11689 = vmatpush.bf16.msra.mxu0 %v7077
    %11690 = vmatpush.bf16.msra.mxu0 %v7069
    %11691 = vmatpush.bf16.msra.mxu0 %v7061
    %11692 = vmatpush.bf16.msra.mxu0 %v7053
    %11693 = vmatmul.bf16.gmra.mxu0 %v1824
    %v11694 = vpop.f32.mrf.mxu0
    %v11695 = vadd.f32 %v11681, %v11694
    %v11696 = vpop.f32.mrf.mxu0
    %v11697 = vadd.f32 %v11683, %v11696
    %11698 = vdwg.mxu0
    %11699 = vmatpush.bf16.msra.mxu0 %v7173
    %11700 = vmatpush.bf16.msra.mxu0 %v7165
    %11701 = vmatpush.bf16.msra.mxu0 %v7157
    %11702 = vmatpush.bf16.msra.mxu0 %v7149
    %11703 = vmatpush.bf16.msra.mxu0 %v7141
    %11704 = vmatpush.bf16.msra.mxu0 %v7133
    %11705 = vmatpush.bf16.msra.mxu0 %v7125
    %11706 = vmatpush.bf16.msra.mxu0 %v7117
    %11707 = vmatmul.bf16.gmra.mxu0 %v1825
    %v11708 = vpop.f32.mrf.mxu0
    %v11709 = vadd.f32 %v11695, %v11708
    %v11710 = vpop.f32.mrf.mxu0
    %v11711 = vadd.f32 %v11697, %v11710
    %11712 = vdwg.mxu0
    %11713 = vmatpush.bf16.msra.mxu0 %v7237
    %11714 = vmatpush.bf16.msra.mxu0 %v7229
    %11715 = vmatpush.bf16.msra.mxu0 %v7221
    %11716 = vmatpush.bf16.msra.mxu0 %v7213
    %11717 = vmatpush.bf16.msra.mxu0 %v7205
    %11718 = vmatpush.bf16.msra.mxu0 %v7197
    %11719 = vmatpush.bf16.msra.mxu0 %v7189
    %11720 = vmatpush.bf16.msra.mxu0 %v7181
    %11721 = vmatmul.bf16.gmra.mxu0 %v1826
    %v11722 = vpop.f32.mrf.mxu0
    %v11723 = vadd.f32 %v11709, %v11722
    %v11724 = vpop.f32.mrf.mxu0
    %v11725 = vadd.f32 %v11711, %v11724
    %11726 = vdwg.mxu0
    %11727 = vmatpush.bf16.msra.mxu0 %v7301
    %11728 = vmatpush.bf16.msra.mxu0 %v7293
    %11729 = vmatpush.bf16.msra.mxu0 %v7285
    %11730 = vmatpush.bf16.msra.mxu0 %v7277
    %11731 = vmatpush.bf16.msra.mxu0 %v7269
    %11732 = vmatpush.bf16.msra.mxu0 %v7261
    %11733 = vmatpush.bf16.msra.mxu0 %v7253
    %11734 = vmatpush.bf16.msra.mxu0 %v7245
    %11735 = vmatmul.bf16.gmra.mxu0 %v1827
    %v11736 = vpop.f32.mrf.mxu0
    %v11737 = vadd.f32 %v11723, %v11736
    %v11738 = vpop.f32.mrf.mxu0
    %v11739 = vadd.f32 %v11725, %v11738
    %11740 = vdwg.mxu0
    %11741 = vmatpush.bf16.msra.mxu0 %v7365
    %11742 = vmatpush.bf16.msra.mxu0 %v7357
    %11743 = vmatpush.bf16.msra.mxu0 %v7349
    %11744 = vmatpush.bf16.msra.mxu0 %v7341
    %11745 = vmatpush.bf16.msra.mxu0 %v7333
    %11746 = vmatpush.bf16.msra.mxu0 %v7325
    %11747 = vmatpush.bf16.msra.mxu0 %v7317
    %11748 = vmatpush.bf16.msra.mxu0 %v7309
    %11749 = vmatmul.bf16.gmra.mxu0 %v1828
    %v11750 = vpop.f32.mrf.mxu0
    %v11751 = vadd.f32 %v11737, %v11750
    %v11752 = vpop.f32.mrf.mxu0
    %v11753 = vadd.f32 %v11739, %v11752
    %11754 = vdwg.mxu0
    %11755 = vmatpush.bf16.msra.mxu0 %v7429
    %11756 = vmatpush.bf16.msra.mxu0 %v7421
    %11757 = vmatpush.bf16.msra.mxu0 %v7413
    %11758 = vmatpush.bf16.msra.mxu0 %v7405
    %11759 = vmatpush.bf16.msra.mxu0 %v7397
    %11760 = vmatpush.bf16.msra.mxu0 %v7389
    %11761 = vmatpush.bf16.msra.mxu0 %v7381
    %11762 = vmatpush.bf16.msra.mxu0 %v7373
    %11763 = vmatmul.bf16.gmra.mxu0 %v1829
    %v11764 = vpop.f32.mrf.mxu0
    %v11765 = vadd.f32 %v11751, %v11764
    %v11766 = vpop.f32.mrf.mxu0
    %v11767 = vadd.f32 %v11753, %v11766
    %11768 = vdwg.mxu0
    %11769 = vmatpush.bf16.msra.mxu0 %v7493
    %11770 = vmatpush.bf16.msra.mxu0 %v7485
    %11771 = vmatpush.bf16.msra.mxu0 %v7477
    %11772 = vmatpush.bf16.msra.mxu0 %v7469
    %11773 = vmatpush.bf16.msra.mxu0 %v7461
    %11774 = vmatpush.bf16.msra.mxu0 %v7453
    %11775 = vmatpush.bf16.msra.mxu0 %v7445
    %11776 = vmatpush.bf16.msra.mxu0 %v7437
    %11777 = vmatmul.bf16.gmra.mxu0 %v1830
    %v11778 = vpop.f32.mrf.mxu0
    %v11779 = vadd.f32 %v11765, %v11778
    %v11780 = vpop.f32.mrf.mxu0
    %v11781 = vadd.f32 %v11767, %v11780
    %11782 = vdwg.mxu0
    %11783 = vmatpush.bf16.msra.mxu0 %v7557
    %11784 = vmatpush.bf16.msra.mxu0 %v7549
    %11785 = vmatpush.bf16.msra.mxu0 %v7541
    %11786 = vmatpush.bf16.msra.mxu0 %v7533
    %11787 = vmatpush.bf16.msra.mxu0 %v7525
    %11788 = vmatpush.bf16.msra.mxu0 %v7517
    %11789 = vmatpush.bf16.msra.mxu0 %v7509
    %11790 = vmatpush.bf16.msra.mxu0 %v7501
    %11791 = vmatmul.bf16.gmra.mxu0 %v1831
    %v11792 = vpop.f32.mrf.mxu0
    %v11793 = vadd.f32 %v11779, %v11792
    %v11794 = vpop.f32.mrf.mxu0
    %v11795 = vadd.f32 %v11781, %v11794
    %11796 = vdwg.mxu0
    %11797 = vmatpush.bf16.msra.mxu0 %v7621
    %11798 = vmatpush.bf16.msra.mxu0 %v7613
    %11799 = vmatpush.bf16.msra.mxu0 %v7605
    %11800 = vmatpush.bf16.msra.mxu0 %v7597
    %11801 = vmatpush.bf16.msra.mxu0 %v7589
    %11802 = vmatpush.bf16.msra.mxu0 %v7581
    %11803 = vmatpush.bf16.msra.mxu0 %v7573
    %11804 = vmatpush.bf16.msra.mxu0 %v7565
    %11805 = vmatmul.bf16.gmra.mxu0 %v1832
    %v11806 = vpop.f32.mrf.mxu0
    %v11807 = vadd.f32 %v11793, %v11806
    %v11808 = vpop.f32.mrf.mxu0
    %v11809 = vadd.f32 %v11795, %v11808
    %11810 = vdwg.mxu0
    %11811 = vmatpush.bf16.msra.mxu0 %v7685
    %11812 = vmatpush.bf16.msra.mxu0 %v7677
    %11813 = vmatpush.bf16.msra.mxu0 %v7669
    %11814 = vmatpush.bf16.msra.mxu0 %v7661
    %11815 = vmatpush.bf16.msra.mxu0 %v7653
    %11816 = vmatpush.bf16.msra.mxu0 %v7645
    %11817 = vmatpush.bf16.msra.mxu0 %v7637
    %11818 = vmatpush.bf16.msra.mxu0 %v7629
    %11819 = vmatmul.bf16.gmra.mxu0 %v1833
    %v11820 = vpop.f32.mrf.mxu0
    %v11821 = vadd.f32 %v11807, %v11820
    %v11822 = vpop.f32.mrf.mxu0
    %v11823 = vadd.f32 %v11809, %v11822
    %11824 = vdwg.mxu0
    %11825 = vmatpush.bf16.msra.mxu0 %v7749
    %11826 = vmatpush.bf16.msra.mxu0 %v7741
    %11827 = vmatpush.bf16.msra.mxu0 %v7733
    %11828 = vmatpush.bf16.msra.mxu0 %v7725
    %11829 = vmatpush.bf16.msra.mxu0 %v7717
    %11830 = vmatpush.bf16.msra.mxu0 %v7709
    %11831 = vmatpush.bf16.msra.mxu0 %v7701
    %11832 = vmatpush.bf16.msra.mxu0 %v7693
    %11833 = vmatmul.bf16.gmra.mxu0 %v1834
    %v11834 = vpop.f32.mrf.mxu0
    %v11835 = vadd.f32 %v11821, %v11834
    %v11836 = vpop.f32.mrf.mxu0
    %v11837 = vadd.f32 %v11823, %v11836
    %11838 = vdwg.mxu0
    %11839 = vmatpush.bf16.msra.mxu0 %v7813
    %11840 = vmatpush.bf16.msra.mxu0 %v7805
    %11841 = vmatpush.bf16.msra.mxu0 %v7797
    %11842 = vmatpush.bf16.msra.mxu0 %v7789
    %11843 = vmatpush.bf16.msra.mxu0 %v7781
    %11844 = vmatpush.bf16.msra.mxu0 %v7773
    %11845 = vmatpush.bf16.msra.mxu0 %v7765
    %11846 = vmatpush.bf16.msra.mxu0 %v7757
    %11847 = vmatmul.bf16.gmra.mxu0 %v1835
    %v11848 = vpop.f32.mrf.mxu0
    %v11849 = vadd.f32 %v11835, %v11848
    %v11850 = vpop.f32.mrf.mxu0
    %v11851 = vadd.f32 %v11837, %v11850
    %11852 = vdwg.mxu0
    %11853 = vmatpush.bf16.msra.mxu0 %v7877
    %11854 = vmatpush.bf16.msra.mxu0 %v7869
    %11855 = vmatpush.bf16.msra.mxu0 %v7861
    %11856 = vmatpush.bf16.msra.mxu0 %v7853
    %11857 = vmatpush.bf16.msra.mxu0 %v7845
    %11858 = vmatpush.bf16.msra.mxu0 %v7837
    %11859 = vmatpush.bf16.msra.mxu0 %v7829
    %11860 = vmatpush.bf16.msra.mxu0 %v7821
    %11861 = vmatmul.bf16.gmra.mxu0 %v1836
    %v11862 = vpop.f32.mrf.mxu0
    %v11863 = vadd.f32 %v11849, %v11862
    %v11864 = vpop.f32.mrf.mxu0
    %v11865 = vadd.f32 %v11851, %v11864
    %11866 = vdwg.mxu0
    %11867 = vmatpush.bf16.msra.mxu0 %v7941
    %11868 = vmatpush.bf16.msra.mxu0 %v7933
    %11869 = vmatpush.bf16.msra.mxu0 %v7925
    %11870 = vmatpush.bf16.msra.mxu0 %v7917
    %11871 = vmatpush.bf16.msra.mxu0 %v7909
    %11872 = vmatpush.bf16.msra.mxu0 %v7901
    %11873 = vmatpush.bf16.msra.mxu0 %v7893
    %11874 = vmatpush.bf16.msra.mxu0 %v7885
    %11875 = vmatmul.bf16.gmra.mxu0 %v1837
    %v11876 = vpop.f32.mrf.mxu0
    %v11877 = vadd.f32 %v11863, %v11876
    %v11878 = vpop.f32.mrf.mxu0
    %v11879 = vadd.f32 %v11865, %v11878
    %11880 = vdwg.mxu0
    %11881 = vmatpush.bf16.msra.mxu0 %v8005
    %11882 = vmatpush.bf16.msra.mxu0 %v7997
    %11883 = vmatpush.bf16.msra.mxu0 %v7989
    %11884 = vmatpush.bf16.msra.mxu0 %v7981
    %11885 = vmatpush.bf16.msra.mxu0 %v7973
    %11886 = vmatpush.bf16.msra.mxu0 %v7965
    %11887 = vmatpush.bf16.msra.mxu0 %v7957
    %11888 = vmatpush.bf16.msra.mxu0 %v7949
    %11889 = vmatmul.bf16.gmra.mxu0 %v1838
    %v11890 = vpop.f32.mrf.mxu0
    %v11891 = vadd.f32 %v11877, %v11890
    %v11892 = vpop.f32.mrf.mxu0
    %v11893 = vadd.f32 %v11879, %v11892
    %11894 = vdwg.mxu0
    %11895 = vmatpush.bf16.msra.mxu0 %v6534
    %11896 = vmatpush.bf16.msra.mxu0 %v6526
    %11897 = vmatpush.bf16.msra.mxu0 %v6518
    %11898 = vmatpush.bf16.msra.mxu0 %v6510
    %11899 = vmatpush.bf16.msra.mxu0 %v6502
    %11900 = vmatpush.bf16.msra.mxu0 %v6494
    %11901 = vmatpush.bf16.msra.mxu0 %v6486
    %11902 = vmatpush.bf16.msra.mxu0 %v6478
    %11903 = vmatmul.bf16.gmra.mxu0 %v1815
    %v11904 = vpop.f32.mrf.mxu0
    %v11905 = vadd.f32 %v1734, %v11904
    %v11906 = vpop.f32.mrf.mxu0
    %v11907 = vadd.f32 %v1734, %v11906
    %11908 = vdwg.mxu0
    %11909 = vmatpush.bf16.msra.mxu0 %v6598
    %11910 = vmatpush.bf16.msra.mxu0 %v6590
    %11911 = vmatpush.bf16.msra.mxu0 %v6582
    %11912 = vmatpush.bf16.msra.mxu0 %v6574
    %11913 = vmatpush.bf16.msra.mxu0 %v6566
    %11914 = vmatpush.bf16.msra.mxu0 %v6558
    %11915 = vmatpush.bf16.msra.mxu0 %v6550
    %11916 = vmatpush.bf16.msra.mxu0 %v6542
    %11917 = vmatmul.bf16.gmra.mxu0 %v1816
    %v11918 = vpop.f32.mrf.mxu0
    %v11919 = vadd.f32 %v11905, %v11918
    %v11920 = vpop.f32.mrf.mxu0
    %v11921 = vadd.f32 %v11907, %v11920
    %11922 = vdwg.mxu0
    %11923 = vmatpush.bf16.msra.mxu0 %v6662
    %11924 = vmatpush.bf16.msra.mxu0 %v6654
    %11925 = vmatpush.bf16.msra.mxu0 %v6646
    %11926 = vmatpush.bf16.msra.mxu0 %v6638
    %11927 = vmatpush.bf16.msra.mxu0 %v6630
    %11928 = vmatpush.bf16.msra.mxu0 %v6622
    %11929 = vmatpush.bf16.msra.mxu0 %v6614
    %11930 = vmatpush.bf16.msra.mxu0 %v6606
    %11931 = vmatmul.bf16.gmra.mxu0 %v1817
    %v11932 = vpop.f32.mrf.mxu0
    %v11933 = vadd.f32 %v11919, %v11932
    %v11934 = vpop.f32.mrf.mxu0
    %v11935 = vadd.f32 %v11921, %v11934
    %11936 = vdwg.mxu0
    %11937 = vmatpush.bf16.msra.mxu0 %v6726
    %11938 = vmatpush.bf16.msra.mxu0 %v6718
    %11939 = vmatpush.bf16.msra.mxu0 %v6710
    %11940 = vmatpush.bf16.msra.mxu0 %v6702
    %11941 = vmatpush.bf16.msra.mxu0 %v6694
    %11942 = vmatpush.bf16.msra.mxu0 %v6686
    %11943 = vmatpush.bf16.msra.mxu0 %v6678
    %11944 = vmatpush.bf16.msra.mxu0 %v6670
    %11945 = vmatmul.bf16.gmra.mxu0 %v1818
    %v11946 = vpop.f32.mrf.mxu0
    %v11947 = vadd.f32 %v11933, %v11946
    %v11948 = vpop.f32.mrf.mxu0
    %v11949 = vadd.f32 %v11935, %v11948
    %11950 = vdwg.mxu0
    %11951 = vmatpush.bf16.msra.mxu0 %v6790
    %11952 = vmatpush.bf16.msra.mxu0 %v6782
    %11953 = vmatpush.bf16.msra.mxu0 %v6774
    %11954 = vmatpush.bf16.msra.mxu0 %v6766
    %11955 = vmatpush.bf16.msra.mxu0 %v6758
    %11956 = vmatpush.bf16.msra.mxu0 %v6750
    %11957 = vmatpush.bf16.msra.mxu0 %v6742
    %11958 = vmatpush.bf16.msra.mxu0 %v6734
    %11959 = vmatmul.bf16.gmra.mxu0 %v1819
    %v11960 = vpop.f32.mrf.mxu0
    %v11961 = vadd.f32 %v11947, %v11960
    %v11962 = vpop.f32.mrf.mxu0
    %v11963 = vadd.f32 %v11949, %v11962
    %11964 = vdwg.mxu0
    %11965 = vmatpush.bf16.msra.mxu0 %v6854
    %11966 = vmatpush.bf16.msra.mxu0 %v6846
    %11967 = vmatpush.bf16.msra.mxu0 %v6838
    %11968 = vmatpush.bf16.msra.mxu0 %v6830
    %11969 = vmatpush.bf16.msra.mxu0 %v6822
    %11970 = vmatpush.bf16.msra.mxu0 %v6814
    %11971 = vmatpush.bf16.msra.mxu0 %v6806
    %11972 = vmatpush.bf16.msra.mxu0 %v6798
    %11973 = vmatmul.bf16.gmra.mxu0 %v1820
    %v11974 = vpop.f32.mrf.mxu0
    %v11975 = vadd.f32 %v11961, %v11974
    %v11976 = vpop.f32.mrf.mxu0
    %v11977 = vadd.f32 %v11963, %v11976
    %11978 = vdwg.mxu0
    %11979 = vmatpush.bf16.msra.mxu0 %v6918
    %11980 = vmatpush.bf16.msra.mxu0 %v6910
    %11981 = vmatpush.bf16.msra.mxu0 %v6902
    %11982 = vmatpush.bf16.msra.mxu0 %v6894
    %11983 = vmatpush.bf16.msra.mxu0 %v6886
    %11984 = vmatpush.bf16.msra.mxu0 %v6878
    %11985 = vmatpush.bf16.msra.mxu0 %v6870
    %11986 = vmatpush.bf16.msra.mxu0 %v6862
    %11987 = vmatmul.bf16.gmra.mxu0 %v1821
    %v11988 = vpop.f32.mrf.mxu0
    %v11989 = vadd.f32 %v11975, %v11988
    %v11990 = vpop.f32.mrf.mxu0
    %v11991 = vadd.f32 %v11977, %v11990
    %11992 = vdwg.mxu0
    %11993 = vmatpush.bf16.msra.mxu0 %v6982
    %11994 = vmatpush.bf16.msra.mxu0 %v6974
    %11995 = vmatpush.bf16.msra.mxu0 %v6966
    %11996 = vmatpush.bf16.msra.mxu0 %v6958
    %11997 = vmatpush.bf16.msra.mxu0 %v6950
    %11998 = vmatpush.bf16.msra.mxu0 %v6942
    %11999 = vmatpush.bf16.msra.mxu0 %v6934
    %12000 = vmatpush.bf16.msra.mxu0 %v6926
    %12001 = vmatmul.bf16.gmra.mxu0 %v1822
    %v12002 = vpop.f32.mrf.mxu0
    %v12003 = vadd.f32 %v11989, %v12002
    %v12004 = vpop.f32.mrf.mxu0
    %v12005 = vadd.f32 %v11991, %v12004
    %12006 = vdwg.mxu0
    %12007 = vmatpush.bf16.msra.mxu0 %v7046
    %12008 = vmatpush.bf16.msra.mxu0 %v7038
    %12009 = vmatpush.bf16.msra.mxu0 %v7030
    %12010 = vmatpush.bf16.msra.mxu0 %v7022
    %12011 = vmatpush.bf16.msra.mxu0 %v7014
    %12012 = vmatpush.bf16.msra.mxu0 %v7006
    %12013 = vmatpush.bf16.msra.mxu0 %v6998
    %12014 = vmatpush.bf16.msra.mxu0 %v6990
    %12015 = vmatmul.bf16.gmra.mxu0 %v1823
    %v12016 = vpop.f32.mrf.mxu0
    %v12017 = vadd.f32 %v12003, %v12016
    %v12018 = vpop.f32.mrf.mxu0
    %v12019 = vadd.f32 %v12005, %v12018
    %12020 = vdwg.mxu0
    %12021 = vmatpush.bf16.msra.mxu0 %v7110
    %12022 = vmatpush.bf16.msra.mxu0 %v7102
    %12023 = vmatpush.bf16.msra.mxu0 %v7094
    %12024 = vmatpush.bf16.msra.mxu0 %v7086
    %12025 = vmatpush.bf16.msra.mxu0 %v7078
    %12026 = vmatpush.bf16.msra.mxu0 %v7070
    %12027 = vmatpush.bf16.msra.mxu0 %v7062
    %12028 = vmatpush.bf16.msra.mxu0 %v7054
    %12029 = vmatmul.bf16.gmra.mxu0 %v1824
    %v12030 = vpop.f32.mrf.mxu0
    %v12031 = vadd.f32 %v12017, %v12030
    %v12032 = vpop.f32.mrf.mxu0
    %v12033 = vadd.f32 %v12019, %v12032
    %12034 = vdwg.mxu0
    %12035 = vmatpush.bf16.msra.mxu0 %v7174
    %12036 = vmatpush.bf16.msra.mxu0 %v7166
    %12037 = vmatpush.bf16.msra.mxu0 %v7158
    %12038 = vmatpush.bf16.msra.mxu0 %v7150
    %12039 = vmatpush.bf16.msra.mxu0 %v7142
    %12040 = vmatpush.bf16.msra.mxu0 %v7134
    %12041 = vmatpush.bf16.msra.mxu0 %v7126
    %12042 = vmatpush.bf16.msra.mxu0 %v7118
    %12043 = vmatmul.bf16.gmra.mxu0 %v1825
    %v12044 = vpop.f32.mrf.mxu0
    %v12045 = vadd.f32 %v12031, %v12044
    %v12046 = vpop.f32.mrf.mxu0
    %v12047 = vadd.f32 %v12033, %v12046
    %12048 = vdwg.mxu0
    %12049 = vmatpush.bf16.msra.mxu0 %v7238
    %12050 = vmatpush.bf16.msra.mxu0 %v7230
    %12051 = vmatpush.bf16.msra.mxu0 %v7222
    %12052 = vmatpush.bf16.msra.mxu0 %v7214
    %12053 = vmatpush.bf16.msra.mxu0 %v7206
    %12054 = vmatpush.bf16.msra.mxu0 %v7198
    %12055 = vmatpush.bf16.msra.mxu0 %v7190
    %12056 = vmatpush.bf16.msra.mxu0 %v7182
    %12057 = vmatmul.bf16.gmra.mxu0 %v1826
    %v12058 = vpop.f32.mrf.mxu0
    %v12059 = vadd.f32 %v12045, %v12058
    %v12060 = vpop.f32.mrf.mxu0
    %v12061 = vadd.f32 %v12047, %v12060
    %12062 = vdwg.mxu0
    %12063 = vmatpush.bf16.msra.mxu0 %v7302
    %12064 = vmatpush.bf16.msra.mxu0 %v7294
    %12065 = vmatpush.bf16.msra.mxu0 %v7286
    %12066 = vmatpush.bf16.msra.mxu0 %v7278
    %12067 = vmatpush.bf16.msra.mxu0 %v7270
    %12068 = vmatpush.bf16.msra.mxu0 %v7262
    %12069 = vmatpush.bf16.msra.mxu0 %v7254
    %12070 = vmatpush.bf16.msra.mxu0 %v7246
    %12071 = vmatmul.bf16.gmra.mxu0 %v1827
    %v12072 = vpop.f32.mrf.mxu0
    %v12073 = vadd.f32 %v12059, %v12072
    %v12074 = vpop.f32.mrf.mxu0
    %v12075 = vadd.f32 %v12061, %v12074
    %12076 = vdwg.mxu0
    %12077 = vmatpush.bf16.msra.mxu0 %v7366
    %12078 = vmatpush.bf16.msra.mxu0 %v7358
    %12079 = vmatpush.bf16.msra.mxu0 %v7350
    %12080 = vmatpush.bf16.msra.mxu0 %v7342
    %12081 = vmatpush.bf16.msra.mxu0 %v7334
    %12082 = vmatpush.bf16.msra.mxu0 %v7326
    %12083 = vmatpush.bf16.msra.mxu0 %v7318
    %12084 = vmatpush.bf16.msra.mxu0 %v7310
    %12085 = vmatmul.bf16.gmra.mxu0 %v1828
    %v12086 = vpop.f32.mrf.mxu0
    %v12087 = vadd.f32 %v12073, %v12086
    %v12088 = vpop.f32.mrf.mxu0
    %v12089 = vadd.f32 %v12075, %v12088
    %12090 = vdwg.mxu0
    %12091 = vmatpush.bf16.msra.mxu0 %v7430
    %12092 = vmatpush.bf16.msra.mxu0 %v7422
    %12093 = vmatpush.bf16.msra.mxu0 %v7414
    %12094 = vmatpush.bf16.msra.mxu0 %v7406
    %12095 = vmatpush.bf16.msra.mxu0 %v7398
    %12096 = vmatpush.bf16.msra.mxu0 %v7390
    %12097 = vmatpush.bf16.msra.mxu0 %v7382
    %12098 = vmatpush.bf16.msra.mxu0 %v7374
    %12099 = vmatmul.bf16.gmra.mxu0 %v1829
    %v12100 = vpop.f32.mrf.mxu0
    %v12101 = vadd.f32 %v12087, %v12100
    %v12102 = vpop.f32.mrf.mxu0
    %v12103 = vadd.f32 %v12089, %v12102
    %12104 = vdwg.mxu0
    %12105 = vmatpush.bf16.msra.mxu0 %v7494
    %12106 = vmatpush.bf16.msra.mxu0 %v7486
    %12107 = vmatpush.bf16.msra.mxu0 %v7478
    %12108 = vmatpush.bf16.msra.mxu0 %v7470
    %12109 = vmatpush.bf16.msra.mxu0 %v7462
    %12110 = vmatpush.bf16.msra.mxu0 %v7454
    %12111 = vmatpush.bf16.msra.mxu0 %v7446
    %12112 = vmatpush.bf16.msra.mxu0 %v7438
    %12113 = vmatmul.bf16.gmra.mxu0 %v1830
    %v12114 = vpop.f32.mrf.mxu0
    %v12115 = vadd.f32 %v12101, %v12114
    %v12116 = vpop.f32.mrf.mxu0
    %v12117 = vadd.f32 %v12103, %v12116
    %12118 = vdwg.mxu0
    %12119 = vmatpush.bf16.msra.mxu0 %v7558
    %12120 = vmatpush.bf16.msra.mxu0 %v7550
    %12121 = vmatpush.bf16.msra.mxu0 %v7542
    %12122 = vmatpush.bf16.msra.mxu0 %v7534
    %12123 = vmatpush.bf16.msra.mxu0 %v7526
    %12124 = vmatpush.bf16.msra.mxu0 %v7518
    %12125 = vmatpush.bf16.msra.mxu0 %v7510
    %12126 = vmatpush.bf16.msra.mxu0 %v7502
    %12127 = vmatmul.bf16.gmra.mxu0 %v1831
    %v12128 = vpop.f32.mrf.mxu0
    %v12129 = vadd.f32 %v12115, %v12128
    %v12130 = vpop.f32.mrf.mxu0
    %v12131 = vadd.f32 %v12117, %v12130
    %12132 = vdwg.mxu0
    %12133 = vmatpush.bf16.msra.mxu0 %v7622
    %12134 = vmatpush.bf16.msra.mxu0 %v7614
    %12135 = vmatpush.bf16.msra.mxu0 %v7606
    %12136 = vmatpush.bf16.msra.mxu0 %v7598
    %12137 = vmatpush.bf16.msra.mxu0 %v7590
    %12138 = vmatpush.bf16.msra.mxu0 %v7582
    %12139 = vmatpush.bf16.msra.mxu0 %v7574
    %12140 = vmatpush.bf16.msra.mxu0 %v7566
    %12141 = vmatmul.bf16.gmra.mxu0 %v1832
    %v12142 = vpop.f32.mrf.mxu0
    %v12143 = vadd.f32 %v12129, %v12142
    %v12144 = vpop.f32.mrf.mxu0
    %v12145 = vadd.f32 %v12131, %v12144
    %12146 = vdwg.mxu0
    %12147 = vmatpush.bf16.msra.mxu0 %v7686
    %12148 = vmatpush.bf16.msra.mxu0 %v7678
    %12149 = vmatpush.bf16.msra.mxu0 %v7670
    %12150 = vmatpush.bf16.msra.mxu0 %v7662
    %12151 = vmatpush.bf16.msra.mxu0 %v7654
    %12152 = vmatpush.bf16.msra.mxu0 %v7646
    %12153 = vmatpush.bf16.msra.mxu0 %v7638
    %12154 = vmatpush.bf16.msra.mxu0 %v7630
    %12155 = vmatmul.bf16.gmra.mxu0 %v1833
    %v12156 = vpop.f32.mrf.mxu0
    %v12157 = vadd.f32 %v12143, %v12156
    %v12158 = vpop.f32.mrf.mxu0
    %v12159 = vadd.f32 %v12145, %v12158
    %12160 = vdwg.mxu0
    %12161 = vmatpush.bf16.msra.mxu0 %v7750
    %12162 = vmatpush.bf16.msra.mxu0 %v7742
    %12163 = vmatpush.bf16.msra.mxu0 %v7734
    %12164 = vmatpush.bf16.msra.mxu0 %v7726
    %12165 = vmatpush.bf16.msra.mxu0 %v7718
    %12166 = vmatpush.bf16.msra.mxu0 %v7710
    %12167 = vmatpush.bf16.msra.mxu0 %v7702
    %12168 = vmatpush.bf16.msra.mxu0 %v7694
    %12169 = vmatmul.bf16.gmra.mxu0 %v1834
    %v12170 = vpop.f32.mrf.mxu0
    %v12171 = vadd.f32 %v12157, %v12170
    %v12172 = vpop.f32.mrf.mxu0
    %v12173 = vadd.f32 %v12159, %v12172
    %12174 = vdwg.mxu0
    %12175 = vmatpush.bf16.msra.mxu0 %v7814
    %12176 = vmatpush.bf16.msra.mxu0 %v7806
    %12177 = vmatpush.bf16.msra.mxu0 %v7798
    %12178 = vmatpush.bf16.msra.mxu0 %v7790
    %12179 = vmatpush.bf16.msra.mxu0 %v7782
    %12180 = vmatpush.bf16.msra.mxu0 %v7774
    %12181 = vmatpush.bf16.msra.mxu0 %v7766
    %12182 = vmatpush.bf16.msra.mxu0 %v7758
    %12183 = vmatmul.bf16.gmra.mxu0 %v1835
    %v12184 = vpop.f32.mrf.mxu0
    %v12185 = vadd.f32 %v12171, %v12184
    %v12186 = vpop.f32.mrf.mxu0
    %v12187 = vadd.f32 %v12173, %v12186
    %12188 = vdwg.mxu0
    %12189 = vmatpush.bf16.msra.mxu0 %v7878
    %12190 = vmatpush.bf16.msra.mxu0 %v7870
    %12191 = vmatpush.bf16.msra.mxu0 %v7862
    %12192 = vmatpush.bf16.msra.mxu0 %v7854
    %12193 = vmatpush.bf16.msra.mxu0 %v7846
    %12194 = vmatpush.bf16.msra.mxu0 %v7838
    %12195 = vmatpush.bf16.msra.mxu0 %v7830
    %12196 = vmatpush.bf16.msra.mxu0 %v7822
    %12197 = vmatmul.bf16.gmra.mxu0 %v1836
    %v12198 = vpop.f32.mrf.mxu0
    %v12199 = vadd.f32 %v12185, %v12198
    %v12200 = vpop.f32.mrf.mxu0
    %v12201 = vadd.f32 %v12187, %v12200
    %12202 = vdwg.mxu0
    %12203 = vmatpush.bf16.msra.mxu0 %v7942
    %12204 = vmatpush.bf16.msra.mxu0 %v7934
    %12205 = vmatpush.bf16.msra.mxu0 %v7926
    %12206 = vmatpush.bf16.msra.mxu0 %v7918
    %12207 = vmatpush.bf16.msra.mxu0 %v7910
    %12208 = vmatpush.bf16.msra.mxu0 %v7902
    %12209 = vmatpush.bf16.msra.mxu0 %v7894
    %12210 = vmatpush.bf16.msra.mxu0 %v7886
    %12211 = vmatmul.bf16.gmra.mxu0 %v1837
    %v12212 = vpop.f32.mrf.mxu0
    %v12213 = vadd.f32 %v12199, %v12212
    %v12214 = vpop.f32.mrf.mxu0
    %v12215 = vadd.f32 %v12201, %v12214
    %12216 = vdwg.mxu0
    %12217 = vmatpush.bf16.msra.mxu0 %v8006
    %12218 = vmatpush.bf16.msra.mxu0 %v7998
    %12219 = vmatpush.bf16.msra.mxu0 %v7990
    %12220 = vmatpush.bf16.msra.mxu0 %v7982
    %12221 = vmatpush.bf16.msra.mxu0 %v7974
    %12222 = vmatpush.bf16.msra.mxu0 %v7966
    %12223 = vmatpush.bf16.msra.mxu0 %v7958
    %12224 = vmatpush.bf16.msra.mxu0 %v7950
    %12225 = vmatmul.bf16.gmra.mxu0 %v1838
    %v12226 = vpop.f32.mrf.mxu0
    %v12227 = vadd.f32 %v12213, %v12226
    %v12228 = vpop.f32.mrf.mxu0
    %v12229 = vadd.f32 %v12215, %v12228
    %12230 = vdwg.mxu0
    %v12231 = vmax.f32 %v9875, 0.0
    %v12232 = vmax.f32 %v10211, 0.0
    %v12233 = vmax.f32 %v10547, 0.0
    %v12234 = vmax.f32 %v10883, 0.0
    %v12235 = vmax.f32 %v11219, 0.0
    %v12236 = vmax.f32 %v11555, 0.0
    %v12237 = vmax.f32 %v11891, 0.0
    %v12238 = vmax.f32 %v12227, 0.0
    %v12239 = vmax.f32 %v9877, 0.0
    %v12240 = vmax.f32 %v10213, 0.0
    %v12241 = vmax.f32 %v10549, 0.0
    %v12242 = vmax.f32 %v10885, 0.0
    %v12243 = vmax.f32 %v11221, 0.0
    %v12244 = vmax.f32 %v11557, 0.0
    %v12245 = vmax.f32 %v11893, 0.0
    %v12246 = vmax.f32 %v12229, 0.0
    %v12247 = vpack.c.bf16 %v12239, %v12231
    %v12248 = vpack.c.bf16 %v12240, %v12232
    %v12249 = vpack.c.bf16 %v12241, %v12233
    %v12250 = vpack.c.bf16 %v12242, %v12234
    %v12251 = vpack.c.bf16 %v12243, %v12235
    %v12252 = vpack.c.bf16 %v12244, %v12236
    %v12253 = vpack.c.bf16 %v12245, %v12237
    %v12254 = vpack.c.bf16 %v12246, %v12238
    %v12255 = vld [vmem:[#allocation8] sm:$0xff]
    %v12256 = vld [vmem:[#allocation8 + $0x8] sm:$0xff]
    %v12257 = vld [vmem:[#allocation8 + $0x10] sm:$0xff]
    %v12258 = vld [vmem:[#allocation8 + $0x18] sm:$0xff]
    %v12259 = vld [vmem:[#allocation8 + $0x20] sm:$0xff]
    %v12260 = vld [vmem:[#allocation8 + $0x28] sm:$0xff]
    %v12261 = vld [vmem:[#allocation8 + $0x30] sm:$0xff]
    %v12262 = vld [vmem:[#allocation8 + $0x38] sm:$0xff]
    %v12263 = vld [vmem:[#allocation8 + $0x40] sm:$0xff]
    %v12264 = vld [vmem:[#allocation8 + $0x48] sm:$0xff]
    %v12265 = vld [vmem:[#allocation8 + $0x50] sm:$0xff]
    %v12266 = vld [vmem:[#allocation8 + $0x58] sm:$0xff]
    %v12267 = vld [vmem:[#allocation8 + $0x60] sm:$0xff]
    %v12268 = vld [vmem:[#allocation8 + $0x68] sm:$0xff]
    %v12269 = vld [vmem:[#allocation8 + $0x70] sm:$0xff]
    %v12270 = vld [vmem:[#allocation8 + $0x78] sm:$0xff]
    %v12271 = vld [vmem:[#allocation8 + $0x80] sm:$0xff]
    %v12272 = vld [vmem:[#allocation8 + $0x88] sm:$0xff]
    %v12273 = vld [vmem:[#allocation8 + $0x90] sm:$0xff]
    %v12274 = vld [vmem:[#allocation8 + $0x98] sm:$0xff]
    %v12275 = vld [vmem:[#allocation8 + $0xa0] sm:$0xff]
    %v12276 = vld [vmem:[#allocation8 + $0xa8] sm:$0xff]
    %v12277 = vld [vmem:[#allocation8 + $0xb0] sm:$0xff]
    %v12278 = vld [vmem:[#allocation8 + $0xb8] sm:$0xff]
    %v12279 = vld [vmem:[#allocation8 + $0xc0] sm:$0xff]
    %v12280 = vld [vmem:[#allocation8 + $0xc8] sm:$0xff]
    %v12281 = vld [vmem:[#allocation8 + $0xd0] sm:$0xff]
    %v12282 = vld [vmem:[#allocation8 + $0xd8] sm:$0xff]
    %v12283 = vld [vmem:[#allocation8 + $0xe0] sm:$0xff]
    %v12284 = vld [vmem:[#allocation8 + $0xe8] sm:$0xff]
    %v12285 = vld [vmem:[#allocation8 + $0xf0] sm:$0xff]
    %v12286 = vld [vmem:[#allocation8 + $0xf8] sm:$0xff]
    %v12287 = vld [vmem:[#allocation8 + $0x100] sm:$0xff]
    %v12288 = vld [vmem:[#allocation8 + $0x108] sm:$0xff]
    %v12289 = vld [vmem:[#allocation8 + $0x110] sm:$0xff]
    %v12290 = vld [vmem:[#allocation8 + $0x118] sm:$0xff]
    %v12291 = vld [vmem:[#allocation8 + $0x120] sm:$0xff]
    %v12292 = vld [vmem:[#allocation8 + $0x128] sm:$0xff]
    %v12293 = vld [vmem:[#allocation8 + $0x130] sm:$0xff]
    %v12294 = vld [vmem:[#allocation8 + $0x138] sm:$0xff]
    %v12295 = vld [vmem:[#allocation8 + $0x140] sm:$0xff]
    %v12296 = vld [vmem:[#allocation8 + $0x148] sm:$0xff]
    %v12297 = vld [vmem:[#allocation8 + $0x150] sm:$0xff]
    %v12298 = vld [vmem:[#allocation8 + $0x158] sm:$0xff]
    %v12299 = vld [vmem:[#allocation8 + $0x160] sm:$0xff]
    %v12300 = vld [vmem:[#allocation8 + $0x168] sm:$0xff]
    %v12301 = vld [vmem:[#allocation8 + $0x170] sm:$0xff]
    %v12302 = vld [vmem:[#allocation8 + $0x178] sm:$0xff]
    %v12303 = vld [vmem:[#allocation8 + $0x180] sm:$0xff]
    %v12304 = vld [vmem:[#allocation8 + $0x188] sm:$0xff]
    %v12305 = vld [vmem:[#allocation8 + $0x190] sm:$0xff]
    %v12306 = vld [vmem:[#allocation8 + $0x198] sm:$0xff]
    %v12307 = vld [vmem:[#allocation8 + $0x1a0] sm:$0xff]
    %v12308 = vld [vmem:[#allocation8 + $0x1a8] sm:$0xff]
    %v12309 = vld [vmem:[#allocation8 + $0x1b0] sm:$0xff]
    %v12310 = vld [vmem:[#allocation8 + $0x1b8] sm:$0xff]
    %v12311 = vld [vmem:[#allocation8 + $0x1c0] sm:$0xff]
    %v12312 = vld [vmem:[#allocation8 + $0x1c8] sm:$0xff]
    %v12313 = vld [vmem:[#allocation8 + $0x1d0] sm:$0xff]
    %v12314 = vld [vmem:[#allocation8 + $0x1d8] sm:$0xff]
    %v12315 = vld [vmem:[#allocation8 + $0x1e0] sm:$0xff]
    %v12316 = vld [vmem:[#allocation8 + $0x1e8] sm:$0xff]
    %v12317 = vld [vmem:[#allocation8 + $0x1f0] sm:$0xff]
    %v12318 = vld [vmem:[#allocation8 + $0x1f8] sm:$0xff]
    %v12319 = vld [vmem:[#allocation8 + $0x200] sm:$0xff]
    %v12320 = vld [vmem:[#allocation8 + $0x208] sm:$0xff]
    %v12321 = vld [vmem:[#allocation8 + $0x210] sm:$0xff]
    %v12322 = vld [vmem:[#allocation8 + $0x218] sm:$0xff]
    %v12323 = vld [vmem:[#allocation8 + $0x220] sm:$0xff]
    %v12324 = vld [vmem:[#allocation8 + $0x228] sm:$0xff]
    %v12325 = vld [vmem:[#allocation8 + $0x230] sm:$0xff]
    %v12326 = vld [vmem:[#allocation8 + $0x238] sm:$0xff]
    %v12327 = vld [vmem:[#allocation8 + $0x240] sm:$0xff]
    %v12328 = vld [vmem:[#allocation8 + $0x248] sm:$0xff]
    %v12329 = vld [vmem:[#allocation8 + $0x250] sm:$0xff]
    %v12330 = vld [vmem:[#allocation8 + $0x258] sm:$0xff]
    %v12331 = vld [vmem:[#allocation8 + $0x260] sm:$0xff]
    %v12332 = vld [vmem:[#allocation8 + $0x268] sm:$0xff]
    %v12333 = vld [vmem:[#allocation8 + $0x270] sm:$0xff]
    %v12334 = vld [vmem:[#allocation8 + $0x278] sm:$0xff]
    %v12335 = vld [vmem:[#allocation8 + $0x280] sm:$0xff]
    %v12336 = vld [vmem:[#allocation8 + $0x288] sm:$0xff]
    %v12337 = vld [vmem:[#allocation8 + $0x290] sm:$0xff]
    %v12338 = vld [vmem:[#allocation8 + $0x298] sm:$0xff]
    %v12339 = vld [vmem:[#allocation8 + $0x2a0] sm:$0xff]
    %v12340 = vld [vmem:[#allocation8 + $0x2a8] sm:$0xff]
    %v12341 = vld [vmem:[#allocation8 + $0x2b0] sm:$0xff]
    %v12342 = vld [vmem:[#allocation8 + $0x2b8] sm:$0xff]
    %v12343 = vld [vmem:[#allocation8 + $0x2c0] sm:$0xff]
    %v12344 = vld [vmem:[#allocation8 + $0x2c8] sm:$0xff]
    %v12345 = vld [vmem:[#allocation8 + $0x2d0] sm:$0xff]
    %v12346 = vld [vmem:[#allocation8 + $0x2d8] sm:$0xff]
    %v12347 = vld [vmem:[#allocation8 + $0x2e0] sm:$0xff]
    %v12348 = vld [vmem:[#allocation8 + $0x2e8] sm:$0xff]
    %v12349 = vld [vmem:[#allocation8 + $0x2f0] sm:$0xff]
    %v12350 = vld [vmem:[#allocation8 + $0x2f8] sm:$0xff]
    %v12351 = vld [vmem:[#allocation8 + $0x300] sm:$0xff]
    %v12352 = vld [vmem:[#allocation8 + $0x308] sm:$0xff]
    %v12353 = vld [vmem:[#allocation8 + $0x310] sm:$0xff]
    %v12354 = vld [vmem:[#allocation8 + $0x318] sm:$0xff]
    %v12355 = vld [vmem:[#allocation8 + $0x320] sm:$0xff]
    %v12356 = vld [vmem:[#allocation8 + $0x328] sm:$0xff]
    %v12357 = vld [vmem:[#allocation8 + $0x330] sm:$0xff]
    %v12358 = vld [vmem:[#allocation8 + $0x338] sm:$0xff]
    %v12359 = vld [vmem:[#allocation8 + $0x340] sm:$0xff]
    %v12360 = vld [vmem:[#allocation8 + $0x348] sm:$0xff]
    %v12361 = vld [vmem:[#allocation8 + $0x350] sm:$0xff]
    %v12362 = vld [vmem:[#allocation8 + $0x358] sm:$0xff]
    %v12363 = vld [vmem:[#allocation8 + $0x360] sm:$0xff]
    %v12364 = vld [vmem:[#allocation8 + $0x368] sm:$0xff]
    %v12365 = vld [vmem:[#allocation8 + $0x370] sm:$0xff]
    %v12366 = vld [vmem:[#allocation8 + $0x378] sm:$0xff]
    %v12367 = vld [vmem:[#allocation8 + $0x380] sm:$0xff]
    %v12368 = vld [vmem:[#allocation8 + $0x388] sm:$0xff]
    %v12369 = vld [vmem:[#allocation8 + $0x390] sm:$0xff]
    %v12370 = vld [vmem:[#allocation8 + $0x398] sm:$0xff]
    %v12371 = vld [vmem:[#allocation8 + $0x3a0] sm:$0xff]
    %v12372 = vld [vmem:[#allocation8 + $0x3a8] sm:$0xff]
    %v12373 = vld [vmem:[#allocation8 + $0x3b0] sm:$0xff]
    %v12374 = vld [vmem:[#allocation8 + $0x3b8] sm:$0xff]
    %v12375 = vld [vmem:[#allocation8 + $0x3c0] sm:$0xff]
    %v12376 = vld [vmem:[#allocation8 + $0x3c8] sm:$0xff]
    %v12377 = vld [vmem:[#allocation8 + $0x3d0] sm:$0xff]
    %v12378 = vld [vmem:[#allocation8 + $0x3d8] sm:$0xff]
    %v12379 = vld [vmem:[#allocation8 + $0x3e0] sm:$0xff]
    %v12380 = vld [vmem:[#allocation8 + $0x3e8] sm:$0xff]
    %v12381 = vld [vmem:[#allocation8 + $0x3f0] sm:$0xff]
    %v12382 = vld [vmem:[#allocation8 + $0x3f8] sm:$0xff]
    %v12383 = vld [vmem:[#allocation8 + $0x400] sm:$0xff]
    %v12384 = vld [vmem:[#allocation8 + $0x408] sm:$0xff]
    %v12385 = vld [vmem:[#allocation8 + $0x410] sm:$0xff]
    %v12386 = vld [vmem:[#allocation8 + $0x418] sm:$0xff]
    %v12387 = vld [vmem:[#allocation8 + $0x420] sm:$0xff]
    %v12388 = vld [vmem:[#allocation8 + $0x428] sm:$0xff]
    %v12389 = vld [vmem:[#allocation8 + $0x430] sm:$0xff]
    %v12390 = vld [vmem:[#allocation8 + $0x438] sm:$0xff]
    %v12391 = vld [vmem:[#allocation8 + $0x440] sm:$0xff]
    %v12392 = vld [vmem:[#allocation8 + $0x448] sm:$0xff]
    %v12393 = vld [vmem:[#allocation8 + $0x450] sm:$0xff]
    %v12394 = vld [vmem:[#allocation8 + $0x458] sm:$0xff]
    %v12395 = vld [vmem:[#allocation8 + $0x460] sm:$0xff]
    %v12396 = vld [vmem:[#allocation8 + $0x468] sm:$0xff]
    %v12397 = vld [vmem:[#allocation8 + $0x470] sm:$0xff]
    %v12398 = vld [vmem:[#allocation8 + $0x478] sm:$0xff]
    %v12399 = vld [vmem:[#allocation8 + $0x480] sm:$0xff]
    %v12400 = vld [vmem:[#allocation8 + $0x488] sm:$0xff]
    %v12401 = vld [vmem:[#allocation8 + $0x490] sm:$0xff]
    %v12402 = vld [vmem:[#allocation8 + $0x498] sm:$0xff]
    %v12403 = vld [vmem:[#allocation8 + $0x4a0] sm:$0xff]
    %v12404 = vld [vmem:[#allocation8 + $0x4a8] sm:$0xff]
    %v12405 = vld [vmem:[#allocation8 + $0x4b0] sm:$0xff]
    %v12406 = vld [vmem:[#allocation8 + $0x4b8] sm:$0xff]
    %v12407 = vld [vmem:[#allocation8 + $0x4c0] sm:$0xff]
    %v12408 = vld [vmem:[#allocation8 + $0x4c8] sm:$0xff]
    %v12409 = vld [vmem:[#allocation8 + $0x4d0] sm:$0xff]
    %v12410 = vld [vmem:[#allocation8 + $0x4d8] sm:$0xff]
    %v12411 = vld [vmem:[#allocation8 + $0x4e0] sm:$0xff]
    %v12412 = vld [vmem:[#allocation8 + $0x4e8] sm:$0xff]
    %v12413 = vld [vmem:[#allocation8 + $0x4f0] sm:$0xff]
    %v12414 = vld [vmem:[#allocation8 + $0x4f8] sm:$0xff]
    %v12415 = vld [vmem:[#allocation8 + $0x500] sm:$0xff]
    %v12416 = vld [vmem:[#allocation8 + $0x508] sm:$0xff]
    %v12417 = vld [vmem:[#allocation8 + $0x510] sm:$0xff]
    %v12418 = vld [vmem:[#allocation8 + $0x518] sm:$0xff]
    %v12419 = vld [vmem:[#allocation8 + $0x520] sm:$0xff]
    %v12420 = vld [vmem:[#allocation8 + $0x528] sm:$0xff]
    %v12421 = vld [vmem:[#allocation8 + $0x530] sm:$0xff]
    %v12422 = vld [vmem:[#allocation8 + $0x538] sm:$0xff]
    %v12423 = vld [vmem:[#allocation8 + $0x540] sm:$0xff]
    %v12424 = vld [vmem:[#allocation8 + $0x548] sm:$0xff]
    %v12425 = vld [vmem:[#allocation8 + $0x550] sm:$0xff]
    %v12426 = vld [vmem:[#allocation8 + $0x558] sm:$0xff]
    %v12427 = vld [vmem:[#allocation8 + $0x560] sm:$0xff]
    %v12428 = vld [vmem:[#allocation8 + $0x568] sm:$0xff]
    %v12429 = vld [vmem:[#allocation8 + $0x570] sm:$0xff]
    %v12430 = vld [vmem:[#allocation8 + $0x578] sm:$0xff]
    %v12431 = vld [vmem:[#allocation8 + $0x580] sm:$0xff]
    %v12432 = vld [vmem:[#allocation8 + $0x588] sm:$0xff]
    %v12433 = vld [vmem:[#allocation8 + $0x590] sm:$0xff]
    %v12434 = vld [vmem:[#allocation8 + $0x598] sm:$0xff]
    %v12435 = vld [vmem:[#allocation8 + $0x5a0] sm:$0xff]
    %v12436 = vld [vmem:[#allocation8 + $0x5a8] sm:$0xff]
    %v12437 = vld [vmem:[#allocation8 + $0x5b0] sm:$0xff]
    %v12438 = vld [vmem:[#allocation8 + $0x5b8] sm:$0xff]
    %v12439 = vld [vmem:[#allocation8 + $0x5c0] sm:$0xff]
    %v12440 = vld [vmem:[#allocation8 + $0x5c8] sm:$0xff]
    %v12441 = vld [vmem:[#allocation8 + $0x5d0] sm:$0xff]
    %v12442 = vld [vmem:[#allocation8 + $0x5d8] sm:$0xff]
    %v12443 = vld [vmem:[#allocation8 + $0x5e0] sm:$0xff]
    %v12444 = vld [vmem:[#allocation8 + $0x5e8] sm:$0xff]
    %v12445 = vld [vmem:[#allocation8 + $0x5f0] sm:$0xff]
    %v12446 = vld [vmem:[#allocation8 + $0x5f8] sm:$0xff]
    %v12447 = vld [vmem:[#allocation8 + $0x600] sm:$0xff]
    %v12448 = vld [vmem:[#allocation8 + $0x608] sm:$0xff]
    %v12449 = vld [vmem:[#allocation8 + $0x610] sm:$0xff]
    %v12450 = vld [vmem:[#allocation8 + $0x618] sm:$0xff]
    %v12451 = vld [vmem:[#allocation8 + $0x620] sm:$0xff]
    %v12452 = vld [vmem:[#allocation8 + $0x628] sm:$0xff]
    %v12453 = vld [vmem:[#allocation8 + $0x630] sm:$0xff]
    %v12454 = vld [vmem:[#allocation8 + $0x638] sm:$0xff]
    %v12455 = vld [vmem:[#allocation8 + $0x640] sm:$0xff]
    %v12456 = vld [vmem:[#allocation8 + $0x648] sm:$0xff]
    %v12457 = vld [vmem:[#allocation8 + $0x650] sm:$0xff]
    %v12458 = vld [vmem:[#allocation8 + $0x658] sm:$0xff]
    %v12459 = vld [vmem:[#allocation8 + $0x660] sm:$0xff]
    %v12460 = vld [vmem:[#allocation8 + $0x668] sm:$0xff]
    %v12461 = vld [vmem:[#allocation8 + $0x670] sm:$0xff]
    %v12462 = vld [vmem:[#allocation8 + $0x678] sm:$0xff]
    %v12463 = vld [vmem:[#allocation8 + $0x680] sm:$0xff]
    %v12464 = vld [vmem:[#allocation8 + $0x688] sm:$0xff]
    %v12465 = vld [vmem:[#allocation8 + $0x690] sm:$0xff]
    %v12466 = vld [vmem:[#allocation8 + $0x698] sm:$0xff]
    %v12467 = vld [vmem:[#allocation8 + $0x6a0] sm:$0xff]
    %v12468 = vld [vmem:[#allocation8 + $0x6a8] sm:$0xff]
    %v12469 = vld [vmem:[#allocation8 + $0x6b0] sm:$0xff]
    %v12470 = vld [vmem:[#allocation8 + $0x6b8] sm:$0xff]
    %v12471 = vld [vmem:[#allocation8 + $0x6c0] sm:$0xff]
    %v12472 = vld [vmem:[#allocation8 + $0x6c8] sm:$0xff]
    %v12473 = vld [vmem:[#allocation8 + $0x6d0] sm:$0xff]
    %v12474 = vld [vmem:[#allocation8 + $0x6d8] sm:$0xff]
    %v12475 = vld [vmem:[#allocation8 + $0x6e0] sm:$0xff]
    %v12476 = vld [vmem:[#allocation8 + $0x6e8] sm:$0xff]
    %v12477 = vld [vmem:[#allocation8 + $0x6f0] sm:$0xff]
    %v12478 = vld [vmem:[#allocation8 + $0x6f8] sm:$0xff]
    %v12479 = vld [vmem:[#allocation8 + $0x700] sm:$0xff]
    %v12480 = vld [vmem:[#allocation8 + $0x708] sm:$0xff]
    %v12481 = vld [vmem:[#allocation8 + $0x710] sm:$0xff]
    %v12482 = vld [vmem:[#allocation8 + $0x718] sm:$0xff]
    %v12483 = vld [vmem:[#allocation8 + $0x720] sm:$0xff]
    %v12484 = vld [vmem:[#allocation8 + $0x728] sm:$0xff]
    %v12485 = vld [vmem:[#allocation8 + $0x730] sm:$0xff]
    %v12486 = vld [vmem:[#allocation8 + $0x738] sm:$0xff]
    %v12487 = vld [vmem:[#allocation8 + $0x740] sm:$0xff]
    %v12488 = vld [vmem:[#allocation8 + $0x748] sm:$0xff]
    %v12489 = vld [vmem:[#allocation8 + $0x750] sm:$0xff]
    %v12490 = vld [vmem:[#allocation8 + $0x758] sm:$0xff]
    %v12491 = vld [vmem:[#allocation8 + $0x760] sm:$0xff]
    %v12492 = vld [vmem:[#allocation8 + $0x768] sm:$0xff]
    %v12493 = vld [vmem:[#allocation8 + $0x770] sm:$0xff]
    %v12494 = vld [vmem:[#allocation8 + $0x778] sm:$0xff]
    %v12495 = vld [vmem:[#allocation8 + $0x780] sm:$0xff]
    %v12496 = vld [vmem:[#allocation8 + $0x788] sm:$0xff]
    %v12497 = vld [vmem:[#allocation8 + $0x790] sm:$0xff]
    %v12498 = vld [vmem:[#allocation8 + $0x798] sm:$0xff]
    %v12499 = vld [vmem:[#allocation8 + $0x7a0] sm:$0xff]
    %v12500 = vld [vmem:[#allocation8 + $0x7a8] sm:$0xff]
    %v12501 = vld [vmem:[#allocation8 + $0x7b0] sm:$0xff]
    %v12502 = vld [vmem:[#allocation8 + $0x7b8] sm:$0xff]
    %v12503 = vld [vmem:[#allocation8 + $0x7c0] sm:$0xff]
    %v12504 = vld [vmem:[#allocation8 + $0x7c8] sm:$0xff]
    %v12505 = vld [vmem:[#allocation8 + $0x7d0] sm:$0xff]
    %v12506 = vld [vmem:[#allocation8 + $0x7d8] sm:$0xff]
    %v12507 = vld [vmem:[#allocation8 + $0x7e0] sm:$0xff]
    %v12508 = vld [vmem:[#allocation8 + $0x7e8] sm:$0xff]
    %v12509 = vld [vmem:[#allocation8 + $0x7f0] sm:$0xff]
    %v12510 = vld [vmem:[#allocation8 + $0x7f8] sm:$0xff]
    %v12511 = vld [vmem:[#allocation10] sm:$0xf]
    %v12513 = vperm.slane %v12511, 0
    %v12514 = vperm.slane %v12511, 1
    %v12515 = vperm.slane %v12511, 2
    %v12516 = vperm.slane %v12511, 3
    %v12777 = vunpack.c.l.b16 %v12255
    %v12778 = vunpack.c.h.b16 %v12255
    %v12779 = vunpack.c.l.b16 %v12256
    %v12780 = vunpack.c.h.b16 %v12256
    %v12781 = vunpack.c.l.b16 %v12257
    %v12782 = vunpack.c.h.b16 %v12257
    %v12783 = vunpack.c.l.b16 %v12258
    %v12784 = vunpack.c.h.b16 %v12258
    %v12785 = vunpack.c.l.b16 %v12259
    %v12786 = vunpack.c.h.b16 %v12259
    %v12787 = vunpack.c.l.b16 %v12260
    %v12788 = vunpack.c.h.b16 %v12260
    %v12789 = vunpack.c.l.b16 %v12261
    %v12790 = vunpack.c.h.b16 %v12261
    %v12791 = vunpack.c.l.b16 %v12262
    %v12792 = vunpack.c.h.b16 %v12262
    %v12793 = vunpack.c.l.b16 %v12263
    %v12794 = vunpack.c.h.b16 %v12263
    %v12795 = vunpack.c.l.b16 %v12264
    %v12796 = vunpack.c.h.b16 %v12264
    %v12797 = vunpack.c.l.b16 %v12265
    %v12798 = vunpack.c.h.b16 %v12265
    %v12799 = vunpack.c.l.b16 %v12266
    %v12800 = vunpack.c.h.b16 %v12266
    %v12801 = vunpack.c.l.b16 %v12267
    %v12802 = vunpack.c.h.b16 %v12267
    %v12803 = vunpack.c.l.b16 %v12268
    %v12804 = vunpack.c.h.b16 %v12268
    %v12805 = vunpack.c.l.b16 %v12269
    %v12806 = vunpack.c.h.b16 %v12269
    %v12807 = vunpack.c.l.b16 %v12270
    %v12808 = vunpack.c.h.b16 %v12270
    %v12809 = vunpack.c.l.b16 %v12271
    %v12810 = vunpack.c.h.b16 %v12271
    %v12811 = vunpack.c.l.b16 %v12272
    %v12812 = vunpack.c.h.b16 %v12272
    %v12813 = vunpack.c.l.b16 %v12273
    %v12814 = vunpack.c.h.b16 %v12273
    %v12815 = vunpack.c.l.b16 %v12274
    %v12816 = vunpack.c.h.b16 %v12274
    %v12817 = vunpack.c.l.b16 %v12275
    %v12818 = vunpack.c.h.b16 %v12275
    %v12819 = vunpack.c.l.b16 %v12276
    %v12820 = vunpack.c.h.b16 %v12276
    %v12821 = vunpack.c.l.b16 %v12277
    %v12822 = vunpack.c.h.b16 %v12277
    %v12823 = vunpack.c.l.b16 %v12278
    %v12824 = vunpack.c.h.b16 %v12278
    %v12825 = vunpack.c.l.b16 %v12279
    %v12826 = vunpack.c.h.b16 %v12279
    %v12827 = vunpack.c.l.b16 %v12280
    %v12828 = vunpack.c.h.b16 %v12280
    %v12829 = vunpack.c.l.b16 %v12281
    %v12830 = vunpack.c.h.b16 %v12281
    %v12831 = vunpack.c.l.b16 %v12282
    %v12832 = vunpack.c.h.b16 %v12282
    %v12833 = vunpack.c.l.b16 %v12283
    %v12834 = vunpack.c.h.b16 %v12283
    %v12835 = vunpack.c.l.b16 %v12284
    %v12836 = vunpack.c.h.b16 %v12284
    %v12837 = vunpack.c.l.b16 %v12285
    %v12838 = vunpack.c.h.b16 %v12285
    %v12839 = vunpack.c.l.b16 %v12286
    %v12840 = vunpack.c.h.b16 %v12286
    %v12841 = vunpack.c.l.b16 %v12287
    %v12842 = vunpack.c.h.b16 %v12287
    %v12843 = vunpack.c.l.b16 %v12288
    %v12844 = vunpack.c.h.b16 %v12288
    %v12845 = vunpack.c.l.b16 %v12289
    %v12846 = vunpack.c.h.b16 %v12289
    %v12847 = vunpack.c.l.b16 %v12290
    %v12848 = vunpack.c.h.b16 %v12290
    %v12849 = vunpack.c.l.b16 %v12291
    %v12850 = vunpack.c.h.b16 %v12291
    %v12851 = vunpack.c.l.b16 %v12292
    %v12852 = vunpack.c.h.b16 %v12292
    %v12853 = vunpack.c.l.b16 %v12293
    %v12854 = vunpack.c.h.b16 %v12293
    %v12855 = vunpack.c.l.b16 %v12294
    %v12856 = vunpack.c.h.b16 %v12294
    %v12857 = vunpack.c.l.b16 %v12295
    %v12858 = vunpack.c.h.b16 %v12295
    %v12859 = vunpack.c.l.b16 %v12296
    %v12860 = vunpack.c.h.b16 %v12296
    %v12861 = vunpack.c.l.b16 %v12297
    %v12862 = vunpack.c.h.b16 %v12297
    %v12863 = vunpack.c.l.b16 %v12298
    %v12864 = vunpack.c.h.b16 %v12298
    %v12865 = vunpack.c.l.b16 %v12299
    %v12866 = vunpack.c.h.b16 %v12299
    %v12867 = vunpack.c.l.b16 %v12300
    %v12868 = vunpack.c.h.b16 %v12300
    %v12869 = vunpack.c.l.b16 %v12301
    %v12870 = vunpack.c.h.b16 %v12301
    %v12871 = vunpack.c.l.b16 %v12302
    %v12872 = vunpack.c.h.b16 %v12302
    %v12873 = vunpack.c.l.b16 %v12303
    %v12874 = vunpack.c.h.b16 %v12303
    %v12875 = vunpack.c.l.b16 %v12304
    %v12876 = vunpack.c.h.b16 %v12304
    %v12877 = vunpack.c.l.b16 %v12305
    %v12878 = vunpack.c.h.b16 %v12305
    %v12879 = vunpack.c.l.b16 %v12306
    %v12880 = vunpack.c.h.b16 %v12306
    %v12881 = vunpack.c.l.b16 %v12307
    %v12882 = vunpack.c.h.b16 %v12307
    %v12883 = vunpack.c.l.b16 %v12308
    %v12884 = vunpack.c.h.b16 %v12308
    %v12885 = vunpack.c.l.b16 %v12309
    %v12886 = vunpack.c.h.b16 %v12309
    %v12887 = vunpack.c.l.b16 %v12310
    %v12888 = vunpack.c.h.b16 %v12310
    %v12889 = vunpack.c.l.b16 %v12311
    %v12890 = vunpack.c.h.b16 %v12311
    %v12891 = vunpack.c.l.b16 %v12312
    %v12892 = vunpack.c.h.b16 %v12312
    %v12893 = vunpack.c.l.b16 %v12313
    %v12894 = vunpack.c.h.b16 %v12313
    %v12895 = vunpack.c.l.b16 %v12314
    %v12896 = vunpack.c.h.b16 %v12314
    %v12897 = vunpack.c.l.b16 %v12315
    %v12898 = vunpack.c.h.b16 %v12315
    %v12899 = vunpack.c.l.b16 %v12316
    %v12900 = vunpack.c.h.b16 %v12316
    %v12901 = vunpack.c.l.b16 %v12317
    %v12902 = vunpack.c.h.b16 %v12317
    %v12903 = vunpack.c.l.b16 %v12318
    %v12904 = vunpack.c.h.b16 %v12318
    %v12905 = vunpack.c.l.b16 %v12319
    %v12906 = vunpack.c.h.b16 %v12319
    %v12907 = vunpack.c.l.b16 %v12320
    %v12908 = vunpack.c.h.b16 %v12320
    %v12909 = vunpack.c.l.b16 %v12321
    %v12910 = vunpack.c.h.b16 %v12321
    %v12911 = vunpack.c.l.b16 %v12322
    %v12912 = vunpack.c.h.b16 %v12322
    %v12913 = vunpack.c.l.b16 %v12323
    %v12914 = vunpack.c.h.b16 %v12323
    %v12915 = vunpack.c.l.b16 %v12324
    %v12916 = vunpack.c.h.b16 %v12324
    %v12917 = vunpack.c.l.b16 %v12325
    %v12918 = vunpack.c.h.b16 %v12325
    %v12919 = vunpack.c.l.b16 %v12326
    %v12920 = vunpack.c.h.b16 %v12326
    %v12921 = vunpack.c.l.b16 %v12327
    %v12922 = vunpack.c.h.b16 %v12327
    %v12923 = vunpack.c.l.b16 %v12328
    %v12924 = vunpack.c.h.b16 %v12328
    %v12925 = vunpack.c.l.b16 %v12329
    %v12926 = vunpack.c.h.b16 %v12329
    %v12927 = vunpack.c.l.b16 %v12330
    %v12928 = vunpack.c.h.b16 %v12330
    %v12929 = vunpack.c.l.b16 %v12331
    %v12930 = vunpack.c.h.b16 %v12331
    %v12931 = vunpack.c.l.b16 %v12332
    %v12932 = vunpack.c.h.b16 %v12332
    %v12933 = vunpack.c.l.b16 %v12333
    %v12934 = vunpack.c.h.b16 %v12333
    %v12935 = vunpack.c.l.b16 %v12334
    %v12936 = vunpack.c.h.b16 %v12334
    %v12937 = vunpack.c.l.b16 %v12335
    %v12938 = vunpack.c.h.b16 %v12335
    %v12939 = vunpack.c.l.b16 %v12336
    %v12940 = vunpack.c.h.b16 %v12336
    %v12941 = vunpack.c.l.b16 %v12337
    %v12942 = vunpack.c.h.b16 %v12337
    %v12943 = vunpack.c.l.b16 %v12338
    %v12944 = vunpack.c.h.b16 %v12338
    %v12945 = vunpack.c.l.b16 %v12339
    %v12946 = vunpack.c.h.b16 %v12339
    %v12947 = vunpack.c.l.b16 %v12340
    %v12948 = vunpack.c.h.b16 %v12340
    %v12949 = vunpack.c.l.b16 %v12341
    %v12950 = vunpack.c.h.b16 %v12341
    %v12951 = vunpack.c.l.b16 %v12342
    %v12952 = vunpack.c.h.b16 %v12342
    %v12953 = vunpack.c.l.b16 %v12343
    %v12954 = vunpack.c.h.b16 %v12343
    %v12955 = vunpack.c.l.b16 %v12344
    %v12956 = vunpack.c.h.b16 %v12344
    %v12957 = vunpack.c.l.b16 %v12345
    %v12958 = vunpack.c.h.b16 %v12345
    %v12959 = vunpack.c.l.b16 %v12346
    %v12960 = vunpack.c.h.b16 %v12346
    %v12961 = vunpack.c.l.b16 %v12347
    %v12962 = vunpack.c.h.b16 %v12347
    %v12963 = vunpack.c.l.b16 %v12348
    %v12964 = vunpack.c.h.b16 %v12348
    %v12965 = vunpack.c.l.b16 %v12349
    %v12966 = vunpack.c.h.b16 %v12349
    %v12967 = vunpack.c.l.b16 %v12350
    %v12968 = vunpack.c.h.b16 %v12350
    %v12969 = vunpack.c.l.b16 %v12351
    %v12970 = vunpack.c.h.b16 %v12351
    %v12971 = vunpack.c.l.b16 %v12352
    %v12972 = vunpack.c.h.b16 %v12352
    %v12973 = vunpack.c.l.b16 %v12353
    %v12974 = vunpack.c.h.b16 %v12353
    %v12975 = vunpack.c.l.b16 %v12354
    %v12976 = vunpack.c.h.b16 %v12354
    %v12977 = vunpack.c.l.b16 %v12355
    %v12978 = vunpack.c.h.b16 %v12355
    %v12979 = vunpack.c.l.b16 %v12356
    %v12980 = vunpack.c.h.b16 %v12356
    %v12981 = vunpack.c.l.b16 %v12357
    %v12982 = vunpack.c.h.b16 %v12357
    %v12983 = vunpack.c.l.b16 %v12358
    %v12984 = vunpack.c.h.b16 %v12358
    %v12985 = vunpack.c.l.b16 %v12359
    %v12986 = vunpack.c.h.b16 %v12359
    %v12987 = vunpack.c.l.b16 %v12360
    %v12988 = vunpack.c.h.b16 %v12360
    %v12989 = vunpack.c.l.b16 %v12361
    %v12990 = vunpack.c.h.b16 %v12361
    %v12991 = vunpack.c.l.b16 %v12362
    %v12992 = vunpack.c.h.b16 %v12362
    %v12993 = vunpack.c.l.b16 %v12363
    %v12994 = vunpack.c.h.b16 %v12363
    %v12995 = vunpack.c.l.b16 %v12364
    %v12996 = vunpack.c.h.b16 %v12364
    %v12997 = vunpack.c.l.b16 %v12365
    %v12998 = vunpack.c.h.b16 %v12365
    %v12999 = vunpack.c.l.b16 %v12366
    %v13000 = vunpack.c.h.b16 %v12366
    %v13001 = vunpack.c.l.b16 %v12367
    %v13002 = vunpack.c.h.b16 %v12367
    %v13003 = vunpack.c.l.b16 %v12368
    %v13004 = vunpack.c.h.b16 %v12368
    %v13005 = vunpack.c.l.b16 %v12369
    %v13006 = vunpack.c.h.b16 %v12369
    %v13007 = vunpack.c.l.b16 %v12370
    %v13008 = vunpack.c.h.b16 %v12370
    %v13009 = vunpack.c.l.b16 %v12371
    %v13010 = vunpack.c.h.b16 %v12371
    %v13011 = vunpack.c.l.b16 %v12372
    %v13012 = vunpack.c.h.b16 %v12372
    %v13013 = vunpack.c.l.b16 %v12373
    %v13014 = vunpack.c.h.b16 %v12373
    %v13015 = vunpack.c.l.b16 %v12374
    %v13016 = vunpack.c.h.b16 %v12374
    %v13017 = vunpack.c.l.b16 %v12375
    %v13018 = vunpack.c.h.b16 %v12375
    %v13019 = vunpack.c.l.b16 %v12376
    %v13020 = vunpack.c.h.b16 %v12376
    %v13021 = vunpack.c.l.b16 %v12377
    %v13022 = vunpack.c.h.b16 %v12377
    %v13023 = vunpack.c.l.b16 %v12378
    %v13024 = vunpack.c.h.b16 %v12378
    %v13025 = vunpack.c.l.b16 %v12379
    %v13026 = vunpack.c.h.b16 %v12379
    %v13027 = vunpack.c.l.b16 %v12380
    %v13028 = vunpack.c.h.b16 %v12380
    %v13029 = vunpack.c.l.b16 %v12381
    %v13030 = vunpack.c.h.b16 %v12381
    %v13031 = vunpack.c.l.b16 %v12382
    %v13032 = vunpack.c.h.b16 %v12382
    %v13033 = vunpack.c.l.b16 %v12383
    %v13034 = vunpack.c.h.b16 %v12383
    %v13035 = vunpack.c.l.b16 %v12384
    %v13036 = vunpack.c.h.b16 %v12384
    %v13037 = vunpack.c.l.b16 %v12385
    %v13038 = vunpack.c.h.b16 %v12385
    %v13039 = vunpack.c.l.b16 %v12386
    %v13040 = vunpack.c.h.b16 %v12386
    %v13041 = vunpack.c.l.b16 %v12387
    %v13042 = vunpack.c.h.b16 %v12387
    %v13043 = vunpack.c.l.b16 %v12388
    %v13044 = vunpack.c.h.b16 %v12388
    %v13045 = vunpack.c.l.b16 %v12389
    %v13046 = vunpack.c.h.b16 %v12389
    %v13047 = vunpack.c.l.b16 %v12390
    %v13048 = vunpack.c.h.b16 %v12390
    %v13049 = vunpack.c.l.b16 %v12391
    %v13050 = vunpack.c.h.b16 %v12391
    %v13051 = vunpack.c.l.b16 %v12392
    %v13052 = vunpack.c.h.b16 %v12392
    %v13053 = vunpack.c.l.b16 %v12393
    %v13054 = vunpack.c.h.b16 %v12393
    %v13055 = vunpack.c.l.b16 %v12394
    %v13056 = vunpack.c.h.b16 %v12394
    %v13057 = vunpack.c.l.b16 %v12395
    %v13058 = vunpack.c.h.b16 %v12395
    %v13059 = vunpack.c.l.b16 %v12396
    %v13060 = vunpack.c.h.b16 %v12396
    %v13061 = vunpack.c.l.b16 %v12397
    %v13062 = vunpack.c.h.b16 %v12397
    %v13063 = vunpack.c.l.b16 %v12398
    %v13064 = vunpack.c.h.b16 %v12398
    %v13065 = vunpack.c.l.b16 %v12399
    %v13066 = vunpack.c.h.b16 %v12399
    %v13067 = vunpack.c.l.b16 %v12400
    %v13068 = vunpack.c.h.b16 %v12400
    %v13069 = vunpack.c.l.b16 %v12401
    %v13070 = vunpack.c.h.b16 %v12401
    %v13071 = vunpack.c.l.b16 %v12402
    %v13072 = vunpack.c.h.b16 %v12402
    %v13073 = vunpack.c.l.b16 %v12403
    %v13074 = vunpack.c.h.b16 %v12403
    %v13075 = vunpack.c.l.b16 %v12404
    %v13076 = vunpack.c.h.b16 %v12404
    %v13077 = vunpack.c.l.b16 %v12405
    %v13078 = vunpack.c.h.b16 %v12405
    %v13079 = vunpack.c.l.b16 %v12406
    %v13080 = vunpack.c.h.b16 %v12406
    %v13081 = vunpack.c.l.b16 %v12407
    %v13082 = vunpack.c.h.b16 %v12407
    %v13083 = vunpack.c.l.b16 %v12408
    %v13084 = vunpack.c.h.b16 %v12408
    %v13085 = vunpack.c.l.b16 %v12409
    %v13086 = vunpack.c.h.b16 %v12409
    %v13087 = vunpack.c.l.b16 %v12410
    %v13088 = vunpack.c.h.b16 %v12410
    %v13089 = vunpack.c.l.b16 %v12411
    %v13090 = vunpack.c.h.b16 %v12411
    %v13091 = vunpack.c.l.b16 %v12412
    %v13092 = vunpack.c.h.b16 %v12412
    %v13093 = vunpack.c.l.b16 %v12413
    %v13094 = vunpack.c.h.b16 %v12413
    %v13095 = vunpack.c.l.b16 %v12414
    %v13096 = vunpack.c.h.b16 %v12414
    %v13097 = vunpack.c.l.b16 %v12415
    %v13098 = vunpack.c.h.b16 %v12415
    %v13099 = vunpack.c.l.b16 %v12416
    %v13100 = vunpack.c.h.b16 %v12416
    %v13101 = vunpack.c.l.b16 %v12417
    %v13102 = vunpack.c.h.b16 %v12417
    %v13103 = vunpack.c.l.b16 %v12418
    %v13104 = vunpack.c.h.b16 %v12418
    %v13105 = vunpack.c.l.b16 %v12419
    %v13106 = vunpack.c.h.b16 %v12419
    %v13107 = vunpack.c.l.b16 %v12420
    %v13108 = vunpack.c.h.b16 %v12420
    %v13109 = vunpack.c.l.b16 %v12421
    %v13110 = vunpack.c.h.b16 %v12421
    %v13111 = vunpack.c.l.b16 %v12422
    %v13112 = vunpack.c.h.b16 %v12422
    %v13113 = vunpack.c.l.b16 %v12423
    %v13114 = vunpack.c.h.b16 %v12423
    %v13115 = vunpack.c.l.b16 %v12424
    %v13116 = vunpack.c.h.b16 %v12424
    %v13117 = vunpack.c.l.b16 %v12425
    %v13118 = vunpack.c.h.b16 %v12425
    %v13119 = vunpack.c.l.b16 %v12426
    %v13120 = vunpack.c.h.b16 %v12426
    %v13121 = vunpack.c.l.b16 %v12427
    %v13122 = vunpack.c.h.b16 %v12427
    %v13123 = vunpack.c.l.b16 %v12428
    %v13124 = vunpack.c.h.b16 %v12428
    %v13125 = vunpack.c.l.b16 %v12429
    %v13126 = vunpack.c.h.b16 %v12429
    %v13127 = vunpack.c.l.b16 %v12430
    %v13128 = vunpack.c.h.b16 %v12430
    %v13129 = vunpack.c.l.b16 %v12431
    %v13130 = vunpack.c.h.b16 %v12431
    %v13131 = vunpack.c.l.b16 %v12432
    %v13132 = vunpack.c.h.b16 %v12432
    %v13133 = vunpack.c.l.b16 %v12433
    %v13134 = vunpack.c.h.b16 %v12433
    %v13135 = vunpack.c.l.b16 %v12434
    %v13136 = vunpack.c.h.b16 %v12434
    %v13137 = vunpack.c.l.b16 %v12435
    %v13138 = vunpack.c.h.b16 %v12435
    %v13139 = vunpack.c.l.b16 %v12436
    %v13140 = vunpack.c.h.b16 %v12436
    %v13141 = vunpack.c.l.b16 %v12437
    %v13142 = vunpack.c.h.b16 %v12437
    %v13143 = vunpack.c.l.b16 %v12438
    %v13144 = vunpack.c.h.b16 %v12438
    %v13145 = vunpack.c.l.b16 %v12439
    %v13146 = vunpack.c.h.b16 %v12439
    %v13147 = vunpack.c.l.b16 %v12440
    %v13148 = vunpack.c.h.b16 %v12440
    %v13149 = vunpack.c.l.b16 %v12441
    %v13150 = vunpack.c.h.b16 %v12441
    %v13151 = vunpack.c.l.b16 %v12442
    %v13152 = vunpack.c.h.b16 %v12442
    %v13153 = vunpack.c.l.b16 %v12443
    %v13154 = vunpack.c.h.b16 %v12443
    %v13155 = vunpack.c.l.b16 %v12444
    %v13156 = vunpack.c.h.b16 %v12444
    %v13157 = vunpack.c.l.b16 %v12445
    %v13158 = vunpack.c.h.b16 %v12445
    %v13159 = vunpack.c.l.b16 %v12446
    %v13160 = vunpack.c.h.b16 %v12446
    %v13161 = vunpack.c.l.b16 %v12447
    %v13162 = vunpack.c.h.b16 %v12447
    %v13163 = vunpack.c.l.b16 %v12448
    %v13164 = vunpack.c.h.b16 %v12448
    %v13165 = vunpack.c.l.b16 %v12449
    %v13166 = vunpack.c.h.b16 %v12449
    %v13167 = vunpack.c.l.b16 %v12450
    %v13168 = vunpack.c.h.b16 %v12450
    %v13169 = vunpack.c.l.b16 %v12451
    %v13170 = vunpack.c.h.b16 %v12451
    %v13171 = vunpack.c.l.b16 %v12452
    %v13172 = vunpack.c.h.b16 %v12452
    %v13173 = vunpack.c.l.b16 %v12453
    %v13174 = vunpack.c.h.b16 %v12453
    %v13175 = vunpack.c.l.b16 %v12454
    %v13176 = vunpack.c.h.b16 %v12454
    %v13177 = vunpack.c.l.b16 %v12455
    %v13178 = vunpack.c.h.b16 %v12455
    %v13179 = vunpack.c.l.b16 %v12456
    %v13180 = vunpack.c.h.b16 %v12456
    %v13181 = vunpack.c.l.b16 %v12457
    %v13182 = vunpack.c.h.b16 %v12457
    %v13183 = vunpack.c.l.b16 %v12458
    %v13184 = vunpack.c.h.b16 %v12458
    %v13185 = vunpack.c.l.b16 %v12459
    %v13186 = vunpack.c.h.b16 %v12459
    %v13187 = vunpack.c.l.b16 %v12460
    %v13188 = vunpack.c.h.b16 %v12460
    %v13189 = vunpack.c.l.b16 %v12461
    %v13190 = vunpack.c.h.b16 %v12461
    %v13191 = vunpack.c.l.b16 %v12462
    %v13192 = vunpack.c.h.b16 %v12462
    %v13193 = vunpack.c.l.b16 %v12463
    %v13194 = vunpack.c.h.b16 %v12463
    %v13195 = vunpack.c.l.b16 %v12464
    %v13196 = vunpack.c.h.b16 %v12464
    %v13197 = vunpack.c.l.b16 %v12465
    %v13198 = vunpack.c.h.b16 %v12465
    %v13199 = vunpack.c.l.b16 %v12466
    %v13200 = vunpack.c.h.b16 %v12466
    %v13201 = vunpack.c.l.b16 %v12467
    %v13202 = vunpack.c.h.b16 %v12467
    %v13203 = vunpack.c.l.b16 %v12468
    %v13204 = vunpack.c.h.b16 %v12468
    %v13205 = vunpack.c.l.b16 %v12469
    %v13206 = vunpack.c.h.b16 %v12469
    %v13207 = vunpack.c.l.b16 %v12470
    %v13208 = vunpack.c.h.b16 %v12470
    %v13209 = vunpack.c.l.b16 %v12471
    %v13210 = vunpack.c.h.b16 %v12471
    %v13211 = vunpack.c.l.b16 %v12472
    %v13212 = vunpack.c.h.b16 %v12472
    %v13213 = vunpack.c.l.b16 %v12473
    %v13214 = vunpack.c.h.b16 %v12473
    %v13215 = vunpack.c.l.b16 %v12474
    %v13216 = vunpack.c.h.b16 %v12474
    %v13217 = vunpack.c.l.b16 %v12475
    %v13218 = vunpack.c.h.b16 %v12475
    %v13219 = vunpack.c.l.b16 %v12476
    %v13220 = vunpack.c.h.b16 %v12476
    %v13221 = vunpack.c.l.b16 %v12477
    %v13222 = vunpack.c.h.b16 %v12477
    %v13223 = vunpack.c.l.b16 %v12478
    %v13224 = vunpack.c.h.b16 %v12478
    %v13225 = vunpack.c.l.b16 %v12479
    %v13226 = vunpack.c.h.b16 %v12479
    %v13227 = vunpack.c.l.b16 %v12480
    %v13228 = vunpack.c.h.b16 %v12480
    %v13229 = vunpack.c.l.b16 %v12481
    %v13230 = vunpack.c.h.b16 %v12481
    %v13231 = vunpack.c.l.b16 %v12482
    %v13232 = vunpack.c.h.b16 %v12482
    %v13233 = vunpack.c.l.b16 %v12483
    %v13234 = vunpack.c.h.b16 %v12483
    %v13235 = vunpack.c.l.b16 %v12484
    %v13236 = vunpack.c.h.b16 %v12484
    %v13237 = vunpack.c.l.b16 %v12485
    %v13238 = vunpack.c.h.b16 %v12485
    %v13239 = vunpack.c.l.b16 %v12486
    %v13240 = vunpack.c.h.b16 %v12486
    %v13241 = vunpack.c.l.b16 %v12487
    %v13242 = vunpack.c.h.b16 %v12487
    %v13243 = vunpack.c.l.b16 %v12488
    %v13244 = vunpack.c.h.b16 %v12488
    %v13245 = vunpack.c.l.b16 %v12489
    %v13246 = vunpack.c.h.b16 %v12489
    %v13247 = vunpack.c.l.b16 %v12490
    %v13248 = vunpack.c.h.b16 %v12490
    %v13249 = vunpack.c.l.b16 %v12491
    %v13250 = vunpack.c.h.b16 %v12491
    %v13251 = vunpack.c.l.b16 %v12492
    %v13252 = vunpack.c.h.b16 %v12492
    %v13253 = vunpack.c.l.b16 %v12493
    %v13254 = vunpack.c.h.b16 %v12493
    %v13255 = vunpack.c.l.b16 %v12494
    %v13256 = vunpack.c.h.b16 %v12494
    %v13257 = vunpack.c.l.b16 %v12495
    %v13258 = vunpack.c.h.b16 %v12495
    %v13259 = vunpack.c.l.b16 %v12496
    %v13260 = vunpack.c.h.b16 %v12496
    %v13261 = vunpack.c.l.b16 %v12497
    %v13262 = vunpack.c.h.b16 %v12497
    %v13263 = vunpack.c.l.b16 %v12498
    %v13264 = vunpack.c.h.b16 %v12498
    %v13265 = vunpack.c.l.b16 %v12499
    %v13266 = vunpack.c.h.b16 %v12499
    %v13267 = vunpack.c.l.b16 %v12500
    %v13268 = vunpack.c.h.b16 %v12500
    %v13269 = vunpack.c.l.b16 %v12501
    %v13270 = vunpack.c.h.b16 %v12501
    %v13271 = vunpack.c.l.b16 %v12502
    %v13272 = vunpack.c.h.b16 %v12502
    %v13273 = vunpack.c.l.b16 %v12503
    %v13274 = vunpack.c.h.b16 %v12503
    %v13275 = vunpack.c.l.b16 %v12504
    %v13276 = vunpack.c.h.b16 %v12504
    %v13277 = vunpack.c.l.b16 %v12505
    %v13278 = vunpack.c.h.b16 %v12505
    %v13279 = vunpack.c.l.b16 %v12506
    %v13280 = vunpack.c.h.b16 %v12506
    %v13281 = vunpack.c.l.b16 %v12507
    %v13282 = vunpack.c.h.b16 %v12507
    %v13283 = vunpack.c.l.b16 %v12508
    %v13284 = vunpack.c.h.b16 %v12508
    %v13285 = vunpack.c.l.b16 %v12509
    %v13286 = vunpack.c.h.b16 %v12509
    %v13287 = vunpack.c.l.b16 %v12510
    %v13288 = vunpack.c.h.b16 %v12510
    %v13289 = vpack.c.b16 %v12781, %v12777
    %v13290 = vpack.c.b16 %v12782, %v12778
    %v13291 = vpack.c.b16 %v12783, %v12779
    %v13292 = vpack.c.b16 %v12784, %v12780
    %v13293 = vpack.c.b16 %v12789, %v12785
    %v13294 = vpack.c.b16 %v12790, %v12786
    %v13295 = vpack.c.b16 %v12791, %v12787
    %v13296 = vpack.c.b16 %v12792, %v12788
    %v13297 = vpack.c.b16 %v12797, %v12793
    %v13298 = vpack.c.b16 %v12798, %v12794
    %v13299 = vpack.c.b16 %v12799, %v12795
    %v13300 = vpack.c.b16 %v12800, %v12796
    %v13301 = vpack.c.b16 %v12805, %v12801
    %v13302 = vpack.c.b16 %v12806, %v12802
    %v13303 = vpack.c.b16 %v12807, %v12803
    %v13304 = vpack.c.b16 %v12808, %v12804
    %v13305 = vpack.c.b16 %v12813, %v12809
    %v13306 = vpack.c.b16 %v12814, %v12810
    %v13307 = vpack.c.b16 %v12815, %v12811
    %v13308 = vpack.c.b16 %v12816, %v12812
    %v13309 = vpack.c.b16 %v12821, %v12817
    %v13310 = vpack.c.b16 %v12822, %v12818
    %v13311 = vpack.c.b16 %v12823, %v12819
    %v13312 = vpack.c.b16 %v12824, %v12820
    %v13313 = vpack.c.b16 %v12829, %v12825
    %v13314 = vpack.c.b16 %v12830, %v12826
    %v13315 = vpack.c.b16 %v12831, %v12827
    %v13316 = vpack.c.b16 %v12832, %v12828
    %v13317 = vpack.c.b16 %v12837, %v12833
    %v13318 = vpack.c.b16 %v12838, %v12834
    %v13319 = vpack.c.b16 %v12839, %v12835
    %v13320 = vpack.c.b16 %v12840, %v12836
    %v13321 = vpack.c.b16 %v12845, %v12841
    %v13322 = vpack.c.b16 %v12846, %v12842
    %v13323 = vpack.c.b16 %v12847, %v12843
    %v13324 = vpack.c.b16 %v12848, %v12844
    %v13325 = vpack.c.b16 %v12853, %v12849
    %v13326 = vpack.c.b16 %v12854, %v12850
    %v13327 = vpack.c.b16 %v12855, %v12851
    %v13328 = vpack.c.b16 %v12856, %v12852
    %v13329 = vpack.c.b16 %v12861, %v12857
    %v13330 = vpack.c.b16 %v12862, %v12858
    %v13331 = vpack.c.b16 %v12863, %v12859
    %v13332 = vpack.c.b16 %v12864, %v12860
    %v13333 = vpack.c.b16 %v12869, %v12865
    %v13334 = vpack.c.b16 %v12870, %v12866
    %v13335 = vpack.c.b16 %v12871, %v12867
    %v13336 = vpack.c.b16 %v12872, %v12868
    %v13337 = vpack.c.b16 %v12877, %v12873
    %v13338 = vpack.c.b16 %v12878, %v12874
    %v13339 = vpack.c.b16 %v12879, %v12875
    %v13340 = vpack.c.b16 %v12880, %v12876
    %v13341 = vpack.c.b16 %v12885, %v12881
    %v13342 = vpack.c.b16 %v12886, %v12882
    %v13343 = vpack.c.b16 %v12887, %v12883
    %v13344 = vpack.c.b16 %v12888, %v12884
    %v13345 = vpack.c.b16 %v12893, %v12889
    %v13346 = vpack.c.b16 %v12894, %v12890
    %v13347 = vpack.c.b16 %v12895, %v12891
    %v13348 = vpack.c.b16 %v12896, %v12892
    %v13349 = vpack.c.b16 %v12901, %v12897
    %v13350 = vpack.c.b16 %v12902, %v12898
    %v13351 = vpack.c.b16 %v12903, %v12899
    %v13352 = vpack.c.b16 %v12904, %v12900
    %v13353 = vpack.c.b16 %v12909, %v12905
    %v13354 = vpack.c.b16 %v12910, %v12906
    %v13355 = vpack.c.b16 %v12911, %v12907
    %v13356 = vpack.c.b16 %v12912, %v12908
    %v13357 = vpack.c.b16 %v12917, %v12913
    %v13358 = vpack.c.b16 %v12918, %v12914
    %v13359 = vpack.c.b16 %v12919, %v12915
    %v13360 = vpack.c.b16 %v12920, %v12916
    %v13361 = vpack.c.b16 %v12925, %v12921
    %v13362 = vpack.c.b16 %v12926, %v12922
    %v13363 = vpack.c.b16 %v12927, %v12923
    %v13364 = vpack.c.b16 %v12928, %v12924
    %v13365 = vpack.c.b16 %v12933, %v12929
    %v13366 = vpack.c.b16 %v12934, %v12930
    %v13367 = vpack.c.b16 %v12935, %v12931
    %v13368 = vpack.c.b16 %v12936, %v12932
    %v13369 = vpack.c.b16 %v12941, %v12937
    %v13370 = vpack.c.b16 %v12942, %v12938
    %v13371 = vpack.c.b16 %v12943, %v12939
    %v13372 = vpack.c.b16 %v12944, %v12940
    %v13373 = vpack.c.b16 %v12949, %v12945
    %v13374 = vpack.c.b16 %v12950, %v12946
    %v13375 = vpack.c.b16 %v12951, %v12947
    %v13376 = vpack.c.b16 %v12952, %v12948
    %v13377 = vpack.c.b16 %v12957, %v12953
    %v13378 = vpack.c.b16 %v12958, %v12954
    %v13379 = vpack.c.b16 %v12959, %v12955
    %v13380 = vpack.c.b16 %v12960, %v12956
    %v13381 = vpack.c.b16 %v12965, %v12961
    %v13382 = vpack.c.b16 %v12966, %v12962
    %v13383 = vpack.c.b16 %v12967, %v12963
    %v13384 = vpack.c.b16 %v12968, %v12964
    %v13385 = vpack.c.b16 %v12973, %v12969
    %v13386 = vpack.c.b16 %v12974, %v12970
    %v13387 = vpack.c.b16 %v12975, %v12971
    %v13388 = vpack.c.b16 %v12976, %v12972
    %v13389 = vpack.c.b16 %v12981, %v12977
    %v13390 = vpack.c.b16 %v12982, %v12978
    %v13391 = vpack.c.b16 %v12983, %v12979
    %v13392 = vpack.c.b16 %v12984, %v12980
    %v13393 = vpack.c.b16 %v12989, %v12985
    %v13394 = vpack.c.b16 %v12990, %v12986
    %v13395 = vpack.c.b16 %v12991, %v12987
    %v13396 = vpack.c.b16 %v12992, %v12988
    %v13397 = vpack.c.b16 %v12997, %v12993
    %v13398 = vpack.c.b16 %v12998, %v12994
    %v13399 = vpack.c.b16 %v12999, %v12995
    %v13400 = vpack.c.b16 %v13000, %v12996
    %v13401 = vpack.c.b16 %v13005, %v13001
    %v13402 = vpack.c.b16 %v13006, %v13002
    %v13403 = vpack.c.b16 %v13007, %v13003
    %v13404 = vpack.c.b16 %v13008, %v13004
    %v13405 = vpack.c.b16 %v13013, %v13009
    %v13406 = vpack.c.b16 %v13014, %v13010
    %v13407 = vpack.c.b16 %v13015, %v13011
    %v13408 = vpack.c.b16 %v13016, %v13012
    %v13409 = vpack.c.b16 %v13021, %v13017
    %v13410 = vpack.c.b16 %v13022, %v13018
    %v13411 = vpack.c.b16 %v13023, %v13019
    %v13412 = vpack.c.b16 %v13024, %v13020
    %v13413 = vpack.c.b16 %v13029, %v13025
    %v13414 = vpack.c.b16 %v13030, %v13026
    %v13415 = vpack.c.b16 %v13031, %v13027
    %v13416 = vpack.c.b16 %v13032, %v13028
    %v13417 = vpack.c.b16 %v13037, %v13033
    %v13418 = vpack.c.b16 %v13038, %v13034
    %v13419 = vpack.c.b16 %v13039, %v13035
    %v13420 = vpack.c.b16 %v13040, %v13036
    %v13421 = vpack.c.b16 %v13045, %v13041
    %v13422 = vpack.c.b16 %v13046, %v13042
    %v13423 = vpack.c.b16 %v13047, %v13043
    %v13424 = vpack.c.b16 %v13048, %v13044
    %v13425 = vpack.c.b16 %v13053, %v13049
    %v13426 = vpack.c.b16 %v13054, %v13050
    %v13427 = vpack.c.b16 %v13055, %v13051
    %v13428 = vpack.c.b16 %v13056, %v13052
    %v13429 = vpack.c.b16 %v13061, %v13057
    %v13430 = vpack.c.b16 %v13062, %v13058
    %v13431 = vpack.c.b16 %v13063, %v13059
    %v13432 = vpack.c.b16 %v13064, %v13060
    %v13433 = vpack.c.b16 %v13069, %v13065
    %v13434 = vpack.c.b16 %v13070, %v13066
    %v13435 = vpack.c.b16 %v13071, %v13067
    %v13436 = vpack.c.b16 %v13072, %v13068
    %v13437 = vpack.c.b16 %v13077, %v13073
    %v13438 = vpack.c.b16 %v13078, %v13074
    %v13439 = vpack.c.b16 %v13079, %v13075
    %v13440 = vpack.c.b16 %v13080, %v13076
    %v13441 = vpack.c.b16 %v13085, %v13081
    %v13442 = vpack.c.b16 %v13086, %v13082
    %v13443 = vpack.c.b16 %v13087, %v13083
    %v13444 = vpack.c.b16 %v13088, %v13084
    %v13445 = vpack.c.b16 %v13093, %v13089
    %v13446 = vpack.c.b16 %v13094, %v13090
    %v13447 = vpack.c.b16 %v13095, %v13091
    %v13448 = vpack.c.b16 %v13096, %v13092
    %v13449 = vpack.c.b16 %v13101, %v13097
    %v13450 = vpack.c.b16 %v13102, %v13098
    %v13451 = vpack.c.b16 %v13103, %v13099
    %v13452 = vpack.c.b16 %v13104, %v13100
    %v13453 = vpack.c.b16 %v13109, %v13105
    %v13454 = vpack.c.b16 %v13110, %v13106
    %v13455 = vpack.c.b16 %v13111, %v13107
    %v13456 = vpack.c.b16 %v13112, %v13108
    %v13457 = vpack.c.b16 %v13117, %v13113
    %v13458 = vpack.c.b16 %v13118, %v13114
    %v13459 = vpack.c.b16 %v13119, %v13115
    %v13460 = vpack.c.b16 %v13120, %v13116
    %v13461 = vpack.c.b16 %v13125, %v13121
    %v13462 = vpack.c.b16 %v13126, %v13122
    %v13463 = vpack.c.b16 %v13127, %v13123
    %v13464 = vpack.c.b16 %v13128, %v13124
    %v13465 = vpack.c.b16 %v13133, %v13129
    %v13466 = vpack.c.b16 %v13134, %v13130
    %v13467 = vpack.c.b16 %v13135, %v13131
    %v13468 = vpack.c.b16 %v13136, %v13132
    %v13469 = vpack.c.b16 %v13141, %v13137
    %v13470 = vpack.c.b16 %v13142, %v13138
    %v13471 = vpack.c.b16 %v13143, %v13139
    %v13472 = vpack.c.b16 %v13144, %v13140
    %v13473 = vpack.c.b16 %v13149, %v13145
    %v13474 = vpack.c.b16 %v13150, %v13146
    %v13475 = vpack.c.b16 %v13151, %v13147
    %v13476 = vpack.c.b16 %v13152, %v13148
    %v13477 = vpack.c.b16 %v13157, %v13153
    %v13478 = vpack.c.b16 %v13158, %v13154
    %v13479 = vpack.c.b16 %v13159, %v13155
    %v13480 = vpack.c.b16 %v13160, %v13156
    %v13481 = vpack.c.b16 %v13165, %v13161
    %v13482 = vpack.c.b16 %v13166, %v13162
    %v13483 = vpack.c.b16 %v13167, %v13163
    %v13484 = vpack.c.b16 %v13168, %v13164
    %v13485 = vpack.c.b16 %v13173, %v13169
    %v13486 = vpack.c.b16 %v13174, %v13170
    %v13487 = vpack.c.b16 %v13175, %v13171
    %v13488 = vpack.c.b16 %v13176, %v13172
    %v13489 = vpack.c.b16 %v13181, %v13177
    %v13490 = vpack.c.b16 %v13182, %v13178
    %v13491 = vpack.c.b16 %v13183, %v13179
    %v13492 = vpack.c.b16 %v13184, %v13180
    %v13493 = vpack.c.b16 %v13189, %v13185
    %v13494 = vpack.c.b16 %v13190, %v13186
    %v13495 = vpack.c.b16 %v13191, %v13187
    %v13496 = vpack.c.b16 %v13192, %v13188
    %v13497 = vpack.c.b16 %v13197, %v13193
    %v13498 = vpack.c.b16 %v13198, %v13194
    %v13499 = vpack.c.b16 %v13199, %v13195
    %v13500 = vpack.c.b16 %v13200, %v13196
    %v13501 = vpack.c.b16 %v13205, %v13201
    %v13502 = vpack.c.b16 %v13206, %v13202
    %v13503 = vpack.c.b16 %v13207, %v13203
    %v13504 = vpack.c.b16 %v13208, %v13204
    %v13505 = vpack.c.b16 %v13213, %v13209
    %v13506 = vpack.c.b16 %v13214, %v13210
    %v13507 = vpack.c.b16 %v13215, %v13211
    %v13508 = vpack.c.b16 %v13216, %v13212
    %v13509 = vpack.c.b16 %v13221, %v13217
    %v13510 = vpack.c.b16 %v13222, %v13218
    %v13511 = vpack.c.b16 %v13223, %v13219
    %v13512 = vpack.c.b16 %v13224, %v13220
    %v13513 = vpack.c.b16 %v13229, %v13225
    %v13514 = vpack.c.b16 %v13230, %v13226
    %v13515 = vpack.c.b16 %v13231, %v13227
    %v13516 = vpack.c.b16 %v13232, %v13228
    %v13517 = vpack.c.b16 %v13237, %v13233
    %v13518 = vpack.c.b16 %v13238, %v13234
    %v13519 = vpack.c.b16 %v13239, %v13235
    %v13520 = vpack.c.b16 %v13240, %v13236
    %v13521 = vpack.c.b16 %v13245, %v13241
    %v13522 = vpack.c.b16 %v13246, %v13242
    %v13523 = vpack.c.b16 %v13247, %v13243
    %v13524 = vpack.c.b16 %v13248, %v13244
    %v13525 = vpack.c.b16 %v13253, %v13249
    %v13526 = vpack.c.b16 %v13254, %v13250
    %v13527 = vpack.c.b16 %v13255, %v13251
    %v13528 = vpack.c.b16 %v13256, %v13252
    %v13529 = vpack.c.b16 %v13261, %v13257
    %v13530 = vpack.c.b16 %v13262, %v13258
    %v13531 = vpack.c.b16 %v13263, %v13259
    %v13532 = vpack.c.b16 %v13264, %v13260
    %v13533 = vpack.c.b16 %v13269, %v13265
    %v13534 = vpack.c.b16 %v13270, %v13266
    %v13535 = vpack.c.b16 %v13271, %v13267
    %v13536 = vpack.c.b16 %v13272, %v13268
    %v13537 = vpack.c.b16 %v13277, %v13273
    %v13538 = vpack.c.b16 %v13278, %v13274
    %v13539 = vpack.c.b16 %v13279, %v13275
    %v13540 = vpack.c.b16 %v13280, %v13276
    %v13541 = vpack.c.b16 %v13285, %v13281
    %v13542 = vpack.c.b16 %v13286, %v13282
    %v13543 = vpack.c.b16 %v13287, %v13283
    %v13544 = vpack.c.b16 %v13288, %v13284
    %13801 = vmatpush.bf16.msra.mxu0 %v13317
    %13802 = vmatpush.bf16.msra.mxu0 %v13313
    %13803 = vmatpush.bf16.msra.mxu0 %v13309
    %13804 = vmatpush.bf16.msra.mxu0 %v13305
    %13805 = vmatpush.bf16.msra.mxu0 %v13301
    %13806 = vmatpush.bf16.msra.mxu0 %v13297
    %13807 = vmatpush.bf16.msra.mxu0 %v13293
    %13808 = vmatpush.bf16.msra.mxu0 %v13289
    %13809 = vmatmul.bf16.gmra.mxu0 %v12247
    %v13810 = vpop.f32.mrf.mxu0
    %v13811 = vadd.f32 %v12513, %v13810
    %v13812 = vpop.f32.mrf.mxu0
    %v13813 = vadd.f32 %v12513, %v13812
    %13814 = vdwg.mxu0
    %13815 = vmatpush.bf16.msra.mxu0 %v13349
    %13816 = vmatpush.bf16.msra.mxu0 %v13345
    %13817 = vmatpush.bf16.msra.mxu0 %v13341
    %13818 = vmatpush.bf16.msra.mxu0 %v13337
    %13819 = vmatpush.bf16.msra.mxu0 %v13333
    %13820 = vmatpush.bf16.msra.mxu0 %v13329
    %13821 = vmatpush.bf16.msra.mxu0 %v13325
    %13822 = vmatpush.bf16.msra.mxu0 %v13321
    %13823 = vmatmul.bf16.gmra.mxu0 %v12248
    %v13824 = vpop.f32.mrf.mxu0
    %v13825 = vadd.f32 %v13811, %v13824
    %v13826 = vpop.f32.mrf.mxu0
    %v13827 = vadd.f32 %v13813, %v13826
    %13828 = vdwg.mxu0
    %13829 = vmatpush.bf16.msra.mxu0 %v13381
    %13830 = vmatpush.bf16.msra.mxu0 %v13377
    %13831 = vmatpush.bf16.msra.mxu0 %v13373
    %13832 = vmatpush.bf16.msra.mxu0 %v13369
    %13833 = vmatpush.bf16.msra.mxu0 %v13365
    %13834 = vmatpush.bf16.msra.mxu0 %v13361
    %13835 = vmatpush.bf16.msra.mxu0 %v13357
    %13836 = vmatpush.bf16.msra.mxu0 %v13353
    %13837 = vmatmul.bf16.gmra.mxu0 %v12249
    %v13838 = vpop.f32.mrf.mxu0
    %v13839 = vadd.f32 %v13825, %v13838
    %v13840 = vpop.f32.mrf.mxu0
    %v13841 = vadd.f32 %v13827, %v13840
    %13842 = vdwg.mxu0
    %13843 = vmatpush.bf16.msra.mxu0 %v13413
    %13844 = vmatpush.bf16.msra.mxu0 %v13409
    %13845 = vmatpush.bf16.msra.mxu0 %v13405
    %13846 = vmatpush.bf16.msra.mxu0 %v13401
    %13847 = vmatpush.bf16.msra.mxu0 %v13397
    %13848 = vmatpush.bf16.msra.mxu0 %v13393
    %13849 = vmatpush.bf16.msra.mxu0 %v13389
    %13850 = vmatpush.bf16.msra.mxu0 %v13385
    %13851 = vmatmul.bf16.gmra.mxu0 %v12250
    %v13852 = vpop.f32.mrf.mxu0
    %v13853 = vadd.f32 %v13839, %v13852
    %v13854 = vpop.f32.mrf.mxu0
    %v13855 = vadd.f32 %v13841, %v13854
    %13856 = vdwg.mxu0
    %13857 = vmatpush.bf16.msra.mxu0 %v13445
    %13858 = vmatpush.bf16.msra.mxu0 %v13441
    %13859 = vmatpush.bf16.msra.mxu0 %v13437
    %13860 = vmatpush.bf16.msra.mxu0 %v13433
    %13861 = vmatpush.bf16.msra.mxu0 %v13429
    %13862 = vmatpush.bf16.msra.mxu0 %v13425
    %13863 = vmatpush.bf16.msra.mxu0 %v13421
    %13864 = vmatpush.bf16.msra.mxu0 %v13417
    %13865 = vmatmul.bf16.gmra.mxu0 %v12251
    %v13866 = vpop.f32.mrf.mxu0
    %v13867 = vadd.f32 %v13853, %v13866
    %v13868 = vpop.f32.mrf.mxu0
    %v13869 = vadd.f32 %v13855, %v13868
    %13870 = vdwg.mxu0
    %13871 = vmatpush.bf16.msra.mxu0 %v13477
    %13872 = vmatpush.bf16.msra.mxu0 %v13473
    %13873 = vmatpush.bf16.msra.mxu0 %v13469
    %13874 = vmatpush.bf16.msra.mxu0 %v13465
    %13875 = vmatpush.bf16.msra.mxu0 %v13461
    %13876 = vmatpush.bf16.msra.mxu0 %v13457
    %13877 = vmatpush.bf16.msra.mxu0 %v13453
    %13878 = vmatpush.bf16.msra.mxu0 %v13449
    %13879 = vmatmul.bf16.gmra.mxu0 %v12252
    %v13880 = vpop.f32.mrf.mxu0
    %v13881 = vadd.f32 %v13867, %v13880
    %v13882 = vpop.f32.mrf.mxu0
    %v13883 = vadd.f32 %v13869, %v13882
    %13884 = vdwg.mxu0
    %13885 = vmatpush.bf16.msra.mxu0 %v13509
    %13886 = vmatpush.bf16.msra.mxu0 %v13505
    %13887 = vmatpush.bf16.msra.mxu0 %v13501
    %13888 = vmatpush.bf16.msra.mxu0 %v13497
    %13889 = vmatpush.bf16.msra.mxu0 %v13493
    %13890 = vmatpush.bf16.msra.mxu0 %v13489
    %13891 = vmatpush.bf16.msra.mxu0 %v13485
    %13892 = vmatpush.bf16.msra.mxu0 %v13481
    %13893 = vmatmul.bf16.gmra.mxu0 %v12253
    %v13894 = vpop.f32.mrf.mxu0
    %v13895 = vadd.f32 %v13881, %v13894
    %v13896 = vpop.f32.mrf.mxu0
    %v13897 = vadd.f32 %v13883, %v13896
    %13898 = vdwg.mxu0
    %13899 = vmatpush.bf16.msra.mxu0 %v13541
    %13900 = vmatpush.bf16.msra.mxu0 %v13537
    %13901 = vmatpush.bf16.msra.mxu0 %v13533
    %13902 = vmatpush.bf16.msra.mxu0 %v13529
    %13903 = vmatpush.bf16.msra.mxu0 %v13525
    %13904 = vmatpush.bf16.msra.mxu0 %v13521
    %13905 = vmatpush.bf16.msra.mxu0 %v13517
    %13906 = vmatpush.bf16.msra.mxu0 %v13513
    %13907 = vmatmul.bf16.gmra.mxu0 %v12254
    %v13908 = vpop.f32.mrf.mxu0
    %v13909 = vadd.f32 %v13895, %v13908
    %v13910 = vpop.f32.mrf.mxu0
    %v13911 = vadd.f32 %v13897, %v13910
    %13912 = vdwg.mxu0
    %13913 = vmatpush.bf16.msra.mxu0 %v13318
    %13914 = vmatpush.bf16.msra.mxu0 %v13314
    %13915 = vmatpush.bf16.msra.mxu0 %v13310
    %13916 = vmatpush.bf16.msra.mxu0 %v13306
    %13917 = vmatpush.bf16.msra.mxu0 %v13302
    %13918 = vmatpush.bf16.msra.mxu0 %v13298
    %13919 = vmatpush.bf16.msra.mxu0 %v13294
    %13920 = vmatpush.bf16.msra.mxu0 %v13290
    %13921 = vmatmul.bf16.gmra.mxu0 %v12247
    %v13922 = vpop.f32.mrf.mxu0
    %v13923 = vadd.f32 %v12514, %v13922
    %v13924 = vpop.f32.mrf.mxu0
    %v13925 = vadd.f32 %v12514, %v13924
    %13926 = vdwg.mxu0
    %13927 = vmatpush.bf16.msra.mxu0 %v13350
    %13928 = vmatpush.bf16.msra.mxu0 %v13346
    %13929 = vmatpush.bf16.msra.mxu0 %v13342
    %13930 = vmatpush.bf16.msra.mxu0 %v13338
    %13931 = vmatpush.bf16.msra.mxu0 %v13334
    %13932 = vmatpush.bf16.msra.mxu0 %v13330
    %13933 = vmatpush.bf16.msra.mxu0 %v13326
    %13934 = vmatpush.bf16.msra.mxu0 %v13322
    %13935 = vmatmul.bf16.gmra.mxu0 %v12248
    %v13936 = vpop.f32.mrf.mxu0
    %v13937 = vadd.f32 %v13923, %v13936
    %v13938 = vpop.f32.mrf.mxu0
    %v13939 = vadd.f32 %v13925, %v13938
    %13940 = vdwg.mxu0
    %13941 = vmatpush.bf16.msra.mxu0 %v13382
    %13942 = vmatpush.bf16.msra.mxu0 %v13378
    %13943 = vmatpush.bf16.msra.mxu0 %v13374
    %13944 = vmatpush.bf16.msra.mxu0 %v13370
    %13945 = vmatpush.bf16.msra.mxu0 %v13366
    %13946 = vmatpush.bf16.msra.mxu0 %v13362
    %13947 = vmatpush.bf16.msra.mxu0 %v13358
    %13948 = vmatpush.bf16.msra.mxu0 %v13354
    %13949 = vmatmul.bf16.gmra.mxu0 %v12249
    %v13950 = vpop.f32.mrf.mxu0
    %v13951 = vadd.f32 %v13937, %v13950
    %v13952 = vpop.f32.mrf.mxu0
    %v13953 = vadd.f32 %v13939, %v13952
    %13954 = vdwg.mxu0
    %13955 = vmatpush.bf16.msra.mxu0 %v13414
    %13956 = vmatpush.bf16.msra.mxu0 %v13410
    %13957 = vmatpush.bf16.msra.mxu0 %v13406
    %13958 = vmatpush.bf16.msra.mxu0 %v13402
    %13959 = vmatpush.bf16.msra.mxu0 %v13398
    %13960 = vmatpush.bf16.msra.mxu0 %v13394
    %13961 = vmatpush.bf16.msra.mxu0 %v13390
    %13962 = vmatpush.bf16.msra.mxu0 %v13386
    %13963 = vmatmul.bf16.gmra.mxu0 %v12250
    %v13964 = vpop.f32.mrf.mxu0
    %v13965 = vadd.f32 %v13951, %v13964
    %v13966 = vpop.f32.mrf.mxu0
    %v13967 = vadd.f32 %v13953, %v13966
    %13968 = vdwg.mxu0
    %13969 = vmatpush.bf16.msra.mxu0 %v13446
    %13970 = vmatpush.bf16.msra.mxu0 %v13442
    %13971 = vmatpush.bf16.msra.mxu0 %v13438
    %13972 = vmatpush.bf16.msra.mxu0 %v13434
    %13973 = vmatpush.bf16.msra.mxu0 %v13430
    %13974 = vmatpush.bf16.msra.mxu0 %v13426
    %13975 = vmatpush.bf16.msra.mxu0 %v13422
    %13976 = vmatpush.bf16.msra.mxu0 %v13418
    %13977 = vmatmul.bf16.gmra.mxu0 %v12251
    %v13978 = vpop.f32.mrf.mxu0
    %v13979 = vadd.f32 %v13965, %v13978
    %v13980 = vpop.f32.mrf.mxu0
    %v13981 = vadd.f32 %v13967, %v13980
    %13982 = vdwg.mxu0
    %13983 = vmatpush.bf16.msra.mxu0 %v13478
    %13984 = vmatpush.bf16.msra.mxu0 %v13474
    %13985 = vmatpush.bf16.msra.mxu0 %v13470
    %13986 = vmatpush.bf16.msra.mxu0 %v13466
    %13987 = vmatpush.bf16.msra.mxu0 %v13462
    %13988 = vmatpush.bf16.msra.mxu0 %v13458
    %13989 = vmatpush.bf16.msra.mxu0 %v13454
    %13990 = vmatpush.bf16.msra.mxu0 %v13450
    %13991 = vmatmul.bf16.gmra.mxu0 %v12252
    %v13992 = vpop.f32.mrf.mxu0
    %v13993 = vadd.f32 %v13979, %v13992
    %v13994 = vpop.f32.mrf.mxu0
    %v13995 = vadd.f32 %v13981, %v13994
    %13996 = vdwg.mxu0
    %13997 = vmatpush.bf16.msra.mxu0 %v13510
    %13998 = vmatpush.bf16.msra.mxu0 %v13506
    %13999 = vmatpush.bf16.msra.mxu0 %v13502
    %14000 = vmatpush.bf16.msra.mxu0 %v13498
    %14001 = vmatpush.bf16.msra.mxu0 %v13494
    %14002 = vmatpush.bf16.msra.mxu0 %v13490
    %14003 = vmatpush.bf16.msra.mxu0 %v13486
    %14004 = vmatpush.bf16.msra.mxu0 %v13482
    %14005 = vmatmul.bf16.gmra.mxu0 %v12253
    %v14006 = vpop.f32.mrf.mxu0
    %v14007 = vadd.f32 %v13993, %v14006
    %v14008 = vpop.f32.mrf.mxu0
    %v14009 = vadd.f32 %v13995, %v14008
    %14010 = vdwg.mxu0
    %14011 = vmatpush.bf16.msra.mxu0 %v13542
    %14012 = vmatpush.bf16.msra.mxu0 %v13538
    %14013 = vmatpush.bf16.msra.mxu0 %v13534
    %14014 = vmatpush.bf16.msra.mxu0 %v13530
    %14015 = vmatpush.bf16.msra.mxu0 %v13526
    %14016 = vmatpush.bf16.msra.mxu0 %v13522
    %14017 = vmatpush.bf16.msra.mxu0 %v13518
    %14018 = vmatpush.bf16.msra.mxu0 %v13514
    %14019 = vmatmul.bf16.gmra.mxu0 %v12254
    %v14020 = vpop.f32.mrf.mxu0
    %v14021 = vadd.f32 %v14007, %v14020
    %v14022 = vpop.f32.mrf.mxu0
    %v14023 = vadd.f32 %v14009, %v14022
    %14024 = vdwg.mxu0
    %14025 = vmatpush.bf16.msra.mxu0 %v13319
    %14026 = vmatpush.bf16.msra.mxu0 %v13315
    %14027 = vmatpush.bf16.msra.mxu0 %v13311
    %14028 = vmatpush.bf16.msra.mxu0 %v13307
    %14029 = vmatpush.bf16.msra.mxu0 %v13303
    %14030 = vmatpush.bf16.msra.mxu0 %v13299
    %14031 = vmatpush.bf16.msra.mxu0 %v13295
    %14032 = vmatpush.bf16.msra.mxu0 %v13291
    %14033 = vmatmul.bf16.gmra.mxu0 %v12247
    %v14034 = vpop.f32.mrf.mxu0
    %v14035 = vadd.f32 %v12515, %v14034
    %v14036 = vpop.f32.mrf.mxu0
    %v14037 = vadd.f32 %v12515, %v14036
    %14038 = vdwg.mxu0
    %14039 = vmatpush.bf16.msra.mxu0 %v13351
    %14040 = vmatpush.bf16.msra.mxu0 %v13347
    %14041 = vmatpush.bf16.msra.mxu0 %v13343
    %14042 = vmatpush.bf16.msra.mxu0 %v13339
    %14043 = vmatpush.bf16.msra.mxu0 %v13335
    %14044 = vmatpush.bf16.msra.mxu0 %v13331
    %14045 = vmatpush.bf16.msra.mxu0 %v13327
    %14046 = vmatpush.bf16.msra.mxu0 %v13323
    %14047 = vmatmul.bf16.gmra.mxu0 %v12248
    %v14048 = vpop.f32.mrf.mxu0
    %v14049 = vadd.f32 %v14035, %v14048
    %v14050 = vpop.f32.mrf.mxu0
    %v14051 = vadd.f32 %v14037, %v14050
    %14052 = vdwg.mxu0
    %14053 = vmatpush.bf16.msra.mxu0 %v13383
    %14054 = vmatpush.bf16.msra.mxu0 %v13379
    %14055 = vmatpush.bf16.msra.mxu0 %v13375
    %14056 = vmatpush.bf16.msra.mxu0 %v13371
    %14057 = vmatpush.bf16.msra.mxu0 %v13367
    %14058 = vmatpush.bf16.msra.mxu0 %v13363
    %14059 = vmatpush.bf16.msra.mxu0 %v13359
    %14060 = vmatpush.bf16.msra.mxu0 %v13355
    %14061 = vmatmul.bf16.gmra.mxu0 %v12249
    %v14062 = vpop.f32.mrf.mxu0
    %v14063 = vadd.f32 %v14049, %v14062
    %v14064 = vpop.f32.mrf.mxu0
    %v14065 = vadd.f32 %v14051, %v14064
    %14066 = vdwg.mxu0
    %14067 = vmatpush.bf16.msra.mxu0 %v13415
    %14068 = vmatpush.bf16.msra.mxu0 %v13411
    %14069 = vmatpush.bf16.msra.mxu0 %v13407
    %14070 = vmatpush.bf16.msra.mxu0 %v13403
    %14071 = vmatpush.bf16.msra.mxu0 %v13399
    %14072 = vmatpush.bf16.msra.mxu0 %v13395
    %14073 = vmatpush.bf16.msra.mxu0 %v13391
    %14074 = vmatpush.bf16.msra.mxu0 %v13387
    %14075 = vmatmul.bf16.gmra.mxu0 %v12250
    %v14076 = vpop.f32.mrf.mxu0
    %v14077 = vadd.f32 %v14063, %v14076
    %v14078 = vpop.f32.mrf.mxu0
    %v14079 = vadd.f32 %v14065, %v14078
    %14080 = vdwg.mxu0
    %14081 = vmatpush.bf16.msra.mxu0 %v13447
    %14082 = vmatpush.bf16.msra.mxu0 %v13443
    %14083 = vmatpush.bf16.msra.mxu0 %v13439
    %14084 = vmatpush.bf16.msra.mxu0 %v13435
    %14085 = vmatpush.bf16.msra.mxu0 %v13431
    %14086 = vmatpush.bf16.msra.mxu0 %v13427
    %14087 = vmatpush.bf16.msra.mxu0 %v13423
    %14088 = vmatpush.bf16.msra.mxu0 %v13419
    %14089 = vmatmul.bf16.gmra.mxu0 %v12251
    %v14090 = vpop.f32.mrf.mxu0
    %v14091 = vadd.f32 %v14077, %v14090
    %v14092 = vpop.f32.mrf.mxu0
    %v14093 = vadd.f32 %v14079, %v14092
    %14094 = vdwg.mxu0
    %14095 = vmatpush.bf16.msra.mxu0 %v13479
    %14096 = vmatpush.bf16.msra.mxu0 %v13475
    %14097 = vmatpush.bf16.msra.mxu0 %v13471
    %14098 = vmatpush.bf16.msra.mxu0 %v13467
    %14099 = vmatpush.bf16.msra.mxu0 %v13463
    %14100 = vmatpush.bf16.msra.mxu0 %v13459
    %14101 = vmatpush.bf16.msra.mxu0 %v13455
    %14102 = vmatpush.bf16.msra.mxu0 %v13451
    %14103 = vmatmul.bf16.gmra.mxu0 %v12252
    %v14104 = vpop.f32.mrf.mxu0
    %v14105 = vadd.f32 %v14091, %v14104
    %v14106 = vpop.f32.mrf.mxu0
    %v14107 = vadd.f32 %v14093, %v14106
    %14108 = vdwg.mxu0
    %14109 = vmatpush.bf16.msra.mxu0 %v13511
    %14110 = vmatpush.bf16.msra.mxu0 %v13507
    %14111 = vmatpush.bf16.msra.mxu0 %v13503
    %14112 = vmatpush.bf16.msra.mxu0 %v13499
    %14113 = vmatpush.bf16.msra.mxu0 %v13495
    %14114 = vmatpush.bf16.msra.mxu0 %v13491
    %14115 = vmatpush.bf16.msra.mxu0 %v13487
    %14116 = vmatpush.bf16.msra.mxu0 %v13483
    %14117 = vmatmul.bf16.gmra.mxu0 %v12253
    %v14118 = vpop.f32.mrf.mxu0
    %v14119 = vadd.f32 %v14105, %v14118
    %v14120 = vpop.f32.mrf.mxu0
    %v14121 = vadd.f32 %v14107, %v14120
    %14122 = vdwg.mxu0
    %14123 = vmatpush.bf16.msra.mxu0 %v13543
    %14124 = vmatpush.bf16.msra.mxu0 %v13539
    %14125 = vmatpush.bf16.msra.mxu0 %v13535
    %14126 = vmatpush.bf16.msra.mxu0 %v13531
    %14127 = vmatpush.bf16.msra.mxu0 %v13527
    %14128 = vmatpush.bf16.msra.mxu0 %v13523
    %14129 = vmatpush.bf16.msra.mxu0 %v13519
    %14130 = vmatpush.bf16.msra.mxu0 %v13515
    %14131 = vmatmul.bf16.gmra.mxu0 %v12254
    %v14132 = vpop.f32.mrf.mxu0
    %v14133 = vadd.f32 %v14119, %v14132
    %v14134 = vpop.f32.mrf.mxu0
    %v14135 = vadd.f32 %v14121, %v14134
    %14136 = vdwg.mxu0
    %14137 = vmatpush.bf16.msra.mxu0 %v13320
    %14138 = vmatpush.bf16.msra.mxu0 %v13316
    %14139 = vmatpush.bf16.msra.mxu0 %v13312
    %14140 = vmatpush.bf16.msra.mxu0 %v13308
    %14141 = vmatpush.bf16.msra.mxu0 %v13304
    %14142 = vmatpush.bf16.msra.mxu0 %v13300
    %14143 = vmatpush.bf16.msra.mxu0 %v13296
    %14144 = vmatpush.bf16.msra.mxu0 %v13292
    %14145 = vmatmul.bf16.gmra.mxu0 %v12247
    %v14146 = vpop.f32.mrf.mxu0
    %v14147 = vadd.f32 %v12516, %v14146
    %v14148 = vpop.f32.mrf.mxu0
    %v14149 = vadd.f32 %v12516, %v14148
    %14150 = vdwg.mxu0
    %14151 = vmatpush.bf16.msra.mxu0 %v13352
    %14152 = vmatpush.bf16.msra.mxu0 %v13348
    %14153 = vmatpush.bf16.msra.mxu0 %v13344
    %14154 = vmatpush.bf16.msra.mxu0 %v13340
    %14155 = vmatpush.bf16.msra.mxu0 %v13336
    %14156 = vmatpush.bf16.msra.mxu0 %v13332
    %14157 = vmatpush.bf16.msra.mxu0 %v13328
    %14158 = vmatpush.bf16.msra.mxu0 %v13324
    %14159 = vmatmul.bf16.gmra.mxu0 %v12248
    %v14160 = vpop.f32.mrf.mxu0
    %v14161 = vadd.f32 %v14147, %v14160
    %v14162 = vpop.f32.mrf.mxu0
    %v14163 = vadd.f32 %v14149, %v14162
    %14164 = vdwg.mxu0
    %14165 = vmatpush.bf16.msra.mxu0 %v13384
    %14166 = vmatpush.bf16.msra.mxu0 %v13380
    %14167 = vmatpush.bf16.msra.mxu0 %v13376
    %14168 = vmatpush.bf16.msra.mxu0 %v13372
    %14169 = vmatpush.bf16.msra.mxu0 %v13368
    %14170 = vmatpush.bf16.msra.mxu0 %v13364
    %14171 = vmatpush.bf16.msra.mxu0 %v13360
    %14172 = vmatpush.bf16.msra.mxu0 %v13356
    %14173 = vmatmul.bf16.gmra.mxu0 %v12249
    %v14174 = vpop.f32.mrf.mxu0
    %v14175 = vadd.f32 %v14161, %v14174
    %v14176 = vpop.f32.mrf.mxu0
    %v14177 = vadd.f32 %v14163, %v14176
    %14178 = vdwg.mxu0
    %14179 = vmatpush.bf16.msra.mxu0 %v13416
    %14180 = vmatpush.bf16.msra.mxu0 %v13412
    %14181 = vmatpush.bf16.msra.mxu0 %v13408
    %14182 = vmatpush.bf16.msra.mxu0 %v13404
    %14183 = vmatpush.bf16.msra.mxu0 %v13400
    %14184 = vmatpush.bf16.msra.mxu0 %v13396
    %14185 = vmatpush.bf16.msra.mxu0 %v13392
    %14186 = vmatpush.bf16.msra.mxu0 %v13388
    %14187 = vmatmul.bf16.gmra.mxu0 %v12250
    %v14188 = vpop.f32.mrf.mxu0
    %v14189 = vadd.f32 %v14175, %v14188
    %v14190 = vpop.f32.mrf.mxu0
    %v14191 = vadd.f32 %v14177, %v14190
    %14192 = vdwg.mxu0
    %14193 = vmatpush.bf16.msra.mxu0 %v13448
    %14194 = vmatpush.bf16.msra.mxu0 %v13444
    %14195 = vmatpush.bf16.msra.mxu0 %v13440
    %14196 = vmatpush.bf16.msra.mxu0 %v13436
    %14197 = vmatpush.bf16.msra.mxu0 %v13432
    %14198 = vmatpush.bf16.msra.mxu0 %v13428
    %14199 = vmatpush.bf16.msra.mxu0 %v13424
    %14200 = vmatpush.bf16.msra.mxu0 %v13420
    %14201 = vmatmul.bf16.gmra.mxu0 %v12251
    %v14202 = vpop.f32.mrf.mxu0
    %v14203 = vadd.f32 %v14189, %v14202
    %v14204 = vpop.f32.mrf.mxu0
    %v14205 = vadd.f32 %v14191, %v14204
    %14206 = vdwg.mxu0
    %14207 = vmatpush.bf16.msra.mxu0 %v13480
    %14208 = vmatpush.bf16.msra.mxu0 %v13476
    %14209 = vmatpush.bf16.msra.mxu0 %v13472
    %14210 = vmatpush.bf16.msra.mxu0 %v13468
    %14211 = vmatpush.bf16.msra.mxu0 %v13464
    %14212 = vmatpush.bf16.msra.mxu0 %v13460
    %14213 = vmatpush.bf16.msra.mxu0 %v13456
    %14214 = vmatpush.bf16.msra.mxu0 %v13452
    %14215 = vmatmul.bf16.gmra.mxu0 %v12252
    %v14216 = vpop.f32.mrf.mxu0
    %v14217 = vadd.f32 %v14203, %v14216
    %v14218 = vpop.f32.mrf.mxu0
    %v14219 = vadd.f32 %v14205, %v14218
    %14220 = vdwg.mxu0
    %14221 = vmatpush.bf16.msra.mxu0 %v13512
    %14222 = vmatpush.bf16.msra.mxu0 %v13508
    %14223 = vmatpush.bf16.msra.mxu0 %v13504
    %14224 = vmatpush.bf16.msra.mxu0 %v13500
    %14225 = vmatpush.bf16.msra.mxu0 %v13496
    %14226 = vmatpush.bf16.msra.mxu0 %v13492
    %14227 = vmatpush.bf16.msra.mxu0 %v13488
    %14228 = vmatpush.bf16.msra.mxu0 %v13484
    %14229 = vmatmul.bf16.gmra.mxu0 %v12253
    %v14230 = vpop.f32.mrf.mxu0
    %v14231 = vadd.f32 %v14217, %v14230
    %v14232 = vpop.f32.mrf.mxu0
    %v14233 = vadd.f32 %v14219, %v14232
    %14234 = vdwg.mxu0
    %14235 = vmatpush.bf16.msra.mxu0 %v13544
    %14236 = vmatpush.bf16.msra.mxu0 %v13540
    %14237 = vmatpush.bf16.msra.mxu0 %v13536
    %14238 = vmatpush.bf16.msra.mxu0 %v13532
    %14239 = vmatpush.bf16.msra.mxu0 %v13528
    %14240 = vmatpush.bf16.msra.mxu0 %v13524
    %14241 = vmatpush.bf16.msra.mxu0 %v13520
    %14242 = vmatpush.bf16.msra.mxu0 %v13516
    %14243 = vmatmul.bf16.gmra.mxu0 %v12254
    %v14244 = vpop.f32.mrf.mxu0
    %v14245 = vadd.f32 %v14231, %v14244
    %v14246 = vpop.f32.mrf.mxu0
    %v14247 = vadd.f32 %v14233, %v14246
    %14248 = vdwg.mxu0
    %v14249 = vmax.f32 %v13909, 0.0
    %v14250 = vmax.f32 %v14021, 0.0
    %v14251 = vmax.f32 %v14133, 0.0
    %v14252 = vmax.f32 %v14245, 0.0
    %v14253 = vmax.f32 %v13911, 0.0
    %v14254 = vmax.f32 %v14023, 0.0
    %v14255 = vmax.f32 %v14135, 0.0
    %v14256 = vmax.f32 %v14247, 0.0
    %v14257 = vpack.c.bf16 %v14253, %v14249
    %v14258 = vpack.c.bf16 %v14254, %v14250
    %v14259 = vpack.c.bf16 %v14255, %v14251
    %v14260 = vpack.c.bf16 %v14256, %v14252
    %v14261 = vld [vmem:[#allocation11] sm:$0xff]
    %v14262 = vld [vmem:[#allocation11 + $0x8] sm:$0xff]
    %v14263 = vld [vmem:[#allocation11 + $0x10] sm:$0xff]
    %v14264 = vld [vmem:[#allocation11 + $0x18] sm:$0xff]
    %v14265 = vld [vmem:[#allocation11 + $0x20] sm:$0xff]
    %v14266 = vld [vmem:[#allocation11 + $0x28] sm:$0xff]
    %v14267 = vld [vmem:[#allocation11 + $0x30] sm:$0xff]
    %v14268 = vld [vmem:[#allocation11 + $0x38] sm:$0xff]
    %v14269 = vld [vmem:[#allocation11 + $0x40] sm:$0xff]
    %v14270 = vld [vmem:[#allocation11 + $0x48] sm:$0xff]
    %v14271 = vld [vmem:[#allocation11 + $0x50] sm:$0xff]
    %v14272 = vld [vmem:[#allocation11 + $0x58] sm:$0xff]
    %v14273 = vld [vmem:[#allocation11 + $0x60] sm:$0xff]
    %v14274 = vld [vmem:[#allocation11 + $0x68] sm:$0xff]
    %v14275 = vld [vmem:[#allocation11 + $0x70] sm:$0xff]
    %v14276 = vld [vmem:[#allocation11 + $0x78] sm:$0xff]
    %v14277 = vld [vmem:[#allocation11 + $0x80] sm:$0xff]
    %v14278 = vld [vmem:[#allocation11 + $0x88] sm:$0xff]
    %v14279 = vld [vmem:[#allocation11 + $0x90] sm:$0xff]
    %v14280 = vld [vmem:[#allocation11 + $0x98] sm:$0xff]
    %v14281 = vld [vmem:[#allocation11 + $0xa0] sm:$0xff]
    %v14282 = vld [vmem:[#allocation11 + $0xa8] sm:$0xff]
    %v14283 = vld [vmem:[#allocation11 + $0xb0] sm:$0xff]
    %v14284 = vld [vmem:[#allocation11 + $0xb8] sm:$0xff]
    %v14285 = vld [vmem:[#allocation11 + $0xc0] sm:$0xff]
    %v14286 = vld [vmem:[#allocation11 + $0xc8] sm:$0xff]
    %v14287 = vld [vmem:[#allocation11 + $0xd0] sm:$0xff]
    %v14288 = vld [vmem:[#allocation11 + $0xd8] sm:$0xff]
    %v14289 = vld [vmem:[#allocation11 + $0xe0] sm:$0xff]
    %v14290 = vld [vmem:[#allocation11 + $0xe8] sm:$0xff]
    %v14291 = vld [vmem:[#allocation11 + $0xf0] sm:$0xff]
    %v14292 = vld [vmem:[#allocation11 + $0xf8] sm:$0xff]
    %v14293 = vld [vmem:[#allocation11 + $0x100] sm:$0xff]
    %v14294 = vld [vmem:[#allocation11 + $0x108] sm:$0xff]
    %v14295 = vld [vmem:[#allocation11 + $0x110] sm:$0xff]
    %v14296 = vld [vmem:[#allocation11 + $0x118] sm:$0xff]
    %v14297 = vld [vmem:[#allocation11 + $0x120] sm:$0xff]
    %v14298 = vld [vmem:[#allocation11 + $0x128] sm:$0xff]
    %v14299 = vld [vmem:[#allocation11 + $0x130] sm:$0xff]
    %v14300 = vld [vmem:[#allocation11 + $0x138] sm:$0xff]
    %v14301 = vld [vmem:[#allocation11 + $0x140] sm:$0xff]
    %v14302 = vld [vmem:[#allocation11 + $0x148] sm:$0xff]
    %v14303 = vld [vmem:[#allocation11 + $0x150] sm:$0xff]
    %v14304 = vld [vmem:[#allocation11 + $0x158] sm:$0xff]
    %v14305 = vld [vmem:[#allocation11 + $0x160] sm:$0xff]
    %v14306 = vld [vmem:[#allocation11 + $0x168] sm:$0xff]
    %v14307 = vld [vmem:[#allocation11 + $0x170] sm:$0xff]
    %v14308 = vld [vmem:[#allocation11 + $0x178] sm:$0xff]
    %v14309 = vld [vmem:[#allocation11 + $0x180] sm:$0xff]
    %v14310 = vld [vmem:[#allocation11 + $0x188] sm:$0xff]
    %v14311 = vld [vmem:[#allocation11 + $0x190] sm:$0xff]
    %v14312 = vld [vmem:[#allocation11 + $0x198] sm:$0xff]
    %v14313 = vld [vmem:[#allocation11 + $0x1a0] sm:$0xff]
    %v14314 = vld [vmem:[#allocation11 + $0x1a8] sm:$0xff]
    %v14315 = vld [vmem:[#allocation11 + $0x1b0] sm:$0xff]
    %v14316 = vld [vmem:[#allocation11 + $0x1b8] sm:$0xff]
    %v14317 = vld [vmem:[#allocation11 + $0x1c0] sm:$0xff]
    %v14318 = vld [vmem:[#allocation11 + $0x1c8] sm:$0xff]
    %v14319 = vld [vmem:[#allocation11 + $0x1d0] sm:$0xff]
    %v14320 = vld [vmem:[#allocation11 + $0x1d8] sm:$0xff]
    %v14321 = vld [vmem:[#allocation11 + $0x1e0] sm:$0xff]
    %v14322 = vld [vmem:[#allocation11 + $0x1e8] sm:$0xff]
    %v14323 = vld [vmem:[#allocation11 + $0x1f0] sm:$0xff]
    %v14324 = vld [vmem:[#allocation11 + $0x1f8] sm:$0xff]
    %v14325 = vld [vmem:[#allocation13] sm:$0x3]
    %v14327 = vperm.slane %v14325, 0
    %v14328 = vperm.slane %v14325, 1
    %v14395 = vunpack.c.l.b16 %v14261
    %v14396 = vunpack.c.h.b16 %v14261
    %v14397 = vunpack.c.l.b16 %v14262
    %v14398 = vunpack.c.h.b16 %v14262
    %v14399 = vunpack.c.l.b16 %v14263
    %v14400 = vunpack.c.h.b16 %v14263
    %v14401 = vunpack.c.l.b16 %v14264
    %v14402 = vunpack.c.h.b16 %v14264
    %v14403 = vunpack.c.l.b16 %v14265
    %v14404 = vunpack.c.h.b16 %v14265
    %v14405 = vunpack.c.l.b16 %v14266
    %v14406 = vunpack.c.h.b16 %v14266
    %v14407 = vunpack.c.l.b16 %v14267
    %v14408 = vunpack.c.h.b16 %v14267
    %v14409 = vunpack.c.l.b16 %v14268
    %v14410 = vunpack.c.h.b16 %v14268
    %v14411 = vunpack.c.l.b16 %v14269
    %v14412 = vunpack.c.h.b16 %v14269
    %v14413 = vunpack.c.l.b16 %v14270
    %v14414 = vunpack.c.h.b16 %v14270
    %v14415 = vunpack.c.l.b16 %v14271
    %v14416 = vunpack.c.h.b16 %v14271
    %v14417 = vunpack.c.l.b16 %v14272
    %v14418 = vunpack.c.h.b16 %v14272
    %v14419 = vunpack.c.l.b16 %v14273
    %v14420 = vunpack.c.h.b16 %v14273
    %v14421 = vunpack.c.l.b16 %v14274
    %v14422 = vunpack.c.h.b16 %v14274
    %v14423 = vunpack.c.l.b16 %v14275
    %v14424 = vunpack.c.h.b16 %v14275
    %v14425 = vunpack.c.l.b16 %v14276
    %v14426 = vunpack.c.h.b16 %v14276
    %v14427 = vunpack.c.l.b16 %v14277
    %v14428 = vunpack.c.h.b16 %v14277
    %v14429 = vunpack.c.l.b16 %v14278
    %v14430 = vunpack.c.h.b16 %v14278
    %v14431 = vunpack.c.l.b16 %v14279
    %v14432 = vunpack.c.h.b16 %v14279
    %v14433 = vunpack.c.l.b16 %v14280
    %v14434 = vunpack.c.h.b16 %v14280
    %v14435 = vunpack.c.l.b16 %v14281
    %v14436 = vunpack.c.h.b16 %v14281
    %v14437 = vunpack.c.l.b16 %v14282
    %v14438 = vunpack.c.h.b16 %v14282
    %v14439 = vunpack.c.l.b16 %v14283
    %v14440 = vunpack.c.h.b16 %v14283
    %v14441 = vunpack.c.l.b16 %v14284
    %v14442 = vunpack.c.h.b16 %v14284
    %v14443 = vunpack.c.l.b16 %v14285
    %v14444 = vunpack.c.h.b16 %v14285
    %v14445 = vunpack.c.l.b16 %v14286
    %v14446 = vunpack.c.h.b16 %v14286
    %v14447 = vunpack.c.l.b16 %v14287
    %v14448 = vunpack.c.h.b16 %v14287
    %v14449 = vunpack.c.l.b16 %v14288
    %v14450 = vunpack.c.h.b16 %v14288
    %v14451 = vunpack.c.l.b16 %v14289
    %v14452 = vunpack.c.h.b16 %v14289
    %v14453 = vunpack.c.l.b16 %v14290
    %v14454 = vunpack.c.h.b16 %v14290
    %v14455 = vunpack.c.l.b16 %v14291
    %v14456 = vunpack.c.h.b16 %v14291
    %v14457 = vunpack.c.l.b16 %v14292
    %v14458 = vunpack.c.h.b16 %v14292
    %v14459 = vunpack.c.l.b16 %v14293
    %v14460 = vunpack.c.h.b16 %v14293
    %v14461 = vunpack.c.l.b16 %v14294
    %v14462 = vunpack.c.h.b16 %v14294
    %v14463 = vunpack.c.l.b16 %v14295
    %v14464 = vunpack.c.h.b16 %v14295
    %v14465 = vunpack.c.l.b16 %v14296
    %v14466 = vunpack.c.h.b16 %v14296
    %v14467 = vunpack.c.l.b16 %v14297
    %v14468 = vunpack.c.h.b16 %v14297
    %v14469 = vunpack.c.l.b16 %v14298
    %v14470 = vunpack.c.h.b16 %v14298
    %v14471 = vunpack.c.l.b16 %v14299
    %v14472 = vunpack.c.h.b16 %v14299
    %v14473 = vunpack.c.l.b16 %v14300
    %v14474 = vunpack.c.h.b16 %v14300
    %v14475 = vunpack.c.l.b16 %v14301
    %v14476 = vunpack.c.h.b16 %v14301
    %v14477 = vunpack.c.l.b16 %v14302
    %v14478 = vunpack.c.h.b16 %v14302
    %v14479 = vunpack.c.l.b16 %v14303
    %v14480 = vunpack.c.h.b16 %v14303
    %v14481 = vunpack.c.l.b16 %v14304
    %v14482 = vunpack.c.h.b16 %v14304
    %v14483 = vunpack.c.l.b16 %v14305
    %v14484 = vunpack.c.h.b16 %v14305
    %v14485 = vunpack.c.l.b16 %v14306
    %v14486 = vunpack.c.h.b16 %v14306
    %v14487 = vunpack.c.l.b16 %v14307
    %v14488 = vunpack.c.h.b16 %v14307
    %v14489 = vunpack.c.l.b16 %v14308
    %v14490 = vunpack.c.h.b16 %v14308
    %v14491 = vunpack.c.l.b16 %v14309
    %v14492 = vunpack.c.h.b16 %v14309
    %v14493 = vunpack.c.l.b16 %v14310
    %v14494 = vunpack.c.h.b16 %v14310
    %v14495 = vunpack.c.l.b16 %v14311
    %v14496 = vunpack.c.h.b16 %v14311
    %v14497 = vunpack.c.l.b16 %v14312
    %v14498 = vunpack.c.h.b16 %v14312
    %v14499 = vunpack.c.l.b16 %v14313
    %v14500 = vunpack.c.h.b16 %v14313
    %v14501 = vunpack.c.l.b16 %v14314
    %v14502 = vunpack.c.h.b16 %v14314
    %v14503 = vunpack.c.l.b16 %v14315
    %v14504 = vunpack.c.h.b16 %v14315
    %v14505 = vunpack.c.l.b16 %v14316
    %v14506 = vunpack.c.h.b16 %v14316
    %v14507 = vunpack.c.l.b16 %v14317
    %v14508 = vunpack.c.h.b16 %v14317
    %v14509 = vunpack.c.l.b16 %v14318
    %v14510 = vunpack.c.h.b16 %v14318
    %v14511 = vunpack.c.l.b16 %v14319
    %v14512 = vunpack.c.h.b16 %v14319
    %v14513 = vunpack.c.l.b16 %v14320
    %v14514 = vunpack.c.h.b16 %v14320
    %v14515 = vunpack.c.l.b16 %v14321
    %v14516 = vunpack.c.h.b16 %v14321
    %v14517 = vunpack.c.l.b16 %v14322
    %v14518 = vunpack.c.h.b16 %v14322
    %v14519 = vunpack.c.l.b16 %v14323
    %v14520 = vunpack.c.h.b16 %v14323
    %v14521 = vunpack.c.l.b16 %v14324
    %v14522 = vunpack.c.h.b16 %v14324
    %v14523 = vpack.c.b16 %v14397, %v14395
    %v14524 = vpack.c.b16 %v14398, %v14396
    %v14525 = vpack.c.b16 %v14401, %v14399
    %v14526 = vpack.c.b16 %v14402, %v14400
    %v14527 = vpack.c.b16 %v14405, %v14403
    %v14528 = vpack.c.b16 %v14406, %v14404
    %v14529 = vpack.c.b16 %v14409, %v14407
    %v14530 = vpack.c.b16 %v14410, %v14408
    %v14531 = vpack.c.b16 %v14413, %v14411
    %v14532 = vpack.c.b16 %v14414, %v14412
    %v14533 = vpack.c.b16 %v14417, %v14415
    %v14534 = vpack.c.b16 %v14418, %v14416
    %v14535 = vpack.c.b16 %v14421, %v14419
    %v14536 = vpack.c.b16 %v14422, %v14420
    %v14537 = vpack.c.b16 %v14425, %v14423
    %v14538 = vpack.c.b16 %v14426, %v14424
    %v14539 = vpack.c.b16 %v14429, %v14427
    %v14540 = vpack.c.b16 %v14430, %v14428
    %v14541 = vpack.c.b16 %v14433, %v14431
    %v14542 = vpack.c.b16 %v14434, %v14432
    %v14543 = vpack.c.b16 %v14437, %v14435
    %v14544 = vpack.c.b16 %v14438, %v14436
    %v14545 = vpack.c.b16 %v14441, %v14439
    %v14546 = vpack.c.b16 %v14442, %v14440
    %v14547 = vpack.c.b16 %v14445, %v14443
    %v14548 = vpack.c.b16 %v14446, %v14444
    %v14549 = vpack.c.b16 %v14449, %v14447
    %v14550 = vpack.c.b16 %v14450, %v14448
    %v14551 = vpack.c.b16 %v14453, %v14451
    %v14552 = vpack.c.b16 %v14454, %v14452
    %v14553 = vpack.c.b16 %v14457, %v14455
    %v14554 = vpack.c.b16 %v14458, %v14456
    %v14555 = vpack.c.b16 %v14461, %v14459
    %v14556 = vpack.c.b16 %v14462, %v14460
    %v14557 = vpack.c.b16 %v14465, %v14463
    %v14558 = vpack.c.b16 %v14466, %v14464
    %v14559 = vpack.c.b16 %v14469, %v14467
    %v14560 = vpack.c.b16 %v14470, %v14468
    %v14561 = vpack.c.b16 %v14473, %v14471
    %v14562 = vpack.c.b16 %v14474, %v14472
    %v14563 = vpack.c.b16 %v14477, %v14475
    %v14564 = vpack.c.b16 %v14478, %v14476
    %v14565 = vpack.c.b16 %v14481, %v14479
    %v14566 = vpack.c.b16 %v14482, %v14480
    %v14567 = vpack.c.b16 %v14485, %v14483
    %v14568 = vpack.c.b16 %v14486, %v14484
    %v14569 = vpack.c.b16 %v14489, %v14487
    %v14570 = vpack.c.b16 %v14490, %v14488
    %v14571 = vpack.c.b16 %v14493, %v14491
    %v14572 = vpack.c.b16 %v14494, %v14492
    %v14573 = vpack.c.b16 %v14497, %v14495
    %v14574 = vpack.c.b16 %v14498, %v14496
    %v14575 = vpack.c.b16 %v14501, %v14499
    %v14576 = vpack.c.b16 %v14502, %v14500
    %v14577 = vpack.c.b16 %v14505, %v14503
    %v14578 = vpack.c.b16 %v14506, %v14504
    %v14579 = vpack.c.b16 %v14509, %v14507
    %v14580 = vpack.c.b16 %v14510, %v14508
    %v14581 = vpack.c.b16 %v14513, %v14511
    %v14582 = vpack.c.b16 %v14514, %v14512
    %v14583 = vpack.c.b16 %v14517, %v14515
    %v14584 = vpack.c.b16 %v14518, %v14516
    %v14585 = vpack.c.b16 %v14521, %v14519
    %v14586 = vpack.c.b16 %v14522, %v14520
    %14651 = vmatpush.bf16.msra.mxu0 %v14537
    %14652 = vmatpush.bf16.msra.mxu0 %v14535
    %14653 = vmatpush.bf16.msra.mxu0 %v14533
    %14654 = vmatpush.bf16.msra.mxu0 %v14531
    %14655 = vmatpush.bf16.msra.mxu0 %v14529
    %14656 = vmatpush.bf16.msra.mxu0 %v14527
    %14657 = vmatpush.bf16.msra.mxu0 %v14525
    %14658 = vmatpush.bf16.msra.mxu0 %v14523
    %14659 = vmatmul.bf16.gmra.mxu0 %v14257
    %v14660 = vpop.f32.mrf.mxu0
    %v14661 = vadd.f32 %v14327, %v14660
    %v14662 = vpop.f32.mrf.mxu0
    %v14663 = vadd.f32 %v14327, %v14662
    %14664 = vdwg.mxu0
    %14665 = vmatpush.bf16.msra.mxu0 %v14553
    %14666 = vmatpush.bf16.msra.mxu0 %v14551
    %14667 = vmatpush.bf16.msra.mxu0 %v14549
    %14668 = vmatpush.bf16.msra.mxu0 %v14547
    %14669 = vmatpush.bf16.msra.mxu0 %v14545
    %14670 = vmatpush.bf16.msra.mxu0 %v14543
    %14671 = vmatpush.bf16.msra.mxu0 %v14541
    %14672 = vmatpush.bf16.msra.mxu0 %v14539
    %14673 = vmatmul.bf16.gmra.mxu0 %v14258
    %v14674 = vpop.f32.mrf.mxu0
    %v14675 = vadd.f32 %v14661, %v14674
    %v14676 = vpop.f32.mrf.mxu0
    %v14677 = vadd.f32 %v14663, %v14676
    %14678 = vdwg.mxu0
    %14679 = vmatpush.bf16.msra.mxu0 %v14569
    %14680 = vmatpush.bf16.msra.mxu0 %v14567
    %14681 = vmatpush.bf16.msra.mxu0 %v14565
    %14682 = vmatpush.bf16.msra.mxu0 %v14563
    %14683 = vmatpush.bf16.msra.mxu0 %v14561
    %14684 = vmatpush.bf16.msra.mxu0 %v14559
    %14685 = vmatpush.bf16.msra.mxu0 %v14557
    %14686 = vmatpush.bf16.msra.mxu0 %v14555
    %14687 = vmatmul.bf16.gmra.mxu0 %v14259
    %v14688 = vpop.f32.mrf.mxu0
    %v14689 = vadd.f32 %v14675, %v14688
    %v14690 = vpop.f32.mrf.mxu0
    %v14691 = vadd.f32 %v14677, %v14690
    %14692 = vdwg.mxu0
    %14693 = vmatpush.bf16.msra.mxu0 %v14585
    %14694 = vmatpush.bf16.msra.mxu0 %v14583
    %14695 = vmatpush.bf16.msra.mxu0 %v14581
    %14696 = vmatpush.bf16.msra.mxu0 %v14579
    %14697 = vmatpush.bf16.msra.mxu0 %v14577
    %14698 = vmatpush.bf16.msra.mxu0 %v14575
    %14699 = vmatpush.bf16.msra.mxu0 %v14573
    %14700 = vmatpush.bf16.msra.mxu0 %v14571
    %14701 = vmatmul.bf16.gmra.mxu0 %v14260
    %v14702 = vpop.f32.mrf.mxu0
    %v14703 = vadd.f32 %v14689, %v14702
    %v14704 = vpop.f32.mrf.mxu0
    %v14705 = vadd.f32 %v14691, %v14704
    %14706 = vdwg.mxu0
    %14707 = vmatpush.bf16.msra.mxu0 %v14538
    %14708 = vmatpush.bf16.msra.mxu0 %v14536
    %14709 = vmatpush.bf16.msra.mxu0 %v14534
    %14710 = vmatpush.bf16.msra.mxu0 %v14532
    %14711 = vmatpush.bf16.msra.mxu0 %v14530
    %14712 = vmatpush.bf16.msra.mxu0 %v14528
    %14713 = vmatpush.bf16.msra.mxu0 %v14526
    %14714 = vmatpush.bf16.msra.mxu0 %v14524
    %14715 = vmatmul.bf16.gmra.mxu0 %v14257
    %v14716 = vpop.f32.mrf.mxu0
    %v14717 = vadd.f32 %v14328, %v14716
    %v14718 = vpop.f32.mrf.mxu0
    %v14719 = vadd.f32 %v14328, %v14718
    %14720 = vdwg.mxu0
    %14721 = vmatpush.bf16.msra.mxu0 %v14554
    %14722 = vmatpush.bf16.msra.mxu0 %v14552
    %14723 = vmatpush.bf16.msra.mxu0 %v14550
    %14724 = vmatpush.bf16.msra.mxu0 %v14548
    %14725 = vmatpush.bf16.msra.mxu0 %v14546
    %14726 = vmatpush.bf16.msra.mxu0 %v14544
    %14727 = vmatpush.bf16.msra.mxu0 %v14542
    %14728 = vmatpush.bf16.msra.mxu0 %v14540
    %14729 = vmatmul.bf16.gmra.mxu0 %v14258
    %v14730 = vpop.f32.mrf.mxu0
    %v14731 = vadd.f32 %v14717, %v14730
    %v14732 = vpop.f32.mrf.mxu0
    %v14733 = vadd.f32 %v14719, %v14732
    %14734 = vdwg.mxu0
    %14735 = vmatpush.bf16.msra.mxu0 %v14570
    %14736 = vmatpush.bf16.msra.mxu0 %v14568
    %14737 = vmatpush.bf16.msra.mxu0 %v14566
    %14738 = vmatpush.bf16.msra.mxu0 %v14564
    %14739 = vmatpush.bf16.msra.mxu0 %v14562
    %14740 = vmatpush.bf16.msra.mxu0 %v14560
    %14741 = vmatpush.bf16.msra.mxu0 %v14558
    %14742 = vmatpush.bf16.msra.mxu0 %v14556
    %14743 = vmatmul.bf16.gmra.mxu0 %v14259
    %v14744 = vpop.f32.mrf.mxu0
    %v14745 = vadd.f32 %v14731, %v14744
    %v14746 = vpop.f32.mrf.mxu0
    %v14747 = vadd.f32 %v14733, %v14746
    %14748 = vdwg.mxu0
    %14749 = vmatpush.bf16.msra.mxu0 %v14586
    %14750 = vmatpush.bf16.msra.mxu0 %v14584
    %14751 = vmatpush.bf16.msra.mxu0 %v14582
    %14752 = vmatpush.bf16.msra.mxu0 %v14580
    %14753 = vmatpush.bf16.msra.mxu0 %v14578
    %14754 = vmatpush.bf16.msra.mxu0 %v14576
    %14755 = vmatpush.bf16.msra.mxu0 %v14574
    %14756 = vmatpush.bf16.msra.mxu0 %v14572
    %14757 = vmatmul.bf16.gmra.mxu0 %v14260
    %v14758 = vpop.f32.mrf.mxu0
    %v14759 = vadd.f32 %v14745, %v14758
    %v14760 = vpop.f32.mrf.mxu0
    %v14761 = vadd.f32 %v14747, %v14760
    %14762 = vdwg.mxu0
    %v14763 = vmax.f32 %v14703, 0.0
    %v14764 = vmax.f32 %v14759, 0.0
    %v14765 = vmax.f32 %v14705, 0.0
    %v14766 = vmax.f32 %v14761, 0.0
    %v14767 = vpack.c.bf16 %v14765, %v14763
    %v14768 = vpack.c.bf16 %v14766, %v14764
    %v14769 = vld [vmem:[#allocation14] sm:$0xf]
    %v14770 = vld [vmem:[#allocation14 + $0x4] sm:$0xf]
    %v14771 = vld [vmem:[#allocation14 + $0x8] sm:$0xf]
    %v14772 = vld [vmem:[#allocation14 + $0xc] sm:$0xf]
    %v14773 = vld [vmem:[#allocation14 + $0x10] sm:$0xf]
    %v14774 = vld [vmem:[#allocation14 + $0x14] sm:$0xf]
    %v14775 = vld [vmem:[#allocation14 + $0x18] sm:$0xf]
    %v14776 = vld [vmem:[#allocation14 + $0x1c] sm:$0xf]
    %v14777 = vld [vmem:[#allocation14 + $0x20] sm:$0xf]
    %v14778 = vld [vmem:[#allocation14 + $0x24] sm:$0xf]
    %v14779 = vld [vmem:[#allocation14 + $0x28] sm:$0xf]
    %v14780 = vld [vmem:[#allocation14 + $0x2c] sm:$0xf]
    %v14781 = vld [vmem:[#allocation14 + $0x30] sm:$0xf]
    %v14782 = vld [vmem:[#allocation14 + $0x34] sm:$0xf]
    %v14783 = vld [vmem:[#allocation14 + $0x38] sm:$0xf]
    %v14784 = vld [vmem:[#allocation14 + $0x3c] sm:$0xf]
    %v14785 = vld [vmem:[#allocation14 + $0x40] sm:$0xf]
    %v14786 = vld [vmem:[#allocation14 + $0x44] sm:$0xf]
    %v14787 = vld [vmem:[#allocation14 + $0x48] sm:$0xf]
    %v14788 = vld [vmem:[#allocation14 + $0x4c] sm:$0xf]
    %v14789 = vld [vmem:[#allocation14 + $0x50] sm:$0xf]
    %v14790 = vld [vmem:[#allocation14 + $0x54] sm:$0xf]
    %v14791 = vld [vmem:[#allocation14 + $0x58] sm:$0xf]
    %v14792 = vld [vmem:[#allocation14 + $0x5c] sm:$0xf]
    %v14793 = vld [vmem:[#allocation14 + $0x60] sm:$0xf]
    %v14794 = vld [vmem:[#allocation14 + $0x64] sm:$0xf]
    %v14795 = vld [vmem:[#allocation14 + $0x68] sm:$0xf]
    %v14796 = vld [vmem:[#allocation14 + $0x6c] sm:$0xf]
    %v14797 = vld [vmem:[#allocation14 + $0x70] sm:$0xf]
    %v14798 = vld [vmem:[#allocation14 + $0x74] sm:$0xf]
    %v14799 = vld [vmem:[#allocation14 + $0x78] sm:$0xf]
    %v14800 = vld [vmem:[#allocation14 + $0x7c] sm:$0xf]
    %v14801 = vld [vmem:[#allocation16] sm:$0x1]
    %v14803 = vperm.slane %v14801, 0
    %v14837 = vunpack.c.l.b16 %v14769
    %v14838 = vunpack.c.l.b16 %v14770
    %v14839 = vunpack.c.l.b16 %v14771
    %v14840 = vunpack.c.l.b16 %v14772
    %v14841 = vunpack.c.l.b16 %v14773
    %v14842 = vunpack.c.l.b16 %v14774
    %v14843 = vunpack.c.l.b16 %v14775
    %v14844 = vunpack.c.l.b16 %v14776
    %v14845 = vunpack.c.l.b16 %v14777
    %v14846 = vunpack.c.l.b16 %v14778
    %v14847 = vunpack.c.l.b16 %v14779
    %v14848 = vunpack.c.l.b16 %v14780
    %v14849 = vunpack.c.l.b16 %v14781
    %v14850 = vunpack.c.l.b16 %v14782
    %v14851 = vunpack.c.l.b16 %v14783
    %v14852 = vunpack.c.l.b16 %v14784
    %v14853 = vunpack.c.l.b16 %v14785
    %v14854 = vunpack.c.l.b16 %v14786
    %v14855 = vunpack.c.l.b16 %v14787
    %v14856 = vunpack.c.l.b16 %v14788
    %v14857 = vunpack.c.l.b16 %v14789
    %v14858 = vunpack.c.l.b16 %v14790
    %v14859 = vunpack.c.l.b16 %v14791
    %v14860 = vunpack.c.l.b16 %v14792
    %v14861 = vunpack.c.l.b16 %v14793
    %v14862 = vunpack.c.l.b16 %v14794
    %v14863 = vunpack.c.l.b16 %v14795
    %v14864 = vunpack.c.l.b16 %v14796
    %v14865 = vunpack.c.l.b16 %v14797
    %v14866 = vunpack.c.l.b16 %v14798
    %v14867 = vunpack.c.l.b16 %v14799
    %v14868 = vunpack.c.l.b16 %v14800
    %v14869 = vpack.c.b16 %v14838, %v14837
    %v14870 = vpack.c.b16 %v14840, %v14839
    %v14871 = vpack.c.b16 %v14842, %v14841
    %v14872 = vpack.c.b16 %v14844, %v14843
    %v14873 = vpack.c.b16 %v14846, %v14845
    %v14874 = vpack.c.b16 %v14848, %v14847
    %v14875 = vpack.c.b16 %v14850, %v14849
    %v14876 = vpack.c.b16 %v14852, %v14851
    %v14877 = vpack.c.b16 %v14854, %v14853
    %v14878 = vpack.c.b16 %v14856, %v14855
    %v14879 = vpack.c.b16 %v14858, %v14857
    %v14880 = vpack.c.b16 %v14860, %v14859
    %v14881 = vpack.c.b16 %v14862, %v14861
    %v14882 = vpack.c.b16 %v14864, %v14863
    %v14883 = vpack.c.b16 %v14866, %v14865
    %v14884 = vpack.c.b16 %v14868, %v14867
    %14901 = vmatpush.bf16.msra.mxu0 %v14876
    %14902 = vmatpush.bf16.msra.mxu0 %v14875
    %14903 = vmatpush.bf16.msra.mxu0 %v14874
    %14904 = vmatpush.bf16.msra.mxu0 %v14873
    %14905 = vmatpush.bf16.msra.mxu0 %v14872
    %14906 = vmatpush.bf16.msra.mxu0 %v14871
    %14907 = vmatpush.bf16.msra.mxu0 %v14870
    %14908 = vmatpush.bf16.msra.mxu0 %v14869
    %14909 = vmatmul.bf16.gmra.mxu0 %v14767
    %v14910 = vpop.f32.mrf.mxu0
    %v14911 = vadd.f32 %v14803, %v14910
    %v14912 = vpop.f32.mrf.mxu0
    %v14913 = vadd.f32 %v14803, %v14912
    %14914 = vdwg.mxu0
    %14915 = vmatpush.bf16.msra.mxu0 %v14884
    %14916 = vmatpush.bf16.msra.mxu0 %v14883
    %14917 = vmatpush.bf16.msra.mxu0 %v14882
    %14918 = vmatpush.bf16.msra.mxu0 %v14881
    %14919 = vmatpush.bf16.msra.mxu0 %v14880
    %14920 = vmatpush.bf16.msra.mxu0 %v14879
    %14921 = vmatpush.bf16.msra.mxu0 %v14878
    %14922 = vmatpush.bf16.msra.mxu0 %v14877
    %14923 = vmatmul.bf16.gmra.mxu0 %v14768
    %v14924 = vpop.f32.mrf.mxu0
    %v14925 = vadd.f32 %v14911, %v14924
    %v14926 = vpop.f32.mrf.mxu0
    %v14927 = vadd.f32 %v14913, %v14926
    %14928 = vdwg.mxu0
    %v14929 = vxor.u32 %v14925, 2147483648
    %v14930 = vxor.u32 %v14927, 2147483648
    %v14931 = vmul.f32 %v14929, 1.442695
    %v14932 = vpow.pop %v14931
    %v14933 = vmul.f32 %v14930, 1.442695
    %v14934 = vpow.pop %v14933
    %v14935 = vadd.f32 %v14932, 1.0
    %v14936 = vadd.f32 %v14934, 1.0
    %v14937 = vrcp.pop %v14935
    %v14938 = vmul.f32 %v14935, %v14937
    %v14939 = vsub.f32 1.0, %v14938
    %v14940 = vmul.f32 %v14937, %v14939
    %v14941 = vadd.f32 %v14937, %v14940
    %vm14942 = vweird.f32 %v14935
    %vm14943 = vweird.f32 %v14937
    %vm14944 = vmor %vm14942, %vm14943
    %v14945 = vsel %vm14944, %v14937, %v14941
    %v14946 = vand.u32 2147483647, %v14935
    %vm14947 = vcmp.eq.f32.partialorder %v14946, 8.507059e+37
    %v14948 = vand.u32 %v14935, 2147483648
    %v14949 = vor.u32 1.1754944e-38, %v14948
    %v14950 = vsel %vm14947, %v14949, %v14945
    %v14951 = vmul.f32 1.0, %v14950
    %v14952 = vrcp.pop %v14936
    %v14953 = vmul.f32 %v14936, %v14952
    %v14954 = vsub.f32 1.0, %v14953
    %v14955 = vmul.f32 %v14952, %v14954
    %v14956 = vadd.f32 %v14952, %v14955
    %vm14957 = vweird.f32 %v14936
    %vm14958 = vweird.f32 %v14952
    %vm14959 = vmor %vm14957, %vm14958
    %v14960 = vsel %vm14959, %v14952, %v14956
    %v14961 = vand.u32 2147483647, %v14936
    %vm14962 = vcmp.eq.f32.partialorder %v14961, 8.507059e+37
    %v14963 = vand.u32 %v14936, 2147483648
    %v14964 = vor.u32 1.1754944e-38, %v14963
    %v14965 = vsel %vm14962, %v14964, %v14960
    %v14966 = vmul.f32 1.0, %v14965
    %14967 = vst [vmem:[#allocation17] sm:$0xff] %v14951
    %14968 = vst [vmem:[#allocation17 + $0x8] sm:$0xff] %v14966
    // Predicated region
    $region74: #{tpu_custom_call.1} parent=1 // pred_check
      _
    $region75: #{tpu_custom_call.1} parent=1 // pred_check_branch
      %14970 = sbr.rel (0) target = $region77
    $region76: #{tpu_custom_call.1} parent=1 // pred_region
      %14972 = vsyncadd [#allocation4], 0
      %s14973 = sshll.u32 [#allocation17], 4
      %s14974 = int_to_ptr.vmem [resolvable:$true] %s14973
      %s14975 = sshll.u32 %s9, 4
      %s14976 = int_to_ptr.hbm [resolvable:$true] %s14975
      %14981 = dma.vmem_to_hbm [thread:$0]  %s14974, 256, %s14976, [#allocation4], 128, 128, 8
    $region77: #{tpu_custom_call.1} parent=1 // pred_fallthru
      _
    // Predicated region
    $region78: #{tpu_custom_call.1} parent=1 // pred_check
      _
    $region79: #{tpu_custom_call.1} parent=1 // pred_check_branch
      %14983 = sbr.rel (0) target = $region81
    $region80: #{tpu_custom_call.1} parent=1 // pred_region
      %14985 = dma.done [#allocation4], 256
    $region81: #{tpu_custom_call.1} parent=1 // pred_fallthru
      _
    %14986 = vsyncpa [#allocation3], 1
    %14987 = vsyncpa [#allocation6], 1
    %14988 = vsyncpa [#allocation9], 1
    %14989 = vsyncpa [#allocation12], 1
    %14990 = vsyncpa [#allocation15], 1
    %14991 = vsyncpa [#allocation4], 1

</llo_original>
